<compile_context>
chip_gen: v6e
topology: v6e:2x2x1
jax: 0.10.0
libtpu: 0.0.40
codegen_flags: <defaults>
</compile_context>

<pallas_src>
import math

import jax
import jax.numpy as jnp
from jax import lax
from jax.experimental import pallas as pl
from jax.experimental.pallas import tpu as pltpu


def _bottleneck_kernel(x_ref, w1_ref, b1_ref, w2_ref, b2_ref, w3_ref, b3_ref,
                       o_ref, padh_ref, acc_ref):
    """Nb images per grid step; everything resident in VMEM.

    x_ref   : (Nb, H, W, Cin)      bf16  input tile (NHWC)
    w1_ref  : (Cin, Cw)            bf16  1x1 conv, BN1 scale folded in
    w2_ref  : (3, 3*Cw, Cw)        bf16  3x3 taps (kh, kw*Ci + ci, co), BN2 folded
    w3_ref  : (Cw, Cout)           bf16  1x1 conv, BN3 scale folded in
    b*_ref  : (1, C)               f32   folded BN biases
    o_ref   : (Nb, H, W, Cout)     bf16  output tile
    padh_ref: (Nb, H+2, W, 3*Cw)   bf16  per-image H-padded W-im2col of conv2 in
    acc_ref : (Nb*H*W, Cw)         f32   conv2 accumulator
    """
    Nb, H, W, Cin = x_ref.shape
    Cw = w1_ref.shape[1]
    Cout = w3_ref.shape[1]
    M = Nb * H * W

    # ---- conv1 (1x1) + bn1 + relu : one MXU matmul over channels -----------
    xb = x_ref[...].reshape(M, Cin)                       # bf16, no cast
    y1 = jnp.dot(xb, w1_ref[...], preferred_element_type=jnp.float32)
    y1 = jnp.maximum(y1 + b1_ref[...], 0.0).reshape(Nb * H, W, Cw)   # f32

    # ---- conv2 (3x3, pad=1, stride=1) + bn2 + relu --------------------------
    # Column (dx) shifts via XLU roll + small (W, Cw) edge mask broadcast over
    # the leading (Nb*H) dim: no full-tile int32 iota, no unaligned copies.
    col = lax.broadcasted_iota(jnp.int32, (W, Cw), 0)
    left = jnp.where(col == 0, 0.0, pltpu.roll(y1, shift=1, axis=1))
    right = jnp.where(col == W - 1, 0.0, pltpu.roll(y1, shift=W - 1, axis=1))
    # TODO(synk): pad Cw to a multiple of 128 in the wrapper so this concat is
    # vreg-granular and the conv1/conv2 MXU N-dim is full on v6e/v7x.
    cols = jnp.concatenate([left, y1, right], axis=2).astype(jnp.bfloat16)

    # Row (dy) shifts via a per-image H-padded scratch; dim-1 slices are
    # aligned, copy-free views.
    zrow = jnp.zeros((Nb, 1, W, 3 * Cw), jnp.bfloat16)
    padh_ref[:, 0:1] = zrow                 # re-zero 1-row halos each step
    padh_ref[:, H + 1:H + 2] = zrow
    padh_ref[:, 1:H + 1] = cols.reshape(Nb, H, W, 3 * Cw)

    # 3 MXU matmuls with contraction depth K = 3*Cw; dy=0 writes directly
    # (no zero-init pass), dy=1,2 accumulate in the VMEM scratch.
    acc_ref[...] = jnp.dot(padh_ref[:, 0:H].reshape(M, 3 * Cw), w2_ref[0],
                           preferred_element_type=jnp.float32)
    for dy in (1, 2):
        acc_ref[...] += jnp.dot(padh_ref[:, dy:dy + H].reshape(M, 3 * Cw),
                                w2_ref[dy], preferred_element_type=jnp.float32)
    y2 = jnp.maximum(acc_ref[...] + b2_ref[...], 0.0)     # (M, Cw) f32

    # ---- conv3 (1x1) + bn3 ---------------------------------------------------
    y3 = jnp.dot(y2.astype(jnp.bfloat16), w3_ref[...],
                 preferred_element_type=jnp.float32) + b3_ref[...]

    # ---- residual add (downsample=None -> identity) + relu -------------------
    # Re-read x late and upcast once instead of carrying an f32 copy of the
    # whole tile through the body.
    res = x_ref[...].reshape(M, Cout).astype(jnp.float32)
    out = jnp.maximum(y3 + res, 0.0)
    o_ref[...] = out.reshape(Nb, H, W, Cout).astype(o_ref.dtype)


def _nbytes(shape, dtype):
    return math.prod(shape) * jnp.dtype(dtype).itemsize


def _chip_vmem_cap_bytes():
    """Physical per-core VMEM minus headroom; conservative default if unknown."""
    cap = 64 << 20                     # v7x per-TensorCore VMEM (smallest gen)
    try:
        info = pltpu.get_tpu_info()
        cap = int(getattr(info, "vmem_capacity_bytes", cap))
    except Exception:
        pass
    return max(cap - (8 << 20), 16 << 20)


def _vmem_estimate(nb, H, W, Cin, Cw, Cout, weight_bytes, weight_bufs):
    bf16, f32 = 2, 4
    tiles = 2 * nb * H * W * (Cin + Cout) * bf16            # in/out double-buffered
    weights = weight_bufs * weight_bytes
    scratch = nb * (H + 2) * W * 3 * Cw * bf16 + nb * H * W * Cw * f32
    # generous estimate of live intermediates (y1/left/right/cols/y2/y3/res)
    live = nb * H * W * (6 * Cw * f32 + 6 * Cw * bf16 + 2 * Cout * f32)
    return tiles + weights + scratch + live


def _pick_batch_block(N, H, W, Cin, Cw, Cout, weight_bytes, cap):
    """Largest Nb <= 8 dividing N whose working set fits the VMEM cap."""
    best = 1
    for nb in range(1, min(N, 8) + 1):
        if N % nb:
            continue
        if _vmem_estimate(nb, H, W, Cin, Cw, Cout, weight_bytes, 2) <= cap:
            best = nb
    return best


def bottleneck_forward(x_nhwc, params):
    """x_nhwc: (N, H, W, Cin), any float dtype. Returns (N, H, W, Cout) bf16."""
    w1, b1, w2, b2, w3, b3 = params
    N, H, W, Cin = x_nhwc.shape
    Cw = w1.shape[1]
    Cout = w3.shape[1]
    # Identity-residual configuration (stride=1, downsample=None, groups=1).
    assert Cin == Cout, "identity residual requires inplanes == planes*expansion"

    # bf16 kernel I/O: halves the HBM bytes of the mem-bound in/out tiles.
    x_bf16 = x_nhwc.astype(jnp.bfloat16)

    weight_bytes = sum(_nbytes(p.shape, p.dtype) for p in params)
    cap = _chip_vmem_cap_bytes()
    Nb = _pick_batch_block(N, H, W, Cin, Cw, Cout, weight_bytes, cap)
    est = _vmem_estimate(Nb, H, W, Cin, Cw, Cout, weight_bytes, 2)
    vmem_limit = int(min(max(2 * est + (16 << 20), 32 << 20), cap))

    def call(single_buffer_weights):
        def const_spec(shape):
            idx = lambda n, _r=len(shape): (0,) * _r
            if single_buffer_weights:
                # Constant index_map -> block never changes; a single VMEM
                # buffer halves weight residency (matters most on v7x 64 MiB).
                return pl.BlockSpec(shape, idx, pipeline_mode=pl.Buffered(1))
            return pl.BlockSpec(shape, idx)

        return pl.pallas_call(
            _bottleneck_kernel,
            out_shape=jax.ShapeDtypeStruct((N, H, W, Cout), jnp.bfloat16),
            grid_spec=pltpu.PrefetchScalarGridSpec(
                num_scalar_prefetch=0,
                grid=(N // Nb,),
                in_specs=[
                    pl.BlockSpec((Nb, H, W, Cin), lambda n: (n, 0, 0, 0)),
                    const_spec(w1.shape), const_spec(b1.shape),
                    const_spec(w2.shape), const_spec(b2.shape),
                    const_spec(w3.shape), const_spec(b3.shape),
                ],
                out_specs=pl.BlockSpec((Nb, H, W, Cout), lambda n: (n, 0, 0, 0)),
                scratch_shapes=[
                    pltpu.VMEM((Nb, H + 2, W, 3 * Cw), jnp.bfloat16),
                    pltpu.VMEM((Nb * H * W, Cw), jnp.float32),
                ],
            ),
            compiler_params=pltpu.CompilerParams(
                dimension_semantics=("parallel",),
                vmem_limit_bytes=vmem_limit),
        )(x_bf16, w1, b1, w2, b2, w3, b3)

    # TODO(synk): for v7x-scale feature maps add an H-strip grid axis with a
    # 1-row halo so per-step VMEM fits 64 MiB and both TensorCores get work.
    try:
        out = call(single_buffer_weights=True)
        jax.block_until_ready(out)
        return out
    except Exception:
        # pl.Buffered(1) unsupported on this jax/libtpu combo -> default
        # double-buffered weight blocks (identical numerics, a bit more VMEM).
        return call(single_buffer_weights=False)


def init_params(key, inplanes, planes, base_width=64, groups=1, eps=1e-5):
    """Deterministic synthetic parameters (no checkpoint)."""
    width = int(planes * (base_width / 64.0)) * groups
    cout = planes * 4  # Bottleneck.expansion
    ks = jax.random.split(key, 15)

    # PyTorch-layout conv weights (OIHW), bias=False
    w1_t = 0.1 * jax.random.normal(ks[0], (width, inplanes, 1, 1), jnp.float32)
    w2_t = 0.1 * jax.random.normal(ks[1], (width, width, 3, 3), jnp.float32)
    w3_t = 0.1 * jax.random.normal(ks[2], (cout, width, 1, 1), jnp.float32)

    def bn_fold(kg, kb, km, kv, c):
        gamma = 1.0 + 0.1 * jax.random.normal(kg, (c,), jnp.float32)
        beta = 0.1 * jax.random.normal(kb, (c,), jnp.float32)
        mean = 0.1 * jax.random.normal(km, (c,), jnp.float32)
        var = jnp.abs(jax.random.normal(kv, (c,), jnp.float32)) + 0.5
        scale = gamma / jnp.sqrt(var + eps)
        bias = beta - mean * scale
        return scale, bias

    s1, b1 = bn_fold(ks[3], ks[4], ks[5], ks[6], width)
    s2, b2 = bn_fold(ks[7], ks[8], ks[9], ks[10], width)
    s3, b3 = bn_fold(ks[11], ks[12], ks[13], ks[14], cout)

    # Kernel-layout params: BN scale folded into bf16 weights, biases kept f32.
    w1k = (jnp.transpose(w1_t[:, :, 0, 0], (1, 0)) * s1[None, :]).astype(jnp.bfloat16)
    w2_hwio = jnp.transpose(w2_t, (2, 3, 1, 0)) * s2[None, None, None, :]   # (3,3,Ci,Co)
    w2k = w2_hwio.reshape(3, 3 * width, width).astype(jnp.bfloat16)         # (kh, kw*Ci+ci, co)
    w3k = (jnp.transpose(w3_t[:, :, 0, 0], (1, 0)) * s3[None, :]).astype(jnp.bfloat16)

    torch_params = (w1_t, s1, b1, w2_t, s2, b2, w3_t, s3, b3)
    kernel_params = (w1k, b1.reshape(1, -1), w2k, b2.reshape(1, -1),
                     w3k, b3.reshape(1, -1))
    return torch_params, kernel_params


def ref_forward(x_nchw, w1_t, s1, b1, w2_t, s2, b2, w3_t, s3, b3):
    """Pure-JAX NCHW reference mirroring the PyTorch Bottleneck.forward."""
    dn = ('NCHW', 'OIHW', 'NCHW')

    def conv(inp, w, pad):
        return lax.conv_general_dilated(inp, w, (1, 1), pad,
                                        dimension_numbers=dn)

    def bn(y, s, b):
        return y * s.reshape(1, -1, 1, 1) + b.reshape(1, -1, 1, 1)

    out = jnp.maximum(bn(conv(x_nchw, w1_t, 'VALID'), s1, b1), 0.0)
    out = jnp.maximum(bn(conv(out, w2_t, ((1, 1), (1, 1))), s2, b2), 0.0)
    out = bn(conv(out, w3_t, 'VALID'), s3, b3)
    return jnp.maximum(out + x_nchw, 0.0)


if __name__ == "__main__":
    key = jax.random.PRNGKey(0)
    kx, kp = jax.random.split(key)

    # small shapes: batch=2, inplanes=16 (=planes*expansion), planes=4, 16x16
    N, inplanes, planes, H, W = 2, 16, 4, 16, 16
    x_nchw = jax.random.normal(kx, (N, inplanes, H, W), jnp.float32)

    torch_params, kernel_params = init_params(kp, inplanes, planes)

    x_nhwc = jnp.transpose(x_nchw, (0, 2, 3, 1))
    out_nhwc = bottleneck_forward(x_nhwc, kernel_params)
    out_nchw = jnp.transpose(out_nhwc.astype(jnp.float32), (0, 3, 1, 2))
    jax.block_until_ready(out_nchw)

    ref = ref_forward(x_nchw, *torch_params)
    assert out_nchw.shape == ref.shape == (N, planes * 4, H, W)
    # bf16 I/O + bf16 MXU operands with f32 accumulation -> loosened tolerance
    # versus the all-f32 reference.
    assert jnp.allclose(out_nchw, ref, atol=6e-2, rtol=5e-2), "mismatch vs reference"

    print("KERNEL_OK")
</pallas_src>

<mosaic_0001>
module attributes {stable_mosaic.version = 11 : i64} {
  func.func @_bottleneck_kernel(%arg0: i32, %arg1: memref<2x16x16x16xbf16, #tpu.memory_space<vmem>>, %arg2: memref<16x4xbf16, #tpu.memory_space<vmem>>, %arg3: memref<1x4xf32, #tpu.memory_space<vmem>>, %arg4: memref<3x12x4xbf16, #tpu.memory_space<vmem>>, %arg5: memref<1x4xf32, #tpu.memory_space<vmem>>, %arg6: memref<4x16xbf16, #tpu.memory_space<vmem>>, %arg7: memref<1x16xf32, #tpu.memory_space<vmem>>, %arg8: memref<2x16x16x16xbf16, #tpu.memory_space<vmem>>, %arg9: memref<2x18x16x12xbf16, #tpu.memory_space<vmem>>, %arg10: memref<512x4xf32, #tpu.memory_space<vmem>>) attributes {dimension_semantics = [#tpu.dimension_semantics<parallel>], iteration_bounds = array<i64: 1>, scalar_prefetch = 0 : i64, scratch_operands = 2 : i64, tpu.core_type = #tpu.core_type<tc>, window_params = [{transform_indices = @transform_0, window_bounds = array<i64: 2, 16, 16, 16>}, {pipeline_mode = #tpu.pipeline_mode<synchronous>, transform_indices = @transform_1, window_bounds = array<i64: 16, 4>}, {pipeline_mode = #tpu.pipeline_mode<synchronous>, transform_indices = @transform_2, window_bounds = array<i64: 1, 4>}, {pipeline_mode = #tpu.pipeline_mode<synchronous>, transform_indices = @transform_3, window_bounds = array<i64: 3, 12, 4>}, {pipeline_mode = #tpu.pipeline_mode<synchronous>, transform_indices = @transform_4, window_bounds = array<i64: 1, 4>}, {pipeline_mode = #tpu.pipeline_mode<synchronous>, transform_indices = @transform_5, window_bounds = array<i64: 4, 16>}, {pipeline_mode = #tpu.pipeline_mode<synchronous>, transform_indices = @transform_6, window_bounds = array<i64: 1, 16>}, {transform_indices = @transform_7, window_bounds = array<i64: 2, 16, 16, 16>}]} {
    %c0 = arith.constant 0 : index
    %c0_0 = arith.constant 0 : index
    %c0_1 = arith.constant 0 : index
    %c0_2 = arith.constant 0 : index
    %0 = vector.load %arg1[%c0, %c0_0, %c0_1, %c0_2] : memref<2x16x16x16xbf16, #tpu.memory_space<vmem>>, vector<2x16x16x16xbf16>
    %1 = vector.shape_cast %0 : vector<2x16x16x16xbf16> to vector<512x16xbf16>
    %c0_3 = arith.constant 0 : index
    %c0_4 = arith.constant 0 : index
    %2 = vector.load %arg2[%c0_3, %c0_4] : memref<16x4xbf16, #tpu.memory_space<vmem>>, vector<16x4xbf16>
    %cst = arith.constant dense<0.000000e+00> : vector<512x4xf32>
    %3 = tpu.matmul %1, %2, %cst {dimension_numbers = #tpu.dot_dimension_numbers<[1], [0], [0], [1], [0, 0, 1, 1], [], []>} : vector<512x16xbf16>, vector<16x4xbf16>, vector<512x4xf32> -> vector<512x4xf32>
    %c0_5 = arith.constant 0 : index
    %c0_6 = arith.constant 0 : index
    %4 = vector.load %arg3[%c0_5, %c0_6] : memref<1x4xf32, #tpu.memory_space<vmem>>, vector<1x4xf32>
    %5 = vector.broadcast %4 : vector<1x4xf32> to vector<512x4xf32>
    %6 = arith.addf %3, %5 : vector<512x4xf32>
    %cst_7 = arith.constant 0.000000e+00 : f32
    %7 = vector.broadcast %cst_7 : f32 to vector<512x4xf32>
    %8 = arith.maximumf %6, %7 : vector<512x4xf32>
    %9 = vector.shape_cast %8 : vector<512x4xf32> to vector<32x16x4xf32>
    %10 = tpu.iota {dimensions = array<i32: 0>} : vector<16x4xi32>
    %c0_i32 = arith.constant 0 : i32
    %11 = vector.broadcast %c0_i32 : i32 to vector<16x4xi32>
    %12 = arith.cmpi eq, %10, %11 : vector<16x4xi32>
    %c1_i32 = arith.constant 1 : i32
    %13 = tpu.dynamic_rotate %9 by %c1_i32 dim 1 : vector<32x16x4xf32>, i32 -> vector<32x16x4xf32>
    %cst_8 = arith.constant 0.000000e+00 : f32
    %14 = vector.shape_cast %12 : vector<16x4xi1> to vector<1x16x4xi1>
    %15 = vector.broadcast %14 : vector<1x16x4xi1> to vector<32x16x4xi1>
    %16 = vector.broadcast %cst_8 : f32 to vector<32x16x4xf32>
    %17 = arith.select %15, %16, %13 : vector<32x16x4xi1>, vector<32x16x4xf32>
    %c15_i32 = arith.constant 15 : i32
    %18 = vector.broadcast %c15_i32 : i32 to vector<16x4xi32>
    %19 = arith.cmpi eq, %10, %18 : vector<16x4xi32>
    %c15_i32_9 = arith.constant 15 : i32
    %20 = tpu.dynamic_rotate %9 by %c15_i32_9 dim 1 : vector<32x16x4xf32>, i32 -> vector<32x16x4xf32>
    %cst_10 = arith.constant 0.000000e+00 : f32
    %21 = vector.shape_cast %19 : vector<16x4xi1> to vector<1x16x4xi1>
    %22 = vector.broadcast %21 : vector<1x16x4xi1> to vector<32x16x4xi1>
    %23 = vector.broadcast %cst_10 : f32 to vector<32x16x4xf32>
    %24 = arith.select %22, %23, %20 : vector<32x16x4xi1>, vector<32x16x4xf32>
    %25 = tpu.concatenate %17, %9, %24 in 2 : vector<32x16x4xf32>, vector<32x16x4xf32>, vector<32x16x4xf32> -> vector<32x16x12xf32>
    %26 = arith.truncf %25 : vector<32x16x12xf32> to vector<32x16x12xbf16>
    %cst_11 = arith.constant 0.000000e+00 : bf16
    %27 = vector.broadcast %cst_11 : bf16 to vector<2x1x16x12xbf16>
    %c0_12 = arith.constant 0 : index
    %c0_13 = arith.constant 0 : index
    %c0_14 = arith.constant 0 : index
    %c0_15 = arith.constant 0 : index
    %28 = vector.load %arg9[%c0_12, %c0_13, %c0_14, %c0_15] : memref<2x18x16x12xbf16, #tpu.memory_space<vmem>>, vector<2x1x16x12xbf16>
    tpu.vector_store %arg9[%c0_12, %c0_13, %c0_14, %c0_15], %27 {strides = array<i32>} : memref<2x18x16x12xbf16, #tpu.memory_space<vmem>>, vector<2x1x16x12xbf16>,
    %c0_16 = arith.constant 0 : index
    %c17 = arith.constant 17 : index
    %c0_17 = arith.constant 0 : index
    %c0_18 = arith.constant 0 : index
    %29 = vector.load %arg9[%c0_16, %c17, %c0_17, %c0_18] : memref<2x18x16x12xbf16, #tpu.memory_space<vmem>>, vector<2x1x16x12xbf16>
    tpu.vector_store %arg9[%c0_16, %c17, %c0_17, %c0_18], %27 {strides = array<i32>} : memref<2x18x16x12xbf16, #tpu.memory_space<vmem>>, vector<2x1x16x12xbf16>,
    %30 = vector.shape_cast %26 : vector<32x16x12xbf16> to vector<2x16x16x12xbf16>
    %c0_19 = arith.constant 0 : index
    %c1 = arith.constant 1 : index
    %c0_20 = arith.constant 0 : index
    %c0_21 = arith.constant 0 : index
    %31 = vector.load %arg9[%c0_19, %c1, %c0_20, %c0_21] : memref<2x18x16x12xbf16, #tpu.memory_space<vmem>>, vector<2x16x16x12xbf16>
    tpu.vector_store %arg9[%c0_19, %c1, %c0_20, %c0_21], %30 {strides = array<i32>} : memref<2x18x16x12xbf16, #tpu.memory_space<vmem>>, vector<2x16x16x12xbf16>,
    %c0_22 = arith.constant 0 : index
    %c0_23 = arith.constant 0 : index
    %c0_24 = arith.constant 0 : index
    %c0_25 = arith.constant 0 : index
    %32 = vector.load %arg9[%c0_22, %c0_23, %c0_24, %c0_25] : memref<2x18x16x12xbf16, #tpu.memory_space<vmem>>, vector<2x16x16x12xbf16>
    %33 = vector.shape_cast %32 : vector<2x16x16x12xbf16> to vector<512x12xbf16>
    %c0_26 = arith.constant 0 : index
    %c0_27 = arith.constant 0 : index
    %c0_28 = arith.constant 0 : index
    %34 = vector.load %arg4[%c0_26, %c0_27, %c0_28] : memref<3x12x4xbf16, #tpu.memory_space<vmem>>, vector<1x12x4xbf16>
    %35 = vector.shape_cast %34 : vector<1x12x4xbf16> to vector<12x4xbf16>
    %cst_29 = arith.constant dense<0.000000e+00> : vector<512x4xf32>
    %36 = tpu.matmul %33, %35, %cst_29 {dimension_numbers = #tpu.dot_dimension_numbers<[1], [0], [0], [1], [0, 0, 1, 1], [], []>} : vector<512x12xbf16>, vector<12x4xbf16>, vector<512x4xf32> -> vector<512x4xf32>
    %c0_30 = arith.constant 0 : index
    %c0_31 = arith.constant 0 : index
    %37 = vector.load %arg10[%c0_30, %c0_31] : memref<512x4xf32, #tpu.memory_space<vmem>>, vector<512x4xf32>
    tpu.vector_store %arg10[%c0_30, %c0_31], %36 {strides = array<i32>} : memref<512x4xf32, #tpu.memory_space<vmem>>, vector<512x4xf32>,
    %c0_32 = arith.constant 0 : index
    %c0_33 = arith.constant 0 : index
    %38 = vector.load %arg10[%c0_32, %c0_33] : memref<512x4xf32, #tpu.memory_space<vmem>>, vector<512x4xf32>
    %c0_34 = arith.constant 0 : index
    %c1_35 = arith.constant 1 : index
    %c0_36 = arith.constant 0 : index
    %c0_37 = arith.constant 0 : index
    %39 = vector.load %arg9[%c0_34, %c1_35, %c0_36, %c0_37] : memref<2x18x16x12xbf16, #tpu.memory_space<vmem>>, vector<2x16x16x12xbf16>
    %40 = vector.shape_cast %39 : vector<2x16x16x12xbf16> to vector<512x12xbf16>
    %c1_38 = arith.constant 1 : index
    %c0_39 = arith.constant 0 : index
    %c0_40 = arith.constant 0 : index
    %41 = vector.load %arg4[%c1_38, %c0_39, %c0_40] : memref<3x12x4xbf16, #tpu.memory_space<vmem>>, vector<1x12x4xbf16>
    %42 = vector.shape_cast %41 : vector<1x12x4xbf16> to vector<12x4xbf16>
    %cst_41 = arith.constant dense<0.000000e+00> : vector<512x4xf32>
    %43 = tpu.matmul %40, %42, %cst_41 {dimension_numbers = #tpu.dot_dimension_numbers<[1], [0], [0], [1], [0, 0, 1, 1], [], []>} : vector<512x12xbf16>, vector<12x4xbf16>, vector<512x4xf32> -> vector<512x4xf32>
    %44 = arith.addf %38, %43 : vector<512x4xf32>
    %c0_42 = arith.constant 0 : index
    %c0_43 = arith.constant 0 : index
    %45 = vector.load %arg10[%c0_42, %c0_43] : memref<512x4xf32, #tpu.memory_space<vmem>>, vector<512x4xf32>
    tpu.vector_store %arg10[%c0_42, %c0_43], %44 {strides = array<i32>} : memref<512x4xf32, #tpu.memory_space<vmem>>, vector<512x4xf32>,
    %c0_44 = arith.constant 0 : index
    %c0_45 = arith.constant 0 : index
    %46 = vector.load %arg10[%c0_44, %c0_45] : memref<512x4xf32, #tpu.memory_space<vmem>>, vector<512x4xf32>
    %c0_46 = arith.constant 0 : index
    %c2 = arith.constant 2 : index
    %c0_47 = arith.constant 0 : index
    %c0_48 = arith.constant 0 : index
    %47 = vector.load %arg9[%c0_46, %c2, %c0_47, %c0_48] : memref<2x18x16x12xbf16, #tpu.memory_space<vmem>>, vector<2x16x16x12xbf16>
    %48 = vector.shape_cast %47 : vector<2x16x16x12xbf16> to vector<512x12xbf16>
    %c2_49 = arith.constant 2 : index
    %c0_50 = arith.constant 0 : index
    %c0_51 = arith.constant 0 : index
    %49 = vector.load %arg4[%c2_49, %c0_50, %c0_51] : memref<3x12x4xbf16, #tpu.memory_space<vmem>>, vector<1x12x4xbf16>
    %50 = vector.shape_cast %49 : vector<1x12x4xbf16> to vector<12x4xbf16>
    %cst_52 = arith.constant dense<0.000000e+00> : vector<512x4xf32>
    %51 = tpu.matmul %48, %50, %cst_52 {dimension_numbers = #tpu.dot_dimension_numbers<[1], [0], [0], [1], [0, 0, 1, 1], [], []>} : vector<512x12xbf16>, vector<12x4xbf16>, vector<512x4xf32> -> vector<512x4xf32>
    %52 = arith.addf %46, %51 : vector<512x4xf32>
    %c0_53 = arith.constant 0 : index
    %c0_54 = arith.constant 0 : index
    %53 = vector.load %arg10[%c0_53, %c0_54] : memref<512x4xf32, #tpu.memory_space<vmem>>, vector<512x4xf32>
    tpu.vector_store %arg10[%c0_53, %c0_54], %52 {strides = array<i32>} : memref<512x4xf32, #tpu.memory_space<vmem>>, vector<512x4xf32>,
    %c0_55 = arith.constant 0 : index
    %c0_56 = arith.constant 0 : index
    %54 = vector.load %arg10[%c0_55, %c0_56] : memref<512x4xf32, #tpu.memory_space<vmem>>, vector<512x4xf32>
    %c0_57 = arith.constant 0 : index
    %c0_58 = arith.constant 0 : index
    %55 = vector.load %arg5[%c0_57, %c0_58] : memref<1x4xf32, #tpu.memory_space<vmem>>, vector<1x4xf32>
    %56 = vector.broadcast %55 : vector<1x4xf32> to vector<512x4xf32>
    %57 = arith.addf %54, %56 : vector<512x4xf32>
    %cst_59 = arith.constant 0.000000e+00 : f32
    %58 = vector.broadcast %cst_59 : f32 to vector<512x4xf32>
    %59 = arith.maximumf %57, %58 : vector<512x4xf32>
    %60 = arith.truncf %59 : vector<512x4xf32> to vector<512x4xbf16>
    %c0_60 = arith.constant 0 : index
    %c0_61 = arith.constant 0 : index
    %61 = vector.load %arg6[%c0_60, %c0_61] : memref<4x16xbf16, #tpu.memory_space<vmem>>, vector<4x16xbf16>
    %cst_62 = arith.constant dense<0.000000e+00> : vector<512x16xf32>
    %62 = tpu.matmul %60, %61, %cst_62 {dimension_numbers = #tpu.dot_dimension_numbers<[1], [0], [0], [1], [0, 0, 1, 1], [], []>} : vector<512x4xbf16>, vector<4x16xbf16>, vector<512x16xf32> -> vector<512x16xf32>
    %c0_63 = arith.constant 0 : index
    %c0_64 = arith.constant 0 : index
    %63 = vector.load %arg7[%c0_63, %c0_64] : memref<1x16xf32, #tpu.memory_space<vmem>>, vector<1x16xf32>
    %64 = vector.broadcast %63 : vector<1x16xf32> to vector<512x16xf32>
    %65 = arith.addf %62, %64 : vector<512x16xf32>
    %c0_65 = arith.constant 0 : index
    %c0_66 = arith.constant 0 : index
    %c0_67 = arith.constant 0 : index
    %c0_68 = arith.constant 0 : index
    %66 = vector.load %arg1[%c0_65, %c0_66, %c0_67, %c0_68] : memref<2x16x16x16xbf16, #tpu.memory_space<vmem>>, vector<2x16x16x16xbf16>
    %67 = vector.shape_cast %66 : vector<2x16x16x16xbf16> to vector<512x16xbf16>
    %68 = arith.extf %67 : vector<512x16xbf16> to vector<512x16xf32>
    %69 = arith.addf %65, %68 : vector<512x16xf32>
    %cst_69 = arith.constant 0.000000e+00 : f32
    %70 = vector.broadcast %cst_69 : f32 to vector<512x16xf32>
    %71 = arith.maximumf %69, %70 : vector<512x16xf32>
    %72 = vector.shape_cast %71 : vector<512x16xf32> to vector<2x16x16x16xf32>
    %73 = arith.truncf %72 : vector<2x16x16x16xf32> to vector<2x16x16x16xbf16>
    %c0_70 = arith.constant 0 : index
    %c0_71 = arith.constant 0 : index
    %c0_72 = arith.constant 0 : index
    %c0_73 = arith.constant 0 : index
    %74 = vector.load %arg8[%c0_70, %c0_71, %c0_72, %c0_73] : memref<2x16x16x16xbf16, #tpu.memory_space<vmem>>, vector<2x16x16x16xbf16>
    tpu.vector_store %arg8[%c0_70, %c0_71, %c0_72, %c0_73], %73 {strides = array<i32>} : memref<2x16x16x16xbf16, #tpu.memory_space<vmem>>, vector<2x16x16x16xbf16>,
    return
  }
  func.func @transform_0(%arg0: i32) -> (i32, i32, i32, i32) {
    %c0_i32 = arith.constant 0 : i32
    %c0_i32_0 = arith.constant 0 : i32
    %c0_i32_1 = arith.constant 0 : i32
    %c0_i32_2 = arith.constant 0 : i32
    return %arg0, %c0_i32, %c0_i32_0, %c0_i32_1 : i32, i32, i32, i32
  }
  func.func @transform_1(%arg0: i32) -> (i32, i32) {
    %c0_i32 = arith.constant 0 : i32
    %c0_i32_0 = arith.constant 0 : i32
    %c0_i32_1 = arith.constant 0 : i32
    return %c0_i32, %c0_i32_0 : i32, i32
  }
  func.func @transform_2(%arg0: i32) -> (i32, i32) {
    %c0_i32 = arith.constant 0 : i32
    %c0_i32_0 = arith.constant 0 : i32
    %c0_i32_1 = arith.constant 0 : i32
    return %c0_i32, %c0_i32_0 : i32, i32
  }
  func.func @transform_3(%arg0: i32) -> (i32, i32, i32) {
    %c0_i32 = arith.constant 0 : i32
    %c0_i32_0 = arith.constant 0 : i32
    %c0_i32_1 = arith.constant 0 : i32
    %c0_i32_2 = arith.constant 0 : i32
    return %c0_i32, %c0_i32_0, %c0_i32_1 : i32, i32, i32
  }
  func.func @transform_4(%arg0: i32) -> (i32, i32) {
    %c0_i32 = arith.constant 0 : i32
    %c0_i32_0 = arith.constant 0 : i32
    %c0_i32_1 = arith.constant 0 : i32
    return %c0_i32, %c0_i32_0 : i32, i32
  }
  func.func @transform_5(%arg0: i32) -> (i32, i32) {
    %c0_i32 = arith.constant 0 : i32
    %c0_i32_0 = arith.constant 0 : i32
    %c0_i32_1 = arith.constant 0 : i32
    return %c0_i32, %c0_i32_0 : i32, i32
  }
  func.func @transform_6(%arg0: i32) -> (i32, i32) {
    %c0_i32 = arith.constant 0 : i32
    %c0_i32_0 = arith.constant 0 : i32
    %c0_i32_1 = arith.constant 0 : i32
    return %c0_i32, %c0_i32_0 : i32, i32
  }
  func.func @transform_7(%arg0: i32) -> (i32, i32, i32, i32) {
    %c0_i32 = arith.constant 0 : i32
    %c0_i32_0 = arith.constant 0 : i32
    %c0_i32_1 = arith.constant 0 : i32
    %c0_i32_2 = arith.constant 0 : i32
    return %arg0, %c0_i32, %c0_i32_0, %c0_i32_1 : i32, i32, i32, i32
  }
}

module attributes {stable_mosaic.version = 11 : i64} {
  func.func @_bottleneck_kernel(%arg0: i32, %arg1: memref<2x16x16x16xbf16, #tpu.memory_space<vmem>>, %arg2: memref<16x4xbf16, #tpu.memory_space<vmem>>, %arg3: memref<1x4xf32, #tpu.memory_space<vmem>>, %arg4: memref<3x12x4xbf16, #tpu.memory_space<vmem>>, %arg5: memref<1x4xf32, #tpu.memory_space<vmem>>, %arg6: memref<4x16xbf16, #tpu.memory_space<vmem>>, %arg7: memref<1x16xf32, #tpu.memory_space<vmem>>, %arg8: memref<2x16x16x16xbf16, #tpu.memory_space<vmem>>, %arg9: memref<2x18x16x12xbf16, #tpu.memory_space<vmem>>, %arg10: memref<512x4xf32, #tpu.memory_space<vmem>>) attributes {dimension_semantics = [#tpu.dimension_semantics<parallel>], iteration_bounds = array<i64: 1>, scalar_prefetch = 0 : i64, scratch_operands = 2 : i64, tpu.core_type = #tpu.core_type<tc>, window_params = [{transform_indices = @transform_0, window_bounds = array<i64: 2, 16, 16, 16>}, {pipeline_mode = #tpu.pipeline_mode<synchronous>, transform_indices = @transform_1, window_bounds = array<i64: 16, 4>}, {pipeline_mode = #tpu.pipeline_mode<synchronous>, transform_indices = @transform_2, window_bounds = array<i64: 1, 4>}, {pipeline_mode = #tpu.pipeline_mode<synchronous>, transform_indices = @transform_3, window_bounds = array<i64: 3, 12, 4>}, {pipeline_mode = #tpu.pipeline_mode<synchronous>, transform_indices = @transform_4, window_bounds = array<i64: 1, 4>}, {pipeline_mode = #tpu.pipeline_mode<synchronous>, transform_indices = @transform_5, window_bounds = array<i64: 4, 16>}, {pipeline_mode = #tpu.pipeline_mode<synchronous>, transform_indices = @transform_6, window_bounds = array<i64: 1, 16>}, {transform_indices = @transform_7, window_bounds = array<i64: 2, 16, 16, 16>}]} {
    %c0 = arith.constant 0 : index
    %c0_0 = arith.constant 0 : index
    %c0_1 = arith.constant 0 : index
    %c0_2 = arith.constant 0 : index
    %0 = vector.load %arg1[%c0, %c0_0, %c0_1, %c0_2] : memref<2x16x16x16xbf16, #tpu.memory_space<vmem>>, vector<2x16x16x16xbf16>
    %1 = vector.shape_cast %0 : vector<2x16x16x16xbf16> to vector<512x16xbf16>
    %c0_3 = arith.constant 0 : index
    %c0_4 = arith.constant 0 : index
    %2 = vector.load %arg2[%c0_3, %c0_4] : memref<16x4xbf16, #tpu.memory_space<vmem>>, vector<16x4xbf16>
    %cst = arith.constant dense<0.000000e+00> : vector<512x4xf32>
    %3 = tpu.matmul %1, %2, %cst {dimension_numbers = #tpu.dot_dimension_numbers<[1], [0], [0], [1], [0, 0, 1, 1], [], []>} : vector<512x16xbf16>, vector<16x4xbf16>, vector<512x4xf32> -> vector<512x4xf32>
    %c0_5 = arith.constant 0 : index
    %c0_6 = arith.constant 0 : index
    %4 = vector.load %arg3[%c0_5, %c0_6] : memref<1x4xf32, #tpu.memory_space<vmem>>, vector<1x4xf32>
    %5 = vector.broadcast %4 : vector<1x4xf32> to vector<512x4xf32>
    %6 = arith.addf %3, %5 : vector<512x4xf32>
    %cst_7 = arith.constant 0.000000e+00 : f32
    %7 = vector.broadcast %cst_7 : f32 to vector<512x4xf32>
    %8 = arith.maximumf %6, %7 : vector<512x4xf32>
    %9 = vector.shape_cast %8 : vector<512x4xf32> to vector<32x16x4xf32>
    %10 = tpu.iota {dimensions = array<i32: 0>} : vector<16x4xi32>
    %c0_i32 = arith.constant 0 : i32
    %11 = vector.broadcast %c0_i32 : i32 to vector<16x4xi32>
    %12 = arith.cmpi eq, %10, %11 : vector<16x4xi32>
    %c1_i32 = arith.constant 1 : i32
    %13 = tpu.dynamic_rotate %9 by %c1_i32 dim 1 : vector<32x16x4xf32>, i32 -> vector<32x16x4xf32>
    %cst_8 = arith.constant 0.000000e+00 : f32
    %14 = vector.shape_cast %12 : vector<16x4xi1> to vector<1x16x4xi1>
    %15 = vector.broadcast %14 : vector<1x16x4xi1> to vector<32x16x4xi1>
    %16 = vector.broadcast %cst_8 : f32 to vector<32x16x4xf32>
    %17 = arith.select %15, %16, %13 : vector<32x16x4xi1>, vector<32x16x4xf32>
    %c15_i32 = arith.constant 15 : i32
    %18 = vector.broadcast %c15_i32 : i32 to vector<16x4xi32>
    %19 = arith.cmpi eq, %10, %18 : vector<16x4xi32>
    %c15_i32_9 = arith.constant 15 : i32
    %20 = tpu.dynamic_rotate %9 by %c15_i32_9 dim 1 : vector<32x16x4xf32>, i32 -> vector<32x16x4xf32>
    %cst_10 = arith.constant 0.000000e+00 : f32
    %21 = vector.shape_cast %19 : vector<16x4xi1> to vector<1x16x4xi1>
    %22 = vector.broadcast %21 : vector<1x16x4xi1> to vector<32x16x4xi1>
    %23 = vector.broadcast %cst_10 : f32 to vector<32x16x4xf32>
    %24 = arith.select %22, %23, %20 : vector<32x16x4xi1>, vector<32x16x4xf32>
    %25 = tpu.concatenate %17, %9, %24 in 2 : vector<32x16x4xf32>, vector<32x16x4xf32>, vector<32x16x4xf32> -> vector<32x16x12xf32>
    %26 = arith.truncf %25 : vector<32x16x12xf32> to vector<32x16x12xbf16>
    %cst_11 = arith.constant 0.000000e+00 : bf16
    %27 = vector.broadcast %cst_11 : bf16 to vector<2x1x16x12xbf16>
    %c0_12 = arith.constant 0 : index
    %c0_13 = arith.constant 0 : index
    %c0_14 = arith.constant 0 : index
    %c0_15 = arith.constant 0 : index
    %28 = vector.load %arg9[%c0_12, %c0_13, %c0_14, %c0_15] : memref<2x18x16x12xbf16, #tpu.memory_space<vmem>>, vector<2x1x16x12xbf16>
    tpu.vector_store %arg9[%c0_12, %c0_13, %c0_14, %c0_15], %27 {strides = array<i32>} : memref<2x18x16x12xbf16, #tpu.memory_space<vmem>>, vector<2x1x16x12xbf16>,
    %c0_16 = arith.constant 0 : index
    %c17 = arith.constant 17 : index
    %c0_17 = arith.constant 0 : index
    %c0_18 = arith.constant 0 : index
    %29 = vector.load %arg9[%c0_16, %c17, %c0_17, %c0_18] : memref<2x18x16x12xbf16, #tpu.memory_space<vmem>>, vector<2x1x16x12xbf16>
    tpu.vector_store %arg9[%c0_16, %c17, %c0_17, %c0_18], %27 {strides = array<i32>} : memref<2x18x16x12xbf16, #tpu.memory_space<vmem>>, vector<2x1x16x12xbf16>,
    %30 = vector.shape_cast %26 : vector<32x16x12xbf16> to vector<2x16x16x12xbf16>
    %c0_19 = arith.constant 0 : index
    %c1 = arith.constant 1 : index
    %c0_20 = arith.constant 0 : index
    %c0_21 = arith.constant 0 : index
    %31 = vector.load %arg9[%c0_19, %c1, %c0_20, %c0_21] : memref<2x18x16x12xbf16, #tpu.memory_space<vmem>>, vector<2x16x16x12xbf16>
    tpu.vector_store %arg9[%c0_19, %c1, %c0_20, %c0_21], %30 {strides = array<i32>} : memref<2x18x16x12xbf16, #tpu.memory_space<vmem>>, vector<2x16x16x12xbf16>,
    %c0_22 = arith.constant 0 : index
    %c0_23 = arith.constant 0 : index
    %c0_24 = arith.constant 0 : index
    %c0_25 = arith.constant 0 : index
    %32 = vector.load %arg9[%c0_22, %c0_23, %c0_24, %c0_25] : memref<2x18x16x12xbf16, #tpu.memory_space<vmem>>, vector<2x16x16x12xbf16>
    %33 = vector.shape_cast %32 : vector<2x16x16x12xbf16> to vector<512x12xbf16>
    %c0_26 = arith.constant 0 : index
    %c0_27 = arith.constant 0 : index
    %c0_28 = arith.constant 0 : index
    %34 = vector.load %arg4[%c0_26, %c0_27, %c0_28] : memref<3x12x4xbf16, #tpu.memory_space<vmem>>, vector<1x12x4xbf16>
    %35 = vector.shape_cast %34 : vector<1x12x4xbf16> to vector<12x4xbf16>
    %cst_29 = arith.constant dense<0.000000e+00> : vector<512x4xf32>
    %36 = tpu.matmul %33, %35, %cst_29 {dimension_numbers = #tpu.dot_dimension_numbers<[1], [0], [0], [1], [0, 0, 1, 1], [], []>} : vector<512x12xbf16>, vector<12x4xbf16>, vector<512x4xf32> -> vector<512x4xf32>
    %c0_30 = arith.constant 0 : index
    %c0_31 = arith.constant 0 : index
    %37 = vector.load %arg10[%c0_30, %c0_31] : memref<512x4xf32, #tpu.memory_space<vmem>>, vector<512x4xf32>
    tpu.vector_store %arg10[%c0_30, %c0_31], %36 {strides = array<i32>} : memref<512x4xf32, #tpu.memory_space<vmem>>, vector<512x4xf32>,
    %c0_32 = arith.constant 0 : index
    %c0_33 = arith.constant 0 : index
    %38 = vector.load %arg10[%c0_32, %c0_33] : memref<512x4xf32, #tpu.memory_space<vmem>>, vector<512x4xf32>
    %c0_34 = arith.constant 0 : index
    %c1_35 = arith.constant 1 : index
    %c0_36 = arith.constant 0 : index
    %c0_37 = arith.constant 0 : index
    %39 = vector.load %arg9[%c0_34, %c1_35, %c0_36, %c0_37] : memref<2x18x16x12xbf16, #tpu.memory_space<vmem>>, vector<2x16x16x12xbf16>
    %40 = vector.shape_cast %39 : vector<2x16x16x12xbf16> to vector<512x12xbf16>
    %c1_38 = arith.constant 1 : index
    %c0_39 = arith.constant 0 : index
    %c0_40 = arith.constant 0 : index
    %41 = vector.load %arg4[%c1_38, %c0_39, %c0_40] : memref<3x12x4xbf16, #tpu.memory_space<vmem>>, vector<1x12x4xbf16>
    %42 = vector.shape_cast %41 : vector<1x12x4xbf16> to vector<12x4xbf16>
    %cst_41 = arith.constant dense<0.000000e+00> : vector<512x4xf32>
    %43 = tpu.matmul %40, %42, %cst_41 {dimension_numbers = #tpu.dot_dimension_numbers<[1], [0], [0], [1], [0, 0, 1, 1], [], []>} : vector<512x12xbf16>, vector<12x4xbf16>, vector<512x4xf32> -> vector<512x4xf32>
    %44 = arith.addf %38, %43 : vector<512x4xf32>
    %c0_42 = arith.constant 0 : index
    %c0_43 = arith.constant 0 : index
    %45 = vector.load %arg10[%c0_42, %c0_43] : memref<512x4xf32, #tpu.memory_space<vmem>>, vector<512x4xf32>
    tpu.vector_store %arg10[%c0_42, %c0_43], %44 {strides = array<i32>} : memref<512x4xf32, #tpu.memory_space<vmem>>, vector<512x4xf32>,
    %c0_44 = arith.constant 0 : index
    %c0_45 = arith.constant 0 : index
    %46 = vector.load %arg10[%c0_44, %c0_45] : memref<512x4xf32, #tpu.memory_space<vmem>>, vector<512x4xf32>
    %c0_46 = arith.constant 0 : index
    %c2 = arith.constant 2 : index
    %c0_47 = arith.constant 0 : index
    %c0_48 = arith.constant 0 : index
    %47 = vector.load %arg9[%c0_46, %c2, %c0_47, %c0_48] : memref<2x18x16x12xbf16, #tpu.memory_space<vmem>>, vector<2x16x16x12xbf16>
    %48 = vector.shape_cast %47 : vector<2x16x16x12xbf16> to vector<512x12xbf16>
    %c2_49 = arith.constant 2 : index
    %c0_50 = arith.constant 0 : index
    %c0_51 = arith.constant 0 : index
    %49 = vector.load %arg4[%c2_49, %c0_50, %c0_51] : memref<3x12x4xbf16, #tpu.memory_space<vmem>>, vector<1x12x4xbf16>
    %50 = vector.shape_cast %49 : vector<1x12x4xbf16> to vector<12x4xbf16>
    %cst_52 = arith.constant dense<0.000000e+00> : vector<512x4xf32>
    %51 = tpu.matmul %48, %50, %cst_52 {dimension_numbers = #tpu.dot_dimension_numbers<[1], [0], [0], [1], [0, 0, 1, 1], [], []>} : vector<512x12xbf16>, vector<12x4xbf16>, vector<512x4xf32> -> vector<512x4xf32>
    %52 = arith.addf %46, %51 : vector<512x4xf32>
    %c0_53 = arith.constant 0 : index
    %c0_54 = arith.constant 0 : index
    %53 = vector.load %arg10[%c0_53, %c0_54] : memref<512x4xf32, #tpu.memory_space<vmem>>, vector<512x4xf32>
    tpu.vector_store %arg10[%c0_53, %c0_54], %52 {strides = array<i32>} : memref<512x4xf32, #tpu.memory_space<vmem>>, vector<512x4xf32>,
    %c0_55 = arith.constant 0 : index
    %c0_56 = arith.constant 0 : index
    %54 = vector.load %arg10[%c0_55, %c0_56] : memref<512x4xf32, #tpu.memory_space<vmem>>, vector<512x4xf32>
    %c0_57 = arith.constant 0 : index
    %c0_58 = arith.constant 0 : index
    %55 = vector.load %arg5[%c0_57, %c0_58] : memref<1x4xf32, #tpu.memory_space<vmem>>, vector<1x4xf32>
    %56 = vector.broadcast %55 : vector<1x4xf32> to vector<512x4xf32>
    %57 = arith.addf %54, %56 : vector<512x4xf32>
    %cst_59 = arith.constant 0.000000e+00 : f32
    %58 = vector.broadcast %cst_59 : f32 to vector<512x4xf32>
    %59 = arith.maximumf %57, %58 : vector<512x4xf32>
    %60 = arith.truncf %59 : vector<512x4xf32> to vector<512x4xbf16>
    %c0_60 = arith.constant 0 : index
    %c0_61 = arith.constant 0 : index
    %61 = vector.load %arg6[%c0_60, %c0_61] : memref<4x16xbf16, #tpu.memory_space<vmem>>, vector<4x16xbf16>
    %cst_62 = arith.constant dense<0.000000e+00> : vector<512x16xf32>
    %62 = tpu.matmul %60, %61, %cst_62 {dimension_numbers = #tpu.dot_dimension_numbers<[1], [0], [0], [1], [0, 0, 1, 1], [], []>} : vector<512x4xbf16>, vector<4x16xbf16>, vector<512x16xf32> -> vector<512x16xf32>
    %c0_63 = arith.constant 0 : index
    %c0_64 = arith.constant 0 : index
    %63 = vector.load %arg7[%c0_63, %c0_64] : memref<1x16xf32, #tpu.memory_space<vmem>>, vector<1x16xf32>
    %64 = vector.broadcast %63 : vector<1x16xf32> to vector<512x16xf32>
    %65 = arith.addf %62, %64 : vector<512x16xf32>
    %c0_65 = arith.constant 0 : index
    %c0_66 = arith.constant 0 : index
    %c0_67 = arith.constant 0 : index
    %c0_68 = arith.constant 0 : index
    %66 = vector.load %arg1[%c0_65, %c0_66, %c0_67, %c0_68] : memref<2x16x16x16xbf16, #tpu.memory_space<vmem>>, vector<2x16x16x16xbf16>
    %67 = vector.shape_cast %66 : vector<2x16x16x16xbf16> to vector<512x16xbf16>
    %68 = arith.extf %67 : vector<512x16xbf16> to vector<512x16xf32>
    %69 = arith.addf %65, %68 : vector<512x16xf32>
    %cst_69 = arith.constant 0.000000e+00 : f32
    %70 = vector.broadcast %cst_69 : f32 to vector<512x16xf32>
    %71 = arith.maximumf %69, %70 : vector<512x16xf32>
    %72 = vector.shape_cast %71 : vector<512x16xf32> to vector<2x16x16x16xf32>
    %73 = arith.truncf %72 : vector<2x16x16x16xf32> to vector<2x16x16x16xbf16>
    %c0_70 = arith.constant 0 : index
    %c0_71 = arith.constant 0 : index
    %c0_72 = arith.constant 0 : index
    %c0_73 = arith.constant 0 : index
    %74 = vector.load %arg8[%c0_70, %c0_71, %c0_72, %c0_73] : memref<2x16x16x16xbf16, #tpu.memory_space<vmem>>, vector<2x16x16x16xbf16>
    tpu.vector_store %arg8[%c0_70, %c0_71, %c0_72, %c0_73], %73 {strides = array<i32>} : memref<2x16x16x16xbf16, #tpu.memory_space<vmem>>, vector<2x16x16x16xbf16>,
    return
  }
  func.func @transform_0(%arg0: i32) -> (i32, i32, i32, i32) {
    %c0_i32 = arith.constant 0 : i32
    %c0_i32_0 = arith.constant 0 : i32
    %c0_i32_1 = arith.constant 0 : i32
    %c0_i32_2 = arith.constant 0 : i32
    return %arg0, %c0_i32, %c0_i32_0, %c0_i32_1 : i32, i32, i32, i32
  }
  func.func @transform_1(%arg0: i32) -> (i32, i32) {
    %c0_i32 = arith.constant 0 : i32
    %c0_i32_0 = arith.constant 0 : i32
    %c0_i32_1 = arith.constant 0 : i32
    return %c0_i32, %c0_i32_0 : i32, i32
  }
  func.func @transform_2(%arg0: i32) -> (i32, i32) {
    %c0_i32 = arith.constant 0 : i32
    %c0_i32_0 = arith.constant 0 : i32
    %c0_i32_1 = arith.constant 0 : i32
    return %c0_i32, %c0_i32_0 : i32, i32
  }
  func.func @transform_3(%arg0: i32) -> (i32, i32, i32) {
    %c0_i32 = arith.constant 0 : i32
    %c0_i32_0 = arith.constant 0 : i32
    %c0_i32_1 = arith.constant 0 : i32
    %c0_i32_2 = arith.constant 0 : i32
    return %c0_i32, %c0_i32_0, %c0_i32_1 : i32, i32, i32
  }
  func.func @transform_4(%arg0: i32) -> (i32, i32) {
    %c0_i32 = arith.constant 0 : i32
    %c0_i32_0 = arith.constant 0 : i32
    %c0_i32_1 = arith.constant 0 : i32
    return %c0_i32, %c0_i32_0 : i32, i32
  }
  func.func @transform_5(%arg0: i32) -> (i32, i32) {
    %c0_i32 = arith.constant 0 : i32
    %c0_i32_0 = arith.constant 0 : i32
    %c0_i32_1 = arith.constant 0 : i32
    return %c0_i32, %c0_i32_0 : i32, i32
  }
  func.func @transform_6(%arg0: i32) -> (i32, i32) {
    %c0_i32 = arith.constant 0 : i32
    %c0_i32_0 = arith.constant 0 : i32
    %c0_i32_1 = arith.constant 0 : i32
    return %c0_i32, %c0_i32_0 : i32, i32
  }
  func.func @transform_7(%arg0: i32) -> (i32, i32, i32, i32) {
    %c0_i32 = arith.constant 0 : i32
    %c0_i32_0 = arith.constant 0 : i32
    %c0_i32_1 = arith.constant 0 : i32
    %c0_i32_2 = arith.constant 0 : i32
    return %arg0, %c0_i32, %c0_i32_0, %c0_i32_1 : i32, i32, i32, i32
  }
}

</mosaic_0001>

<llo_original>
// kernel: tpu_custom_call.1
$region0: #{tpu_custom_call.1}
  #allocation0 [shape = 'u32[]', space=smem, size = 0x4, offset = 0x4, fixed_abs, tag = 'smem constant byte address 0x4 - core index']
  #allocation1 [shape = 'u32[144,128]{1,0:T(1,128)}', space=vmem, size = 0x12000, scoped, tag = 'internal scratch']
  #allocation2 [shape = 'bf16[2,18,16,12]{3,2,1,0:T(8,128)(2,1)}', space=vmem, size = 0x24000, scoped, tag = 'scratch operand']
  #allocation3 [shape = 'f32[512,4]{1,0:T(8,128)}', space=vmem, size = 0x40000, scoped, tag = 'scratch operand']
  %s0 = inlined_call_operand.hbm [shape: bf16[2,16,16,16], index: 0, kind: input, shape index: {}]
  %s1 = inlined_call_operand.vmem [shape: bf16[16,4], index: 1, kind: input, shape index: {}]
  %s2 = inlined_call_operand.vmem [shape: f32[1,4], index: 2, kind: input, shape index: {}]
  %s3 = inlined_call_operand.vmem [shape: bf16[3,12,4], index: 3, kind: input, shape index: {}]
  %s4 = inlined_call_operand.vmem [shape: f32[1,4], index: 4, kind: input, shape index: {}]
  %s5 = inlined_call_operand.vmem [shape: bf16[4,16], index: 5, kind: input, shape index: {}]
  %s6 = inlined_call_operand.vmem [shape: f32[1,16], index: 6, kind: input, shape index: {}]
  %s7 = inlined_call_operand.hbm [shape: bf16[2,16,16,16], index: 7, kind: output, shape index: {}]
  %s8 = sld [smem:[#allocation0]]
  $region42: #{tpu_custom_call.1} parent=0
    _
  %s10 = ssub.s32 1, %s8
  %s11 = scalar_select 0, %s10, %s8
  $region1: #{tpu_custom_call.1} parent=0
    #allocation4 [shape = 'u8[131072]{0}', space=vmem, size = 0x20000, scoped, tag = 'input window, operand 0, single buffered']
    #allocation5 [shape = 's32[1]{0}', space=sflag, size = 0x4, scoped, tag = 'scoped memory for tpu_custom_call.1']
    #allocation6 [shape = 's32[1]{0}', space=sflag, size = 0x4, scoped, tag = 'scoped memory for tpu_custom_call.1']
    #allocation7 [shape = 'u8[131072]{0}', space=vmem, size = 0x20000, scoped, tag = 'output window, operand 0, single buffered']
    %12 = vsyncpa [#allocation5], 0
    %13 = vsyncpa [#allocation6], 0
    // Predicated region
    $region2: #{tpu_custom_call.1} parent=1 // pred_check
      _
    $region3: #{tpu_custom_call.1} parent=1 // pred_check_branch
      %15 = sbr.rel (0) target = $region5
    $region4: #{tpu_custom_call.1} parent=1 // pred_region
      %s17 = ssub.s32 4096, 4096
      %18 = vsyncadd [#allocation5], %s17
      %s19 = sshll.u32 [#allocation4], 4
      %s20 = int_to_ptr.vmem [resolvable:$true] %s19
      %25 = dma.hbm_to_vmem [thread:$0]  %s0, 4096, %s20, [#allocation5], 64, 64, 4
    $region5: #{tpu_custom_call.1} parent=1 // pred_fallthru
      _
    // Predicated region
    $region6: #{tpu_custom_call.1} parent=1 // pred_check
      _
    $region7: #{tpu_custom_call.1} parent=1 // pred_check_branch
      %27 = sbr.rel (0) target = $region9
    $region8: #{tpu_custom_call.1} parent=1 // pred_region
      _
    $region9: #{tpu_custom_call.1} parent=1 // pred_fallthru
      _
    // Predicated region
    $region10: #{tpu_custom_call.1} parent=1 // pred_check
      _
    $region11: #{tpu_custom_call.1} parent=1 // pred_check_branch
      %29 = sbr.rel (0) target = $region13
    $region12: #{tpu_custom_call.1} parent=1 // pred_region
      _
    $region13: #{tpu_custom_call.1} parent=1 // pred_fallthru
      _
    // Predicated region
    $region14: #{tpu_custom_call.1} parent=1 // pred_check
      _
    $region15: #{tpu_custom_call.1} parent=1 // pred_check_branch
      %31 = sbr.rel (0) target = $region17
    $region16: #{tpu_custom_call.1} parent=1 // pred_region
      _
    $region17: #{tpu_custom_call.1} parent=1 // pred_fallthru
      _
    // Predicated region
    $region18: #{tpu_custom_call.1} parent=1 // pred_check
      _
    $region19: #{tpu_custom_call.1} parent=1 // pred_check_branch
      %33 = sbr.rel (0) target = $region21
    $region20: #{tpu_custom_call.1} parent=1 // pred_region
      _
    $region21: #{tpu_custom_call.1} parent=1 // pred_fallthru
      _
    // Predicated region
    $region22: #{tpu_custom_call.1} parent=1 // pred_check
      _
    $region23: #{tpu_custom_call.1} parent=1 // pred_check_branch
      %35 = sbr.rel (0) target = $region25
    $region24: #{tpu_custom_call.1} parent=1 // pred_region
      _
    $region25: #{tpu_custom_call.1} parent=1 // pred_fallthru
      _
    // Predicated region
    $region26: #{tpu_custom_call.1} parent=1 // pred_check
      _
    $region27: #{tpu_custom_call.1} parent=1 // pred_check_branch
      %37 = sbr.rel (0) target = $region29
    $region28: #{tpu_custom_call.1} parent=1 // pred_region
      _
    $region29: #{tpu_custom_call.1} parent=1 // pred_fallthru
      _
    // Predicated region
    $region30: #{tpu_custom_call.1} parent=1 // pred_check
      _
    $region31: #{tpu_custom_call.1} parent=1 // pred_check_branch
      %39 = sbr.rel (0) target = $region33
    $region32: #{tpu_custom_call.1} parent=1 // pred_region
      %40 = dma.done [#allocation5], 4096
    $region33: #{tpu_custom_call.1} parent=1 // pred_fallthru
      _
    %v42 = vld [vmem:[#allocation4] sm:$0xf]
    %v43 = vld [vmem:[#allocation4 + $0x4] sm:$0xf]
    %v44 = vld [vmem:[#allocation4 + $0x8] sm:$0xf]
    %v45 = vld [vmem:[#allocation4 + $0xc] sm:$0xf]
    %v46 = vld [vmem:[#allocation4 + $0x10] sm:$0xf]
    %v47 = vld [vmem:[#allocation4 + $0x14] sm:$0xf]
    %v48 = vld [vmem:[#allocation4 + $0x18] sm:$0xf]
    %v49 = vld [vmem:[#allocation4 + $0x1c] sm:$0xf]
    %v50 = vld [vmem:[#allocation4 + $0x20] sm:$0xf]
    %v51 = vld [vmem:[#allocation4 + $0x24] sm:$0xf]
    %v52 = vld [vmem:[#allocation4 + $0x28] sm:$0xf]
    %v53 = vld [vmem:[#allocation4 + $0x2c] sm:$0xf]
    %v54 = vld [vmem:[#allocation4 + $0x30] sm:$0xf]
    %v55 = vld [vmem:[#allocation4 + $0x34] sm:$0xf]
    %v56 = vld [vmem:[#allocation4 + $0x38] sm:$0xf]
    %v57 = vld [vmem:[#allocation4 + $0x3c] sm:$0xf]
    %v58 = vld [vmem:[#allocation4 + $0x40] sm:$0xf]
    %v59 = vld [vmem:[#allocation4 + $0x44] sm:$0xf]
    %v60 = vld [vmem:[#allocation4 + $0x48] sm:$0xf]
    %v61 = vld [vmem:[#allocation4 + $0x4c] sm:$0xf]
    %v62 = vld [vmem:[#allocation4 + $0x50] sm:$0xf]
    %v63 = vld [vmem:[#allocation4 + $0x54] sm:$0xf]
    %v64 = vld [vmem:[#allocation4 + $0x58] sm:$0xf]
    %v65 = vld [vmem:[#allocation4 + $0x5c] sm:$0xf]
    %v66 = vld [vmem:[#allocation4 + $0x60] sm:$0xf]
    %v67 = vld [vmem:[#allocation4 + $0x64] sm:$0xf]
    %v68 = vld [vmem:[#allocation4 + $0x68] sm:$0xf]
    %v69 = vld [vmem:[#allocation4 + $0x6c] sm:$0xf]
    %v70 = vld [vmem:[#allocation4 + $0x70] sm:$0xf]
    %v71 = vld [vmem:[#allocation4 + $0x74] sm:$0xf]
    %v72 = vld [vmem:[#allocation4 + $0x78] sm:$0xf]
    %v73 = vld [vmem:[#allocation4 + $0x7c] sm:$0xf]
    %v74 = vld [vmem:[#allocation4 + $0x80] sm:$0xf]
    %v75 = vld [vmem:[#allocation4 + $0x84] sm:$0xf]
    %v76 = vld [vmem:[#allocation4 + $0x88] sm:$0xf]
    %v77 = vld [vmem:[#allocation4 + $0x8c] sm:$0xf]
    %v78 = vld [vmem:[#allocation4 + $0x90] sm:$0xf]
    %v79 = vld [vmem:[#allocation4 + $0x94] sm:$0xf]
    %v80 = vld [vmem:[#allocation4 + $0x98] sm:$0xf]
    %v81 = vld [vmem:[#allocation4 + $0x9c] sm:$0xf]
    %v82 = vld [vmem:[#allocation4 + $0xa0] sm:$0xf]
    %v83 = vld [vmem:[#allocation4 + $0xa4] sm:$0xf]
    %v84 = vld [vmem:[#allocation4 + $0xa8] sm:$0xf]
    %v85 = vld [vmem:[#allocation4 + $0xac] sm:$0xf]
    %v86 = vld [vmem:[#allocation4 + $0xb0] sm:$0xf]
    %v87 = vld [vmem:[#allocation4 + $0xb4] sm:$0xf]
    %v88 = vld [vmem:[#allocation4 + $0xb8] sm:$0xf]
    %v89 = vld [vmem:[#allocation4 + $0xbc] sm:$0xf]
    %v90 = vld [vmem:[#allocation4 + $0xc0] sm:$0xf]
    %v91 = vld [vmem:[#allocation4 + $0xc4] sm:$0xf]
    %v92 = vld [vmem:[#allocation4 + $0xc8] sm:$0xf]
    %v93 = vld [vmem:[#allocation4 + $0xcc] sm:$0xf]
    %v94 = vld [vmem:[#allocation4 + $0xd0] sm:$0xf]
    %v95 = vld [vmem:[#allocation4 + $0xd4] sm:$0xf]
    %v96 = vld [vmem:[#allocation4 + $0xd8] sm:$0xf]
    %v97 = vld [vmem:[#allocation4 + $0xdc] sm:$0xf]
    %v98 = vld [vmem:[#allocation4 + $0xe0] sm:$0xf]
    %v99 = vld [vmem:[#allocation4 + $0xe4] sm:$0xf]
    %v100 = vld [vmem:[#allocation4 + $0xe8] sm:$0xf]
    %v101 = vld [vmem:[#allocation4 + $0xec] sm:$0xf]
    %v102 = vld [vmem:[#allocation4 + $0xf0] sm:$0xf]
    %v103 = vld [vmem:[#allocation4 + $0xf4] sm:$0xf]
    %v104 = vld [vmem:[#allocation4 + $0xf8] sm:$0xf]
    %v105 = vld [vmem:[#allocation4 + $0xfc] sm:$0xf]
    %v106 = vld [vmem:[%s1] sm:$0xf]
    %v107 = vld [vmem:[%s1 + $0x4] sm:$0xf]
    %v108 = vld [vmem:[%s2] sm:$0x1]
    %v110 = vlaneseq
    %v111 = vshrl.u32 %v110, 7
    %v112 = vsub.s32 0, %v111
    %v113 = vrot.slane %v108, %v112
    %v179 = vunpack.c.l.b16 %v42
    %v180 = vunpack.c.l.b16 %v43
    %v181 = vunpack.c.l.b16 %v44
    %v182 = vunpack.c.l.b16 %v45
    %v183 = vunpack.c.l.b16 %v46
    %v184 = vunpack.c.l.b16 %v47
    %v185 = vunpack.c.l.b16 %v48
    %v186 = vunpack.c.l.b16 %v49
    %v187 = vunpack.c.l.b16 %v50
    %v188 = vunpack.c.l.b16 %v51
    %v189 = vunpack.c.l.b16 %v52
    %v190 = vunpack.c.l.b16 %v53
    %v191 = vunpack.c.l.b16 %v54
    %v192 = vunpack.c.l.b16 %v55
    %v193 = vunpack.c.l.b16 %v56
    %v194 = vunpack.c.l.b16 %v57
    %v195 = vunpack.c.l.b16 %v58
    %v196 = vunpack.c.l.b16 %v59
    %v197 = vunpack.c.l.b16 %v60
    %v198 = vunpack.c.l.b16 %v61
    %v199 = vunpack.c.l.b16 %v62
    %v200 = vunpack.c.l.b16 %v63
    %v201 = vunpack.c.l.b16 %v64
    %v202 = vunpack.c.l.b16 %v65
    %v203 = vunpack.c.l.b16 %v66
    %v204 = vunpack.c.l.b16 %v67
    %v205 = vunpack.c.l.b16 %v68
    %v206 = vunpack.c.l.b16 %v69
    %v207 = vunpack.c.l.b16 %v70
    %v208 = vunpack.c.l.b16 %v71
    %v209 = vunpack.c.l.b16 %v72
    %v210 = vunpack.c.l.b16 %v73
    %v211 = vunpack.c.l.b16 %v74
    %v212 = vunpack.c.l.b16 %v75
    %v213 = vunpack.c.l.b16 %v76
    %v214 = vunpack.c.l.b16 %v77
    %v215 = vunpack.c.l.b16 %v78
    %v216 = vunpack.c.l.b16 %v79
    %v217 = vunpack.c.l.b16 %v80
    %v218 = vunpack.c.l.b16 %v81
    %v219 = vunpack.c.l.b16 %v82
    %v220 = vunpack.c.l.b16 %v83
    %v221 = vunpack.c.l.b16 %v84
    %v222 = vunpack.c.l.b16 %v85
    %v223 = vunpack.c.l.b16 %v86
    %v224 = vunpack.c.l.b16 %v87
    %v225 = vunpack.c.l.b16 %v88
    %v226 = vunpack.c.l.b16 %v89
    %v227 = vunpack.c.l.b16 %v90
    %v228 = vunpack.c.l.b16 %v91
    %v229 = vunpack.c.l.b16 %v92
    %v230 = vunpack.c.l.b16 %v93
    %v231 = vunpack.c.l.b16 %v94
    %v232 = vunpack.c.l.b16 %v95
    %v233 = vunpack.c.l.b16 %v96
    %v234 = vunpack.c.l.b16 %v97
    %v235 = vunpack.c.l.b16 %v98
    %v236 = vunpack.c.l.b16 %v99
    %v237 = vunpack.c.l.b16 %v100
    %v238 = vunpack.c.l.b16 %v101
    %v239 = vunpack.c.l.b16 %v102
    %v240 = vunpack.c.l.b16 %v103
    %v241 = vunpack.c.l.b16 %v104
    %v242 = vunpack.c.l.b16 %v105
    %v243 = vpack.c.b16 %v180, %v179
    %v244 = vpack.c.b16 %v182, %v181
    %v245 = vpack.c.b16 %v184, %v183
    %v246 = vpack.c.b16 %v186, %v185
    %v247 = vpack.c.b16 %v188, %v187
    %v248 = vpack.c.b16 %v190, %v189
    %v249 = vpack.c.b16 %v192, %v191
    %v250 = vpack.c.b16 %v194, %v193
    %v251 = vpack.c.b16 %v196, %v195
    %v252 = vpack.c.b16 %v198, %v197
    %v253 = vpack.c.b16 %v200, %v199
    %v254 = vpack.c.b16 %v202, %v201
    %v255 = vpack.c.b16 %v204, %v203
    %v256 = vpack.c.b16 %v206, %v205
    %v257 = vpack.c.b16 %v208, %v207
    %v258 = vpack.c.b16 %v210, %v209
    %v259 = vpack.c.b16 %v212, %v211
    %v260 = vpack.c.b16 %v214, %v213
    %v261 = vpack.c.b16 %v216, %v215
    %v262 = vpack.c.b16 %v218, %v217
    %v263 = vpack.c.b16 %v220, %v219
    %v264 = vpack.c.b16 %v222, %v221
    %v265 = vpack.c.b16 %v224, %v223
    %v266 = vpack.c.b16 %v226, %v225
    %v267 = vpack.c.b16 %v228, %v227
    %v268 = vpack.c.b16 %v230, %v229
    %v269 = vpack.c.b16 %v232, %v231
    %v270 = vpack.c.b16 %v234, %v233
    %v271 = vpack.c.b16 %v236, %v235
    %v272 = vpack.c.b16 %v238, %v237
    %v273 = vpack.c.b16 %v240, %v239
    %v274 = vpack.c.b16 %v242, %v241
    %v277 = vunpack.c.l.b16 %v106
    %v278 = vunpack.c.l.b16 %v107
    %v279 = vpack.c.b16 %v278, %v277
    %vm281 = vcmask 130048
    %v283 = vsel %vm281, %v243, 0
    %v286 = vsel %vm281, %v244, 0
    %v289 = vsel %vm281, %v245, 0
    %v292 = vsel %vm281, %v246, 0
    %v295 = vsel %vm281, %v247, 0
    %v298 = vsel %vm281, %v248, 0
    %v301 = vsel %vm281, %v249, 0
    %v304 = vsel %vm281, %v250, 0
    %v307 = vsel %vm281, %v251, 0
    %v310 = vsel %vm281, %v252, 0
    %v313 = vsel %vm281, %v253, 0
    %v316 = vsel %vm281, %v254, 0
    %v319 = vsel %vm281, %v255, 0
    %v322 = vsel %vm281, %v256, 0
    %v325 = vsel %vm281, %v257, 0
    %v328 = vsel %vm281, %v258, 0
    %v331 = vsel %vm281, %v259, 0
    %v334 = vsel %vm281, %v260, 0
    %v337 = vsel %vm281, %v261, 0
    %v340 = vsel %vm281, %v262, 0
    %v343 = vsel %vm281, %v263, 0
    %v346 = vsel %vm281, %v264, 0
    %v349 = vsel %vm281, %v265, 0
    %v352 = vsel %vm281, %v266, 0
    %v355 = vsel %vm281, %v267, 0
    %v358 = vsel %vm281, %v268, 0
    %v361 = vsel %vm281, %v269, 0
    %v364 = vsel %vm281, %v270, 0
    %v367 = vsel %vm281, %v271, 0
    %v370 = vsel %vm281, %v272, 0
    %v373 = vsel %vm281, %v273, 0
    %v376 = vsel %vm281, %v274, 0
    %378 = vmatprep.subr.bf16.mxu0 0
    %379 = vmatpush1.bf16.msra.mxu0 0
    %380 = vmatprep.subr.bf16.mxu0 0
    %381 = vmatpush1.bf16.msra.mxu0 0
    %382 = vmatprep.subr.bf16.mxu0 0
    %383 = vmatpush1.bf16.msra.mxu0 0
    %384 = vmatprep.subr.bf16.mxu0 0
    %385 = vmatpush1.bf16.msra.mxu0 0
    %386 = vmatprep.subr.bf16.mxu0 0
    %387 = vmatpush1.bf16.msra.mxu0 0
    %388 = vmatprep.subr.bf16.mxu0 0
    %389 = vmatpush1.bf16.msra.mxu0 0
    %390 = vmatprep.subr.bf16.mxu0 0
    %391 = vmatpush1.bf16.msra.mxu0 0
    %392 = vmatprep.subr.bf16.mxu0 0
    %393 = vmatpush1.bf16.msra.mxu0 %v279
    %394 = vmatprep.subr.bf16.mxu0 0
    %395 = vmatpush2.bf16.msra.mxu0 0
    %396 = vmatprep.subr.bf16.mxu0 0
    %397 = vmatpush2.bf16.msra.mxu0 0
    %398 = vmatprep.subr.bf16.mxu0 0
    %399 = vmatpush2.bf16.msra.mxu0 0
    %400 = vmatprep.subr.bf16.mxu0 0
    %401 = vmatpush2.bf16.msra.mxu0 0
    %402 = vmatprep.subr.bf16.mxu0 0
    %403 = vmatpush2.bf16.msra.mxu0 0
    %404 = vmatprep.subr.bf16.mxu0 0
    %405 = vmatpush2.bf16.msra.mxu0 0
    %406 = vmatprep.subr.bf16.mxu0 0
    %407 = vmatpush2.bf16.msra.mxu0 0
    %408 = vmatprep.subr.bf16.mxu0 0
    %409 = vmatpush2.bf16.msra.mxu0 0
    %410 = vmatprep.mubr.bf16.mxu0 0
    %411 = vmatmul.mubr.bf16.gmra.mxu0 %v283
    %v412 = vpop.f32.mrf.mxu0
    %v413 = vadd.f32 %v113, %v412
    %v414 = vpop.f32.mrf.mxu0
    %v415 = vpop.f32.mrf.mxu0
    %v416 = vadd.f32 %v113, %v415
    %v417 = vpop.f32.mrf.mxu0
    %418 = vmatprep.mubr.bf16.mxu0 0
    %419 = vmatmul.mubr.bf16.gmra.mxu0 %v286
    %v420 = vpop.f32.mrf.mxu0
    %v421 = vadd.f32 %v113, %v420
    %v422 = vpop.f32.mrf.mxu0
    %v423 = vpop.f32.mrf.mxu0
    %v424 = vadd.f32 %v113, %v423
    %v425 = vpop.f32.mrf.mxu0
    %426 = vmatprep.mubr.bf16.mxu0 0
    %427 = vmatmul.mubr.bf16.gmra.mxu0 %v289
    %v428 = vpop.f32.mrf.mxu0
    %v429 = vadd.f32 %v113, %v428
    %v430 = vpop.f32.mrf.mxu0
    %v431 = vpop.f32.mrf.mxu0
    %v432 = vadd.f32 %v113, %v431
    %v433 = vpop.f32.mrf.mxu0
    %434 = vmatprep.mubr.bf16.mxu0 0
    %435 = vmatmul.mubr.bf16.gmra.mxu0 %v292
    %v436 = vpop.f32.mrf.mxu0
    %v437 = vadd.f32 %v113, %v436
    %v438 = vpop.f32.mrf.mxu0
    %v439 = vpop.f32.mrf.mxu0
    %v440 = vadd.f32 %v113, %v439
    %v441 = vpop.f32.mrf.mxu0
    %442 = vmatprep.mubr.bf16.mxu0 0
    %443 = vmatmul.mubr.bf16.gmra.mxu0 %v295
    %v444 = vpop.f32.mrf.mxu0
    %v445 = vadd.f32 %v113, %v444
    %v446 = vpop.f32.mrf.mxu0
    %v447 = vpop.f32.mrf.mxu0
    %v448 = vadd.f32 %v113, %v447
    %v449 = vpop.f32.mrf.mxu0
    %450 = vmatprep.mubr.bf16.mxu0 0
    %451 = vmatmul.mubr.bf16.gmra.mxu0 %v298
    %v452 = vpop.f32.mrf.mxu0
    %v453 = vadd.f32 %v113, %v452
    %v454 = vpop.f32.mrf.mxu0
    %v455 = vpop.f32.mrf.mxu0
    %v456 = vadd.f32 %v113, %v455
    %v457 = vpop.f32.mrf.mxu0
    %458 = vmatprep.mubr.bf16.mxu0 0
    %459 = vmatmul.mubr.bf16.gmra.mxu0 %v301
    %v460 = vpop.f32.mrf.mxu0
    %v461 = vadd.f32 %v113, %v460
    %v462 = vpop.f32.mrf.mxu0
    %v463 = vpop.f32.mrf.mxu0
    %v464 = vadd.f32 %v113, %v463
    %v465 = vpop.f32.mrf.mxu0
    %466 = vmatprep.mubr.bf16.mxu0 0
    %467 = vmatmul.mubr.bf16.gmra.mxu0 %v304
    %v468 = vpop.f32.mrf.mxu0
    %v469 = vadd.f32 %v113, %v468
    %v470 = vpop.f32.mrf.mxu0
    %v471 = vpop.f32.mrf.mxu0
    %v472 = vadd.f32 %v113, %v471
    %v473 = vpop.f32.mrf.mxu0
    %474 = vmatprep.mubr.bf16.mxu0 0
    %475 = vmatmul.mubr.bf16.gmra.mxu0 %v307
    %v476 = vpop.f32.mrf.mxu0
    %v477 = vadd.f32 %v113, %v476
    %v478 = vpop.f32.mrf.mxu0
    %v479 = vpop.f32.mrf.mxu0
    %v480 = vadd.f32 %v113, %v479
    %v481 = vpop.f32.mrf.mxu0
    %482 = vmatprep.mubr.bf16.mxu0 0
    %483 = vmatmul.mubr.bf16.gmra.mxu0 %v310
    %v484 = vpop.f32.mrf.mxu0
    %v485 = vadd.f32 %v113, %v484
    %v486 = vpop.f32.mrf.mxu0
    %v487 = vpop.f32.mrf.mxu0
    %v488 = vadd.f32 %v113, %v487
    %v489 = vpop.f32.mrf.mxu0
    %490 = vmatprep.mubr.bf16.mxu0 0
    %491 = vmatmul.mubr.bf16.gmra.mxu0 %v313
    %v492 = vpop.f32.mrf.mxu0
    %v493 = vadd.f32 %v113, %v492
    %v494 = vpop.f32.mrf.mxu0
    %v495 = vpop.f32.mrf.mxu0
    %v496 = vadd.f32 %v113, %v495
    %v497 = vpop.f32.mrf.mxu0
    %498 = vmatprep.mubr.bf16.mxu0 0
    %499 = vmatmul.mubr.bf16.gmra.mxu0 %v316
    %v500 = vpop.f32.mrf.mxu0
    %v501 = vadd.f32 %v113, %v500
    %v502 = vpop.f32.mrf.mxu0
    %v503 = vpop.f32.mrf.mxu0
    %v504 = vadd.f32 %v113, %v503
    %v505 = vpop.f32.mrf.mxu0
    %506 = vmatprep.mubr.bf16.mxu0 0
    %507 = vmatmul.mubr.bf16.gmra.mxu0 %v319
    %v508 = vpop.f32.mrf.mxu0
    %v509 = vadd.f32 %v113, %v508
    %v510 = vpop.f32.mrf.mxu0
    %v511 = vpop.f32.mrf.mxu0
    %v512 = vadd.f32 %v113, %v511
    %v513 = vpop.f32.mrf.mxu0
    %514 = vmatprep.mubr.bf16.mxu0 0
    %515 = vmatmul.mubr.bf16.gmra.mxu0 %v322
    %v516 = vpop.f32.mrf.mxu0
    %v517 = vadd.f32 %v113, %v516
    %v518 = vpop.f32.mrf.mxu0
    %v519 = vpop.f32.mrf.mxu0
    %v520 = vadd.f32 %v113, %v519
    %v521 = vpop.f32.mrf.mxu0
    %522 = vmatprep.mubr.bf16.mxu0 0
    %523 = vmatmul.mubr.bf16.gmra.mxu0 %v325
    %v524 = vpop.f32.mrf.mxu0
    %v525 = vadd.f32 %v113, %v524
    %v526 = vpop.f32.mrf.mxu0
    %v527 = vpop.f32.mrf.mxu0
    %v528 = vadd.f32 %v113, %v527
    %v529 = vpop.f32.mrf.mxu0
    %530 = vmatprep.mubr.bf16.mxu0 0
    %531 = vmatmul.mubr.bf16.gmra.mxu0 %v328
    %v532 = vpop.f32.mrf.mxu0
    %v533 = vadd.f32 %v113, %v532
    %v534 = vpop.f32.mrf.mxu0
    %v535 = vpop.f32.mrf.mxu0
    %v536 = vadd.f32 %v113, %v535
    %v537 = vpop.f32.mrf.mxu0
    %538 = vmatprep.mubr.bf16.mxu0 0
    %539 = vmatmul.mubr.bf16.gmra.mxu0 %v331
    %v540 = vpop.f32.mrf.mxu0
    %v541 = vadd.f32 %v113, %v540
    %v542 = vpop.f32.mrf.mxu0
    %v543 = vpop.f32.mrf.mxu0
    %v544 = vadd.f32 %v113, %v543
    %v545 = vpop.f32.mrf.mxu0
    %546 = vmatprep.mubr.bf16.mxu0 0
    %547 = vmatmul.mubr.bf16.gmra.mxu0 %v334
    %v548 = vpop.f32.mrf.mxu0
    %v549 = vadd.f32 %v113, %v548
    %v550 = vpop.f32.mrf.mxu0
    %v551 = vpop.f32.mrf.mxu0
    %v552 = vadd.f32 %v113, %v551
    %v553 = vpop.f32.mrf.mxu0
    %554 = vmatprep.mubr.bf16.mxu0 0
    %555 = vmatmul.mubr.bf16.gmra.mxu0 %v337
    %v556 = vpop.f32.mrf.mxu0
    %v557 = vadd.f32 %v113, %v556
    %v558 = vpop.f32.mrf.mxu0
    %v559 = vpop.f32.mrf.mxu0
    %v560 = vadd.f32 %v113, %v559
    %v561 = vpop.f32.mrf.mxu0
    %562 = vmatprep.mubr.bf16.mxu0 0
    %563 = vmatmul.mubr.bf16.gmra.mxu0 %v340
    %v564 = vpop.f32.mrf.mxu0
    %v565 = vadd.f32 %v113, %v564
    %v566 = vpop.f32.mrf.mxu0
    %v567 = vpop.f32.mrf.mxu0
    %v568 = vadd.f32 %v113, %v567
    %v569 = vpop.f32.mrf.mxu0
    %570 = vmatprep.mubr.bf16.mxu0 0
    %571 = vmatmul.mubr.bf16.gmra.mxu0 %v343
    %v572 = vpop.f32.mrf.mxu0
    %v573 = vadd.f32 %v113, %v572
    %v574 = vpop.f32.mrf.mxu0
    %v575 = vpop.f32.mrf.mxu0
    %v576 = vadd.f32 %v113, %v575
    %v577 = vpop.f32.mrf.mxu0
    %578 = vmatprep.mubr.bf16.mxu0 0
    %579 = vmatmul.mubr.bf16.gmra.mxu0 %v346
    %v580 = vpop.f32.mrf.mxu0
    %v581 = vadd.f32 %v113, %v580
    %v582 = vpop.f32.mrf.mxu0
    %v583 = vpop.f32.mrf.mxu0
    %v584 = vadd.f32 %v113, %v583
    %v585 = vpop.f32.mrf.mxu0
    %586 = vmatprep.mubr.bf16.mxu0 0
    %587 = vmatmul.mubr.bf16.gmra.mxu0 %v349
    %v588 = vpop.f32.mrf.mxu0
    %v589 = vadd.f32 %v113, %v588
    %v590 = vpop.f32.mrf.mxu0
    %v591 = vpop.f32.mrf.mxu0
    %v592 = vadd.f32 %v113, %v591
    %v593 = vpop.f32.mrf.mxu0
    %594 = vmatprep.mubr.bf16.mxu0 0
    %595 = vmatmul.mubr.bf16.gmra.mxu0 %v352
    %v596 = vpop.f32.mrf.mxu0
    %v597 = vadd.f32 %v113, %v596
    %v598 = vpop.f32.mrf.mxu0
    %v599 = vpop.f32.mrf.mxu0
    %v600 = vadd.f32 %v113, %v599
    %v601 = vpop.f32.mrf.mxu0
    %602 = vmatprep.mubr.bf16.mxu0 0
    %603 = vmatmul.mubr.bf16.gmra.mxu0 %v355
    %v604 = vpop.f32.mrf.mxu0
    %v605 = vadd.f32 %v113, %v604
    %v606 = vpop.f32.mrf.mxu0
    %v607 = vpop.f32.mrf.mxu0
    %v608 = vadd.f32 %v113, %v607
    %v609 = vpop.f32.mrf.mxu0
    %610 = vmatprep.mubr.bf16.mxu0 0
    %611 = vmatmul.mubr.bf16.gmra.mxu0 %v358
    %v612 = vpop.f32.mrf.mxu0
    %v613 = vadd.f32 %v113, %v612
    %v614 = vpop.f32.mrf.mxu0
    %v615 = vpop.f32.mrf.mxu0
    %v616 = vadd.f32 %v113, %v615
    %v617 = vpop.f32.mrf.mxu0
    %618 = vmatprep.mubr.bf16.mxu0 0
    %619 = vmatmul.mubr.bf16.gmra.mxu0 %v361
    %v620 = vpop.f32.mrf.mxu0
    %v621 = vadd.f32 %v113, %v620
    %v622 = vpop.f32.mrf.mxu0
    %v623 = vpop.f32.mrf.mxu0
    %v624 = vadd.f32 %v113, %v623
    %v625 = vpop.f32.mrf.mxu0
    %626 = vmatprep.mubr.bf16.mxu0 0
    %627 = vmatmul.mubr.bf16.gmra.mxu0 %v364
    %v628 = vpop.f32.mrf.mxu0
    %v629 = vadd.f32 %v113, %v628
    %v630 = vpop.f32.mrf.mxu0
    %v631 = vpop.f32.mrf.mxu0
    %v632 = vadd.f32 %v113, %v631
    %v633 = vpop.f32.mrf.mxu0
    %634 = vmatprep.mubr.bf16.mxu0 0
    %635 = vmatmul.mubr.bf16.gmra.mxu0 %v367
    %v636 = vpop.f32.mrf.mxu0
    %v637 = vadd.f32 %v113, %v636
    %v638 = vpop.f32.mrf.mxu0
    %v639 = vpop.f32.mrf.mxu0
    %v640 = vadd.f32 %v113, %v639
    %v641 = vpop.f32.mrf.mxu0
    %642 = vmatprep.mubr.bf16.mxu0 0
    %643 = vmatmul.mubr.bf16.gmra.mxu0 %v370
    %v644 = vpop.f32.mrf.mxu0
    %v645 = vadd.f32 %v113, %v644
    %v646 = vpop.f32.mrf.mxu0
    %v647 = vpop.f32.mrf.mxu0
    %v648 = vadd.f32 %v113, %v647
    %v649 = vpop.f32.mrf.mxu0
    %650 = vmatprep.mubr.bf16.mxu0 0
    %651 = vmatmul.mubr.bf16.gmra.mxu0 %v373
    %v652 = vpop.f32.mrf.mxu0
    %v653 = vadd.f32 %v113, %v652
    %v654 = vpop.f32.mrf.mxu0
    %v655 = vpop.f32.mrf.mxu0
    %v656 = vadd.f32 %v113, %v655
    %v657 = vpop.f32.mrf.mxu0
    %658 = vmatprep.mubr.bf16.mxu0 0
    %659 = vmatmul.mubr.bf16.gmra.mxu0 %v376
    %v660 = vpop.f32.mrf.mxu0
    %v661 = vadd.f32 %v113, %v660
    %v662 = vpop.f32.mrf.mxu0
    %v663 = vpop.f32.mrf.mxu0
    %v664 = vadd.f32 %v113, %v663
    %v665 = vpop.f32.mrf.mxu0
    %666 = vdwg.mxu0
    %v667 = vmax.f32 %v413, 0.0
    %v668 = vmax.f32 %v416, 0.0
    %v669 = vmax.f32 %v421, 0.0
    %v670 = vmax.f32 %v424, 0.0
    %v671 = vmax.f32 %v429, 0.0
    %v672 = vmax.f32 %v432, 0.0
    %v673 = vmax.f32 %v437, 0.0
    %v674 = vmax.f32 %v440, 0.0
    %v675 = vmax.f32 %v445, 0.0
    %v676 = vmax.f32 %v448, 0.0
    %v677 = vmax.f32 %v453, 0.0
    %v678 = vmax.f32 %v456, 0.0
    %v679 = vmax.f32 %v461, 0.0
    %v680 = vmax.f32 %v464, 0.0
    %v681 = vmax.f32 %v469, 0.0
    %v682 = vmax.f32 %v472, 0.0
    %v683 = vmax.f32 %v477, 0.0
    %v684 = vmax.f32 %v480, 0.0
    %v685 = vmax.f32 %v485, 0.0
    %v686 = vmax.f32 %v488, 0.0
    %v687 = vmax.f32 %v493, 0.0
    %v688 = vmax.f32 %v496, 0.0
    %v689 = vmax.f32 %v501, 0.0
    %v690 = vmax.f32 %v504, 0.0
    %v691 = vmax.f32 %v509, 0.0
    %v692 = vmax.f32 %v512, 0.0
    %v693 = vmax.f32 %v517, 0.0
    %v694 = vmax.f32 %v520, 0.0
    %v695 = vmax.f32 %v525, 0.0
    %v696 = vmax.f32 %v528, 0.0
    %v697 = vmax.f32 %v533, 0.0
    %v698 = vmax.f32 %v536, 0.0
    %v699 = vmax.f32 %v541, 0.0
    %v700 = vmax.f32 %v544, 0.0
    %v701 = vmax.f32 %v549, 0.0
    %v702 = vmax.f32 %v552, 0.0
    %v703 = vmax.f32 %v557, 0.0
    %v704 = vmax.f32 %v560, 0.0
    %v705 = vmax.f32 %v565, 0.0
    %v706 = vmax.f32 %v568, 0.0
    %v707 = vmax.f32 %v573, 0.0
    %v708 = vmax.f32 %v576, 0.0
    %v709 = vmax.f32 %v581, 0.0
    %v710 = vmax.f32 %v584, 0.0
    %v711 = vmax.f32 %v589, 0.0
    %v712 = vmax.f32 %v592, 0.0
    %v713 = vmax.f32 %v597, 0.0
    %v714 = vmax.f32 %v600, 0.0
    %v715 = vmax.f32 %v605, 0.0
    %v716 = vmax.f32 %v608, 0.0
    %v717 = vmax.f32 %v613, 0.0
    %v718 = vmax.f32 %v616, 0.0
    %v719 = vmax.f32 %v621, 0.0
    %v720 = vmax.f32 %v624, 0.0
    %v721 = vmax.f32 %v629, 0.0
    %v722 = vmax.f32 %v632, 0.0
    %v723 = vmax.f32 %v637, 0.0
    %v724 = vmax.f32 %v640, 0.0
    %v725 = vmax.f32 %v645, 0.0
    %v726 = vmax.f32 %v648, 0.0
    %v727 = vmax.f32 %v653, 0.0
    %v728 = vmax.f32 %v656, 0.0
    %v729 = vmax.f32 %v661, 0.0
    %v730 = vmax.f32 %v664, 0.0
    %v731 = vlaneseq
    %v732 = vshrl.u32 %v731, 7
    %v733 = vadd.s32 %v732, 8
    %vm734 = vcmp.eq.s32.totalorder %v732, 0
    %vm735 = vcmp.eq.s32.totalorder %v733, 0
    %v736 = vrot.slane %v667, 7
    %v737 = vrot.slane %v669, 7
    %v738 = vrot.slane %v671, 7
    %v739 = vrot.slane %v673, 7
    %v740 = vrot.slane %v675, 7
    %v741 = vrot.slane %v677, 7
    %v742 = vrot.slane %v679, 7
    %v743 = vrot.slane %v681, 7
    %v744 = vrot.slane %v683, 7
    %v745 = vrot.slane %v685, 7
    %v746 = vrot.slane %v687, 7
    %v747 = vrot.slane %v689, 7
    %v748 = vrot.slane %v691, 7
    %v749 = vrot.slane %v693, 7
    %v750 = vrot.slane %v695, 7
    %v751 = vrot.slane %v697, 7
    %v752 = vrot.slane %v699, 7
    %v753 = vrot.slane %v701, 7
    %v754 = vrot.slane %v703, 7
    %v755 = vrot.slane %v705, 7
    %v756 = vrot.slane %v707, 7
    %v757 = vrot.slane %v709, 7
    %v758 = vrot.slane %v711, 7
    %v759 = vrot.slane %v713, 7
    %v760 = vrot.slane %v715, 7
    %v761 = vrot.slane %v717, 7
    %v762 = vrot.slane %v719, 7
    %v763 = vrot.slane %v721, 7
    %v764 = vrot.slane %v723, 7
    %v765 = vrot.slane %v725, 7
    %v766 = vrot.slane %v727, 7
    %v767 = vrot.slane %v729, 7
    %v768 = vrot.slane %v668, 7
    %v769 = vrot.slane %v670, 7
    %v770 = vrot.slane %v672, 7
    %v771 = vrot.slane %v674, 7
    %v772 = vrot.slane %v676, 7
    %v773 = vrot.slane %v678, 7
    %v774 = vrot.slane %v680, 7
    %v775 = vrot.slane %v682, 7
    %v776 = vrot.slane %v684, 7
    %v777 = vrot.slane %v686, 7
    %v778 = vrot.slane %v688, 7
    %v779 = vrot.slane %v690, 7
    %v780 = vrot.slane %v692, 7
    %v781 = vrot.slane %v694, 7
    %v782 = vrot.slane %v696, 7
    %v783 = vrot.slane %v698, 7
    %v784 = vrot.slane %v700, 7
    %v785 = vrot.slane %v702, 7
    %v786 = vrot.slane %v704, 7
    %v787 = vrot.slane %v706, 7
    %v788 = vrot.slane %v708, 7
    %v789 = vrot.slane %v710, 7
    %v790 = vrot.slane %v712, 7
    %v791 = vrot.slane %v714, 7
    %v792 = vrot.slane %v716, 7
    %v793 = vrot.slane %v718, 7
    %v794 = vrot.slane %v720, 7
    %v795 = vrot.slane %v722, 7
    %v796 = vrot.slane %v724, 7
    %v797 = vrot.slane %v726, 7
    %v798 = vrot.slane %v728, 7
    %v799 = vrot.slane %v730, 7
    %vm800 = vcmp.lt.s32.totalorder %v732, 1
    %v801 = vsel %vm800, %v736, %v768
    %v802 = vsel %vm800, %v737, %v769
    %v803 = vsel %vm800, %v738, %v770
    %v804 = vsel %vm800, %v739, %v771
    %v805 = vsel %vm800, %v740, %v772
    %v806 = vsel %vm800, %v741, %v773
    %v807 = vsel %vm800, %v742, %v774
    %v808 = vsel %vm800, %v743, %v775
    %v809 = vsel %vm800, %v744, %v776
    %v810 = vsel %vm800, %v745, %v777
    %v811 = vsel %vm800, %v746, %v778
    %v812 = vsel %vm800, %v747, %v779
    %v813 = vsel %vm800, %v748, %v780
    %v814 = vsel %vm800, %v749, %v781
    %v815 = vsel %vm800, %v750, %v782
    %v816 = vsel %vm800, %v751, %v783
    %v817 = vsel %vm800, %v752, %v784
    %v818 = vsel %vm800, %v753, %v785
    %v819 = vsel %vm800, %v754, %v786
    %v820 = vsel %vm800, %v755, %v787
    %v821 = vsel %vm800, %v756, %v788
    %v822 = vsel %vm800, %v757, %v789
    %v823 = vsel %vm800, %v758, %v790
    %v824 = vsel %vm800, %v759, %v791
    %v825 = vsel %vm800, %v760, %v792
    %v826 = vsel %vm800, %v761, %v793
    %v827 = vsel %vm800, %v762, %v794
    %v828 = vsel %vm800, %v763, %v795
    %v829 = vsel %vm800, %v764, %v796
    %v830 = vsel %vm800, %v765, %v797
    %v831 = vsel %vm800, %v766, %v798
    %v832 = vsel %vm800, %v767, %v799
    %v833 = vsel %vm800, %v768, %v736
    %v834 = vsel %vm800, %v769, %v737
    %v835 = vsel %vm800, %v770, %v738
    %v836 = vsel %vm800, %v771, %v739
    %v837 = vsel %vm800, %v772, %v740
    %v838 = vsel %vm800, %v773, %v741
    %v839 = vsel %vm800, %v774, %v742
    %v840 = vsel %vm800, %v775, %v743
    %v841 = vsel %vm800, %v776, %v744
    %v842 = vsel %vm800, %v777, %v745
    %v843 = vsel %vm800, %v778, %v746
    %v844 = vsel %vm800, %v779, %v747
    %v845 = vsel %vm800, %v780, %v748
    %v846 = vsel %vm800, %v781, %v749
    %v847 = vsel %vm800, %v782, %v750
    %v848 = vsel %vm800, %v783, %v751
    %v849 = vsel %vm800, %v784, %v752
    %v850 = vsel %vm800, %v785, %v753
    %v851 = vsel %vm800, %v786, %v754
    %v852 = vsel %vm800, %v787, %v755
    %v853 = vsel %vm800, %v788, %v756
    %v854 = vsel %vm800, %v789, %v757
    %v855 = vsel %vm800, %v790, %v758
    %v856 = vsel %vm800, %v791, %v759
    %v857 = vsel %vm800, %v792, %v760
    %v858 = vsel %vm800, %v793, %v761
    %v859 = vsel %vm800, %v794, %v762
    %v860 = vsel %vm800, %v795, %v763
    %v861 = vsel %vm800, %v796, %v764
    %v862 = vsel %vm800, %v797, %v765
    %v863 = vsel %vm800, %v798, %v766
    %v864 = vsel %vm800, %v799, %v767
    %v865 = vsel %vm734, 1, 0
    %v866 = vsel %vm735, 1, 0
    %vm867 = vcmp.eq.s32.totalorder %v865, 1
    %vm868 = vcmp.eq.s32.totalorder %v866, 1
    %v869 = vsel %vm867, 0.0, %v833
    %v870 = vsel %vm868, 0.0, %v801
    %v871 = vsel %vm867, 0.0, %v834
    %v872 = vsel %vm868, 0.0, %v802
    %v873 = vsel %vm867, 0.0, %v835
    %v874 = vsel %vm868, 0.0, %v803
    %v875 = vsel %vm867, 0.0, %v836
    %v876 = vsel %vm868, 0.0, %v804
    %v877 = vsel %vm867, 0.0, %v837
    %v878 = vsel %vm868, 0.0, %v805
    %v879 = vsel %vm867, 0.0, %v838
    %v880 = vsel %vm868, 0.0, %v806
    %v881 = vsel %vm867, 0.0, %v839
    %v882 = vsel %vm868, 0.0, %v807
    %v883 = vsel %vm867, 0.0, %v840
    %v884 = vsel %vm868, 0.0, %v808
    %v885 = vsel %vm867, 0.0, %v841
    %v886 = vsel %vm868, 0.0, %v809
    %v887 = vsel %vm867, 0.0, %v842
    %v888 = vsel %vm868, 0.0, %v810
    %v889 = vsel %vm867, 0.0, %v843
    %v890 = vsel %vm868, 0.0, %v811
    %v891 = vsel %vm867, 0.0, %v844
    %v892 = vsel %vm868, 0.0, %v812
    %v893 = vsel %vm867, 0.0, %v845
    %v894 = vsel %vm868, 0.0, %v813
    %v895 = vsel %vm867, 0.0, %v846
    %v896 = vsel %vm868, 0.0, %v814
    %v897 = vsel %vm867, 0.0, %v847
    %v898 = vsel %vm868, 0.0, %v815
    %v899 = vsel %vm867, 0.0, %v848
    %v900 = vsel %vm868, 0.0, %v816
    %v901 = vsel %vm867, 0.0, %v849
    %v902 = vsel %vm868, 0.0, %v817
    %v903 = vsel %vm867, 0.0, %v850
    %v904 = vsel %vm868, 0.0, %v818
    %v905 = vsel %vm867, 0.0, %v851
    %v906 = vsel %vm868, 0.0, %v819
    %v907 = vsel %vm867, 0.0, %v852
    %v908 = vsel %vm868, 0.0, %v820
    %v909 = vsel %vm867, 0.0, %v853
    %v910 = vsel %vm868, 0.0, %v821
    %v911 = vsel %vm867, 0.0, %v854
    %v912 = vsel %vm868, 0.0, %v822
    %v913 = vsel %vm867, 0.0, %v855
    %v914 = vsel %vm868, 0.0, %v823
    %v915 = vsel %vm867, 0.0, %v856
    %v916 = vsel %vm868, 0.0, %v824
    %v917 = vsel %vm867, 0.0, %v857
    %v918 = vsel %vm868, 0.0, %v825
    %v919 = vsel %vm867, 0.0, %v858
    %v920 = vsel %vm868, 0.0, %v826
    %v921 = vsel %vm867, 0.0, %v859
    %v922 = vsel %vm868, 0.0, %v827
    %v923 = vsel %vm867, 0.0, %v860
    %v924 = vsel %vm868, 0.0, %v828
    %v925 = vsel %vm867, 0.0, %v861
    %v926 = vsel %vm868, 0.0, %v829
    %v927 = vsel %vm867, 0.0, %v862
    %v928 = vsel %vm868, 0.0, %v830
    %v929 = vsel %vm867, 0.0, %v863
    %v930 = vsel %vm868, 0.0, %v831
    %v931 = vsel %vm867, 0.0, %v864
    %v932 = vsel %vm868, 0.0, %v832
    %vm933 = vcmp.eq.s32.totalorder %v732, 15
    %vm934 = vcmp.eq.s32.totalorder %v733, 15
    %v935 = vrot.slane %v667, 1
    %v936 = vrot.slane %v669, 1
    %v937 = vrot.slane %v671, 1
    %v938 = vrot.slane %v673, 1
    %v939 = vrot.slane %v675, 1
    %v940 = vrot.slane %v677, 1
    %v941 = vrot.slane %v679, 1
    %v942 = vrot.slane %v681, 1
    %v943 = vrot.slane %v683, 1
    %v944 = vrot.slane %v685, 1
    %v945 = vrot.slane %v687, 1
    %v946 = vrot.slane %v689, 1
    %v947 = vrot.slane %v691, 1
    %v948 = vrot.slane %v693, 1
    %v949 = vrot.slane %v695, 1
    %v950 = vrot.slane %v697, 1
    %v951 = vrot.slane %v699, 1
    %v952 = vrot.slane %v701, 1
    %v953 = vrot.slane %v703, 1
    %v954 = vrot.slane %v705, 1
    %v955 = vrot.slane %v707, 1
    %v956 = vrot.slane %v709, 1
    %v957 = vrot.slane %v711, 1
    %v958 = vrot.slane %v713, 1
    %v959 = vrot.slane %v715, 1
    %v960 = vrot.slane %v717, 1
    %v961 = vrot.slane %v719, 1
    %v962 = vrot.slane %v721, 1
    %v963 = vrot.slane %v723, 1
    %v964 = vrot.slane %v725, 1
    %v965 = vrot.slane %v727, 1
    %v966 = vrot.slane %v729, 1
    %v967 = vrot.slane %v668, 1
    %v968 = vrot.slane %v670, 1
    %v969 = vrot.slane %v672, 1
    %v970 = vrot.slane %v674, 1
    %v971 = vrot.slane %v676, 1
    %v972 = vrot.slane %v678, 1
    %v973 = vrot.slane %v680, 1
    %v974 = vrot.slane %v682, 1
    %v975 = vrot.slane %v684, 1
    %v976 = vrot.slane %v686, 1
    %v977 = vrot.slane %v688, 1
    %v978 = vrot.slane %v690, 1
    %v979 = vrot.slane %v692, 1
    %v980 = vrot.slane %v694, 1
    %v981 = vrot.slane %v696, 1
    %v982 = vrot.slane %v698, 1
    %v983 = vrot.slane %v700, 1
    %v984 = vrot.slane %v702, 1
    %v985 = vrot.slane %v704, 1
    %v986 = vrot.slane %v706, 1
    %v987 = vrot.slane %v708, 1
    %v988 = vrot.slane %v710, 1
    %v989 = vrot.slane %v712, 1
    %v990 = vrot.slane %v714, 1
    %v991 = vrot.slane %v716, 1
    %v992 = vrot.slane %v718, 1
    %v993 = vrot.slane %v720, 1
    %v994 = vrot.slane %v722, 1
    %v995 = vrot.slane %v724, 1
    %v996 = vrot.slane %v726, 1
    %v997 = vrot.slane %v728, 1
    %v998 = vrot.slane %v730, 1
    %vm999 = vcmp.lt.s32.totalorder %v732, 7
    %v1000 = vsel %vm999, %v935, %v967
    %v1001 = vsel %vm999, %v936, %v968
    %v1002 = vsel %vm999, %v937, %v969
    %v1003 = vsel %vm999, %v938, %v970
    %v1004 = vsel %vm999, %v939, %v971
    %v1005 = vsel %vm999, %v940, %v972
    %v1006 = vsel %vm999, %v941, %v973
    %v1007 = vsel %vm999, %v942, %v974
    %v1008 = vsel %vm999, %v943, %v975
    %v1009 = vsel %vm999, %v944, %v976
    %v1010 = vsel %vm999, %v945, %v977
    %v1011 = vsel %vm999, %v946, %v978
    %v1012 = vsel %vm999, %v947, %v979
    %v1013 = vsel %vm999, %v948, %v980
    %v1014 = vsel %vm999, %v949, %v981
    %v1015 = vsel %vm999, %v950, %v982
    %v1016 = vsel %vm999, %v951, %v983
    %v1017 = vsel %vm999, %v952, %v984
    %v1018 = vsel %vm999, %v953, %v985
    %v1019 = vsel %vm999, %v954, %v986
    %v1020 = vsel %vm999, %v955, %v987
    %v1021 = vsel %vm999, %v956, %v988
    %v1022 = vsel %vm999, %v957, %v989
    %v1023 = vsel %vm999, %v958, %v990
    %v1024 = vsel %vm999, %v959, %v991
    %v1025 = vsel %vm999, %v960, %v992
    %v1026 = vsel %vm999, %v961, %v993
    %v1027 = vsel %vm999, %v962, %v994
    %v1028 = vsel %vm999, %v963, %v995
    %v1029 = vsel %vm999, %v964, %v996
    %v1030 = vsel %vm999, %v965, %v997
    %v1031 = vsel %vm999, %v966, %v998
    %v1032 = vsel %vm999, %v967, %v935
    %v1033 = vsel %vm999, %v968, %v936
    %v1034 = vsel %vm999, %v969, %v937
    %v1035 = vsel %vm999, %v970, %v938
    %v1036 = vsel %vm999, %v971, %v939
    %v1037 = vsel %vm999, %v972, %v940
    %v1038 = vsel %vm999, %v973, %v941
    %v1039 = vsel %vm999, %v974, %v942
    %v1040 = vsel %vm999, %v975, %v943
    %v1041 = vsel %vm999, %v976, %v944
    %v1042 = vsel %vm999, %v977, %v945
    %v1043 = vsel %vm999, %v978, %v946
    %v1044 = vsel %vm999, %v979, %v947
    %v1045 = vsel %vm999, %v980, %v948
    %v1046 = vsel %vm999, %v981, %v949
    %v1047 = vsel %vm999, %v982, %v950
    %v1048 = vsel %vm999, %v983, %v951
    %v1049 = vsel %vm999, %v984, %v952
    %v1050 = vsel %vm999, %v985, %v953
    %v1051 = vsel %vm999, %v986, %v954
    %v1052 = vsel %vm999, %v987, %v955
    %v1053 = vsel %vm999, %v988, %v956
    %v1054 = vsel %vm999, %v989, %v957
    %v1055 = vsel %vm999, %v990, %v958
    %v1056 = vsel %vm999, %v991, %v959
    %v1057 = vsel %vm999, %v992, %v960
    %v1058 = vsel %vm999, %v993, %v961
    %v1059 = vsel %vm999, %v994, %v962
    %v1060 = vsel %vm999, %v995, %v963
    %v1061 = vsel %vm999, %v996, %v964
    %v1062 = vsel %vm999, %v997, %v965
    %v1063 = vsel %vm999, %v998, %v966
    %v1064 = vsel %vm933, 1, 0
    %v1065 = vsel %vm934, 1, 0
    %vm1066 = vcmp.eq.s32.totalorder %v1064, 1
    %vm1067 = vcmp.eq.s32.totalorder %v1065, 1
    %v1068 = vsel %vm1066, 0.0, %v1000
    %v1069 = vsel %vm1067, 0.0, %v1032
    %v1070 = vsel %vm1066, 0.0, %v1001
    %v1071 = vsel %vm1067, 0.0, %v1033
    %v1072 = vsel %vm1066, 0.0, %v1002
    %v1073 = vsel %vm1067, 0.0, %v1034
    %v1074 = vsel %vm1066, 0.0, %v1003
    %v1075 = vsel %vm1067, 0.0, %v1035
    %v1076 = vsel %vm1066, 0.0, %v1004
    %v1077 = vsel %vm1067, 0.0, %v1036
    %v1078 = vsel %vm1066, 0.0, %v1005
    %v1079 = vsel %vm1067, 0.0, %v1037
    %v1080 = vsel %vm1066, 0.0, %v1006
    %v1081 = vsel %vm1067, 0.0, %v1038
    %v1082 = vsel %vm1066, 0.0, %v1007
    %v1083 = vsel %vm1067, 0.0, %v1039
    %v1084 = vsel %vm1066, 0.0, %v1008
    %v1085 = vsel %vm1067, 0.0, %v1040
    %v1086 = vsel %vm1066, 0.0, %v1009
    %v1087 = vsel %vm1067, 0.0, %v1041
    %v1088 = vsel %vm1066, 0.0, %v1010
    %v1089 = vsel %vm1067, 0.0, %v1042
    %v1090 = vsel %vm1066, 0.0, %v1011
    %v1091 = vsel %vm1067, 0.0, %v1043
    %v1092 = vsel %vm1066, 0.0, %v1012
    %v1093 = vsel %vm1067, 0.0, %v1044
    %v1094 = vsel %vm1066, 0.0, %v1013
    %v1095 = vsel %vm1067, 0.0, %v1045
    %v1096 = vsel %vm1066, 0.0, %v1014
    %v1097 = vsel %vm1067, 0.0, %v1046
    %v1098 = vsel %vm1066, 0.0, %v1015
    %v1099 = vsel %vm1067, 0.0, %v1047
    %v1100 = vsel %vm1066, 0.0, %v1016
    %v1101 = vsel %vm1067, 0.0, %v1048
    %v1102 = vsel %vm1066, 0.0, %v1017
    %v1103 = vsel %vm1067, 0.0, %v1049
    %v1104 = vsel %vm1066, 0.0, %v1018
    %v1105 = vsel %vm1067, 0.0, %v1050
    %v1106 = vsel %vm1066, 0.0, %v1019
    %v1107 = vsel %vm1067, 0.0, %v1051
    %v1108 = vsel %vm1066, 0.0, %v1020
    %v1109 = vsel %vm1067, 0.0, %v1052
    %v1110 = vsel %vm1066, 0.0, %v1021
    %v1111 = vsel %vm1067, 0.0, %v1053
    %v1112 = vsel %vm1066, 0.0, %v1022
    %v1113 = vsel %vm1067, 0.0, %v1054
    %v1114 = vsel %vm1066, 0.0, %v1023
    %v1115 = vsel %vm1067, 0.0, %v1055
    %v1116 = vsel %vm1066, 0.0, %v1024
    %v1117 = vsel %vm1067, 0.0, %v1056
    %v1118 = vsel %vm1066, 0.0, %v1025
    %v1119 = vsel %vm1067, 0.0, %v1057
    %v1120 = vsel %vm1066, 0.0, %v1026
    %v1121 = vsel %vm1067, 0.0, %v1058
    %v1122 = vsel %vm1066, 0.0, %v1027
    %v1123 = vsel %vm1067, 0.0, %v1059
    %v1124 = vsel %vm1066, 0.0, %v1028
    %v1125 = vsel %vm1067, 0.0, %v1060
    %v1126 = vsel %vm1066, 0.0, %v1029
    %v1127 = vsel %vm1067, 0.0, %v1061
    %v1128 = vsel %vm1066, 0.0, %v1030
    %v1129 = vsel %vm1067, 0.0, %v1062
    %v1130 = vsel %vm1066, 0.0, %v1031
    %v1131 = vsel %vm1067, 0.0, %v1063
    %1196 = vrot.lane.b32.xlu0 %v667, 4
    %v1197 = vpop.permute.xlu0 %1196
    %1198 = vrot.lane.b32.xlu0 %v668, 4
    %v1199 = vpop.permute.xlu0 %1198
    %1200 = vrot.lane.b32.xlu0 %v669, 4
    %v1201 = vpop.permute.xlu0 %1200
    %1202 = vrot.lane.b32.xlu0 %v670, 4
    %v1203 = vpop.permute.xlu0 %1202
    %1204 = vrot.lane.b32.xlu0 %v671, 4
    %v1205 = vpop.permute.xlu0 %1204
    %1206 = vrot.lane.b32.xlu0 %v672, 4
    %v1207 = vpop.permute.xlu0 %1206
    %1208 = vrot.lane.b32.xlu0 %v673, 4
    %v1209 = vpop.permute.xlu0 %1208
    %1210 = vrot.lane.b32.xlu0 %v674, 4
    %v1211 = vpop.permute.xlu0 %1210
    %1212 = vrot.lane.b32.xlu0 %v675, 4
    %v1213 = vpop.permute.xlu0 %1212
    %1214 = vrot.lane.b32.xlu0 %v676, 4
    %v1215 = vpop.permute.xlu0 %1214
    %1216 = vrot.lane.b32.xlu0 %v677, 4
    %v1217 = vpop.permute.xlu0 %1216
    %1218 = vrot.lane.b32.xlu0 %v678, 4
    %v1219 = vpop.permute.xlu0 %1218
    %1220 = vrot.lane.b32.xlu0 %v679, 4
    %v1221 = vpop.permute.xlu0 %1220
    %1222 = vrot.lane.b32.xlu0 %v680, 4
    %v1223 = vpop.permute.xlu0 %1222
    %1224 = vrot.lane.b32.xlu0 %v681, 4
    %v1225 = vpop.permute.xlu0 %1224
    %1226 = vrot.lane.b32.xlu0 %v682, 4
    %v1227 = vpop.permute.xlu0 %1226
    %1228 = vrot.lane.b32.xlu0 %v683, 4
    %v1229 = vpop.permute.xlu0 %1228
    %1230 = vrot.lane.b32.xlu0 %v684, 4
    %v1231 = vpop.permute.xlu0 %1230
    %1232 = vrot.lane.b32.xlu0 %v685, 4
    %v1233 = vpop.permute.xlu0 %1232
    %1234 = vrot.lane.b32.xlu0 %v686, 4
    %v1235 = vpop.permute.xlu0 %1234
    %1236 = vrot.lane.b32.xlu0 %v687, 4
    %v1237 = vpop.permute.xlu0 %1236
    %1238 = vrot.lane.b32.xlu0 %v688, 4
    %v1239 = vpop.permute.xlu0 %1238
    %1240 = vrot.lane.b32.xlu0 %v689, 4
    %v1241 = vpop.permute.xlu0 %1240
    %1242 = vrot.lane.b32.xlu0 %v690, 4
    %v1243 = vpop.permute.xlu0 %1242
    %1244 = vrot.lane.b32.xlu0 %v691, 4
    %v1245 = vpop.permute.xlu0 %1244
    %1246 = vrot.lane.b32.xlu0 %v692, 4
    %v1247 = vpop.permute.xlu0 %1246
    %1248 = vrot.lane.b32.xlu0 %v693, 4
    %v1249 = vpop.permute.xlu0 %1248
    %1250 = vrot.lane.b32.xlu0 %v694, 4
    %v1251 = vpop.permute.xlu0 %1250
    %1252 = vrot.lane.b32.xlu0 %v695, 4
    %v1253 = vpop.permute.xlu0 %1252
    %1254 = vrot.lane.b32.xlu0 %v696, 4
    %v1255 = vpop.permute.xlu0 %1254
    %1256 = vrot.lane.b32.xlu0 %v697, 4
    %v1257 = vpop.permute.xlu0 %1256
    %1258 = vrot.lane.b32.xlu0 %v698, 4
    %v1259 = vpop.permute.xlu0 %1258
    %1260 = vrot.lane.b32.xlu0 %v699, 4
    %v1261 = vpop.permute.xlu0 %1260
    %1262 = vrot.lane.b32.xlu0 %v700, 4
    %v1263 = vpop.permute.xlu0 %1262
    %1264 = vrot.lane.b32.xlu0 %v701, 4
    %v1265 = vpop.permute.xlu0 %1264
    %1266 = vrot.lane.b32.xlu0 %v702, 4
    %v1267 = vpop.permute.xlu0 %1266
    %1268 = vrot.lane.b32.xlu0 %v703, 4
    %v1269 = vpop.permute.xlu0 %1268
    %1270 = vrot.lane.b32.xlu0 %v704, 4
    %v1271 = vpop.permute.xlu0 %1270
    %1272 = vrot.lane.b32.xlu0 %v705, 4
    %v1273 = vpop.permute.xlu0 %1272
    %1274 = vrot.lane.b32.xlu0 %v706, 4
    %v1275 = vpop.permute.xlu0 %1274
    %1276 = vrot.lane.b32.xlu0 %v707, 4
    %v1277 = vpop.permute.xlu0 %1276
    %1278 = vrot.lane.b32.xlu0 %v708, 4
    %v1279 = vpop.permute.xlu0 %1278
    %1280 = vrot.lane.b32.xlu0 %v709, 4
    %v1281 = vpop.permute.xlu0 %1280
    %1282 = vrot.lane.b32.xlu0 %v710, 4
    %v1283 = vpop.permute.xlu0 %1282
    %1284 = vrot.lane.b32.xlu0 %v711, 4
    %v1285 = vpop.permute.xlu0 %1284
    %1286 = vrot.lane.b32.xlu0 %v712, 4
    %v1287 = vpop.permute.xlu0 %1286
    %1288 = vrot.lane.b32.xlu0 %v713, 4
    %v1289 = vpop.permute.xlu0 %1288
    %1290 = vrot.lane.b32.xlu0 %v714, 4
    %v1291 = vpop.permute.xlu0 %1290
    %1292 = vrot.lane.b32.xlu0 %v715, 4
    %v1293 = vpop.permute.xlu0 %1292
    %1294 = vrot.lane.b32.xlu0 %v716, 4
    %v1295 = vpop.permute.xlu0 %1294
    %1296 = vrot.lane.b32.xlu0 %v717, 4
    %v1297 = vpop.permute.xlu0 %1296
    %1298 = vrot.lane.b32.xlu0 %v718, 4
    %v1299 = vpop.permute.xlu0 %1298
    %1300 = vrot.lane.b32.xlu0 %v719, 4
    %v1301 = vpop.permute.xlu0 %1300
    %1302 = vrot.lane.b32.xlu0 %v720, 4
    %v1303 = vpop.permute.xlu0 %1302
    %1304 = vrot.lane.b32.xlu0 %v721, 4
    %v1305 = vpop.permute.xlu0 %1304
    %1306 = vrot.lane.b32.xlu0 %v722, 4
    %v1307 = vpop.permute.xlu0 %1306
    %1308 = vrot.lane.b32.xlu0 %v723, 4
    %v1309 = vpop.permute.xlu0 %1308
    %1310 = vrot.lane.b32.xlu0 %v724, 4
    %v1311 = vpop.permute.xlu0 %1310
    %1312 = vrot.lane.b32.xlu0 %v725, 4
    %v1313 = vpop.permute.xlu0 %1312
    %1314 = vrot.lane.b32.xlu0 %v726, 4
    %v1315 = vpop.permute.xlu0 %1314
    %1316 = vrot.lane.b32.xlu0 %v727, 4
    %v1317 = vpop.permute.xlu0 %1316
    %1318 = vrot.lane.b32.xlu0 %v728, 4
    %v1319 = vpop.permute.xlu0 %1318
    %1320 = vrot.lane.b32.xlu0 %v729, 4
    %v1321 = vpop.permute.xlu0 %1320
    %1322 = vrot.lane.b32.xlu0 %v730, 4
    %v1323 = vpop.permute.xlu0 %1322
    %1452 = vrot.lane.b32.xlu0 %v1068, 8
    %v1453 = vpop.permute.xlu0 %1452
    %1454 = vrot.lane.b32.xlu0 %v1069, 8
    %v1455 = vpop.permute.xlu0 %1454
    %1456 = vrot.lane.b32.xlu0 %v1070, 8
    %v1457 = vpop.permute.xlu0 %1456
    %1458 = vrot.lane.b32.xlu0 %v1071, 8
    %v1459 = vpop.permute.xlu0 %1458
    %1460 = vrot.lane.b32.xlu0 %v1072, 8
    %v1461 = vpop.permute.xlu0 %1460
    %1462 = vrot.lane.b32.xlu0 %v1073, 8
    %v1463 = vpop.permute.xlu0 %1462
    %1464 = vrot.lane.b32.xlu0 %v1074, 8
    %v1465 = vpop.permute.xlu0 %1464
    %1466 = vrot.lane.b32.xlu0 %v1075, 8
    %v1467 = vpop.permute.xlu0 %1466
    %1468 = vrot.lane.b32.xlu0 %v1076, 8
    %v1469 = vpop.permute.xlu0 %1468
    %1470 = vrot.lane.b32.xlu0 %v1077, 8
    %v1471 = vpop.permute.xlu0 %1470
    %1472 = vrot.lane.b32.xlu0 %v1078, 8
    %v1473 = vpop.permute.xlu0 %1472
    %1474 = vrot.lane.b32.xlu0 %v1079, 8
    %v1475 = vpop.permute.xlu0 %1474
    %1476 = vrot.lane.b32.xlu0 %v1080, 8
    %v1477 = vpop.permute.xlu0 %1476
    %1478 = vrot.lane.b32.xlu0 %v1081, 8
    %v1479 = vpop.permute.xlu0 %1478
    %1480 = vrot.lane.b32.xlu0 %v1082, 8
    %v1481 = vpop.permute.xlu0 %1480
    %1482 = vrot.lane.b32.xlu0 %v1083, 8
    %v1483 = vpop.permute.xlu0 %1482
    %1484 = vrot.lane.b32.xlu0 %v1084, 8
    %v1485 = vpop.permute.xlu0 %1484
    %1486 = vrot.lane.b32.xlu0 %v1085, 8
    %v1487 = vpop.permute.xlu0 %1486
    %1488 = vrot.lane.b32.xlu0 %v1086, 8
    %v1489 = vpop.permute.xlu0 %1488
    %1490 = vrot.lane.b32.xlu0 %v1087, 8
    %v1491 = vpop.permute.xlu0 %1490
    %1492 = vrot.lane.b32.xlu0 %v1088, 8
    %v1493 = vpop.permute.xlu0 %1492
    %1494 = vrot.lane.b32.xlu0 %v1089, 8
    %v1495 = vpop.permute.xlu0 %1494
    %1496 = vrot.lane.b32.xlu0 %v1090, 8
    %v1497 = vpop.permute.xlu0 %1496
    %1498 = vrot.lane.b32.xlu0 %v1091, 8
    %v1499 = vpop.permute.xlu0 %1498
    %1500 = vrot.lane.b32.xlu0 %v1092, 8
    %v1501 = vpop.permute.xlu0 %1500
    %1502 = vrot.lane.b32.xlu0 %v1093, 8
    %v1503 = vpop.permute.xlu0 %1502
    %1504 = vrot.lane.b32.xlu0 %v1094, 8
    %v1505 = vpop.permute.xlu0 %1504
    %1506 = vrot.lane.b32.xlu0 %v1095, 8
    %v1507 = vpop.permute.xlu0 %1506
    %1508 = vrot.lane.b32.xlu0 %v1096, 8
    %v1509 = vpop.permute.xlu0 %1508
    %1510 = vrot.lane.b32.xlu0 %v1097, 8
    %v1511 = vpop.permute.xlu0 %1510
    %1512 = vrot.lane.b32.xlu0 %v1098, 8
    %v1513 = vpop.permute.xlu0 %1512
    %1514 = vrot.lane.b32.xlu0 %v1099, 8
    %v1515 = vpop.permute.xlu0 %1514
    %1516 = vrot.lane.b32.xlu0 %v1100, 8
    %v1517 = vpop.permute.xlu0 %1516
    %1518 = vrot.lane.b32.xlu0 %v1101, 8
    %v1519 = vpop.permute.xlu0 %1518
    %1520 = vrot.lane.b32.xlu0 %v1102, 8
    %v1521 = vpop.permute.xlu0 %1520
    %1522 = vrot.lane.b32.xlu0 %v1103, 8
    %v1523 = vpop.permute.xlu0 %1522
    %1524 = vrot.lane.b32.xlu0 %v1104, 8
    %v1525 = vpop.permute.xlu0 %1524
    %1526 = vrot.lane.b32.xlu0 %v1105, 8
    %v1527 = vpop.permute.xlu0 %1526
    %1528 = vrot.lane.b32.xlu0 %v1106, 8
    %v1529 = vpop.permute.xlu0 %1528
    %1530 = vrot.lane.b32.xlu0 %v1107, 8
    %v1531 = vpop.permute.xlu0 %1530
    %1532 = vrot.lane.b32.xlu0 %v1108, 8
    %v1533 = vpop.permute.xlu0 %1532
    %1534 = vrot.lane.b32.xlu0 %v1109, 8
    %v1535 = vpop.permute.xlu0 %1534
    %1536 = vrot.lane.b32.xlu0 %v1110, 8
    %v1537 = vpop.permute.xlu0 %1536
    %1538 = vrot.lane.b32.xlu0 %v1111, 8
    %v1539 = vpop.permute.xlu0 %1538
    %1540 = vrot.lane.b32.xlu0 %v1112, 8
    %v1541 = vpop.permute.xlu0 %1540
    %1542 = vrot.lane.b32.xlu0 %v1113, 8
    %v1543 = vpop.permute.xlu0 %1542
    %1544 = vrot.lane.b32.xlu0 %v1114, 8
    %v1545 = vpop.permute.xlu0 %1544
    %1546 = vrot.lane.b32.xlu0 %v1115, 8
    %v1547 = vpop.permute.xlu0 %1546
    %1548 = vrot.lane.b32.xlu0 %v1116, 8
    %v1549 = vpop.permute.xlu0 %1548
    %1550 = vrot.lane.b32.xlu0 %v1117, 8
    %v1551 = vpop.permute.xlu0 %1550
    %1552 = vrot.lane.b32.xlu0 %v1118, 8
    %v1553 = vpop.permute.xlu0 %1552
    %1554 = vrot.lane.b32.xlu0 %v1119, 8
    %v1555 = vpop.permute.xlu0 %1554
    %1556 = vrot.lane.b32.xlu0 %v1120, 8
    %v1557 = vpop.permute.xlu0 %1556
    %1558 = vrot.lane.b32.xlu0 %v1121, 8
    %v1559 = vpop.permute.xlu0 %1558
    %1560 = vrot.lane.b32.xlu0 %v1122, 8
    %v1561 = vpop.permute.xlu0 %1560
    %1562 = vrot.lane.b32.xlu0 %v1123, 8
    %v1563 = vpop.permute.xlu0 %1562
    %1564 = vrot.lane.b32.xlu0 %v1124, 8
    %v1565 = vpop.permute.xlu0 %1564
    %1566 = vrot.lane.b32.xlu0 %v1125, 8
    %v1567 = vpop.permute.xlu0 %1566
    %1568 = vrot.lane.b32.xlu0 %v1126, 8
    %v1569 = vpop.permute.xlu0 %1568
    %1570 = vrot.lane.b32.xlu0 %v1127, 8
    %v1571 = vpop.permute.xlu0 %1570
    %1572 = vrot.lane.b32.xlu0 %v1128, 8
    %v1573 = vpop.permute.xlu0 %1572
    %1574 = vrot.lane.b32.xlu0 %v1129, 8
    %v1575 = vpop.permute.xlu0 %1574
    %1576 = vrot.lane.b32.xlu0 %v1130, 8
    %v1577 = vpop.permute.xlu0 %1576
    %1578 = vrot.lane.b32.xlu0 %v1131, 8
    %v1579 = vpop.permute.xlu0 %1578
    %vm1644 = vcmask 31744
    %v1645 = vsel %vm1644, %v869, %v1197
    %v1646 = vsel %vm1644, %v870, %v1199
    %v1647 = vsel %vm1644, %v871, %v1201
    %v1648 = vsel %vm1644, %v872, %v1203
    %v1649 = vsel %vm1644, %v873, %v1205
    %v1650 = vsel %vm1644, %v874, %v1207
    %v1651 = vsel %vm1644, %v875, %v1209
    %v1652 = vsel %vm1644, %v876, %v1211
    %v1653 = vsel %vm1644, %v877, %v1213
    %v1654 = vsel %vm1644, %v878, %v1215
    %v1655 = vsel %vm1644, %v879, %v1217
    %v1656 = vsel %vm1644, %v880, %v1219
    %v1657 = vsel %vm1644, %v881, %v1221
    %v1658 = vsel %vm1644, %v882, %v1223
    %v1659 = vsel %vm1644, %v883, %v1225
    %v1660 = vsel %vm1644, %v884, %v1227
    %v1661 = vsel %vm1644, %v885, %v1229
    %v1662 = vsel %vm1644, %v886, %v1231
    %v1663 = vsel %vm1644, %v887, %v1233
    %v1664 = vsel %vm1644, %v888, %v1235
    %v1665 = vsel %vm1644, %v889, %v1237
    %v1666 = vsel %vm1644, %v890, %v1239
    %v1667 = vsel %vm1644, %v891, %v1241
    %v1668 = vsel %vm1644, %v892, %v1243
    %v1669 = vsel %vm1644, %v893, %v1245
    %v1670 = vsel %vm1644, %v894, %v1247
    %v1671 = vsel %vm1644, %v895, %v1249
    %v1672 = vsel %vm1644, %v896, %v1251
    %v1673 = vsel %vm1644, %v897, %v1253
    %v1674 = vsel %vm1644, %v898, %v1255
    %v1675 = vsel %vm1644, %v899, %v1257
    %v1676 = vsel %vm1644, %v900, %v1259
    %v1677 = vsel %vm1644, %v901, %v1261
    %v1678 = vsel %vm1644, %v902, %v1263
    %v1679 = vsel %vm1644, %v903, %v1265
    %v1680 = vsel %vm1644, %v904, %v1267
    %v1681 = vsel %vm1644, %v905, %v1269
    %v1682 = vsel %vm1644, %v906, %v1271
    %v1683 = vsel %vm1644, %v907, %v1273
    %v1684 = vsel %vm1644, %v908, %v1275
    %v1685 = vsel %vm1644, %v909, %v1277
    %v1686 = vsel %vm1644, %v910, %v1279
    %v1687 = vsel %vm1644, %v911, %v1281
    %v1688 = vsel %vm1644, %v912, %v1283
    %v1689 = vsel %vm1644, %v913, %v1285
    %v1690 = vsel %vm1644, %v914, %v1287
    %v1691 = vsel %vm1644, %v915, %v1289
    %v1692 = vsel %vm1644, %v916, %v1291
    %v1693 = vsel %vm1644, %v917, %v1293
    %v1694 = vsel %vm1644, %v918, %v1295
    %v1695 = vsel %vm1644, %v919, %v1297
    %v1696 = vsel %vm1644, %v920, %v1299
    %v1697 = vsel %vm1644, %v921, %v1301
    %v1698 = vsel %vm1644, %v922, %v1303
    %v1699 = vsel %vm1644, %v923, %v1305
    %v1700 = vsel %vm1644, %v924, %v1307
    %v1701 = vsel %vm1644, %v925, %v1309
    %v1702 = vsel %vm1644, %v926, %v1311
    %v1703 = vsel %vm1644, %v927, %v1313
    %v1704 = vsel %vm1644, %v928, %v1315
    %v1705 = vsel %vm1644, %v929, %v1317
    %v1706 = vsel %vm1644, %v930, %v1319
    %v1707 = vsel %vm1644, %v931, %v1321
    %v1708 = vsel %vm1644, %v932, %v1323
    %vm1709 = vcmask 64512
    %v1710 = vsel %vm1709, %v1645, %v1453
    %v1711 = vsel %vm1709, %v1646, %v1455
    %v1712 = vsel %vm1709, %v1647, %v1457
    %v1713 = vsel %vm1709, %v1648, %v1459
    %v1714 = vsel %vm1709, %v1649, %v1461
    %v1715 = vsel %vm1709, %v1650, %v1463
    %v1716 = vsel %vm1709, %v1651, %v1465
    %v1717 = vsel %vm1709, %v1652, %v1467
    %v1718 = vsel %vm1709, %v1653, %v1469
    %v1719 = vsel %vm1709, %v1654, %v1471
    %v1720 = vsel %vm1709, %v1655, %v1473
    %v1721 = vsel %vm1709, %v1656, %v1475
    %v1722 = vsel %vm1709, %v1657, %v1477
    %v1723 = vsel %vm1709, %v1658, %v1479
    %v1724 = vsel %vm1709, %v1659, %v1481
    %v1725 = vsel %vm1709, %v1660, %v1483
    %v1726 = vsel %vm1709, %v1661, %v1485
    %v1727 = vsel %vm1709, %v1662, %v1487
    %v1728 = vsel %vm1709, %v1663, %v1489
    %v1729 = vsel %vm1709, %v1664, %v1491
    %v1730 = vsel %vm1709, %v1665, %v1493
    %v1731 = vsel %vm1709, %v1666, %v1495
    %v1732 = vsel %vm1709, %v1667, %v1497
    %v1733 = vsel %vm1709, %v1668, %v1499
    %v1734 = vsel %vm1709, %v1669, %v1501
    %v1735 = vsel %vm1709, %v1670, %v1503
    %v1736 = vsel %vm1709, %v1671, %v1505
    %v1737 = vsel %vm1709, %v1672, %v1507
    %v1738 = vsel %vm1709, %v1673, %v1509
    %v1739 = vsel %vm1709, %v1674, %v1511
    %v1740 = vsel %vm1709, %v1675, %v1513
    %v1741 = vsel %vm1709, %v1676, %v1515
    %v1742 = vsel %vm1709, %v1677, %v1517
    %v1743 = vsel %vm1709, %v1678, %v1519
    %v1744 = vsel %vm1709, %v1679, %v1521
    %v1745 = vsel %vm1709, %v1680, %v1523
    %v1746 = vsel %vm1709, %v1681, %v1525
    %v1747 = vsel %vm1709, %v1682, %v1527
    %v1748 = vsel %vm1709, %v1683, %v1529
    %v1749 = vsel %vm1709, %v1684, %v1531
    %v1750 = vsel %vm1709, %v1685, %v1533
    %v1751 = vsel %vm1709, %v1686, %v1535
    %v1752 = vsel %vm1709, %v1687, %v1537
    %v1753 = vsel %vm1709, %v1688, %v1539
    %v1754 = vsel %vm1709, %v1689, %v1541
    %v1755 = vsel %vm1709, %v1690, %v1543
    %v1756 = vsel %vm1709, %v1691, %v1545
    %v1757 = vsel %vm1709, %v1692, %v1547
    %v1758 = vsel %vm1709, %v1693, %v1549
    %v1759 = vsel %vm1709, %v1694, %v1551
    %v1760 = vsel %vm1709, %v1695, %v1553
    %v1761 = vsel %vm1709, %v1696, %v1555
    %v1762 = vsel %vm1709, %v1697, %v1557
    %v1763 = vsel %vm1709, %v1698, %v1559
    %v1764 = vsel %vm1709, %v1699, %v1561
    %v1765 = vsel %vm1709, %v1700, %v1563
    %v1766 = vsel %vm1709, %v1701, %v1565
    %v1767 = vsel %vm1709, %v1702, %v1567
    %v1768 = vsel %vm1709, %v1703, %v1569
    %v1769 = vsel %vm1709, %v1704, %v1571
    %v1770 = vsel %vm1709, %v1705, %v1573
    %v1771 = vsel %vm1709, %v1706, %v1575
    %v1772 = vsel %vm1709, %v1707, %v1577
    %v1773 = vsel %vm1709, %v1708, %v1579
    %v1774 = vpack.c.bf16 %v1711, %v1710
    %v1775 = vpack.c.bf16 %v1713, %v1712
    %v1776 = vpack.c.bf16 %v1715, %v1714
    %v1777 = vpack.c.bf16 %v1717, %v1716
    %v1778 = vpack.c.bf16 %v1719, %v1718
    %v1779 = vpack.c.bf16 %v1721, %v1720
    %v1780 = vpack.c.bf16 %v1723, %v1722
    %v1781 = vpack.c.bf16 %v1725, %v1724
    %v1782 = vpack.c.bf16 %v1727, %v1726
    %v1783 = vpack.c.bf16 %v1729, %v1728
    %v1784 = vpack.c.bf16 %v1731, %v1730
    %v1785 = vpack.c.bf16 %v1733, %v1732
    %v1786 = vpack.c.bf16 %v1735, %v1734
    %v1787 = vpack.c.bf16 %v1737, %v1736
    %v1788 = vpack.c.bf16 %v1739, %v1738
    %v1789 = vpack.c.bf16 %v1741, %v1740
    %v1790 = vpack.c.bf16 %v1743, %v1742
    %v1791 = vpack.c.bf16 %v1745, %v1744
    %v1792 = vpack.c.bf16 %v1747, %v1746
    %v1793 = vpack.c.bf16 %v1749, %v1748
    %v1794 = vpack.c.bf16 %v1751, %v1750
    %v1795 = vpack.c.bf16 %v1753, %v1752
    %v1796 = vpack.c.bf16 %v1755, %v1754
    %v1797 = vpack.c.bf16 %v1757, %v1756
    %v1798 = vpack.c.bf16 %v1759, %v1758
    %v1799 = vpack.c.bf16 %v1761, %v1760
    %v1800 = vpack.c.bf16 %v1763, %v1762
    %v1801 = vpack.c.bf16 %v1765, %v1764
    %v1802 = vpack.c.bf16 %v1767, %v1766
    %v1803 = vpack.c.bf16 %v1769, %v1768
    %v1804 = vpack.c.bf16 %v1771, %v1770
    %v1805 = vpack.c.bf16 %v1773, %v1772
    %vm1806 = vcmask 93184
    %1807 = vst.msk [vmem:[#allocation2] sm:$0xf] %vm1806, 0
    %1808 = vst.msk [vmem:[#allocation2 + $0x4] sm:$0xf] %vm1806, 0
    %1809 = vst.msk [vmem:[#allocation2 + $0x90] sm:$0xf] %vm1806, 0
    %1810 = vst.msk [vmem:[#allocation2 + $0x94] sm:$0xf] %vm1806, 0
    %s1811 = scalar_lea.vmem [#allocation2], 136
    %1812 = vst.msk [vmem:[%s1811] sm:$0xf] %vm1806, 0
    %1813 = vst.msk [vmem:[%s1811 + $0x4] sm:$0xf] %vm1806, 0
    %1814 = vst.msk [vmem:[%s1811 + $0x90] sm:$0xf] %vm1806, 0
    %1815 = vst.msk [vmem:[%s1811 + $0x94] sm:$0xf] %vm1806, 0
    %v1848 = vunpack.c.l.b16 %v1774
    %v1849 = vunpack.c.h.b16 %v1774
    %v1850 = vunpack.c.l.b16 %v1775
    %v1851 = vunpack.c.h.b16 %v1775
    %v1852 = vunpack.c.l.b16 %v1776
    %v1853 = vunpack.c.h.b16 %v1776
    %v1854 = vunpack.c.l.b16 %v1777
    %v1855 = vunpack.c.h.b16 %v1777
    %v1856 = vunpack.c.l.b16 %v1778
    %v1857 = vunpack.c.h.b16 %v1778
    %v1858 = vunpack.c.l.b16 %v1779
    %v1859 = vunpack.c.h.b16 %v1779
    %v1860 = vunpack.c.l.b16 %v1780
    %v1861 = vunpack.c.h.b16 %v1780
    %v1862 = vunpack.c.l.b16 %v1781
    %v1863 = vunpack.c.h.b16 %v1781
    %v1864 = vunpack.c.l.b16 %v1782
    %v1865 = vunpack.c.h.b16 %v1782
    %v1866 = vunpack.c.l.b16 %v1783
    %v1867 = vunpack.c.h.b16 %v1783
    %v1868 = vunpack.c.l.b16 %v1784
    %v1869 = vunpack.c.h.b16 %v1784
    %v1870 = vunpack.c.l.b16 %v1785
    %v1871 = vunpack.c.h.b16 %v1785
    %v1872 = vunpack.c.l.b16 %v1786
    %v1873 = vunpack.c.h.b16 %v1786
    %v1874 = vunpack.c.l.b16 %v1787
    %v1875 = vunpack.c.h.b16 %v1787
    %v1876 = vunpack.c.l.b16 %v1788
    %v1877 = vunpack.c.h.b16 %v1788
    %v1878 = vunpack.c.l.b16 %v1789
    %v1879 = vunpack.c.h.b16 %v1789
    %v1880 = vunpack.c.l.b16 %v1790
    %v1881 = vunpack.c.h.b16 %v1790
    %v1882 = vunpack.c.l.b16 %v1791
    %v1883 = vunpack.c.h.b16 %v1791
    %v1884 = vunpack.c.l.b16 %v1792
    %v1885 = vunpack.c.h.b16 %v1792
    %v1886 = vunpack.c.l.b16 %v1793
    %v1887 = vunpack.c.h.b16 %v1793
    %v1888 = vunpack.c.l.b16 %v1794
    %v1889 = vunpack.c.h.b16 %v1794
    %v1890 = vunpack.c.l.b16 %v1795
    %v1891 = vunpack.c.h.b16 %v1795
    %v1892 = vunpack.c.l.b16 %v1796
    %v1893 = vunpack.c.h.b16 %v1796
    %v1894 = vunpack.c.l.b16 %v1797
    %v1895 = vunpack.c.h.b16 %v1797
    %v1896 = vunpack.c.l.b16 %v1798
    %v1897 = vunpack.c.h.b16 %v1798
    %v1898 = vunpack.c.l.b16 %v1799
    %v1899 = vunpack.c.h.b16 %v1799
    %v1900 = vunpack.c.l.b16 %v1800
    %v1901 = vunpack.c.h.b16 %v1800
    %v1902 = vunpack.c.l.b16 %v1801
    %v1903 = vunpack.c.h.b16 %v1801
    %v1904 = vunpack.c.l.b16 %v1802
    %v1905 = vunpack.c.h.b16 %v1802
    %v1906 = vunpack.c.l.b16 %v1803
    %v1907 = vunpack.c.h.b16 %v1803
    %v1908 = vunpack.c.l.b16 %v1804
    %v1909 = vunpack.c.h.b16 %v1804
    %v1910 = vunpack.c.l.b16 %v1805
    %v1911 = vunpack.c.h.b16 %v1805
    %v1912 = vpack.c.b16 %v1848, %v1848
    %v1913 = vpack.c.b16 %v1849, %v1849
    %v1914 = vpack.c.b16 %v1850, %v1850
    %v1915 = vpack.c.b16 %v1851, %v1851
    %v1916 = vpack.c.b16 %v1852, %v1852
    %v1917 = vpack.c.b16 %v1853, %v1853
    %v1918 = vpack.c.b16 %v1854, %v1854
    %v1919 = vpack.c.b16 %v1855, %v1855
    %v1920 = vpack.c.b16 %v1856, %v1856
    %v1921 = vpack.c.b16 %v1857, %v1857
    %v1922 = vpack.c.b16 %v1858, %v1858
    %v1923 = vpack.c.b16 %v1859, %v1859
    %v1924 = vpack.c.b16 %v1860, %v1860
    %v1925 = vpack.c.b16 %v1861, %v1861
    %v1926 = vpack.c.b16 %v1862, %v1862
    %v1927 = vpack.c.b16 %v1863, %v1863
    %v1928 = vpack.c.b16 %v1864, %v1864
    %v1929 = vpack.c.b16 %v1865, %v1865
    %v1930 = vpack.c.b16 %v1866, %v1866
    %v1931 = vpack.c.b16 %v1867, %v1867
    %v1932 = vpack.c.b16 %v1868, %v1868
    %v1933 = vpack.c.b16 %v1869, %v1869
    %v1934 = vpack.c.b16 %v1870, %v1870
    %v1935 = vpack.c.b16 %v1871, %v1871
    %v1936 = vpack.c.b16 %v1872, %v1872
    %v1937 = vpack.c.b16 %v1873, %v1873
    %v1938 = vpack.c.b16 %v1874, %v1874
    %v1939 = vpack.c.b16 %v1875, %v1875
    %v1940 = vpack.c.b16 %v1876, %v1876
    %v1941 = vpack.c.b16 %v1877, %v1877
    %v1942 = vpack.c.b16 %v1878, %v1878
    %v1943 = vpack.c.b16 %v1879, %v1879
    %v1944 = vpack.c.b16 %v1880, %v1880
    %v1945 = vpack.c.b16 %v1881, %v1881
    %v1946 = vpack.c.b16 %v1882, %v1882
    %v1947 = vpack.c.b16 %v1883, %v1883
    %v1948 = vpack.c.b16 %v1884, %v1884
    %v1949 = vpack.c.b16 %v1885, %v1885
    %v1950 = vpack.c.b16 %v1886, %v1886
    %v1951 = vpack.c.b16 %v1887, %v1887
    %v1952 = vpack.c.b16 %v1888, %v1888
    %v1953 = vpack.c.b16 %v1889, %v1889
    %v1954 = vpack.c.b16 %v1890, %v1890
    %v1955 = vpack.c.b16 %v1891, %v1891
    %v1956 = vpack.c.b16 %v1892, %v1892
    %v1957 = vpack.c.b16 %v1893, %v1893
    %v1958 = vpack.c.b16 %v1894, %v1894
    %v1959 = vpack.c.b16 %v1895, %v1895
    %v1960 = vpack.c.b16 %v1896, %v1896
    %v1961 = vpack.c.b16 %v1897, %v1897
    %v1962 = vpack.c.b16 %v1898, %v1898
    %v1963 = vpack.c.b16 %v1899, %v1899
    %v1964 = vpack.c.b16 %v1900, %v1900
    %v1965 = vpack.c.b16 %v1901, %v1901
    %v1966 = vpack.c.b16 %v1902, %v1902
    %v1967 = vpack.c.b16 %v1903, %v1903
    %v1968 = vpack.c.b16 %v1904, %v1904
    %v1969 = vpack.c.b16 %v1905, %v1905
    %v1970 = vpack.c.b16 %v1906, %v1906
    %v1971 = vpack.c.b16 %v1907, %v1907
    %v1972 = vpack.c.b16 %v1908, %v1908
    %v1973 = vpack.c.b16 %v1909, %v1909
    %v1974 = vpack.c.b16 %v1910, %v1910
    %v1975 = vpack.c.b16 %v1911, %v1911
    %s2040 = scalar_lea.vmem [#allocation2], 8
    %2041 = vst.msk [vmem:[%s2040] sm:$0xf] %vm1806, %v1912
    %2042 = vst.msk [vmem:[%s2040 + $0x4] sm:$0xf] %vm1806, %v1913
    %2043 = vst.msk [vmem:[%s2040 + $0x8] sm:$0xf] %vm1806, %v1914
    %2044 = vst.msk [vmem:[%s2040 + $0xc] sm:$0xf] %vm1806, %v1915
    %2045 = vst.msk [vmem:[%s2040 + $0x10] sm:$0xf] %vm1806, %v1916
    %2046 = vst.msk [vmem:[%s2040 + $0x14] sm:$0xf] %vm1806, %v1917
    %2047 = vst.msk [vmem:[%s2040 + $0x18] sm:$0xf] %vm1806, %v1918
    %2048 = vst.msk [vmem:[%s2040 + $0x1c] sm:$0xf] %vm1806, %v1919
    %2049 = vst.msk [vmem:[%s2040 + $0x20] sm:$0xf] %vm1806, %v1920
    %2050 = vst.msk [vmem:[%s2040 + $0x24] sm:$0xf] %vm1806, %v1921
    %2051 = vst.msk [vmem:[%s2040 + $0x28] sm:$0xf] %vm1806, %v1922
    %2052 = vst.msk [vmem:[%s2040 + $0x2c] sm:$0xf] %vm1806, %v1923
    %2053 = vst.msk [vmem:[%s2040 + $0x30] sm:$0xf] %vm1806, %v1924
    %2054 = vst.msk [vmem:[%s2040 + $0x34] sm:$0xf] %vm1806, %v1925
    %2055 = vst.msk [vmem:[%s2040 + $0x38] sm:$0xf] %vm1806, %v1926
    %2056 = vst.msk [vmem:[%s2040 + $0x3c] sm:$0xf] %vm1806, %v1927
    %2057 = vst.msk [vmem:[%s2040 + $0x40] sm:$0xf] %vm1806, %v1928
    %2058 = vst.msk [vmem:[%s2040 + $0x44] sm:$0xf] %vm1806, %v1929
    %2059 = vst.msk [vmem:[%s2040 + $0x48] sm:$0xf] %vm1806, %v1930
    %2060 = vst.msk [vmem:[%s2040 + $0x4c] sm:$0xf] %vm1806, %v1931
    %2061 = vst.msk [vmem:[%s2040 + $0x50] sm:$0xf] %vm1806, %v1932
    %2062 = vst.msk [vmem:[%s2040 + $0x54] sm:$0xf] %vm1806, %v1933
    %2063 = vst.msk [vmem:[%s2040 + $0x58] sm:$0xf] %vm1806, %v1934
    %2064 = vst.msk [vmem:[%s2040 + $0x5c] sm:$0xf] %vm1806, %v1935
    %2065 = vst.msk [vmem:[%s2040 + $0x60] sm:$0xf] %vm1806, %v1936
    %2066 = vst.msk [vmem:[%s2040 + $0x64] sm:$0xf] %vm1806, %v1937
    %2067 = vst.msk [vmem:[%s2040 + $0x68] sm:$0xf] %vm1806, %v1938
    %2068 = vst.msk [vmem:[%s2040 + $0x6c] sm:$0xf] %vm1806, %v1939
    %2069 = vst.msk [vmem:[%s2040 + $0x70] sm:$0xf] %vm1806, %v1940
    %2070 = vst.msk [vmem:[%s2040 + $0x74] sm:$0xf] %vm1806, %v1941
    %2071 = vst.msk [vmem:[%s2040 + $0x78] sm:$0xf] %vm1806, %v1942
    %2072 = vst.msk [vmem:[%s2040 + $0x7c] sm:$0xf] %vm1806, %v1943
    %2073 = vst.msk [vmem:[%s2040 + $0x90] sm:$0xf] %vm1806, %v1944
    %2074 = vst.msk [vmem:[%s2040 + $0x94] sm:$0xf] %vm1806, %v1945
    %2075 = vst.msk [vmem:[%s2040 + $0x98] sm:$0xf] %vm1806, %v1946
    %2076 = vst.msk [vmem:[%s2040 + $0x9c] sm:$0xf] %vm1806, %v1947
    %2077 = vst.msk [vmem:[%s2040 + $0xa0] sm:$0xf] %vm1806, %v1948
    %2078 = vst.msk [vmem:[%s2040 + $0xa4] sm:$0xf] %vm1806, %v1949
    %2079 = vst.msk [vmem:[%s2040 + $0xa8] sm:$0xf] %vm1806, %v1950
    %2080 = vst.msk [vmem:[%s2040 + $0xac] sm:$0xf] %vm1806, %v1951
    %2081 = vst.msk [vmem:[%s2040 + $0xb0] sm:$0xf] %vm1806, %v1952
    %2082 = vst.msk [vmem:[%s2040 + $0xb4] sm:$0xf] %vm1806, %v1953
    %2083 = vst.msk [vmem:[%s2040 + $0xb8] sm:$0xf] %vm1806, %v1954
    %2084 = vst.msk [vmem:[%s2040 + $0xbc] sm:$0xf] %vm1806, %v1955
    %2085 = vst.msk [vmem:[%s2040 + $0xc0] sm:$0xf] %vm1806, %v1956
    %2086 = vst.msk [vmem:[%s2040 + $0xc4] sm:$0xf] %vm1806, %v1957
    %2087 = vst.msk [vmem:[%s2040 + $0xc8] sm:$0xf] %vm1806, %v1958
    %2088 = vst.msk [vmem:[%s2040 + $0xcc] sm:$0xf] %vm1806, %v1959
    %2089 = vst.msk [vmem:[%s2040 + $0xd0] sm:$0xf] %vm1806, %v1960
    %2090 = vst.msk [vmem:[%s2040 + $0xd4] sm:$0xf] %vm1806, %v1961
    %2091 = vst.msk [vmem:[%s2040 + $0xd8] sm:$0xf] %vm1806, %v1962
    %2092 = vst.msk [vmem:[%s2040 + $0xdc] sm:$0xf] %vm1806, %v1963
    %2093 = vst.msk [vmem:[%s2040 + $0xe0] sm:$0xf] %vm1806, %v1964
    %2094 = vst.msk [vmem:[%s2040 + $0xe4] sm:$0xf] %vm1806, %v1965
    %2095 = vst.msk [vmem:[%s2040 + $0xe8] sm:$0xf] %vm1806, %v1966
    %2096 = vst.msk [vmem:[%s2040 + $0xec] sm:$0xf] %vm1806, %v1967
    %2097 = vst.msk [vmem:[%s2040 + $0xf0] sm:$0xf] %vm1806, %v1968
    %2098 = vst.msk [vmem:[%s2040 + $0xf4] sm:$0xf] %vm1806, %v1969
    %2099 = vst.msk [vmem:[%s2040 + $0xf8] sm:$0xf] %vm1806, %v1970
    %2100 = vst.msk [vmem:[%s2040 + $0xfc] sm:$0xf] %vm1806, %v1971
    %2101 = vst.msk [vmem:[%s2040 + $0x100] sm:$0xf] %vm1806, %v1972
    %2102 = vst.msk [vmem:[%s2040 + $0x104] sm:$0xf] %vm1806, %v1973
    %2103 = vst.msk [vmem:[%s2040 + $0x108] sm:$0xf] %vm1806, %v1974
    %2104 = vst.msk [vmem:[%s2040 + $0x10c] sm:$0xf] %vm1806, %v1975
    %v2105 = vld [vmem:[#allocation2] sm:$0xf]
    %v2106 = vld [vmem:[#allocation2 + $0x4] sm:$0xf]
    %v2107 = vld [vmem:[#allocation2 + $0x8] sm:$0xf]
    %v2108 = vld [vmem:[#allocation2 + $0xc] sm:$0xf]
    %v2109 = vld [vmem:[#allocation2 + $0x10] sm:$0xf]
    %v2110 = vld [vmem:[#allocation2 + $0x14] sm:$0xf]
    %v2111 = vld [vmem:[#allocation2 + $0x18] sm:$0xf]
    %v2112 = vld [vmem:[#allocation2 + $0x1c] sm:$0xf]
    %v2113 = vld [vmem:[#allocation2 + $0x20] sm:$0xf]
    %v2114 = vld [vmem:[#allocation2 + $0x24] sm:$0xf]
    %v2115 = vld [vmem:[#allocation2 + $0x28] sm:$0xf]
    %v2116 = vld [vmem:[#allocation2 + $0x2c] sm:$0xf]
    %v2117 = vld [vmem:[#allocation2 + $0x30] sm:$0xf]
    %v2118 = vld [vmem:[#allocation2 + $0x34] sm:$0xf]
    %v2119 = vld [vmem:[#allocation2 + $0x38] sm:$0xf]
    %v2120 = vld [vmem:[#allocation2 + $0x3c] sm:$0xf]
    %v2121 = vld [vmem:[#allocation2 + $0x40] sm:$0xf]
    %v2122 = vld [vmem:[#allocation2 + $0x44] sm:$0xf]
    %v2123 = vld [vmem:[#allocation2 + $0x48] sm:$0xf]
    %v2124 = vld [vmem:[#allocation2 + $0x4c] sm:$0xf]
    %v2125 = vld [vmem:[#allocation2 + $0x50] sm:$0xf]
    %v2126 = vld [vmem:[#allocation2 + $0x54] sm:$0xf]
    %v2127 = vld [vmem:[#allocation2 + $0x58] sm:$0xf]
    %v2128 = vld [vmem:[#allocation2 + $0x5c] sm:$0xf]
    %v2129 = vld [vmem:[#allocation2 + $0x60] sm:$0xf]
    %v2130 = vld [vmem:[#allocation2 + $0x64] sm:$0xf]
    %v2131 = vld [vmem:[#allocation2 + $0x68] sm:$0xf]
    %v2132 = vld [vmem:[#allocation2 + $0x6c] sm:$0xf]
    %v2133 = vld [vmem:[#allocation2 + $0x70] sm:$0xf]
    %v2134 = vld [vmem:[#allocation2 + $0x74] sm:$0xf]
    %v2135 = vld [vmem:[#allocation2 + $0x78] sm:$0xf]
    %v2136 = vld [vmem:[#allocation2 + $0x7c] sm:$0xf]
    %v2137 = vld [vmem:[#allocation2 + $0x90] sm:$0xf]
    %v2138 = vld [vmem:[#allocation2 + $0x94] sm:$0xf]
    %v2139 = vld [vmem:[#allocation2 + $0x98] sm:$0xf]
    %v2140 = vld [vmem:[#allocation2 + $0x9c] sm:$0xf]
    %v2141 = vld [vmem:[#allocation2 + $0xa0] sm:$0xf]
    %v2142 = vld [vmem:[#allocation2 + $0xa4] sm:$0xf]
    %v2143 = vld [vmem:[#allocation2 + $0xa8] sm:$0xf]
    %v2144 = vld [vmem:[#allocation2 + $0xac] sm:$0xf]
    %v2145 = vld [vmem:[#allocation2 + $0xb0] sm:$0xf]
    %v2146 = vld [vmem:[#allocation2 + $0xb4] sm:$0xf]
    %v2147 = vld [vmem:[#allocation2 + $0xb8] sm:$0xf]
    %v2148 = vld [vmem:[#allocation2 + $0xbc] sm:$0xf]
    %v2149 = vld [vmem:[#allocation2 + $0xc0] sm:$0xf]
    %v2150 = vld [vmem:[#allocation2 + $0xc4] sm:$0xf]
    %v2151 = vld [vmem:[#allocation2 + $0xc8] sm:$0xf]
    %v2152 = vld [vmem:[#allocation2 + $0xcc] sm:$0xf]
    %v2153 = vld [vmem:[#allocation2 + $0xd0] sm:$0xf]
    %v2154 = vld [vmem:[#allocation2 + $0xd4] sm:$0xf]
    %v2155 = vld [vmem:[#allocation2 + $0xd8] sm:$0xf]
    %v2156 = vld [vmem:[#allocation2 + $0xdc] sm:$0xf]
    %v2157 = vld [vmem:[#allocation2 + $0xe0] sm:$0xf]
    %v2158 = vld [vmem:[#allocation2 + $0xe4] sm:$0xf]
    %v2159 = vld [vmem:[#allocation2 + $0xe8] sm:$0xf]
    %v2160 = vld [vmem:[#allocation2 + $0xec] sm:$0xf]
    %v2161 = vld [vmem:[#allocation2 + $0xf0] sm:$0xf]
    %v2162 = vld [vmem:[#allocation2 + $0xf4] sm:$0xf]
    %v2163 = vld [vmem:[#allocation2 + $0xf8] sm:$0xf]
    %v2164 = vld [vmem:[#allocation2 + $0xfc] sm:$0xf]
    %v2165 = vld [vmem:[#allocation2 + $0x100] sm:$0xf]
    %v2166 = vld [vmem:[#allocation2 + $0x104] sm:$0xf]
    %v2167 = vld [vmem:[#allocation2 + $0x108] sm:$0xf]
    %v2168 = vld [vmem:[#allocation2 + $0x10c] sm:$0xf]
    %v2169 = vld [vmem:[%s3] sm:$0xf]
    %v2170 = vld [vmem:[%s3 + $0x4] sm:$0x3]
    %v2235 = vunpack.c.l.b16 %v2105
    %v2236 = vunpack.c.l.b16 %v2106
    %v2237 = vunpack.c.l.b16 %v2107
    %v2238 = vunpack.c.l.b16 %v2108
    %v2239 = vunpack.c.l.b16 %v2109
    %v2240 = vunpack.c.l.b16 %v2110
    %v2241 = vunpack.c.l.b16 %v2111
    %v2242 = vunpack.c.l.b16 %v2112
    %v2243 = vunpack.c.l.b16 %v2113
    %v2244 = vunpack.c.l.b16 %v2114
    %v2245 = vunpack.c.l.b16 %v2115
    %v2246 = vunpack.c.l.b16 %v2116
    %v2247 = vunpack.c.l.b16 %v2117
    %v2248 = vunpack.c.l.b16 %v2118
    %v2249 = vunpack.c.l.b16 %v2119
    %v2250 = vunpack.c.l.b16 %v2120
    %v2251 = vunpack.c.l.b16 %v2121
    %v2252 = vunpack.c.l.b16 %v2122
    %v2253 = vunpack.c.l.b16 %v2123
    %v2254 = vunpack.c.l.b16 %v2124
    %v2255 = vunpack.c.l.b16 %v2125
    %v2256 = vunpack.c.l.b16 %v2126
    %v2257 = vunpack.c.l.b16 %v2127
    %v2258 = vunpack.c.l.b16 %v2128
    %v2259 = vunpack.c.l.b16 %v2129
    %v2260 = vunpack.c.l.b16 %v2130
    %v2261 = vunpack.c.l.b16 %v2131
    %v2262 = vunpack.c.l.b16 %v2132
    %v2263 = vunpack.c.l.b16 %v2133
    %v2264 = vunpack.c.l.b16 %v2134
    %v2265 = vunpack.c.l.b16 %v2135
    %v2266 = vunpack.c.l.b16 %v2136
    %v2267 = vunpack.c.l.b16 %v2137
    %v2268 = vunpack.c.l.b16 %v2138
    %v2269 = vunpack.c.l.b16 %v2139
    %v2270 = vunpack.c.l.b16 %v2140
    %v2271 = vunpack.c.l.b16 %v2141
    %v2272 = vunpack.c.l.b16 %v2142
    %v2273 = vunpack.c.l.b16 %v2143
    %v2274 = vunpack.c.l.b16 %v2144
    %v2275 = vunpack.c.l.b16 %v2145
    %v2276 = vunpack.c.l.b16 %v2146
    %v2277 = vunpack.c.l.b16 %v2147
    %v2278 = vunpack.c.l.b16 %v2148
    %v2279 = vunpack.c.l.b16 %v2149
    %v2280 = vunpack.c.l.b16 %v2150
    %v2281 = vunpack.c.l.b16 %v2151
    %v2282 = vunpack.c.l.b16 %v2152
    %v2283 = vunpack.c.l.b16 %v2153
    %v2284 = vunpack.c.l.b16 %v2154
    %v2285 = vunpack.c.l.b16 %v2155
    %v2286 = vunpack.c.l.b16 %v2156
    %v2287 = vunpack.c.l.b16 %v2157
    %v2288 = vunpack.c.l.b16 %v2158
    %v2289 = vunpack.c.l.b16 %v2159
    %v2290 = vunpack.c.l.b16 %v2160
    %v2291 = vunpack.c.l.b16 %v2161
    %v2292 = vunpack.c.l.b16 %v2162
    %v2293 = vunpack.c.l.b16 %v2163
    %v2294 = vunpack.c.l.b16 %v2164
    %v2295 = vunpack.c.l.b16 %v2165
    %v2296 = vunpack.c.l.b16 %v2166
    %v2297 = vunpack.c.l.b16 %v2167
    %v2298 = vunpack.c.l.b16 %v2168
    %v2299 = vpack.c.b16 %v2236, %v2235
    %v2300 = vpack.c.b16 %v2238, %v2237
    %v2301 = vpack.c.b16 %v2240, %v2239
    %v2302 = vpack.c.b16 %v2242, %v2241
    %v2303 = vpack.c.b16 %v2244, %v2243
    %v2304 = vpack.c.b16 %v2246, %v2245
    %v2305 = vpack.c.b16 %v2248, %v2247
    %v2306 = vpack.c.b16 %v2250, %v2249
    %v2307 = vpack.c.b16 %v2252, %v2251
    %v2308 = vpack.c.b16 %v2254, %v2253
    %v2309 = vpack.c.b16 %v2256, %v2255
    %v2310 = vpack.c.b16 %v2258, %v2257
    %v2311 = vpack.c.b16 %v2260, %v2259
    %v2312 = vpack.c.b16 %v2262, %v2261
    %v2313 = vpack.c.b16 %v2264, %v2263
    %v2314 = vpack.c.b16 %v2266, %v2265
    %v2315 = vpack.c.b16 %v2268, %v2267
    %v2316 = vpack.c.b16 %v2270, %v2269
    %v2317 = vpack.c.b16 %v2272, %v2271
    %v2318 = vpack.c.b16 %v2274, %v2273
    %v2319 = vpack.c.b16 %v2276, %v2275
    %v2320 = vpack.c.b16 %v2278, %v2277
    %v2321 = vpack.c.b16 %v2280, %v2279
    %v2322 = vpack.c.b16 %v2282, %v2281
    %v2323 = vpack.c.b16 %v2284, %v2283
    %v2324 = vpack.c.b16 %v2286, %v2285
    %v2325 = vpack.c.b16 %v2288, %v2287
    %v2326 = vpack.c.b16 %v2290, %v2289
    %v2327 = vpack.c.b16 %v2292, %v2291
    %v2328 = vpack.c.b16 %v2294, %v2293
    %v2329 = vpack.c.b16 %v2296, %v2295
    %v2330 = vpack.c.b16 %v2298, %v2297
    %v2333 = vunpack.c.l.b16 %v2169
    %v2334 = vunpack.c.l.b16 %v2170
    %v2335 = vpack.c.b16 %v2334, %v2333
    %vm2336 = vcmask 97280
    %v2338 = vsel %vm2336, %v2299, 0
    %v2341 = vsel %vm2336, %v2300, 0
    %v2344 = vsel %vm2336, %v2301, 0
    %v2347 = vsel %vm2336, %v2302, 0
    %v2350 = vsel %vm2336, %v2303, 0
    %v2353 = vsel %vm2336, %v2304, 0
    %v2356 = vsel %vm2336, %v2305, 0
    %v2359 = vsel %vm2336, %v2306, 0
    %v2362 = vsel %vm2336, %v2307, 0
    %v2365 = vsel %vm2336, %v2308, 0
    %v2368 = vsel %vm2336, %v2309, 0
    %v2371 = vsel %vm2336, %v2310, 0
    %v2374 = vsel %vm2336, %v2311, 0
    %v2377 = vsel %vm2336, %v2312, 0
    %v2380 = vsel %vm2336, %v2313, 0
    %v2383 = vsel %vm2336, %v2314, 0
    %v2386 = vsel %vm2336, %v2315, 0
    %v2389 = vsel %vm2336, %v2316, 0
    %v2392 = vsel %vm2336, %v2317, 0
    %v2395 = vsel %vm2336, %v2318, 0
    %v2398 = vsel %vm2336, %v2319, 0
    %v2401 = vsel %vm2336, %v2320, 0
    %v2404 = vsel %vm2336, %v2321, 0
    %v2407 = vsel %vm2336, %v2322, 0
    %v2410 = vsel %vm2336, %v2323, 0
    %v2413 = vsel %vm2336, %v2324, 0
    %v2416 = vsel %vm2336, %v2325, 0
    %v2419 = vsel %vm2336, %v2326, 0
    %v2422 = vsel %vm2336, %v2327, 0
    %v2425 = vsel %vm2336, %v2328, 0
    %v2428 = vsel %vm2336, %v2329, 0
    %v2431 = vsel %vm2336, %v2330, 0
    %vm2433 = vcmask 1045504
    %v2435 = vsel %vm2433, %v2335, 0
    %2437 = vmatprep.subr.bf16.mxu0 0
    %2438 = vmatpush1.bf16.msra.mxu0 0
    %2439 = vmatprep.subr.bf16.mxu0 0
    %2440 = vmatpush1.bf16.msra.mxu0 0
    %2441 = vmatprep.subr.bf16.mxu0 0
    %2442 = vmatpush1.bf16.msra.mxu0 0
    %2443 = vmatprep.subr.bf16.mxu0 0
    %2444 = vmatpush1.bf16.msra.mxu0 0
    %2445 = vmatprep.subr.bf16.mxu0 0
    %2446 = vmatpush1.bf16.msra.mxu0 0
    %2447 = vmatprep.subr.bf16.mxu0 0
    %2448 = vmatpush1.bf16.msra.mxu0 0
    %2449 = vmatprep.subr.bf16.mxu0 0
    %2450 = vmatpush1.bf16.msra.mxu0 0
    %2451 = vmatprep.subr.bf16.mxu0 0
    %2452 = vmatpush1.bf16.msra.mxu0 %v2435
    %2453 = vmatprep.subr.bf16.mxu0 0
    %2454 = vmatpush2.bf16.msra.mxu0 0
    %2455 = vmatprep.subr.bf16.mxu0 0
    %2456 = vmatpush2.bf16.msra.mxu0 0
    %2457 = vmatprep.subr.bf16.mxu0 0
    %2458 = vmatpush2.bf16.msra.mxu0 0
    %2459 = vmatprep.subr.bf16.mxu0 0
    %2460 = vmatpush2.bf16.msra.mxu0 0
    %2461 = vmatprep.subr.bf16.mxu0 0
    %2462 = vmatpush2.bf16.msra.mxu0 0
    %2463 = vmatprep.subr.bf16.mxu0 0
    %2464 = vmatpush2.bf16.msra.mxu0 0
    %2465 = vmatprep.subr.bf16.mxu0 0
    %2466 = vmatpush2.bf16.msra.mxu0 0
    %2467 = vmatprep.subr.bf16.mxu0 0
    %2468 = vmatpush2.bf16.msra.mxu0 0
    %2469 = vmatprep.mubr.bf16.mxu0 0
    %2470 = vmatmul.mubr.bf16.gmra.mxu0 %v2338
    %v2471 = vpop.f32.mrf.mxu0
    %v2472 = vadd.f32 0.0, %v2471
    %v2473 = vpop.f32.mrf.mxu0
    %v2474 = vpop.f32.mrf.mxu0
    %v2475 = vadd.f32 0.0, %v2474
    %v2476 = vpop.f32.mrf.mxu0
    %2477 = vmatprep.mubr.bf16.mxu0 0
    %2478 = vmatmul.mubr.bf16.gmra.mxu0 %v2341
    %v2479 = vpop.f32.mrf.mxu0
    %v2480 = vadd.f32 0.0, %v2479
    %v2481 = vpop.f32.mrf.mxu0
    %v2482 = vpop.f32.mrf.mxu0
    %v2483 = vadd.f32 0.0, %v2482
    %v2484 = vpop.f32.mrf.mxu0
    %2485 = vmatprep.mubr.bf16.mxu0 0
    %2486 = vmatmul.mubr.bf16.gmra.mxu0 %v2344
    %v2487 = vpop.f32.mrf.mxu0
    %v2488 = vadd.f32 0.0, %v2487
    %v2489 = vpop.f32.mrf.mxu0
    %v2490 = vpop.f32.mrf.mxu0
    %v2491 = vadd.f32 0.0, %v2490
    %v2492 = vpop.f32.mrf.mxu0
    %2493 = vmatprep.mubr.bf16.mxu0 0
    %2494 = vmatmul.mubr.bf16.gmra.mxu0 %v2347
    %v2495 = vpop.f32.mrf.mxu0
    %v2496 = vadd.f32 0.0, %v2495
    %v2497 = vpop.f32.mrf.mxu0
    %v2498 = vpop.f32.mrf.mxu0
    %v2499 = vadd.f32 0.0, %v2498
    %v2500 = vpop.f32.mrf.mxu0
    %2501 = vmatprep.mubr.bf16.mxu0 0
    %2502 = vmatmul.mubr.bf16.gmra.mxu0 %v2350
    %v2503 = vpop.f32.mrf.mxu0
    %v2504 = vadd.f32 0.0, %v2503
    %v2505 = vpop.f32.mrf.mxu0
    %v2506 = vpop.f32.mrf.mxu0
    %v2507 = vadd.f32 0.0, %v2506
    %v2508 = vpop.f32.mrf.mxu0
    %2509 = vmatprep.mubr.bf16.mxu0 0
    %2510 = vmatmul.mubr.bf16.gmra.mxu0 %v2353
    %v2511 = vpop.f32.mrf.mxu0
    %v2512 = vadd.f32 0.0, %v2511
    %v2513 = vpop.f32.mrf.mxu0
    %v2514 = vpop.f32.mrf.mxu0
    %v2515 = vadd.f32 0.0, %v2514
    %v2516 = vpop.f32.mrf.mxu0
    %2517 = vmatprep.mubr.bf16.mxu0 0
    %2518 = vmatmul.mubr.bf16.gmra.mxu0 %v2356
    %v2519 = vpop.f32.mrf.mxu0
    %v2520 = vadd.f32 0.0, %v2519
    %v2521 = vpop.f32.mrf.mxu0
    %v2522 = vpop.f32.mrf.mxu0
    %v2523 = vadd.f32 0.0, %v2522
    %v2524 = vpop.f32.mrf.mxu0
    %2525 = vmatprep.mubr.bf16.mxu0 0
    %2526 = vmatmul.mubr.bf16.gmra.mxu0 %v2359
    %v2527 = vpop.f32.mrf.mxu0
    %v2528 = vadd.f32 0.0, %v2527
    %v2529 = vpop.f32.mrf.mxu0
    %v2530 = vpop.f32.mrf.mxu0
    %v2531 = vadd.f32 0.0, %v2530
    %v2532 = vpop.f32.mrf.mxu0
    %2533 = vmatprep.mubr.bf16.mxu0 0
    %2534 = vmatmul.mubr.bf16.gmra.mxu0 %v2362
    %v2535 = vpop.f32.mrf.mxu0
    %v2536 = vadd.f32 0.0, %v2535
    %v2537 = vpop.f32.mrf.mxu0
    %v2538 = vpop.f32.mrf.mxu0
    %v2539 = vadd.f32 0.0, %v2538
    %v2540 = vpop.f32.mrf.mxu0
    %2541 = vmatprep.mubr.bf16.mxu0 0
    %2542 = vmatmul.mubr.bf16.gmra.mxu0 %v2365
    %v2543 = vpop.f32.mrf.mxu0
    %v2544 = vadd.f32 0.0, %v2543
    %v2545 = vpop.f32.mrf.mxu0
    %v2546 = vpop.f32.mrf.mxu0
    %v2547 = vadd.f32 0.0, %v2546
    %v2548 = vpop.f32.mrf.mxu0
    %2549 = vmatprep.mubr.bf16.mxu0 0
    %2550 = vmatmul.mubr.bf16.gmra.mxu0 %v2368
    %v2551 = vpop.f32.mrf.mxu0
    %v2552 = vadd.f32 0.0, %v2551
    %v2553 = vpop.f32.mrf.mxu0
    %v2554 = vpop.f32.mrf.mxu0
    %v2555 = vadd.f32 0.0, %v2554
    %v2556 = vpop.f32.mrf.mxu0
    %2557 = vmatprep.mubr.bf16.mxu0 0
    %2558 = vmatmul.mubr.bf16.gmra.mxu0 %v2371
    %v2559 = vpop.f32.mrf.mxu0
    %v2560 = vadd.f32 0.0, %v2559
    %v2561 = vpop.f32.mrf.mxu0
    %v2562 = vpop.f32.mrf.mxu0
    %v2563 = vadd.f32 0.0, %v2562
    %v2564 = vpop.f32.mrf.mxu0
    %2565 = vmatprep.mubr.bf16.mxu0 0
    %2566 = vmatmul.mubr.bf16.gmra.mxu0 %v2374
    %v2567 = vpop.f32.mrf.mxu0
    %v2568 = vadd.f32 0.0, %v2567
    %v2569 = vpop.f32.mrf.mxu0
    %v2570 = vpop.f32.mrf.mxu0
    %v2571 = vadd.f32 0.0, %v2570
    %v2572 = vpop.f32.mrf.mxu0
    %2573 = vmatprep.mubr.bf16.mxu0 0
    %2574 = vmatmul.mubr.bf16.gmra.mxu0 %v2377
    %v2575 = vpop.f32.mrf.mxu0
    %v2576 = vadd.f32 0.0, %v2575
    %v2577 = vpop.f32.mrf.mxu0
    %v2578 = vpop.f32.mrf.mxu0
    %v2579 = vadd.f32 0.0, %v2578
    %v2580 = vpop.f32.mrf.mxu0
    %2581 = vmatprep.mubr.bf16.mxu0 0
    %2582 = vmatmul.mubr.bf16.gmra.mxu0 %v2380
    %v2583 = vpop.f32.mrf.mxu0
    %v2584 = vadd.f32 0.0, %v2583
    %v2585 = vpop.f32.mrf.mxu0
    %v2586 = vpop.f32.mrf.mxu0
    %v2587 = vadd.f32 0.0, %v2586
    %v2588 = vpop.f32.mrf.mxu0
    %2589 = vmatprep.mubr.bf16.mxu0 0
    %2590 = vmatmul.mubr.bf16.gmra.mxu0 %v2383
    %v2591 = vpop.f32.mrf.mxu0
    %v2592 = vadd.f32 0.0, %v2591
    %v2593 = vpop.f32.mrf.mxu0
    %v2594 = vpop.f32.mrf.mxu0
    %v2595 = vadd.f32 0.0, %v2594
    %v2596 = vpop.f32.mrf.mxu0
    %2597 = vmatprep.mubr.bf16.mxu0 0
    %2598 = vmatmul.mubr.bf16.gmra.mxu0 %v2386
    %v2599 = vpop.f32.mrf.mxu0
    %v2600 = vadd.f32 0.0, %v2599
    %v2601 = vpop.f32.mrf.mxu0
    %v2602 = vpop.f32.mrf.mxu0
    %v2603 = vadd.f32 0.0, %v2602
    %v2604 = vpop.f32.mrf.mxu0
    %2605 = vmatprep.mubr.bf16.mxu0 0
    %2606 = vmatmul.mubr.bf16.gmra.mxu0 %v2389
    %v2607 = vpop.f32.mrf.mxu0
    %v2608 = vadd.f32 0.0, %v2607
    %v2609 = vpop.f32.mrf.mxu0
    %v2610 = vpop.f32.mrf.mxu0
    %v2611 = vadd.f32 0.0, %v2610
    %v2612 = vpop.f32.mrf.mxu0
    %2613 = vmatprep.mubr.bf16.mxu0 0
    %2614 = vmatmul.mubr.bf16.gmra.mxu0 %v2392
    %v2615 = vpop.f32.mrf.mxu0
    %v2616 = vadd.f32 0.0, %v2615
    %v2617 = vpop.f32.mrf.mxu0
    %v2618 = vpop.f32.mrf.mxu0
    %v2619 = vadd.f32 0.0, %v2618
    %v2620 = vpop.f32.mrf.mxu0
    %2621 = vmatprep.mubr.bf16.mxu0 0
    %2622 = vmatmul.mubr.bf16.gmra.mxu0 %v2395
    %v2623 = vpop.f32.mrf.mxu0
    %v2624 = vadd.f32 0.0, %v2623
    %v2625 = vpop.f32.mrf.mxu0
    %v2626 = vpop.f32.mrf.mxu0
    %v2627 = vadd.f32 0.0, %v2626
    %v2628 = vpop.f32.mrf.mxu0
    %2629 = vmatprep.mubr.bf16.mxu0 0
    %2630 = vmatmul.mubr.bf16.gmra.mxu0 %v2398
    %v2631 = vpop.f32.mrf.mxu0
    %v2632 = vadd.f32 0.0, %v2631
    %v2633 = vpop.f32.mrf.mxu0
    %v2634 = vpop.f32.mrf.mxu0
    %v2635 = vadd.f32 0.0, %v2634
    %v2636 = vpop.f32.mrf.mxu0
    %2637 = vmatprep.mubr.bf16.mxu0 0
    %2638 = vmatmul.mubr.bf16.gmra.mxu0 %v2401
    %v2639 = vpop.f32.mrf.mxu0
    %v2640 = vadd.f32 0.0, %v2639
    %v2641 = vpop.f32.mrf.mxu0
    %v2642 = vpop.f32.mrf.mxu0
    %v2643 = vadd.f32 0.0, %v2642
    %v2644 = vpop.f32.mrf.mxu0
    %2645 = vmatprep.mubr.bf16.mxu0 0
    %2646 = vmatmul.mubr.bf16.gmra.mxu0 %v2404
    %v2647 = vpop.f32.mrf.mxu0
    %v2648 = vadd.f32 0.0, %v2647
    %v2649 = vpop.f32.mrf.mxu0
    %v2650 = vpop.f32.mrf.mxu0
    %v2651 = vadd.f32 0.0, %v2650
    %v2652 = vpop.f32.mrf.mxu0
    %2653 = vmatprep.mubr.bf16.mxu0 0
    %2654 = vmatmul.mubr.bf16.gmra.mxu0 %v2407
    %v2655 = vpop.f32.mrf.mxu0
    %v2656 = vadd.f32 0.0, %v2655
    %v2657 = vpop.f32.mrf.mxu0
    %v2658 = vpop.f32.mrf.mxu0
    %v2659 = vadd.f32 0.0, %v2658
    %v2660 = vpop.f32.mrf.mxu0
    %2661 = vmatprep.mubr.bf16.mxu0 0
    %2662 = vmatmul.mubr.bf16.gmra.mxu0 %v2410
    %v2663 = vpop.f32.mrf.mxu0
    %v2664 = vadd.f32 0.0, %v2663
    %v2665 = vpop.f32.mrf.mxu0
    %v2666 = vpop.f32.mrf.mxu0
    %v2667 = vadd.f32 0.0, %v2666
    %v2668 = vpop.f32.mrf.mxu0
    %2669 = vmatprep.mubr.bf16.mxu0 0
    %2670 = vmatmul.mubr.bf16.gmra.mxu0 %v2413
    %v2671 = vpop.f32.mrf.mxu0
    %v2672 = vadd.f32 0.0, %v2671
    %v2673 = vpop.f32.mrf.mxu0
    %v2674 = vpop.f32.mrf.mxu0
    %v2675 = vadd.f32 0.0, %v2674
    %v2676 = vpop.f32.mrf.mxu0
    %2677 = vmatprep.mubr.bf16.mxu0 0
    %2678 = vmatmul.mubr.bf16.gmra.mxu0 %v2416
    %v2679 = vpop.f32.mrf.mxu0
    %v2680 = vadd.f32 0.0, %v2679
    %v2681 = vpop.f32.mrf.mxu0
    %v2682 = vpop.f32.mrf.mxu0
    %v2683 = vadd.f32 0.0, %v2682
    %v2684 = vpop.f32.mrf.mxu0
    %2685 = vmatprep.mubr.bf16.mxu0 0
    %2686 = vmatmul.mubr.bf16.gmra.mxu0 %v2419
    %v2687 = vpop.f32.mrf.mxu0
    %v2688 = vadd.f32 0.0, %v2687
    %v2689 = vpop.f32.mrf.mxu0
    %v2690 = vpop.f32.mrf.mxu0
    %v2691 = vadd.f32 0.0, %v2690
    %v2692 = vpop.f32.mrf.mxu0
    %2693 = vmatprep.mubr.bf16.mxu0 0
    %2694 = vmatmul.mubr.bf16.gmra.mxu0 %v2422
    %v2695 = vpop.f32.mrf.mxu0
    %v2696 = vadd.f32 0.0, %v2695
    %v2697 = vpop.f32.mrf.mxu0
    %v2698 = vpop.f32.mrf.mxu0
    %v2699 = vadd.f32 0.0, %v2698
    %v2700 = vpop.f32.mrf.mxu0
    %2701 = vmatprep.mubr.bf16.mxu0 0
    %2702 = vmatmul.mubr.bf16.gmra.mxu0 %v2425
    %v2703 = vpop.f32.mrf.mxu0
    %v2704 = vadd.f32 0.0, %v2703
    %v2705 = vpop.f32.mrf.mxu0
    %v2706 = vpop.f32.mrf.mxu0
    %v2707 = vadd.f32 0.0, %v2706
    %v2708 = vpop.f32.mrf.mxu0
    %2709 = vmatprep.mubr.bf16.mxu0 0
    %2710 = vmatmul.mubr.bf16.gmra.mxu0 %v2428
    %v2711 = vpop.f32.mrf.mxu0
    %v2712 = vadd.f32 0.0, %v2711
    %v2713 = vpop.f32.mrf.mxu0
    %v2714 = vpop.f32.mrf.mxu0
    %v2715 = vadd.f32 0.0, %v2714
    %v2716 = vpop.f32.mrf.mxu0
    %2717 = vmatprep.mubr.bf16.mxu0 0
    %2718 = vmatmul.mubr.bf16.gmra.mxu0 %v2431
    %v2719 = vpop.f32.mrf.mxu0
    %v2720 = vadd.f32 0.0, %v2719
    %v2721 = vpop.f32.mrf.mxu0
    %v2722 = vpop.f32.mrf.mxu0
    %v2723 = vadd.f32 0.0, %v2722
    %v2724 = vpop.f32.mrf.mxu0
    %2725 = vdwg.mxu0
    %2726 = vst.msk [vmem:[#allocation3] sm:$0xff] %vm1644, %v2472
    %2727 = vst.msk [vmem:[#allocation3 + $0x8] sm:$0xff] %vm1644, %v2475
    %2728 = vst.msk [vmem:[#allocation3 + $0x10] sm:$0xff] %vm1644, %v2480
    %2729 = vst.msk [vmem:[#allocation3 + $0x18] sm:$0xff] %vm1644, %v2483
    %2730 = vst.msk [vmem:[#allocation3 + $0x20] sm:$0xff] %vm1644, %v2488
    %2731 = vst.msk [vmem:[#allocation3 + $0x28] sm:$0xff] %vm1644, %v2491
    %2732 = vst.msk [vmem:[#allocation3 + $0x30] sm:$0xff] %vm1644, %v2496
    %2733 = vst.msk [vmem:[#allocation3 + $0x38] sm:$0xff] %vm1644, %v2499
    %2734 = vst.msk [vmem:[#allocation3 + $0x40] sm:$0xff] %vm1644, %v2504
    %2735 = vst.msk [vmem:[#allocation3 + $0x48] sm:$0xff] %vm1644, %v2507
    %2736 = vst.msk [vmem:[#allocation3 + $0x50] sm:$0xff] %vm1644, %v2512
    %2737 = vst.msk [vmem:[#allocation3 + $0x58] sm:$0xff] %vm1644, %v2515
    %2738 = vst.msk [vmem:[#allocation3 + $0x60] sm:$0xff] %vm1644, %v2520
    %2739 = vst.msk [vmem:[#allocation3 + $0x68] sm:$0xff] %vm1644, %v2523
    %2740 = vst.msk [vmem:[#allocation3 + $0x70] sm:$0xff] %vm1644, %v2528
    %2741 = vst.msk [vmem:[#allocation3 + $0x78] sm:$0xff] %vm1644, %v2531
    %2742 = vst.msk [vmem:[#allocation3 + $0x80] sm:$0xff] %vm1644, %v2536
    %2743 = vst.msk [vmem:[#allocation3 + $0x88] sm:$0xff] %vm1644, %v2539
    %2744 = vst.msk [vmem:[#allocation3 + $0x90] sm:$0xff] %vm1644, %v2544
    %2745 = vst.msk [vmem:[#allocation3 + $0x98] sm:$0xff] %vm1644, %v2547
    %2746 = vst.msk [vmem:[#allocation3 + $0xa0] sm:$0xff] %vm1644, %v2552
    %2747 = vst.msk [vmem:[#allocation3 + $0xa8] sm:$0xff] %vm1644, %v2555
    %2748 = vst.msk [vmem:[#allocation3 + $0xb0] sm:$0xff] %vm1644, %v2560
    %2749 = vst.msk [vmem:[#allocation3 + $0xb8] sm:$0xff] %vm1644, %v2563
    %2750 = vst.msk [vmem:[#allocation3 + $0xc0] sm:$0xff] %vm1644, %v2568
    %2751 = vst.msk [vmem:[#allocation3 + $0xc8] sm:$0xff] %vm1644, %v2571
    %2752 = vst.msk [vmem:[#allocation3 + $0xd0] sm:$0xff] %vm1644, %v2576
    %2753 = vst.msk [vmem:[#allocation3 + $0xd8] sm:$0xff] %vm1644, %v2579
    %2754 = vst.msk [vmem:[#allocation3 + $0xe0] sm:$0xff] %vm1644, %v2584
    %2755 = vst.msk [vmem:[#allocation3 + $0xe8] sm:$0xff] %vm1644, %v2587
    %2756 = vst.msk [vmem:[#allocation3 + $0xf0] sm:$0xff] %vm1644, %v2592
    %2757 = vst.msk [vmem:[#allocation3 + $0xf8] sm:$0xff] %vm1644, %v2595
    %2758 = vst.msk [vmem:[#allocation3 + $0x100] sm:$0xff] %vm1644, %v2600
    %2759 = vst.msk [vmem:[#allocation3 + $0x108] sm:$0xff] %vm1644, %v2603
    %2760 = vst.msk [vmem:[#allocation3 + $0x110] sm:$0xff] %vm1644, %v2608
    %2761 = vst.msk [vmem:[#allocation3 + $0x118] sm:$0xff] %vm1644, %v2611
    %2762 = vst.msk [vmem:[#allocation3 + $0x120] sm:$0xff] %vm1644, %v2616
    %2763 = vst.msk [vmem:[#allocation3 + $0x128] sm:$0xff] %vm1644, %v2619
    %2764 = vst.msk [vmem:[#allocation3 + $0x130] sm:$0xff] %vm1644, %v2624
    %2765 = vst.msk [vmem:[#allocation3 + $0x138] sm:$0xff] %vm1644, %v2627
    %2766 = vst.msk [vmem:[#allocation3 + $0x140] sm:$0xff] %vm1644, %v2632
    %2767 = vst.msk [vmem:[#allocation3 + $0x148] sm:$0xff] %vm1644, %v2635
    %2768 = vst.msk [vmem:[#allocation3 + $0x150] sm:$0xff] %vm1644, %v2640
    %2769 = vst.msk [vmem:[#allocation3 + $0x158] sm:$0xff] %vm1644, %v2643
    %2770 = vst.msk [vmem:[#allocation3 + $0x160] sm:$0xff] %vm1644, %v2648
    %2771 = vst.msk [vmem:[#allocation3 + $0x168] sm:$0xff] %vm1644, %v2651
    %2772 = vst.msk [vmem:[#allocation3 + $0x170] sm:$0xff] %vm1644, %v2656
    %2773 = vst.msk [vmem:[#allocation3 + $0x178] sm:$0xff] %vm1644, %v2659
    %2774 = vst.msk [vmem:[#allocation3 + $0x180] sm:$0xff] %vm1644, %v2664
    %2775 = vst.msk [vmem:[#allocation3 + $0x188] sm:$0xff] %vm1644, %v2667
    %2776 = vst.msk [vmem:[#allocation3 + $0x190] sm:$0xff] %vm1644, %v2672
    %2777 = vst.msk [vmem:[#allocation3 + $0x198] sm:$0xff] %vm1644, %v2675
    %2778 = vst.msk [vmem:[#allocation3 + $0x1a0] sm:$0xff] %vm1644, %v2680
    %2779 = vst.msk [vmem:[#allocation3 + $0x1a8] sm:$0xff] %vm1644, %v2683
    %2780 = vst.msk [vmem:[#allocation3 + $0x1b0] sm:$0xff] %vm1644, %v2688
    %2781 = vst.msk [vmem:[#allocation3 + $0x1b8] sm:$0xff] %vm1644, %v2691
    %2782 = vst.msk [vmem:[#allocation3 + $0x1c0] sm:$0xff] %vm1644, %v2696
    %2783 = vst.msk [vmem:[#allocation3 + $0x1c8] sm:$0xff] %vm1644, %v2699
    %2784 = vst.msk [vmem:[#allocation3 + $0x1d0] sm:$0xff] %vm1644, %v2704
    %2785 = vst.msk [vmem:[#allocation3 + $0x1d8] sm:$0xff] %vm1644, %v2707
    %2786 = vst.msk [vmem:[#allocation3 + $0x1e0] sm:$0xff] %vm1644, %v2712
    %2787 = vst.msk [vmem:[#allocation3 + $0x1e8] sm:$0xff] %vm1644, %v2715
    %2788 = vst.msk [vmem:[#allocation3 + $0x1f0] sm:$0xff] %vm1644, %v2720
    %2789 = vst.msk [vmem:[#allocation3 + $0x1f8] sm:$0xff] %vm1644, %v2723
    %v2790 = vld [vmem:[#allocation3] sm:$0xff]
    %v2791 = vld [vmem:[#allocation3 + $0x8] sm:$0xff]
    %v2792 = vld [vmem:[#allocation3 + $0x10] sm:$0xff]
    %v2793 = vld [vmem:[#allocation3 + $0x18] sm:$0xff]
    %v2794 = vld [vmem:[#allocation3 + $0x20] sm:$0xff]
    %v2795 = vld [vmem:[#allocation3 + $0x28] sm:$0xff]
    %v2796 = vld [vmem:[#allocation3 + $0x30] sm:$0xff]
    %v2797 = vld [vmem:[#allocation3 + $0x38] sm:$0xff]
    %v2798 = vld [vmem:[#allocation3 + $0x40] sm:$0xff]
    %v2799 = vld [vmem:[#allocation3 + $0x48] sm:$0xff]
    %v2800 = vld [vmem:[#allocation3 + $0x50] sm:$0xff]
    %v2801 = vld [vmem:[#allocation3 + $0x58] sm:$0xff]
    %v2802 = vld [vmem:[#allocation3 + $0x60] sm:$0xff]
    %v2803 = vld [vmem:[#allocation3 + $0x68] sm:$0xff]
    %v2804 = vld [vmem:[#allocation3 + $0x70] sm:$0xff]
    %v2805 = vld [vmem:[#allocation3 + $0x78] sm:$0xff]
    %v2806 = vld [vmem:[#allocation3 + $0x80] sm:$0xff]
    %v2807 = vld [vmem:[#allocation3 + $0x88] sm:$0xff]
    %v2808 = vld [vmem:[#allocation3 + $0x90] sm:$0xff]
    %v2809 = vld [vmem:[#allocation3 + $0x98] sm:$0xff]
    %v2810 = vld [vmem:[#allocation3 + $0xa0] sm:$0xff]
    %v2811 = vld [vmem:[#allocation3 + $0xa8] sm:$0xff]
    %v2812 = vld [vmem:[#allocation3 + $0xb0] sm:$0xff]
    %v2813 = vld [vmem:[#allocation3 + $0xb8] sm:$0xff]
    %v2814 = vld [vmem:[#allocation3 + $0xc0] sm:$0xff]
    %v2815 = vld [vmem:[#allocation3 + $0xc8] sm:$0xff]
    %v2816 = vld [vmem:[#allocation3 + $0xd0] sm:$0xff]
    %v2817 = vld [vmem:[#allocation3 + $0xd8] sm:$0xff]
    %v2818 = vld [vmem:[#allocation3 + $0xe0] sm:$0xff]
    %v2819 = vld [vmem:[#allocation3 + $0xe8] sm:$0xff]
    %v2820 = vld [vmem:[#allocation3 + $0xf0] sm:$0xff]
    %v2821 = vld [vmem:[#allocation3 + $0xf8] sm:$0xff]
    %v2822 = vld [vmem:[#allocation3 + $0x100] sm:$0xff]
    %v2823 = vld [vmem:[#allocation3 + $0x108] sm:$0xff]
    %v2824 = vld [vmem:[#allocation3 + $0x110] sm:$0xff]
    %v2825 = vld [vmem:[#allocation3 + $0x118] sm:$0xff]
    %v2826 = vld [vmem:[#allocation3 + $0x120] sm:$0xff]
    %v2827 = vld [vmem:[#allocation3 + $0x128] sm:$0xff]
    %v2828 = vld [vmem:[#allocation3 + $0x130] sm:$0xff]
    %v2829 = vld [vmem:[#allocation3 + $0x138] sm:$0xff]
    %v2830 = vld [vmem:[#allocation3 + $0x140] sm:$0xff]
    %v2831 = vld [vmem:[#allocation3 + $0x148] sm:$0xff]
    %v2832 = vld [vmem:[#allocation3 + $0x150] sm:$0xff]
    %v2833 = vld [vmem:[#allocation3 + $0x158] sm:$0xff]
    %v2834 = vld [vmem:[#allocation3 + $0x160] sm:$0xff]
    %v2835 = vld [vmem:[#allocation3 + $0x168] sm:$0xff]
    %v2836 = vld [vmem:[#allocation3 + $0x170] sm:$0xff]
    %v2837 = vld [vmem:[#allocation3 + $0x178] sm:$0xff]
    %v2838 = vld [vmem:[#allocation3 + $0x180] sm:$0xff]
    %v2839 = vld [vmem:[#allocation3 + $0x188] sm:$0xff]
    %v2840 = vld [vmem:[#allocation3 + $0x190] sm:$0xff]
    %v2841 = vld [vmem:[#allocation3 + $0x198] sm:$0xff]
    %v2842 = vld [vmem:[#allocation3 + $0x1a0] sm:$0xff]
    %v2843 = vld [vmem:[#allocation3 + $0x1a8] sm:$0xff]
    %v2844 = vld [vmem:[#allocation3 + $0x1b0] sm:$0xff]
    %v2845 = vld [vmem:[#allocation3 + $0x1b8] sm:$0xff]
    %v2846 = vld [vmem:[#allocation3 + $0x1c0] sm:$0xff]
    %v2847 = vld [vmem:[#allocation3 + $0x1c8] sm:$0xff]
    %v2848 = vld [vmem:[#allocation3 + $0x1d0] sm:$0xff]
    %v2849 = vld [vmem:[#allocation3 + $0x1d8] sm:$0xff]
    %v2850 = vld [vmem:[#allocation3 + $0x1e0] sm:$0xff]
    %v2851 = vld [vmem:[#allocation3 + $0x1e8] sm:$0xff]
    %v2852 = vld [vmem:[#allocation3 + $0x1f0] sm:$0xff]
    %v2853 = vld [vmem:[#allocation3 + $0x1f8] sm:$0xff]
    %v2854 = vld [vmem:[%s2040] sm:$0xf]
    %v2855 = vld [vmem:[%s2040 + $0x4] sm:$0xf]
    %v2856 = vld [vmem:[%s2040 + $0x8] sm:$0xf]
    %v2857 = vld [vmem:[%s2040 + $0xc] sm:$0xf]
    %v2858 = vld [vmem:[%s2040 + $0x10] sm:$0xf]
    %v2859 = vld [vmem:[%s2040 + $0x14] sm:$0xf]
    %v2860 = vld [vmem:[%s2040 + $0x18] sm:$0xf]
    %v2861 = vld [vmem:[%s2040 + $0x1c] sm:$0xf]
    %v2862 = vld [vmem:[%s2040 + $0x20] sm:$0xf]
    %v2863 = vld [vmem:[%s2040 + $0x24] sm:$0xf]
    %v2864 = vld [vmem:[%s2040 + $0x28] sm:$0xf]
    %v2865 = vld [vmem:[%s2040 + $0x2c] sm:$0xf]
    %v2866 = vld [vmem:[%s2040 + $0x30] sm:$0xf]
    %v2867 = vld [vmem:[%s2040 + $0x34] sm:$0xf]
    %v2868 = vld [vmem:[%s2040 + $0x38] sm:$0xf]
    %v2869 = vld [vmem:[%s2040 + $0x3c] sm:$0xf]
    %v2870 = vld [vmem:[%s2040 + $0x40] sm:$0xf]
    %v2871 = vld [vmem:[%s2040 + $0x44] sm:$0xf]
    %v2872 = vld [vmem:[%s2040 + $0x48] sm:$0xf]
    %v2873 = vld [vmem:[%s2040 + $0x4c] sm:$0xf]
    %v2874 = vld [vmem:[%s2040 + $0x50] sm:$0xf]
    %v2875 = vld [vmem:[%s2040 + $0x54] sm:$0xf]
    %v2876 = vld [vmem:[%s2040 + $0x58] sm:$0xf]
    %v2877 = vld [vmem:[%s2040 + $0x5c] sm:$0xf]
    %v2878 = vld [vmem:[%s2040 + $0x60] sm:$0xf]
    %v2879 = vld [vmem:[%s2040 + $0x64] sm:$0xf]
    %v2880 = vld [vmem:[%s2040 + $0x68] sm:$0xf]
    %v2881 = vld [vmem:[%s2040 + $0x6c] sm:$0xf]
    %v2882 = vld [vmem:[%s2040 + $0x70] sm:$0xf]
    %v2883 = vld [vmem:[%s2040 + $0x74] sm:$0xf]
    %v2884 = vld [vmem:[%s2040 + $0x78] sm:$0xf]
    %v2885 = vld [vmem:[%s2040 + $0x7c] sm:$0xf]
    %v2886 = vld [vmem:[%s2040 + $0x90] sm:$0xf]
    %v2887 = vld [vmem:[%s2040 + $0x94] sm:$0xf]
    %v2888 = vld [vmem:[%s2040 + $0x98] sm:$0xf]
    %v2889 = vld [vmem:[%s2040 + $0x9c] sm:$0xf]
    %v2890 = vld [vmem:[%s2040 + $0xa0] sm:$0xf]
    %v2891 = vld [vmem:[%s2040 + $0xa4] sm:$0xf]
    %v2892 = vld [vmem:[%s2040 + $0xa8] sm:$0xf]
    %v2893 = vld [vmem:[%s2040 + $0xac] sm:$0xf]
    %v2894 = vld [vmem:[%s2040 + $0xb0] sm:$0xf]
    %v2895 = vld [vmem:[%s2040 + $0xb4] sm:$0xf]
    %v2896 = vld [vmem:[%s2040 + $0xb8] sm:$0xf]
    %v2897 = vld [vmem:[%s2040 + $0xbc] sm:$0xf]
    %v2898 = vld [vmem:[%s2040 + $0xc0] sm:$0xf]
    %v2899 = vld [vmem:[%s2040 + $0xc4] sm:$0xf]
    %v2900 = vld [vmem:[%s2040 + $0xc8] sm:$0xf]
    %v2901 = vld [vmem:[%s2040 + $0xcc] sm:$0xf]
    %v2902 = vld [vmem:[%s2040 + $0xd0] sm:$0xf]
    %v2903 = vld [vmem:[%s2040 + $0xd4] sm:$0xf]
    %v2904 = vld [vmem:[%s2040 + $0xd8] sm:$0xf]
    %v2905 = vld [vmem:[%s2040 + $0xdc] sm:$0xf]
    %v2906 = vld [vmem:[%s2040 + $0xe0] sm:$0xf]
    %v2907 = vld [vmem:[%s2040 + $0xe4] sm:$0xf]
    %v2908 = vld [vmem:[%s2040 + $0xe8] sm:$0xf]
    %v2909 = vld [vmem:[%s2040 + $0xec] sm:$0xf]
    %v2910 = vld [vmem:[%s2040 + $0xf0] sm:$0xf]
    %v2911 = vld [vmem:[%s2040 + $0xf4] sm:$0xf]
    %v2912 = vld [vmem:[%s2040 + $0xf8] sm:$0xf]
    %v2913 = vld [vmem:[%s2040 + $0xfc] sm:$0xf]
    %v2914 = vld [vmem:[%s2040 + $0x100] sm:$0xf]
    %v2915 = vld [vmem:[%s2040 + $0x104] sm:$0xf]
    %v2916 = vld [vmem:[%s2040 + $0x108] sm:$0xf]
    %v2917 = vld [vmem:[%s2040 + $0x10c] sm:$0xf]
    %s2918 = scalar_lea.vmem %s3, 8
    %v2919 = vld [vmem:[%s2918] sm:$0xf]
    %v2920 = vld [vmem:[%s2918 + $0x4] sm:$0x3]
    %v2985 = vunpack.c.l.b16 %v2854
    %v2986 = vunpack.c.l.b16 %v2855
    %v2987 = vunpack.c.l.b16 %v2856
    %v2988 = vunpack.c.l.b16 %v2857
    %v2989 = vunpack.c.l.b16 %v2858
    %v2990 = vunpack.c.l.b16 %v2859
    %v2991 = vunpack.c.l.b16 %v2860
    %v2992 = vunpack.c.l.b16 %v2861
    %v2993 = vunpack.c.l.b16 %v2862
    %v2994 = vunpack.c.l.b16 %v2863
    %v2995 = vunpack.c.l.b16 %v2864
    %v2996 = vunpack.c.l.b16 %v2865
    %v2997 = vunpack.c.l.b16 %v2866
    %v2998 = vunpack.c.l.b16 %v2867
    %v2999 = vunpack.c.l.b16 %v2868
    %v3000 = vunpack.c.l.b16 %v2869
    %v3001 = vunpack.c.l.b16 %v2870
    %v3002 = vunpack.c.l.b16 %v2871
    %v3003 = vunpack.c.l.b16 %v2872
    %v3004 = vunpack.c.l.b16 %v2873
    %v3005 = vunpack.c.l.b16 %v2874
    %v3006 = vunpack.c.l.b16 %v2875
    %v3007 = vunpack.c.l.b16 %v2876
    %v3008 = vunpack.c.l.b16 %v2877
    %v3009 = vunpack.c.l.b16 %v2878
    %v3010 = vunpack.c.l.b16 %v2879
    %v3011 = vunpack.c.l.b16 %v2880
    %v3012 = vunpack.c.l.b16 %v2881
    %v3013 = vunpack.c.l.b16 %v2882
    %v3014 = vunpack.c.l.b16 %v2883
    %v3015 = vunpack.c.l.b16 %v2884
    %v3016 = vunpack.c.l.b16 %v2885
    %v3017 = vunpack.c.l.b16 %v2886
    %v3018 = vunpack.c.l.b16 %v2887
    %v3019 = vunpack.c.l.b16 %v2888
    %v3020 = vunpack.c.l.b16 %v2889
    %v3021 = vunpack.c.l.b16 %v2890
    %v3022 = vunpack.c.l.b16 %v2891
    %v3023 = vunpack.c.l.b16 %v2892
    %v3024 = vunpack.c.l.b16 %v2893
    %v3025 = vunpack.c.l.b16 %v2894
    %v3026 = vunpack.c.l.b16 %v2895
    %v3027 = vunpack.c.l.b16 %v2896
    %v3028 = vunpack.c.l.b16 %v2897
    %v3029 = vunpack.c.l.b16 %v2898
    %v3030 = vunpack.c.l.b16 %v2899
    %v3031 = vunpack.c.l.b16 %v2900
    %v3032 = vunpack.c.l.b16 %v2901
    %v3033 = vunpack.c.l.b16 %v2902
    %v3034 = vunpack.c.l.b16 %v2903
    %v3035 = vunpack.c.l.b16 %v2904
    %v3036 = vunpack.c.l.b16 %v2905
    %v3037 = vunpack.c.l.b16 %v2906
    %v3038 = vunpack.c.l.b16 %v2907
    %v3039 = vunpack.c.l.b16 %v2908
    %v3040 = vunpack.c.l.b16 %v2909
    %v3041 = vunpack.c.l.b16 %v2910
    %v3042 = vunpack.c.l.b16 %v2911
    %v3043 = vunpack.c.l.b16 %v2912
    %v3044 = vunpack.c.l.b16 %v2913
    %v3045 = vunpack.c.l.b16 %v2914
    %v3046 = vunpack.c.l.b16 %v2915
    %v3047 = vunpack.c.l.b16 %v2916
    %v3048 = vunpack.c.l.b16 %v2917
    %v3049 = vpack.c.b16 %v2986, %v2985
    %v3050 = vpack.c.b16 %v2988, %v2987
    %v3051 = vpack.c.b16 %v2990, %v2989
    %v3052 = vpack.c.b16 %v2992, %v2991
    %v3053 = vpack.c.b16 %v2994, %v2993
    %v3054 = vpack.c.b16 %v2996, %v2995
    %v3055 = vpack.c.b16 %v2998, %v2997
    %v3056 = vpack.c.b16 %v3000, %v2999
    %v3057 = vpack.c.b16 %v3002, %v3001
    %v3058 = vpack.c.b16 %v3004, %v3003
    %v3059 = vpack.c.b16 %v3006, %v3005
    %v3060 = vpack.c.b16 %v3008, %v3007
    %v3061 = vpack.c.b16 %v3010, %v3009
    %v3062 = vpack.c.b16 %v3012, %v3011
    %v3063 = vpack.c.b16 %v3014, %v3013
    %v3064 = vpack.c.b16 %v3016, %v3015
    %v3065 = vpack.c.b16 %v3018, %v3017
    %v3066 = vpack.c.b16 %v3020, %v3019
    %v3067 = vpack.c.b16 %v3022, %v3021
    %v3068 = vpack.c.b16 %v3024, %v3023
    %v3069 = vpack.c.b16 %v3026, %v3025
    %v3070 = vpack.c.b16 %v3028, %v3027
    %v3071 = vpack.c.b16 %v3030, %v3029
    %v3072 = vpack.c.b16 %v3032, %v3031
    %v3073 = vpack.c.b16 %v3034, %v3033
    %v3074 = vpack.c.b16 %v3036, %v3035
    %v3075 = vpack.c.b16 %v3038, %v3037
    %v3076 = vpack.c.b16 %v3040, %v3039
    %v3077 = vpack.c.b16 %v3042, %v3041
    %v3078 = vpack.c.b16 %v3044, %v3043
    %v3079 = vpack.c.b16 %v3046, %v3045
    %v3080 = vpack.c.b16 %v3048, %v3047
    %v3083 = vunpack.c.l.b16 %v2919
    %v3084 = vunpack.c.l.b16 %v2920
    %v3085 = vpack.c.b16 %v3084, %v3083
    %v3087 = vsel %vm2336, %v3049, 0
    %v3090 = vsel %vm2336, %v3050, 0
    %v3093 = vsel %vm2336, %v3051, 0
    %v3096 = vsel %vm2336, %v3052, 0
    %v3099 = vsel %vm2336, %v3053, 0
    %v3102 = vsel %vm2336, %v3054, 0
    %v3105 = vsel %vm2336, %v3055, 0
    %v3108 = vsel %vm2336, %v3056, 0
    %v3111 = vsel %vm2336, %v3057, 0
    %v3114 = vsel %vm2336, %v3058, 0
    %v3117 = vsel %vm2336, %v3059, 0
    %v3120 = vsel %vm2336, %v3060, 0
    %v3123 = vsel %vm2336, %v3061, 0
    %v3126 = vsel %vm2336, %v3062, 0
    %v3129 = vsel %vm2336, %v3063, 0
    %v3132 = vsel %vm2336, %v3064, 0
    %v3135 = vsel %vm2336, %v3065, 0
    %v3138 = vsel %vm2336, %v3066, 0
    %v3141 = vsel %vm2336, %v3067, 0
    %v3144 = vsel %vm2336, %v3068, 0
    %v3147 = vsel %vm2336, %v3069, 0
    %v3150 = vsel %vm2336, %v3070, 0
    %v3153 = vsel %vm2336, %v3071, 0
    %v3156 = vsel %vm2336, %v3072, 0
    %v3159 = vsel %vm2336, %v3073, 0
    %v3162 = vsel %vm2336, %v3074, 0
    %v3165 = vsel %vm2336, %v3075, 0
    %v3168 = vsel %vm2336, %v3076, 0
    %v3171 = vsel %vm2336, %v3077, 0
    %v3174 = vsel %vm2336, %v3078, 0
    %v3177 = vsel %vm2336, %v3079, 0
    %v3180 = vsel %vm2336, %v3080, 0
    %v3183 = vsel %vm2433, %v3085, 0
    %3185 = vmatprep.subr.bf16.mxu0 0
    %3186 = vmatpush1.bf16.msra.mxu0 0
    %3187 = vmatprep.subr.bf16.mxu0 0
    %3188 = vmatpush1.bf16.msra.mxu0 0
    %3189 = vmatprep.subr.bf16.mxu0 0
    %3190 = vmatpush1.bf16.msra.mxu0 0
    %3191 = vmatprep.subr.bf16.mxu0 0
    %3192 = vmatpush1.bf16.msra.mxu0 0
    %3193 = vmatprep.subr.bf16.mxu0 0
    %3194 = vmatpush1.bf16.msra.mxu0 0
    %3195 = vmatprep.subr.bf16.mxu0 0
    %3196 = vmatpush1.bf16.msra.mxu0 0
    %3197 = vmatprep.subr.bf16.mxu0 0
    %3198 = vmatpush1.bf16.msra.mxu0 0
    %3199 = vmatprep.subr.bf16.mxu0 0
    %3200 = vmatpush1.bf16.msra.mxu0 %v3183
    %3201 = vmatprep.subr.bf16.mxu0 0
    %3202 = vmatpush2.bf16.msra.mxu0 0
    %3203 = vmatprep.subr.bf16.mxu0 0
    %3204 = vmatpush2.bf16.msra.mxu0 0
    %3205 = vmatprep.subr.bf16.mxu0 0
    %3206 = vmatpush2.bf16.msra.mxu0 0
    %3207 = vmatprep.subr.bf16.mxu0 0
    %3208 = vmatpush2.bf16.msra.mxu0 0
    %3209 = vmatprep.subr.bf16.mxu0 0
    %3210 = vmatpush2.bf16.msra.mxu0 0
    %3211 = vmatprep.subr.bf16.mxu0 0
    %3212 = vmatpush2.bf16.msra.mxu0 0
    %3213 = vmatprep.subr.bf16.mxu0 0
    %3214 = vmatpush2.bf16.msra.mxu0 0
    %3215 = vmatprep.subr.bf16.mxu0 0
    %3216 = vmatpush2.bf16.msra.mxu0 0
    %3217 = vmatprep.mubr.bf16.mxu0 0
    %3218 = vmatmul.mubr.bf16.gmra.mxu0 %v3087
    %v3219 = vpop.f32.mrf.mxu0
    %v3220 = vadd.f32 0.0, %v3219
    %v3221 = vpop.f32.mrf.mxu0
    %v3222 = vpop.f32.mrf.mxu0
    %v3223 = vadd.f32 0.0, %v3222
    %v3224 = vpop.f32.mrf.mxu0
    %3225 = vmatprep.mubr.bf16.mxu0 0
    %3226 = vmatmul.mubr.bf16.gmra.mxu0 %v3090
    %v3227 = vpop.f32.mrf.mxu0
    %v3228 = vadd.f32 0.0, %v3227
    %v3229 = vpop.f32.mrf.mxu0
    %v3230 = vpop.f32.mrf.mxu0
    %v3231 = vadd.f32 0.0, %v3230
    %v3232 = vpop.f32.mrf.mxu0
    %3233 = vmatprep.mubr.bf16.mxu0 0
    %3234 = vmatmul.mubr.bf16.gmra.mxu0 %v3093
    %v3235 = vpop.f32.mrf.mxu0
    %v3236 = vadd.f32 0.0, %v3235
    %v3237 = vpop.f32.mrf.mxu0
    %v3238 = vpop.f32.mrf.mxu0
    %v3239 = vadd.f32 0.0, %v3238
    %v3240 = vpop.f32.mrf.mxu0
    %3241 = vmatprep.mubr.bf16.mxu0 0
    %3242 = vmatmul.mubr.bf16.gmra.mxu0 %v3096
    %v3243 = vpop.f32.mrf.mxu0
    %v3244 = vadd.f32 0.0, %v3243
    %v3245 = vpop.f32.mrf.mxu0
    %v3246 = vpop.f32.mrf.mxu0
    %v3247 = vadd.f32 0.0, %v3246
    %v3248 = vpop.f32.mrf.mxu0
    %3249 = vmatprep.mubr.bf16.mxu0 0
    %3250 = vmatmul.mubr.bf16.gmra.mxu0 %v3099
    %v3251 = vpop.f32.mrf.mxu0
    %v3252 = vadd.f32 0.0, %v3251
    %v3253 = vpop.f32.mrf.mxu0
    %v3254 = vpop.f32.mrf.mxu0
    %v3255 = vadd.f32 0.0, %v3254
    %v3256 = vpop.f32.mrf.mxu0
    %3257 = vmatprep.mubr.bf16.mxu0 0
    %3258 = vmatmul.mubr.bf16.gmra.mxu0 %v3102
    %v3259 = vpop.f32.mrf.mxu0
    %v3260 = vadd.f32 0.0, %v3259
    %v3261 = vpop.f32.mrf.mxu0
    %v3262 = vpop.f32.mrf.mxu0
    %v3263 = vadd.f32 0.0, %v3262
    %v3264 = vpop.f32.mrf.mxu0
    %3265 = vmatprep.mubr.bf16.mxu0 0
    %3266 = vmatmul.mubr.bf16.gmra.mxu0 %v3105
    %v3267 = vpop.f32.mrf.mxu0
    %v3268 = vadd.f32 0.0, %v3267
    %v3269 = vpop.f32.mrf.mxu0
    %v3270 = vpop.f32.mrf.mxu0
    %v3271 = vadd.f32 0.0, %v3270
    %v3272 = vpop.f32.mrf.mxu0
    %3273 = vmatprep.mubr.bf16.mxu0 0
    %3274 = vmatmul.mubr.bf16.gmra.mxu0 %v3108
    %v3275 = vpop.f32.mrf.mxu0
    %v3276 = vadd.f32 0.0, %v3275
    %v3277 = vpop.f32.mrf.mxu0
    %v3278 = vpop.f32.mrf.mxu0
    %v3279 = vadd.f32 0.0, %v3278
    %v3280 = vpop.f32.mrf.mxu0
    %3281 = vmatprep.mubr.bf16.mxu0 0
    %3282 = vmatmul.mubr.bf16.gmra.mxu0 %v3111
    %v3283 = vpop.f32.mrf.mxu0
    %v3284 = vadd.f32 0.0, %v3283
    %v3285 = vpop.f32.mrf.mxu0
    %v3286 = vpop.f32.mrf.mxu0
    %v3287 = vadd.f32 0.0, %v3286
    %v3288 = vpop.f32.mrf.mxu0
    %3289 = vmatprep.mubr.bf16.mxu0 0
    %3290 = vmatmul.mubr.bf16.gmra.mxu0 %v3114
    %v3291 = vpop.f32.mrf.mxu0
    %v3292 = vadd.f32 0.0, %v3291
    %v3293 = vpop.f32.mrf.mxu0
    %v3294 = vpop.f32.mrf.mxu0
    %v3295 = vadd.f32 0.0, %v3294
    %v3296 = vpop.f32.mrf.mxu0
    %3297 = vmatprep.mubr.bf16.mxu0 0
    %3298 = vmatmul.mubr.bf16.gmra.mxu0 %v3117
    %v3299 = vpop.f32.mrf.mxu0
    %v3300 = vadd.f32 0.0, %v3299
    %v3301 = vpop.f32.mrf.mxu0
    %v3302 = vpop.f32.mrf.mxu0
    %v3303 = vadd.f32 0.0, %v3302
    %v3304 = vpop.f32.mrf.mxu0
    %3305 = vmatprep.mubr.bf16.mxu0 0
    %3306 = vmatmul.mubr.bf16.gmra.mxu0 %v3120
    %v3307 = vpop.f32.mrf.mxu0
    %v3308 = vadd.f32 0.0, %v3307
    %v3309 = vpop.f32.mrf.mxu0
    %v3310 = vpop.f32.mrf.mxu0
    %v3311 = vadd.f32 0.0, %v3310
    %v3312 = vpop.f32.mrf.mxu0
    %3313 = vmatprep.mubr.bf16.mxu0 0
    %3314 = vmatmul.mubr.bf16.gmra.mxu0 %v3123
    %v3315 = vpop.f32.mrf.mxu0
    %v3316 = vadd.f32 0.0, %v3315
    %v3317 = vpop.f32.mrf.mxu0
    %v3318 = vpop.f32.mrf.mxu0
    %v3319 = vadd.f32 0.0, %v3318
    %v3320 = vpop.f32.mrf.mxu0
    %3321 = vmatprep.mubr.bf16.mxu0 0
    %3322 = vmatmul.mubr.bf16.gmra.mxu0 %v3126
    %v3323 = vpop.f32.mrf.mxu0
    %v3324 = vadd.f32 0.0, %v3323
    %v3325 = vpop.f32.mrf.mxu0
    %v3326 = vpop.f32.mrf.mxu0
    %v3327 = vadd.f32 0.0, %v3326
    %v3328 = vpop.f32.mrf.mxu0
    %3329 = vmatprep.mubr.bf16.mxu0 0
    %3330 = vmatmul.mubr.bf16.gmra.mxu0 %v3129
    %v3331 = vpop.f32.mrf.mxu0
    %v3332 = vadd.f32 0.0, %v3331
    %v3333 = vpop.f32.mrf.mxu0
    %v3334 = vpop.f32.mrf.mxu0
    %v3335 = vadd.f32 0.0, %v3334
    %v3336 = vpop.f32.mrf.mxu0
    %3337 = vmatprep.mubr.bf16.mxu0 0
    %3338 = vmatmul.mubr.bf16.gmra.mxu0 %v3132
    %v3339 = vpop.f32.mrf.mxu0
    %v3340 = vadd.f32 0.0, %v3339
    %v3341 = vpop.f32.mrf.mxu0
    %v3342 = vpop.f32.mrf.mxu0
    %v3343 = vadd.f32 0.0, %v3342
    %v3344 = vpop.f32.mrf.mxu0
    %3345 = vmatprep.mubr.bf16.mxu0 0
    %3346 = vmatmul.mubr.bf16.gmra.mxu0 %v3135
    %v3347 = vpop.f32.mrf.mxu0
    %v3348 = vadd.f32 0.0, %v3347
    %v3349 = vpop.f32.mrf.mxu0
    %v3350 = vpop.f32.mrf.mxu0
    %v3351 = vadd.f32 0.0, %v3350
    %v3352 = vpop.f32.mrf.mxu0
    %3353 = vmatprep.mubr.bf16.mxu0 0
    %3354 = vmatmul.mubr.bf16.gmra.mxu0 %v3138
    %v3355 = vpop.f32.mrf.mxu0
    %v3356 = vadd.f32 0.0, %v3355
    %v3357 = vpop.f32.mrf.mxu0
    %v3358 = vpop.f32.mrf.mxu0
    %v3359 = vadd.f32 0.0, %v3358
    %v3360 = vpop.f32.mrf.mxu0
    %3361 = vmatprep.mubr.bf16.mxu0 0
    %3362 = vmatmul.mubr.bf16.gmra.mxu0 %v3141
    %v3363 = vpop.f32.mrf.mxu0
    %v3364 = vadd.f32 0.0, %v3363
    %v3365 = vpop.f32.mrf.mxu0
    %v3366 = vpop.f32.mrf.mxu0
    %v3367 = vadd.f32 0.0, %v3366
    %v3368 = vpop.f32.mrf.mxu0
    %3369 = vmatprep.mubr.bf16.mxu0 0
    %3370 = vmatmul.mubr.bf16.gmra.mxu0 %v3144
    %v3371 = vpop.f32.mrf.mxu0
    %v3372 = vadd.f32 0.0, %v3371
    %v3373 = vpop.f32.mrf.mxu0
    %v3374 = vpop.f32.mrf.mxu0
    %v3375 = vadd.f32 0.0, %v3374
    %v3376 = vpop.f32.mrf.mxu0
    %3377 = vmatprep.mubr.bf16.mxu0 0
    %3378 = vmatmul.mubr.bf16.gmra.mxu0 %v3147
    %v3379 = vpop.f32.mrf.mxu0
    %v3380 = vadd.f32 0.0, %v3379
    %v3381 = vpop.f32.mrf.mxu0
    %v3382 = vpop.f32.mrf.mxu0
    %v3383 = vadd.f32 0.0, %v3382
    %v3384 = vpop.f32.mrf.mxu0
    %3385 = vmatprep.mubr.bf16.mxu0 0
    %3386 = vmatmul.mubr.bf16.gmra.mxu0 %v3150
    %v3387 = vpop.f32.mrf.mxu0
    %v3388 = vadd.f32 0.0, %v3387
    %v3389 = vpop.f32.mrf.mxu0
    %v3390 = vpop.f32.mrf.mxu0
    %v3391 = vadd.f32 0.0, %v3390
    %v3392 = vpop.f32.mrf.mxu0
    %3393 = vmatprep.mubr.bf16.mxu0 0
    %3394 = vmatmul.mubr.bf16.gmra.mxu0 %v3153
    %v3395 = vpop.f32.mrf.mxu0
    %v3396 = vadd.f32 0.0, %v3395
    %v3397 = vpop.f32.mrf.mxu0
    %v3398 = vpop.f32.mrf.mxu0
    %v3399 = vadd.f32 0.0, %v3398
    %v3400 = vpop.f32.mrf.mxu0
    %3401 = vmatprep.mubr.bf16.mxu0 0
    %3402 = vmatmul.mubr.bf16.gmra.mxu0 %v3156
    %v3403 = vpop.f32.mrf.mxu0
    %v3404 = vadd.f32 0.0, %v3403
    %v3405 = vpop.f32.mrf.mxu0
    %v3406 = vpop.f32.mrf.mxu0
    %v3407 = vadd.f32 0.0, %v3406
    %v3408 = vpop.f32.mrf.mxu0
    %3409 = vmatprep.mubr.bf16.mxu0 0
    %3410 = vmatmul.mubr.bf16.gmra.mxu0 %v3159
    %v3411 = vpop.f32.mrf.mxu0
    %v3412 = vadd.f32 0.0, %v3411
    %v3413 = vpop.f32.mrf.mxu0
    %v3414 = vpop.f32.mrf.mxu0
    %v3415 = vadd.f32 0.0, %v3414
    %v3416 = vpop.f32.mrf.mxu0
    %3417 = vmatprep.mubr.bf16.mxu0 0
    %3418 = vmatmul.mubr.bf16.gmra.mxu0 %v3162
    %v3419 = vpop.f32.mrf.mxu0
    %v3420 = vadd.f32 0.0, %v3419
    %v3421 = vpop.f32.mrf.mxu0
    %v3422 = vpop.f32.mrf.mxu0
    %v3423 = vadd.f32 0.0, %v3422
    %v3424 = vpop.f32.mrf.mxu0
    %3425 = vmatprep.mubr.bf16.mxu0 0
    %3426 = vmatmul.mubr.bf16.gmra.mxu0 %v3165
    %v3427 = vpop.f32.mrf.mxu0
    %v3428 = vadd.f32 0.0, %v3427
    %v3429 = vpop.f32.mrf.mxu0
    %v3430 = vpop.f32.mrf.mxu0
    %v3431 = vadd.f32 0.0, %v3430
    %v3432 = vpop.f32.mrf.mxu0
    %3433 = vmatprep.mubr.bf16.mxu0 0
    %3434 = vmatmul.mubr.bf16.gmra.mxu0 %v3168
    %v3435 = vpop.f32.mrf.mxu0
    %v3436 = vadd.f32 0.0, %v3435
    %v3437 = vpop.f32.mrf.mxu0
    %v3438 = vpop.f32.mrf.mxu0
    %v3439 = vadd.f32 0.0, %v3438
    %v3440 = vpop.f32.mrf.mxu0
    %3441 = vmatprep.mubr.bf16.mxu0 0
    %3442 = vmatmul.mubr.bf16.gmra.mxu0 %v3171
    %v3443 = vpop.f32.mrf.mxu0
    %v3444 = vadd.f32 0.0, %v3443
    %v3445 = vpop.f32.mrf.mxu0
    %v3446 = vpop.f32.mrf.mxu0
    %v3447 = vadd.f32 0.0, %v3446
    %v3448 = vpop.f32.mrf.mxu0
    %3449 = vmatprep.mubr.bf16.mxu0 0
    %3450 = vmatmul.mubr.bf16.gmra.mxu0 %v3174
    %v3451 = vpop.f32.mrf.mxu0
    %v3452 = vadd.f32 0.0, %v3451
    %v3453 = vpop.f32.mrf.mxu0
    %v3454 = vpop.f32.mrf.mxu0
    %v3455 = vadd.f32 0.0, %v3454
    %v3456 = vpop.f32.mrf.mxu0
    %3457 = vmatprep.mubr.bf16.mxu0 0
    %3458 = vmatmul.mubr.bf16.gmra.mxu0 %v3177
    %v3459 = vpop.f32.mrf.mxu0
    %v3460 = vadd.f32 0.0, %v3459
    %v3461 = vpop.f32.mrf.mxu0
    %v3462 = vpop.f32.mrf.mxu0
    %v3463 = vadd.f32 0.0, %v3462
    %v3464 = vpop.f32.mrf.mxu0
    %3465 = vmatprep.mubr.bf16.mxu0 0
    %3466 = vmatmul.mubr.bf16.gmra.mxu0 %v3180
    %v3467 = vpop.f32.mrf.mxu0
    %v3468 = vadd.f32 0.0, %v3467
    %v3469 = vpop.f32.mrf.mxu0
    %v3470 = vpop.f32.mrf.mxu0
    %v3471 = vadd.f32 0.0, %v3470
    %v3472 = vpop.f32.mrf.mxu0
    %3473 = vdwg.mxu0
    %v3474 = vadd.f32 %v2790, %v3220
    %v3475 = vadd.f32 %v2791, %v3223
    %v3476 = vadd.f32 %v2792, %v3228
    %v3477 = vadd.f32 %v2793, %v3231
    %v3478 = vadd.f32 %v2794, %v3236
    %v3479 = vadd.f32 %v2795, %v3239
    %v3480 = vadd.f32 %v2796, %v3244
    %v3481 = vadd.f32 %v2797, %v3247
    %v3482 = vadd.f32 %v2798, %v3252
    %v3483 = vadd.f32 %v2799, %v3255
    %v3484 = vadd.f32 %v2800, %v3260
    %v3485 = vadd.f32 %v2801, %v3263
    %v3486 = vadd.f32 %v2802, %v3268
    %v3487 = vadd.f32 %v2803, %v3271
    %v3488 = vadd.f32 %v2804, %v3276
    %v3489 = vadd.f32 %v2805, %v3279
    %v3490 = vadd.f32 %v2806, %v3284
    %v3491 = vadd.f32 %v2807, %v3287
    %v3492 = vadd.f32 %v2808, %v3292
    %v3493 = vadd.f32 %v2809, %v3295
    %v3494 = vadd.f32 %v2810, %v3300
    %v3495 = vadd.f32 %v2811, %v3303
    %v3496 = vadd.f32 %v2812, %v3308
    %v3497 = vadd.f32 %v2813, %v3311
    %v3498 = vadd.f32 %v2814, %v3316
    %v3499 = vadd.f32 %v2815, %v3319
    %v3500 = vadd.f32 %v2816, %v3324
    %v3501 = vadd.f32 %v2817, %v3327
    %v3502 = vadd.f32 %v2818, %v3332
    %v3503 = vadd.f32 %v2819, %v3335
    %v3504 = vadd.f32 %v2820, %v3340
    %v3505 = vadd.f32 %v2821, %v3343
    %v3506 = vadd.f32 %v2822, %v3348
    %v3507 = vadd.f32 %v2823, %v3351
    %v3508 = vadd.f32 %v2824, %v3356
    %v3509 = vadd.f32 %v2825, %v3359
    %v3510 = vadd.f32 %v2826, %v3364
    %v3511 = vadd.f32 %v2827, %v3367
    %v3512 = vadd.f32 %v2828, %v3372
    %v3513 = vadd.f32 %v2829, %v3375
    %v3514 = vadd.f32 %v2830, %v3380
    %v3515 = vadd.f32 %v2831, %v3383
    %v3516 = vadd.f32 %v2832, %v3388
    %v3517 = vadd.f32 %v2833, %v3391
    %v3518 = vadd.f32 %v2834, %v3396
    %v3519 = vadd.f32 %v2835, %v3399
    %v3520 = vadd.f32 %v2836, %v3404
    %v3521 = vadd.f32 %v2837, %v3407
    %v3522 = vadd.f32 %v2838, %v3412
    %v3523 = vadd.f32 %v2839, %v3415
    %v3524 = vadd.f32 %v2840, %v3420
    %v3525 = vadd.f32 %v2841, %v3423
    %v3526 = vadd.f32 %v2842, %v3428
    %v3527 = vadd.f32 %v2843, %v3431
    %v3528 = vadd.f32 %v2844, %v3436
    %v3529 = vadd.f32 %v2845, %v3439
    %v3530 = vadd.f32 %v2846, %v3444
    %v3531 = vadd.f32 %v2847, %v3447
    %v3532 = vadd.f32 %v2848, %v3452
    %v3533 = vadd.f32 %v2849, %v3455
    %v3534 = vadd.f32 %v2850, %v3460
    %v3535 = vadd.f32 %v2851, %v3463
    %v3536 = vadd.f32 %v2852, %v3468
    %v3537 = vadd.f32 %v2853, %v3471
    %3538 = vst.msk [vmem:[#allocation3] sm:$0xff] %vm1644, %v3474
    %3539 = vst.msk [vmem:[#allocation3 + $0x8] sm:$0xff] %vm1644, %v3475
    %3540 = vst.msk [vmem:[#allocation3 + $0x10] sm:$0xff] %vm1644, %v3476
    %3541 = vst.msk [vmem:[#allocation3 + $0x18] sm:$0xff] %vm1644, %v3477
    %3542 = vst.msk [vmem:[#allocation3 + $0x20] sm:$0xff] %vm1644, %v3478
    %3543 = vst.msk [vmem:[#allocation3 + $0x28] sm:$0xff] %vm1644, %v3479
    %3544 = vst.msk [vmem:[#allocation3 + $0x30] sm:$0xff] %vm1644, %v3480
    %3545 = vst.msk [vmem:[#allocation3 + $0x38] sm:$0xff] %vm1644, %v3481
    %3546 = vst.msk [vmem:[#allocation3 + $0x40] sm:$0xff] %vm1644, %v3482
    %3547 = vst.msk [vmem:[#allocation3 + $0x48] sm:$0xff] %vm1644, %v3483
    %3548 = vst.msk [vmem:[#allocation3 + $0x50] sm:$0xff] %vm1644, %v3484
    %3549 = vst.msk [vmem:[#allocation3 + $0x58] sm:$0xff] %vm1644, %v3485
    %3550 = vst.msk [vmem:[#allocation3 + $0x60] sm:$0xff] %vm1644, %v3486
    %3551 = vst.msk [vmem:[#allocation3 + $0x68] sm:$0xff] %vm1644, %v3487
    %3552 = vst.msk [vmem:[#allocation3 + $0x70] sm:$0xff] %vm1644, %v3488
    %3553 = vst.msk [vmem:[#allocation3 + $0x78] sm:$0xff] %vm1644, %v3489
    %3554 = vst.msk [vmem:[#allocation3 + $0x80] sm:$0xff] %vm1644, %v3490
    %3555 = vst.msk [vmem:[#allocation3 + $0x88] sm:$0xff] %vm1644, %v3491
    %3556 = vst.msk [vmem:[#allocation3 + $0x90] sm:$0xff] %vm1644, %v3492
    %3557 = vst.msk [vmem:[#allocation3 + $0x98] sm:$0xff] %vm1644, %v3493
    %3558 = vst.msk [vmem:[#allocation3 + $0xa0] sm:$0xff] %vm1644, %v3494
    %3559 = vst.msk [vmem:[#allocation3 + $0xa8] sm:$0xff] %vm1644, %v3495
    %3560 = vst.msk [vmem:[#allocation3 + $0xb0] sm:$0xff] %vm1644, %v3496
    %3561 = vst.msk [vmem:[#allocation3 + $0xb8] sm:$0xff] %vm1644, %v3497
    %3562 = vst.msk [vmem:[#allocation3 + $0xc0] sm:$0xff] %vm1644, %v3498
    %3563 = vst.msk [vmem:[#allocation3 + $0xc8] sm:$0xff] %vm1644, %v3499
    %3564 = vst.msk [vmem:[#allocation3 + $0xd0] sm:$0xff] %vm1644, %v3500
    %3565 = vst.msk [vmem:[#allocation3 + $0xd8] sm:$0xff] %vm1644, %v3501
    %3566 = vst.msk [vmem:[#allocation3 + $0xe0] sm:$0xff] %vm1644, %v3502
    %3567 = vst.msk [vmem:[#allocation3 + $0xe8] sm:$0xff] %vm1644, %v3503
    %3568 = vst.msk [vmem:[#allocation3 + $0xf0] sm:$0xff] %vm1644, %v3504
    %3569 = vst.msk [vmem:[#allocation3 + $0xf8] sm:$0xff] %vm1644, %v3505
    %3570 = vst.msk [vmem:[#allocation3 + $0x100] sm:$0xff] %vm1644, %v3506
    %3571 = vst.msk [vmem:[#allocation3 + $0x108] sm:$0xff] %vm1644, %v3507
    %3572 = vst.msk [vmem:[#allocation3 + $0x110] sm:$0xff] %vm1644, %v3508
    %3573 = vst.msk [vmem:[#allocation3 + $0x118] sm:$0xff] %vm1644, %v3509
    %3574 = vst.msk [vmem:[#allocation3 + $0x120] sm:$0xff] %vm1644, %v3510
    %3575 = vst.msk [vmem:[#allocation3 + $0x128] sm:$0xff] %vm1644, %v3511
    %3576 = vst.msk [vmem:[#allocation3 + $0x130] sm:$0xff] %vm1644, %v3512
    %3577 = vst.msk [vmem:[#allocation3 + $0x138] sm:$0xff] %vm1644, %v3513
    %3578 = vst.msk [vmem:[#allocation3 + $0x140] sm:$0xff] %vm1644, %v3514
    %3579 = vst.msk [vmem:[#allocation3 + $0x148] sm:$0xff] %vm1644, %v3515
    %3580 = vst.msk [vmem:[#allocation3 + $0x150] sm:$0xff] %vm1644, %v3516
    %3581 = vst.msk [vmem:[#allocation3 + $0x158] sm:$0xff] %vm1644, %v3517
    %3582 = vst.msk [vmem:[#allocation3 + $0x160] sm:$0xff] %vm1644, %v3518
    %3583 = vst.msk [vmem:[#allocation3 + $0x168] sm:$0xff] %vm1644, %v3519
    %3584 = vst.msk [vmem:[#allocation3 + $0x170] sm:$0xff] %vm1644, %v3520
    %3585 = vst.msk [vmem:[#allocation3 + $0x178] sm:$0xff] %vm1644, %v3521
    %3586 = vst.msk [vmem:[#allocation3 + $0x180] sm:$0xff] %vm1644, %v3522
    %3587 = vst.msk [vmem:[#allocation3 + $0x188] sm:$0xff] %vm1644, %v3523
    %3588 = vst.msk [vmem:[#allocation3 + $0x190] sm:$0xff] %vm1644, %v3524
    %3589 = vst.msk [vmem:[#allocation3 + $0x198] sm:$0xff] %vm1644, %v3525
    %3590 = vst.msk [vmem:[#allocation3 + $0x1a0] sm:$0xff] %vm1644, %v3526
    %3591 = vst.msk [vmem:[#allocation3 + $0x1a8] sm:$0xff] %vm1644, %v3527
    %3592 = vst.msk [vmem:[#allocation3 + $0x1b0] sm:$0xff] %vm1644, %v3528
    %3593 = vst.msk [vmem:[#allocation3 + $0x1b8] sm:$0xff] %vm1644, %v3529
    %3594 = vst.msk [vmem:[#allocation3 + $0x1c0] sm:$0xff] %vm1644, %v3530
    %3595 = vst.msk [vmem:[#allocation3 + $0x1c8] sm:$0xff] %vm1644, %v3531
    %3596 = vst.msk [vmem:[#allocation3 + $0x1d0] sm:$0xff] %vm1644, %v3532
    %3597 = vst.msk [vmem:[#allocation3 + $0x1d8] sm:$0xff] %vm1644, %v3533
    %3598 = vst.msk [vmem:[#allocation3 + $0x1e0] sm:$0xff] %vm1644, %v3534
    %3599 = vst.msk [vmem:[#allocation3 + $0x1e8] sm:$0xff] %vm1644, %v3535
    %3600 = vst.msk [vmem:[#allocation3 + $0x1f0] sm:$0xff] %vm1644, %v3536
    %3601 = vst.msk [vmem:[#allocation3 + $0x1f8] sm:$0xff] %vm1644, %v3537
    %v3602 = vld [vmem:[#allocation3] sm:$0xff]
    %v3603 = vld [vmem:[#allocation3 + $0x8] sm:$0xff]
    %v3604 = vld [vmem:[#allocation3 + $0x10] sm:$0xff]
    %v3605 = vld [vmem:[#allocation3 + $0x18] sm:$0xff]
    %v3606 = vld [vmem:[#allocation3 + $0x20] sm:$0xff]
    %v3607 = vld [vmem:[#allocation3 + $0x28] sm:$0xff]
    %v3608 = vld [vmem:[#allocation3 + $0x30] sm:$0xff]
    %v3609 = vld [vmem:[#allocation3 + $0x38] sm:$0xff]
    %v3610 = vld [vmem:[#allocation3 + $0x40] sm:$0xff]
    %v3611 = vld [vmem:[#allocation3 + $0x48] sm:$0xff]
    %v3612 = vld [vmem:[#allocation3 + $0x50] sm:$0xff]
    %v3613 = vld [vmem:[#allocation3 + $0x58] sm:$0xff]
    %v3614 = vld [vmem:[#allocation3 + $0x60] sm:$0xff]
    %v3615 = vld [vmem:[#allocation3 + $0x68] sm:$0xff]
    %v3616 = vld [vmem:[#allocation3 + $0x70] sm:$0xff]
    %v3617 = vld [vmem:[#allocation3 + $0x78] sm:$0xff]
    %v3618 = vld [vmem:[#allocation3 + $0x80] sm:$0xff]
    %v3619 = vld [vmem:[#allocation3 + $0x88] sm:$0xff]
    %v3620 = vld [vmem:[#allocation3 + $0x90] sm:$0xff]
    %v3621 = vld [vmem:[#allocation3 + $0x98] sm:$0xff]
    %v3622 = vld [vmem:[#allocation3 + $0xa0] sm:$0xff]
    %v3623 = vld [vmem:[#allocation3 + $0xa8] sm:$0xff]
    %v3624 = vld [vmem:[#allocation3 + $0xb0] sm:$0xff]
    %v3625 = vld [vmem:[#allocation3 + $0xb8] sm:$0xff]
    %v3626 = vld [vmem:[#allocation3 + $0xc0] sm:$0xff]
    %v3627 = vld [vmem:[#allocation3 + $0xc8] sm:$0xff]
    %v3628 = vld [vmem:[#allocation3 + $0xd0] sm:$0xff]
    %v3629 = vld [vmem:[#allocation3 + $0xd8] sm:$0xff]
    %v3630 = vld [vmem:[#allocation3 + $0xe0] sm:$0xff]
    %v3631 = vld [vmem:[#allocation3 + $0xe8] sm:$0xff]
    %v3632 = vld [vmem:[#allocation3 + $0xf0] sm:$0xff]
    %v3633 = vld [vmem:[#allocation3 + $0xf8] sm:$0xff]
    %v3634 = vld [vmem:[#allocation3 + $0x100] sm:$0xff]
    %v3635 = vld [vmem:[#allocation3 + $0x108] sm:$0xff]
    %v3636 = vld [vmem:[#allocation3 + $0x110] sm:$0xff]
    %v3637 = vld [vmem:[#allocation3 + $0x118] sm:$0xff]
    %v3638 = vld [vmem:[#allocation3 + $0x120] sm:$0xff]
    %v3639 = vld [vmem:[#allocation3 + $0x128] sm:$0xff]
    %v3640 = vld [vmem:[#allocation3 + $0x130] sm:$0xff]
    %v3641 = vld [vmem:[#allocation3 + $0x138] sm:$0xff]
    %v3642 = vld [vmem:[#allocation3 + $0x140] sm:$0xff]
    %v3643 = vld [vmem:[#allocation3 + $0x148] sm:$0xff]
    %v3644 = vld [vmem:[#allocation3 + $0x150] sm:$0xff]
    %v3645 = vld [vmem:[#allocation3 + $0x158] sm:$0xff]
    %v3646 = vld [vmem:[#allocation3 + $0x160] sm:$0xff]
    %v3647 = vld [vmem:[#allocation3 + $0x168] sm:$0xff]
    %v3648 = vld [vmem:[#allocation3 + $0x170] sm:$0xff]
    %v3649 = vld [vmem:[#allocation3 + $0x178] sm:$0xff]
    %v3650 = vld [vmem:[#allocation3 + $0x180] sm:$0xff]
    %v3651 = vld [vmem:[#allocation3 + $0x188] sm:$0xff]
    %v3652 = vld [vmem:[#allocation3 + $0x190] sm:$0xff]
    %v3653 = vld [vmem:[#allocation3 + $0x198] sm:$0xff]
    %v3654 = vld [vmem:[#allocation3 + $0x1a0] sm:$0xff]
    %v3655 = vld [vmem:[#allocation3 + $0x1a8] sm:$0xff]
    %v3656 = vld [vmem:[#allocation3 + $0x1b0] sm:$0xff]
    %v3657 = vld [vmem:[#allocation3 + $0x1b8] sm:$0xff]
    %v3658 = vld [vmem:[#allocation3 + $0x1c0] sm:$0xff]
    %v3659 = vld [vmem:[#allocation3 + $0x1c8] sm:$0xff]
    %v3660 = vld [vmem:[#allocation3 + $0x1d0] sm:$0xff]
    %v3661 = vld [vmem:[#allocation3 + $0x1d8] sm:$0xff]
    %v3662 = vld [vmem:[#allocation3 + $0x1e0] sm:$0xff]
    %v3663 = vld [vmem:[#allocation3 + $0x1e8] sm:$0xff]
    %v3664 = vld [vmem:[#allocation3 + $0x1f0] sm:$0xff]
    %v3665 = vld [vmem:[#allocation3 + $0x1f8] sm:$0xff]
    %s3666 = scalar_lea.vmem [#allocation2], 16
    %v3667 = vld [vmem:[%s3666] sm:$0xf]
    %v3668 = vld [vmem:[%s3666 + $0x4] sm:$0xf]
    %v3669 = vld [vmem:[%s3666 + $0x8] sm:$0xf]
    %v3670 = vld [vmem:[%s3666 + $0xc] sm:$0xf]
    %v3671 = vld [vmem:[%s3666 + $0x10] sm:$0xf]
    %v3672 = vld [vmem:[%s3666 + $0x14] sm:$0xf]
    %v3673 = vld [vmem:[%s3666 + $0x18] sm:$0xf]
    %v3674 = vld [vmem:[%s3666 + $0x1c] sm:$0xf]
    %v3675 = vld [vmem:[%s3666 + $0x20] sm:$0xf]
    %v3676 = vld [vmem:[%s3666 + $0x24] sm:$0xf]
    %v3677 = vld [vmem:[%s3666 + $0x28] sm:$0xf]
    %v3678 = vld [vmem:[%s3666 + $0x2c] sm:$0xf]
    %v3679 = vld [vmem:[%s3666 + $0x30] sm:$0xf]
    %v3680 = vld [vmem:[%s3666 + $0x34] sm:$0xf]
    %v3681 = vld [vmem:[%s3666 + $0x38] sm:$0xf]
    %v3682 = vld [vmem:[%s3666 + $0x3c] sm:$0xf]
    %v3683 = vld [vmem:[%s3666 + $0x40] sm:$0xf]
    %v3684 = vld [vmem:[%s3666 + $0x44] sm:$0xf]
    %v3685 = vld [vmem:[%s3666 + $0x48] sm:$0xf]
    %v3686 = vld [vmem:[%s3666 + $0x4c] sm:$0xf]
    %v3687 = vld [vmem:[%s3666 + $0x50] sm:$0xf]
    %v3688 = vld [vmem:[%s3666 + $0x54] sm:$0xf]
    %v3689 = vld [vmem:[%s3666 + $0x58] sm:$0xf]
    %v3690 = vld [vmem:[%s3666 + $0x5c] sm:$0xf]
    %v3691 = vld [vmem:[%s3666 + $0x60] sm:$0xf]
    %v3692 = vld [vmem:[%s3666 + $0x64] sm:$0xf]
    %v3693 = vld [vmem:[%s3666 + $0x68] sm:$0xf]
    %v3694 = vld [vmem:[%s3666 + $0x6c] sm:$0xf]
    %v3695 = vld [vmem:[%s3666 + $0x70] sm:$0xf]
    %v3696 = vld [vmem:[%s3666 + $0x74] sm:$0xf]
    %v3697 = vld [vmem:[%s3666 + $0x78] sm:$0xf]
    %v3698 = vld [vmem:[%s3666 + $0x7c] sm:$0xf]
    %v3699 = vld [vmem:[%s3666 + $0x90] sm:$0xf]
    %v3700 = vld [vmem:[%s3666 + $0x94] sm:$0xf]
    %v3701 = vld [vmem:[%s3666 + $0x98] sm:$0xf]
    %v3702 = vld [vmem:[%s3666 + $0x9c] sm:$0xf]
    %v3703 = vld [vmem:[%s3666 + $0xa0] sm:$0xf]
    %v3704 = vld [vmem:[%s3666 + $0xa4] sm:$0xf]
    %v3705 = vld [vmem:[%s3666 + $0xa8] sm:$0xf]
    %v3706 = vld [vmem:[%s3666 + $0xac] sm:$0xf]
    %v3707 = vld [vmem:[%s3666 + $0xb0] sm:$0xf]
    %v3708 = vld [vmem:[%s3666 + $0xb4] sm:$0xf]
    %v3709 = vld [vmem:[%s3666 + $0xb8] sm:$0xf]
    %v3710 = vld [vmem:[%s3666 + $0xbc] sm:$0xf]
    %v3711 = vld [vmem:[%s3666 + $0xc0] sm:$0xf]
    %v3712 = vld [vmem:[%s3666 + $0xc4] sm:$0xf]
    %v3713 = vld [vmem:[%s3666 + $0xc8] sm:$0xf]
    %v3714 = vld [vmem:[%s3666 + $0xcc] sm:$0xf]
    %v3715 = vld [vmem:[%s3666 + $0xd0] sm:$0xf]
    %v3716 = vld [vmem:[%s3666 + $0xd4] sm:$0xf]
    %v3717 = vld [vmem:[%s3666 + $0xd8] sm:$0xf]
    %v3718 = vld [vmem:[%s3666 + $0xdc] sm:$0xf]
    %v3719 = vld [vmem:[%s3666 + $0xe0] sm:$0xf]
    %v3720 = vld [vmem:[%s3666 + $0xe4] sm:$0xf]
    %v3721 = vld [vmem:[%s3666 + $0xe8] sm:$0xf]
    %v3722 = vld [vmem:[%s3666 + $0xec] sm:$0xf]
    %v3723 = vld [vmem:[%s3666 + $0xf0] sm:$0xf]
    %v3724 = vld [vmem:[%s3666 + $0xf4] sm:$0xf]
    %v3725 = vld [vmem:[%s3666 + $0xf8] sm:$0xf]
    %v3726 = vld [vmem:[%s3666 + $0xfc] sm:$0xf]
    %v3727 = vld [vmem:[%s3666 + $0x100] sm:$0xf]
    %v3728 = vld [vmem:[%s3666 + $0x104] sm:$0xf]
    %v3729 = vld [vmem:[%s3666 + $0x108] sm:$0xf]
    %v3730 = vld [vmem:[%s3666 + $0x10c] sm:$0xf]
    %s3731 = scalar_lea.vmem %s3, 16
    %v3732 = vld [vmem:[%s3731] sm:$0xf]
    %v3733 = vld [vmem:[%s3731 + $0x4] sm:$0x3]
    %v3798 = vunpack.c.l.b16 %v3667
    %v3799 = vunpack.c.l.b16 %v3668
    %v3800 = vunpack.c.l.b16 %v3669
    %v3801 = vunpack.c.l.b16 %v3670
    %v3802 = vunpack.c.l.b16 %v3671
    %v3803 = vunpack.c.l.b16 %v3672
    %v3804 = vunpack.c.l.b16 %v3673
    %v3805 = vunpack.c.l.b16 %v3674
    %v3806 = vunpack.c.l.b16 %v3675
    %v3807 = vunpack.c.l.b16 %v3676
    %v3808 = vunpack.c.l.b16 %v3677
    %v3809 = vunpack.c.l.b16 %v3678
    %v3810 = vunpack.c.l.b16 %v3679
    %v3811 = vunpack.c.l.b16 %v3680
    %v3812 = vunpack.c.l.b16 %v3681
    %v3813 = vunpack.c.l.b16 %v3682
    %v3814 = vunpack.c.l.b16 %v3683
    %v3815 = vunpack.c.l.b16 %v3684
    %v3816 = vunpack.c.l.b16 %v3685
    %v3817 = vunpack.c.l.b16 %v3686
    %v3818 = vunpack.c.l.b16 %v3687
    %v3819 = vunpack.c.l.b16 %v3688
    %v3820 = vunpack.c.l.b16 %v3689
    %v3821 = vunpack.c.l.b16 %v3690
    %v3822 = vunpack.c.l.b16 %v3691
    %v3823 = vunpack.c.l.b16 %v3692
    %v3824 = vunpack.c.l.b16 %v3693
    %v3825 = vunpack.c.l.b16 %v3694
    %v3826 = vunpack.c.l.b16 %v3695
    %v3827 = vunpack.c.l.b16 %v3696
    %v3828 = vunpack.c.l.b16 %v3697
    %v3829 = vunpack.c.l.b16 %v3698
    %v3830 = vunpack.c.l.b16 %v3699
    %v3831 = vunpack.c.l.b16 %v3700
    %v3832 = vunpack.c.l.b16 %v3701
    %v3833 = vunpack.c.l.b16 %v3702
    %v3834 = vunpack.c.l.b16 %v3703
    %v3835 = vunpack.c.l.b16 %v3704
    %v3836 = vunpack.c.l.b16 %v3705
    %v3837 = vunpack.c.l.b16 %v3706
    %v3838 = vunpack.c.l.b16 %v3707
    %v3839 = vunpack.c.l.b16 %v3708
    %v3840 = vunpack.c.l.b16 %v3709
    %v3841 = vunpack.c.l.b16 %v3710
    %v3842 = vunpack.c.l.b16 %v3711
    %v3843 = vunpack.c.l.b16 %v3712
    %v3844 = vunpack.c.l.b16 %v3713
    %v3845 = vunpack.c.l.b16 %v3714
    %v3846 = vunpack.c.l.b16 %v3715
    %v3847 = vunpack.c.l.b16 %v3716
    %v3848 = vunpack.c.l.b16 %v3717
    %v3849 = vunpack.c.l.b16 %v3718
    %v3850 = vunpack.c.l.b16 %v3719
    %v3851 = vunpack.c.l.b16 %v3720
    %v3852 = vunpack.c.l.b16 %v3721
    %v3853 = vunpack.c.l.b16 %v3722
    %v3854 = vunpack.c.l.b16 %v3723
    %v3855 = vunpack.c.l.b16 %v3724
    %v3856 = vunpack.c.l.b16 %v3725
    %v3857 = vunpack.c.l.b16 %v3726
    %v3858 = vunpack.c.l.b16 %v3727
    %v3859 = vunpack.c.l.b16 %v3728
    %v3860 = vunpack.c.l.b16 %v3729
    %v3861 = vunpack.c.l.b16 %v3730
    %v3862 = vpack.c.b16 %v3799, %v3798
    %v3863 = vpack.c.b16 %v3801, %v3800
    %v3864 = vpack.c.b16 %v3803, %v3802
    %v3865 = vpack.c.b16 %v3805, %v3804
    %v3866 = vpack.c.b16 %v3807, %v3806
    %v3867 = vpack.c.b16 %v3809, %v3808
    %v3868 = vpack.c.b16 %v3811, %v3810
    %v3869 = vpack.c.b16 %v3813, %v3812
    %v3870 = vpack.c.b16 %v3815, %v3814
    %v3871 = vpack.c.b16 %v3817, %v3816
    %v3872 = vpack.c.b16 %v3819, %v3818
    %v3873 = vpack.c.b16 %v3821, %v3820
    %v3874 = vpack.c.b16 %v3823, %v3822
    %v3875 = vpack.c.b16 %v3825, %v3824
    %v3876 = vpack.c.b16 %v3827, %v3826
    %v3877 = vpack.c.b16 %v3829, %v3828
    %v3878 = vpack.c.b16 %v3831, %v3830
    %v3879 = vpack.c.b16 %v3833, %v3832
    %v3880 = vpack.c.b16 %v3835, %v3834
    %v3881 = vpack.c.b16 %v3837, %v3836
    %v3882 = vpack.c.b16 %v3839, %v3838
    %v3883 = vpack.c.b16 %v3841, %v3840
    %v3884 = vpack.c.b16 %v3843, %v3842
    %v3885 = vpack.c.b16 %v3845, %v3844
    %v3886 = vpack.c.b16 %v3847, %v3846
    %v3887 = vpack.c.b16 %v3849, %v3848
    %v3888 = vpack.c.b16 %v3851, %v3850
    %v3889 = vpack.c.b16 %v3853, %v3852
    %v3890 = vpack.c.b16 %v3855, %v3854
    %v3891 = vpack.c.b16 %v3857, %v3856
    %v3892 = vpack.c.b16 %v3859, %v3858
    %v3893 = vpack.c.b16 %v3861, %v3860
    %v3896 = vunpack.c.l.b16 %v3732
    %v3897 = vunpack.c.l.b16 %v3733
    %v3898 = vpack.c.b16 %v3897, %v3896
    %v3900 = vsel %vm2336, %v3862, 0
    %v3903 = vsel %vm2336, %v3863, 0
    %v3906 = vsel %vm2336, %v3864, 0
    %v3909 = vsel %vm2336, %v3865, 0
    %v3912 = vsel %vm2336, %v3866, 0
    %v3915 = vsel %vm2336, %v3867, 0
    %v3918 = vsel %vm2336, %v3868, 0
    %v3921 = vsel %vm2336, %v3869, 0
    %v3924 = vsel %vm2336, %v3870, 0
    %v3927 = vsel %vm2336, %v3871, 0
    %v3930 = vsel %vm2336, %v3872, 0
    %v3933 = vsel %vm2336, %v3873, 0
    %v3936 = vsel %vm2336, %v3874, 0
    %v3939 = vsel %vm2336, %v3875, 0
    %v3942 = vsel %vm2336, %v3876, 0
    %v3945 = vsel %vm2336, %v3877, 0
    %v3948 = vsel %vm2336, %v3878, 0
    %v3951 = vsel %vm2336, %v3879, 0
    %v3954 = vsel %vm2336, %v3880, 0
    %v3957 = vsel %vm2336, %v3881, 0
    %v3960 = vsel %vm2336, %v3882, 0
    %v3963 = vsel %vm2336, %v3883, 0
    %v3966 = vsel %vm2336, %v3884, 0
    %v3969 = vsel %vm2336, %v3885, 0
    %v3972 = vsel %vm2336, %v3886, 0
    %v3975 = vsel %vm2336, %v3887, 0
    %v3978 = vsel %vm2336, %v3888, 0
    %v3981 = vsel %vm2336, %v3889, 0
    %v3984 = vsel %vm2336, %v3890, 0
    %v3987 = vsel %vm2336, %v3891, 0
    %v3990 = vsel %vm2336, %v3892, 0
    %v3993 = vsel %vm2336, %v3893, 0
    %v3996 = vsel %vm2433, %v3898, 0
    %3998 = vmatprep.subr.bf16.mxu0 0
    %3999 = vmatpush1.bf16.msra.mxu0 0
    %4000 = vmatprep.subr.bf16.mxu0 0
    %4001 = vmatpush1.bf16.msra.mxu0 0
    %4002 = vmatprep.subr.bf16.mxu0 0
    %4003 = vmatpush1.bf16.msra.mxu0 0
    %4004 = vmatprep.subr.bf16.mxu0 0
    %4005 = vmatpush1.bf16.msra.mxu0 0
    %4006 = vmatprep.subr.bf16.mxu0 0
    %4007 = vmatpush1.bf16.msra.mxu0 0
    %4008 = vmatprep.subr.bf16.mxu0 0
    %4009 = vmatpush1.bf16.msra.mxu0 0
    %4010 = vmatprep.subr.bf16.mxu0 0
    %4011 = vmatpush1.bf16.msra.mxu0 0
    %4012 = vmatprep.subr.bf16.mxu0 0
    %4013 = vmatpush1.bf16.msra.mxu0 %v3996
    %4014 = vmatprep.subr.bf16.mxu0 0
    %4015 = vmatpush2.bf16.msra.mxu0 0
    %4016 = vmatprep.subr.bf16.mxu0 0
    %4017 = vmatpush2.bf16.msra.mxu0 0
    %4018 = vmatprep.subr.bf16.mxu0 0
    %4019 = vmatpush2.bf16.msra.mxu0 0
    %4020 = vmatprep.subr.bf16.mxu0 0
    %4021 = vmatpush2.bf16.msra.mxu0 0
    %4022 = vmatprep.subr.bf16.mxu0 0
    %4023 = vmatpush2.bf16.msra.mxu0 0
    %4024 = vmatprep.subr.bf16.mxu0 0
    %4025 = vmatpush2.bf16.msra.mxu0 0
    %4026 = vmatprep.subr.bf16.mxu0 0
    %4027 = vmatpush2.bf16.msra.mxu0 0
    %4028 = vmatprep.subr.bf16.mxu0 0
    %4029 = vmatpush2.bf16.msra.mxu0 0
    %4030 = vmatprep.mubr.bf16.mxu0 0
    %4031 = vmatmul.mubr.bf16.gmra.mxu0 %v3900
    %v4032 = vpop.f32.mrf.mxu0
    %v4033 = vadd.f32 0.0, %v4032
    %v4034 = vpop.f32.mrf.mxu0
    %v4035 = vpop.f32.mrf.mxu0
    %v4036 = vadd.f32 0.0, %v4035
    %v4037 = vpop.f32.mrf.mxu0
    %4038 = vmatprep.mubr.bf16.mxu0 0
    %4039 = vmatmul.mubr.bf16.gmra.mxu0 %v3903
    %v4040 = vpop.f32.mrf.mxu0
    %v4041 = vadd.f32 0.0, %v4040
    %v4042 = vpop.f32.mrf.mxu0
    %v4043 = vpop.f32.mrf.mxu0
    %v4044 = vadd.f32 0.0, %v4043
    %v4045 = vpop.f32.mrf.mxu0
    %4046 = vmatprep.mubr.bf16.mxu0 0
    %4047 = vmatmul.mubr.bf16.gmra.mxu0 %v3906
    %v4048 = vpop.f32.mrf.mxu0
    %v4049 = vadd.f32 0.0, %v4048
    %v4050 = vpop.f32.mrf.mxu0
    %v4051 = vpop.f32.mrf.mxu0
    %v4052 = vadd.f32 0.0, %v4051
    %v4053 = vpop.f32.mrf.mxu0
    %4054 = vmatprep.mubr.bf16.mxu0 0
    %4055 = vmatmul.mubr.bf16.gmra.mxu0 %v3909
    %v4056 = vpop.f32.mrf.mxu0
    %v4057 = vadd.f32 0.0, %v4056
    %v4058 = vpop.f32.mrf.mxu0
    %v4059 = vpop.f32.mrf.mxu0
    %v4060 = vadd.f32 0.0, %v4059
    %v4061 = vpop.f32.mrf.mxu0
    %4062 = vmatprep.mubr.bf16.mxu0 0
    %4063 = vmatmul.mubr.bf16.gmra.mxu0 %v3912
    %v4064 = vpop.f32.mrf.mxu0
    %v4065 = vadd.f32 0.0, %v4064
    %v4066 = vpop.f32.mrf.mxu0
    %v4067 = vpop.f32.mrf.mxu0
    %v4068 = vadd.f32 0.0, %v4067
    %v4069 = vpop.f32.mrf.mxu0
    %4070 = vmatprep.mubr.bf16.mxu0 0
    %4071 = vmatmul.mubr.bf16.gmra.mxu0 %v3915
    %v4072 = vpop.f32.mrf.mxu0
    %v4073 = vadd.f32 0.0, %v4072
    %v4074 = vpop.f32.mrf.mxu0
    %v4075 = vpop.f32.mrf.mxu0
    %v4076 = vadd.f32 0.0, %v4075
    %v4077 = vpop.f32.mrf.mxu0
    %4078 = vmatprep.mubr.bf16.mxu0 0
    %4079 = vmatmul.mubr.bf16.gmra.mxu0 %v3918
    %v4080 = vpop.f32.mrf.mxu0
    %v4081 = vadd.f32 0.0, %v4080
    %v4082 = vpop.f32.mrf.mxu0
    %v4083 = vpop.f32.mrf.mxu0
    %v4084 = vadd.f32 0.0, %v4083
    %v4085 = vpop.f32.mrf.mxu0
    %4086 = vmatprep.mubr.bf16.mxu0 0
    %4087 = vmatmul.mubr.bf16.gmra.mxu0 %v3921
    %v4088 = vpop.f32.mrf.mxu0
    %v4089 = vadd.f32 0.0, %v4088
    %v4090 = vpop.f32.mrf.mxu0
    %v4091 = vpop.f32.mrf.mxu0
    %v4092 = vadd.f32 0.0, %v4091
    %v4093 = vpop.f32.mrf.mxu0
    %4094 = vmatprep.mubr.bf16.mxu0 0
    %4095 = vmatmul.mubr.bf16.gmra.mxu0 %v3924
    %v4096 = vpop.f32.mrf.mxu0
    %v4097 = vadd.f32 0.0, %v4096
    %v4098 = vpop.f32.mrf.mxu0
    %v4099 = vpop.f32.mrf.mxu0
    %v4100 = vadd.f32 0.0, %v4099
    %v4101 = vpop.f32.mrf.mxu0
    %4102 = vmatprep.mubr.bf16.mxu0 0
    %4103 = vmatmul.mubr.bf16.gmra.mxu0 %v3927
    %v4104 = vpop.f32.mrf.mxu0
    %v4105 = vadd.f32 0.0, %v4104
    %v4106 = vpop.f32.mrf.mxu0
    %v4107 = vpop.f32.mrf.mxu0
    %v4108 = vadd.f32 0.0, %v4107
    %v4109 = vpop.f32.mrf.mxu0
    %4110 = vmatprep.mubr.bf16.mxu0 0
    %4111 = vmatmul.mubr.bf16.gmra.mxu0 %v3930
    %v4112 = vpop.f32.mrf.mxu0
    %v4113 = vadd.f32 0.0, %v4112
    %v4114 = vpop.f32.mrf.mxu0
    %v4115 = vpop.f32.mrf.mxu0
    %v4116 = vadd.f32 0.0, %v4115
    %v4117 = vpop.f32.mrf.mxu0
    %4118 = vmatprep.mubr.bf16.mxu0 0
    %4119 = vmatmul.mubr.bf16.gmra.mxu0 %v3933
    %v4120 = vpop.f32.mrf.mxu0
    %v4121 = vadd.f32 0.0, %v4120
    %v4122 = vpop.f32.mrf.mxu0
    %v4123 = vpop.f32.mrf.mxu0
    %v4124 = vadd.f32 0.0, %v4123
    %v4125 = vpop.f32.mrf.mxu0
    %4126 = vmatprep.mubr.bf16.mxu0 0
    %4127 = vmatmul.mubr.bf16.gmra.mxu0 %v3936
    %v4128 = vpop.f32.mrf.mxu0
    %v4129 = vadd.f32 0.0, %v4128
    %v4130 = vpop.f32.mrf.mxu0
    %v4131 = vpop.f32.mrf.mxu0
    %v4132 = vadd.f32 0.0, %v4131
    %v4133 = vpop.f32.mrf.mxu0
    %4134 = vmatprep.mubr.bf16.mxu0 0
    %4135 = vmatmul.mubr.bf16.gmra.mxu0 %v3939
    %v4136 = vpop.f32.mrf.mxu0
    %v4137 = vadd.f32 0.0, %v4136
    %v4138 = vpop.f32.mrf.mxu0
    %v4139 = vpop.f32.mrf.mxu0
    %v4140 = vadd.f32 0.0, %v4139
    %v4141 = vpop.f32.mrf.mxu0
    %4142 = vmatprep.mubr.bf16.mxu0 0
    %4143 = vmatmul.mubr.bf16.gmra.mxu0 %v3942
    %v4144 = vpop.f32.mrf.mxu0
    %v4145 = vadd.f32 0.0, %v4144
    %v4146 = vpop.f32.mrf.mxu0
    %v4147 = vpop.f32.mrf.mxu0
    %v4148 = vadd.f32 0.0, %v4147
    %v4149 = vpop.f32.mrf.mxu0
    %4150 = vmatprep.mubr.bf16.mxu0 0
    %4151 = vmatmul.mubr.bf16.gmra.mxu0 %v3945
    %v4152 = vpop.f32.mrf.mxu0
    %v4153 = vadd.f32 0.0, %v4152
    %v4154 = vpop.f32.mrf.mxu0
    %v4155 = vpop.f32.mrf.mxu0
    %v4156 = vadd.f32 0.0, %v4155
    %v4157 = vpop.f32.mrf.mxu0
    %4158 = vmatprep.mubr.bf16.mxu0 0
    %4159 = vmatmul.mubr.bf16.gmra.mxu0 %v3948
    %v4160 = vpop.f32.mrf.mxu0
    %v4161 = vadd.f32 0.0, %v4160
    %v4162 = vpop.f32.mrf.mxu0
    %v4163 = vpop.f32.mrf.mxu0
    %v4164 = vadd.f32 0.0, %v4163
    %v4165 = vpop.f32.mrf.mxu0
    %4166 = vmatprep.mubr.bf16.mxu0 0
    %4167 = vmatmul.mubr.bf16.gmra.mxu0 %v3951
    %v4168 = vpop.f32.mrf.mxu0
    %v4169 = vadd.f32 0.0, %v4168
    %v4170 = vpop.f32.mrf.mxu0
    %v4171 = vpop.f32.mrf.mxu0
    %v4172 = vadd.f32 0.0, %v4171
    %v4173 = vpop.f32.mrf.mxu0
    %4174 = vmatprep.mubr.bf16.mxu0 0
    %4175 = vmatmul.mubr.bf16.gmra.mxu0 %v3954
    %v4176 = vpop.f32.mrf.mxu0
    %v4177 = vadd.f32 0.0, %v4176
    %v4178 = vpop.f32.mrf.mxu0
    %v4179 = vpop.f32.mrf.mxu0
    %v4180 = vadd.f32 0.0, %v4179
    %v4181 = vpop.f32.mrf.mxu0
    %4182 = vmatprep.mubr.bf16.mxu0 0
    %4183 = vmatmul.mubr.bf16.gmra.mxu0 %v3957
    %v4184 = vpop.f32.mrf.mxu0
    %v4185 = vadd.f32 0.0, %v4184
    %v4186 = vpop.f32.mrf.mxu0
    %v4187 = vpop.f32.mrf.mxu0
    %v4188 = vadd.f32 0.0, %v4187
    %v4189 = vpop.f32.mrf.mxu0
    %4190 = vmatprep.mubr.bf16.mxu0 0
    %4191 = vmatmul.mubr.bf16.gmra.mxu0 %v3960
    %v4192 = vpop.f32.mrf.mxu0
    %v4193 = vadd.f32 0.0, %v4192
    %v4194 = vpop.f32.mrf.mxu0
    %v4195 = vpop.f32.mrf.mxu0
    %v4196 = vadd.f32 0.0, %v4195
    %v4197 = vpop.f32.mrf.mxu0
    %4198 = vmatprep.mubr.bf16.mxu0 0
    %4199 = vmatmul.mubr.bf16.gmra.mxu0 %v3963
    %v4200 = vpop.f32.mrf.mxu0
    %v4201 = vadd.f32 0.0, %v4200
    %v4202 = vpop.f32.mrf.mxu0
    %v4203 = vpop.f32.mrf.mxu0
    %v4204 = vadd.f32 0.0, %v4203
    %v4205 = vpop.f32.mrf.mxu0
    %4206 = vmatprep.mubr.bf16.mxu0 0
    %4207 = vmatmul.mubr.bf16.gmra.mxu0 %v3966
    %v4208 = vpop.f32.mrf.mxu0
    %v4209 = vadd.f32 0.0, %v4208
    %v4210 = vpop.f32.mrf.mxu0
    %v4211 = vpop.f32.mrf.mxu0
    %v4212 = vadd.f32 0.0, %v4211
    %v4213 = vpop.f32.mrf.mxu0
    %4214 = vmatprep.mubr.bf16.mxu0 0
    %4215 = vmatmul.mubr.bf16.gmra.mxu0 %v3969
    %v4216 = vpop.f32.mrf.mxu0
    %v4217 = vadd.f32 0.0, %v4216
    %v4218 = vpop.f32.mrf.mxu0
    %v4219 = vpop.f32.mrf.mxu0
    %v4220 = vadd.f32 0.0, %v4219
    %v4221 = vpop.f32.mrf.mxu0
    %4222 = vmatprep.mubr.bf16.mxu0 0
    %4223 = vmatmul.mubr.bf16.gmra.mxu0 %v3972
    %v4224 = vpop.f32.mrf.mxu0
    %v4225 = vadd.f32 0.0, %v4224
    %v4226 = vpop.f32.mrf.mxu0
    %v4227 = vpop.f32.mrf.mxu0
    %v4228 = vadd.f32 0.0, %v4227
    %v4229 = vpop.f32.mrf.mxu0
    %4230 = vmatprep.mubr.bf16.mxu0 0
    %4231 = vmatmul.mubr.bf16.gmra.mxu0 %v3975
    %v4232 = vpop.f32.mrf.mxu0
    %v4233 = vadd.f32 0.0, %v4232
    %v4234 = vpop.f32.mrf.mxu0
    %v4235 = vpop.f32.mrf.mxu0
    %v4236 = vadd.f32 0.0, %v4235
    %v4237 = vpop.f32.mrf.mxu0
    %4238 = vmatprep.mubr.bf16.mxu0 0
    %4239 = vmatmul.mubr.bf16.gmra.mxu0 %v3978
    %v4240 = vpop.f32.mrf.mxu0
    %v4241 = vadd.f32 0.0, %v4240
    %v4242 = vpop.f32.mrf.mxu0
    %v4243 = vpop.f32.mrf.mxu0
    %v4244 = vadd.f32 0.0, %v4243
    %v4245 = vpop.f32.mrf.mxu0
    %4246 = vmatprep.mubr.bf16.mxu0 0
    %4247 = vmatmul.mubr.bf16.gmra.mxu0 %v3981
    %v4248 = vpop.f32.mrf.mxu0
    %v4249 = vadd.f32 0.0, %v4248
    %v4250 = vpop.f32.mrf.mxu0
    %v4251 = vpop.f32.mrf.mxu0
    %v4252 = vadd.f32 0.0, %v4251
    %v4253 = vpop.f32.mrf.mxu0
    %4254 = vmatprep.mubr.bf16.mxu0 0
    %4255 = vmatmul.mubr.bf16.gmra.mxu0 %v3984
    %v4256 = vpop.f32.mrf.mxu0
    %v4257 = vadd.f32 0.0, %v4256
    %v4258 = vpop.f32.mrf.mxu0
    %v4259 = vpop.f32.mrf.mxu0
    %v4260 = vadd.f32 0.0, %v4259
    %v4261 = vpop.f32.mrf.mxu0
    %4262 = vmatprep.mubr.bf16.mxu0 0
    %4263 = vmatmul.mubr.bf16.gmra.mxu0 %v3987
    %v4264 = vpop.f32.mrf.mxu0
    %v4265 = vadd.f32 0.0, %v4264
    %v4266 = vpop.f32.mrf.mxu0
    %v4267 = vpop.f32.mrf.mxu0
    %v4268 = vadd.f32 0.0, %v4267
    %v4269 = vpop.f32.mrf.mxu0
    %4270 = vmatprep.mubr.bf16.mxu0 0
    %4271 = vmatmul.mubr.bf16.gmra.mxu0 %v3990
    %v4272 = vpop.f32.mrf.mxu0
    %v4273 = vadd.f32 0.0, %v4272
    %v4274 = vpop.f32.mrf.mxu0
    %v4275 = vpop.f32.mrf.mxu0
    %v4276 = vadd.f32 0.0, %v4275
    %v4277 = vpop.f32.mrf.mxu0
    %4278 = vmatprep.mubr.bf16.mxu0 0
    %4279 = vmatmul.mubr.bf16.gmra.mxu0 %v3993
    %v4280 = vpop.f32.mrf.mxu0
    %v4281 = vadd.f32 0.0, %v4280
    %v4282 = vpop.f32.mrf.mxu0
    %v4283 = vpop.f32.mrf.mxu0
    %v4284 = vadd.f32 0.0, %v4283
    %v4285 = vpop.f32.mrf.mxu0
    %4286 = vdwg.mxu0
    %v4287 = vadd.f32 %v3602, %v4033
    %v4288 = vadd.f32 %v3603, %v4036
    %v4289 = vadd.f32 %v3604, %v4041
    %v4290 = vadd.f32 %v3605, %v4044
    %v4291 = vadd.f32 %v3606, %v4049
    %v4292 = vadd.f32 %v3607, %v4052
    %v4293 = vadd.f32 %v3608, %v4057
    %v4294 = vadd.f32 %v3609, %v4060
    %v4295 = vadd.f32 %v3610, %v4065
    %v4296 = vadd.f32 %v3611, %v4068
    %v4297 = vadd.f32 %v3612, %v4073
    %v4298 = vadd.f32 %v3613, %v4076
    %v4299 = vadd.f32 %v3614, %v4081
    %v4300 = vadd.f32 %v3615, %v4084
    %v4301 = vadd.f32 %v3616, %v4089
    %v4302 = vadd.f32 %v3617, %v4092
    %v4303 = vadd.f32 %v3618, %v4097
    %v4304 = vadd.f32 %v3619, %v4100
    %v4305 = vadd.f32 %v3620, %v4105
    %v4306 = vadd.f32 %v3621, %v4108
    %v4307 = vadd.f32 %v3622, %v4113
    %v4308 = vadd.f32 %v3623, %v4116
    %v4309 = vadd.f32 %v3624, %v4121
    %v4310 = vadd.f32 %v3625, %v4124
    %v4311 = vadd.f32 %v3626, %v4129
    %v4312 = vadd.f32 %v3627, %v4132
    %v4313 = vadd.f32 %v3628, %v4137
    %v4314 = vadd.f32 %v3629, %v4140
    %v4315 = vadd.f32 %v3630, %v4145
    %v4316 = vadd.f32 %v3631, %v4148
    %v4317 = vadd.f32 %v3632, %v4153
    %v4318 = vadd.f32 %v3633, %v4156
    %v4319 = vadd.f32 %v3634, %v4161
    %v4320 = vadd.f32 %v3635, %v4164
    %v4321 = vadd.f32 %v3636, %v4169
    %v4322 = vadd.f32 %v3637, %v4172
    %v4323 = vadd.f32 %v3638, %v4177
    %v4324 = vadd.f32 %v3639, %v4180
    %v4325 = vadd.f32 %v3640, %v4185
    %v4326 = vadd.f32 %v3641, %v4188
    %v4327 = vadd.f32 %v3642, %v4193
    %v4328 = vadd.f32 %v3643, %v4196
    %v4329 = vadd.f32 %v3644, %v4201
    %v4330 = vadd.f32 %v3645, %v4204
    %v4331 = vadd.f32 %v3646, %v4209
    %v4332 = vadd.f32 %v3647, %v4212
    %v4333 = vadd.f32 %v3648, %v4217
    %v4334 = vadd.f32 %v3649, %v4220
    %v4335 = vadd.f32 %v3650, %v4225
    %v4336 = vadd.f32 %v3651, %v4228
    %v4337 = vadd.f32 %v3652, %v4233
    %v4338 = vadd.f32 %v3653, %v4236
    %v4339 = vadd.f32 %v3654, %v4241
    %v4340 = vadd.f32 %v3655, %v4244
    %v4341 = vadd.f32 %v3656, %v4249
    %v4342 = vadd.f32 %v3657, %v4252
    %v4343 = vadd.f32 %v3658, %v4257
    %v4344 = vadd.f32 %v3659, %v4260
    %v4345 = vadd.f32 %v3660, %v4265
    %v4346 = vadd.f32 %v3661, %v4268
    %v4347 = vadd.f32 %v3662, %v4273
    %v4348 = vadd.f32 %v3663, %v4276
    %v4349 = vadd.f32 %v3664, %v4281
    %v4350 = vadd.f32 %v3665, %v4284
    %4351 = vst.msk [vmem:[#allocation3] sm:$0xff] %vm1644, %v4287
    %4352 = vst.msk [vmem:[#allocation3 + $0x8] sm:$0xff] %vm1644, %v4288
    %4353 = vst.msk [vmem:[#allocation3 + $0x10] sm:$0xff] %vm1644, %v4289
    %4354 = vst.msk [vmem:[#allocation3 + $0x18] sm:$0xff] %vm1644, %v4290
    %4355 = vst.msk [vmem:[#allocation3 + $0x20] sm:$0xff] %vm1644, %v4291
    %4356 = vst.msk [vmem:[#allocation3 + $0x28] sm:$0xff] %vm1644, %v4292
    %4357 = vst.msk [vmem:[#allocation3 + $0x30] sm:$0xff] %vm1644, %v4293
    %4358 = vst.msk [vmem:[#allocation3 + $0x38] sm:$0xff] %vm1644, %v4294
    %4359 = vst.msk [vmem:[#allocation3 + $0x40] sm:$0xff] %vm1644, %v4295
    %4360 = vst.msk [vmem:[#allocation3 + $0x48] sm:$0xff] %vm1644, %v4296
    %4361 = vst.msk [vmem:[#allocation3 + $0x50] sm:$0xff] %vm1644, %v4297
    %4362 = vst.msk [vmem:[#allocation3 + $0x58] sm:$0xff] %vm1644, %v4298
    %4363 = vst.msk [vmem:[#allocation3 + $0x60] sm:$0xff] %vm1644, %v4299
    %4364 = vst.msk [vmem:[#allocation3 + $0x68] sm:$0xff] %vm1644, %v4300
    %4365 = vst.msk [vmem:[#allocation3 + $0x70] sm:$0xff] %vm1644, %v4301
    %4366 = vst.msk [vmem:[#allocation3 + $0x78] sm:$0xff] %vm1644, %v4302
    %4367 = vst.msk [vmem:[#allocation3 + $0x80] sm:$0xff] %vm1644, %v4303
    %4368 = vst.msk [vmem:[#allocation3 + $0x88] sm:$0xff] %vm1644, %v4304
    %4369 = vst.msk [vmem:[#allocation3 + $0x90] sm:$0xff] %vm1644, %v4305
    %4370 = vst.msk [vmem:[#allocation3 + $0x98] sm:$0xff] %vm1644, %v4306
    %4371 = vst.msk [vmem:[#allocation3 + $0xa0] sm:$0xff] %vm1644, %v4307
    %4372 = vst.msk [vmem:[#allocation3 + $0xa8] sm:$0xff] %vm1644, %v4308
    %4373 = vst.msk [vmem:[#allocation3 + $0xb0] sm:$0xff] %vm1644, %v4309
    %4374 = vst.msk [vmem:[#allocation3 + $0xb8] sm:$0xff] %vm1644, %v4310
    %4375 = vst.msk [vmem:[#allocation3 + $0xc0] sm:$0xff] %vm1644, %v4311
    %4376 = vst.msk [vmem:[#allocation3 + $0xc8] sm:$0xff] %vm1644, %v4312
    %4377 = vst.msk [vmem:[#allocation3 + $0xd0] sm:$0xff] %vm1644, %v4313
    %4378 = vst.msk [vmem:[#allocation3 + $0xd8] sm:$0xff] %vm1644, %v4314
    %4379 = vst.msk [vmem:[#allocation3 + $0xe0] sm:$0xff] %vm1644, %v4315
    %4380 = vst.msk [vmem:[#allocation3 + $0xe8] sm:$0xff] %vm1644, %v4316
    %4381 = vst.msk [vmem:[#allocation3 + $0xf0] sm:$0xff] %vm1644, %v4317
    %4382 = vst.msk [vmem:[#allocation3 + $0xf8] sm:$0xff] %vm1644, %v4318
    %4383 = vst.msk [vmem:[#allocation3 + $0x100] sm:$0xff] %vm1644, %v4319
    %4384 = vst.msk [vmem:[#allocation3 + $0x108] sm:$0xff] %vm1644, %v4320
    %4385 = vst.msk [vmem:[#allocation3 + $0x110] sm:$0xff] %vm1644, %v4321
    %4386 = vst.msk [vmem:[#allocation3 + $0x118] sm:$0xff] %vm1644, %v4322
    %4387 = vst.msk [vmem:[#allocation3 + $0x120] sm:$0xff] %vm1644, %v4323
    %4388 = vst.msk [vmem:[#allocation3 + $0x128] sm:$0xff] %vm1644, %v4324
    %4389 = vst.msk [vmem:[#allocation3 + $0x130] sm:$0xff] %vm1644, %v4325
    %4390 = vst.msk [vmem:[#allocation3 + $0x138] sm:$0xff] %vm1644, %v4326
    %4391 = vst.msk [vmem:[#allocation3 + $0x140] sm:$0xff] %vm1644, %v4327
    %4392 = vst.msk [vmem:[#allocation3 + $0x148] sm:$0xff] %vm1644, %v4328
    %4393 = vst.msk [vmem:[#allocation3 + $0x150] sm:$0xff] %vm1644, %v4329
    %4394 = vst.msk [vmem:[#allocation3 + $0x158] sm:$0xff] %vm1644, %v4330
    %4395 = vst.msk [vmem:[#allocation3 + $0x160] sm:$0xff] %vm1644, %v4331
    %4396 = vst.msk [vmem:[#allocation3 + $0x168] sm:$0xff] %vm1644, %v4332
    %4397 = vst.msk [vmem:[#allocation3 + $0x170] sm:$0xff] %vm1644, %v4333
    %4398 = vst.msk [vmem:[#allocation3 + $0x178] sm:$0xff] %vm1644, %v4334
    %4399 = vst.msk [vmem:[#allocation3 + $0x180] sm:$0xff] %vm1644, %v4335
    %4400 = vst.msk [vmem:[#allocation3 + $0x188] sm:$0xff] %vm1644, %v4336
    %4401 = vst.msk [vmem:[#allocation3 + $0x190] sm:$0xff] %vm1644, %v4337
    %4402 = vst.msk [vmem:[#allocation3 + $0x198] sm:$0xff] %vm1644, %v4338
    %4403 = vst.msk [vmem:[#allocation3 + $0x1a0] sm:$0xff] %vm1644, %v4339
    %4404 = vst.msk [vmem:[#allocation3 + $0x1a8] sm:$0xff] %vm1644, %v4340
    %4405 = vst.msk [vmem:[#allocation3 + $0x1b0] sm:$0xff] %vm1644, %v4341
    %4406 = vst.msk [vmem:[#allocation3 + $0x1b8] sm:$0xff] %vm1644, %v4342
    %4407 = vst.msk [vmem:[#allocation3 + $0x1c0] sm:$0xff] %vm1644, %v4343
    %4408 = vst.msk [vmem:[#allocation3 + $0x1c8] sm:$0xff] %vm1644, %v4344
    %4409 = vst.msk [vmem:[#allocation3 + $0x1d0] sm:$0xff] %vm1644, %v4345
    %4410 = vst.msk [vmem:[#allocation3 + $0x1d8] sm:$0xff] %vm1644, %v4346
    %4411 = vst.msk [vmem:[#allocation3 + $0x1e0] sm:$0xff] %vm1644, %v4347
    %4412 = vst.msk [vmem:[#allocation3 + $0x1e8] sm:$0xff] %vm1644, %v4348
    %4413 = vst.msk [vmem:[#allocation3 + $0x1f0] sm:$0xff] %vm1644, %v4349
    %4414 = vst.msk [vmem:[#allocation3 + $0x1f8] sm:$0xff] %vm1644, %v4350
    %v4415 = vld [vmem:[#allocation3] sm:$0xff]
    %v4416 = vld [vmem:[#allocation3 + $0x8] sm:$0xff]
    %v4417 = vld [vmem:[#allocation3 + $0x10] sm:$0xff]
    %v4418 = vld [vmem:[#allocation3 + $0x18] sm:$0xff]
    %v4419 = vld [vmem:[#allocation3 + $0x20] sm:$0xff]
    %v4420 = vld [vmem:[#allocation3 + $0x28] sm:$0xff]
    %v4421 = vld [vmem:[#allocation3 + $0x30] sm:$0xff]
    %v4422 = vld [vmem:[#allocation3 + $0x38] sm:$0xff]
    %v4423 = vld [vmem:[#allocation3 + $0x40] sm:$0xff]
    %v4424 = vld [vmem:[#allocation3 + $0x48] sm:$0xff]
    %v4425 = vld [vmem:[#allocation3 + $0x50] sm:$0xff]
    %v4426 = vld [vmem:[#allocation3 + $0x58] sm:$0xff]
    %v4427 = vld [vmem:[#allocation3 + $0x60] sm:$0xff]
    %v4428 = vld [vmem:[#allocation3 + $0x68] sm:$0xff]
    %v4429 = vld [vmem:[#allocation3 + $0x70] sm:$0xff]
    %v4430 = vld [vmem:[#allocation3 + $0x78] sm:$0xff]
    %v4431 = vld [vmem:[#allocation3 + $0x80] sm:$0xff]
    %v4432 = vld [vmem:[#allocation3 + $0x88] sm:$0xff]
    %v4433 = vld [vmem:[#allocation3 + $0x90] sm:$0xff]
    %v4434 = vld [vmem:[#allocation3 + $0x98] sm:$0xff]
    %v4435 = vld [vmem:[#allocation3 + $0xa0] sm:$0xff]
    %v4436 = vld [vmem:[#allocation3 + $0xa8] sm:$0xff]
    %v4437 = vld [vmem:[#allocation3 + $0xb0] sm:$0xff]
    %v4438 = vld [vmem:[#allocation3 + $0xb8] sm:$0xff]
    %v4439 = vld [vmem:[#allocation3 + $0xc0] sm:$0xff]
    %v4440 = vld [vmem:[#allocation3 + $0xc8] sm:$0xff]
    %v4441 = vld [vmem:[#allocation3 + $0xd0] sm:$0xff]
    %v4442 = vld [vmem:[#allocation3 + $0xd8] sm:$0xff]
    %v4443 = vld [vmem:[#allocation3 + $0xe0] sm:$0xff]
    %v4444 = vld [vmem:[#allocation3 + $0xe8] sm:$0xff]
    %v4445 = vld [vmem:[#allocation3 + $0xf0] sm:$0xff]
    %v4446 = vld [vmem:[#allocation3 + $0xf8] sm:$0xff]
    %v4447 = vld [vmem:[#allocation3 + $0x100] sm:$0xff]
    %v4448 = vld [vmem:[#allocation3 + $0x108] sm:$0xff]
    %v4449 = vld [vmem:[#allocation3 + $0x110] sm:$0xff]
    %v4450 = vld [vmem:[#allocation3 + $0x118] sm:$0xff]
    %v4451 = vld [vmem:[#allocation3 + $0x120] sm:$0xff]
    %v4452 = vld [vmem:[#allocation3 + $0x128] sm:$0xff]
    %v4453 = vld [vmem:[#allocation3 + $0x130] sm:$0xff]
    %v4454 = vld [vmem:[#allocation3 + $0x138] sm:$0xff]
    %v4455 = vld [vmem:[#allocation3 + $0x140] sm:$0xff]
    %v4456 = vld [vmem:[#allocation3 + $0x148] sm:$0xff]
    %v4457 = vld [vmem:[#allocation3 + $0x150] sm:$0xff]
    %v4458 = vld [vmem:[#allocation3 + $0x158] sm:$0xff]
    %v4459 = vld [vmem:[#allocation3 + $0x160] sm:$0xff]
    %v4460 = vld [vmem:[#allocation3 + $0x168] sm:$0xff]
    %v4461 = vld [vmem:[#allocation3 + $0x170] sm:$0xff]
    %v4462 = vld [vmem:[#allocation3 + $0x178] sm:$0xff]
    %v4463 = vld [vmem:[#allocation3 + $0x180] sm:$0xff]
    %v4464 = vld [vmem:[#allocation3 + $0x188] sm:$0xff]
    %v4465 = vld [vmem:[#allocation3 + $0x190] sm:$0xff]
    %v4466 = vld [vmem:[#allocation3 + $0x198] sm:$0xff]
    %v4467 = vld [vmem:[#allocation3 + $0x1a0] sm:$0xff]
    %v4468 = vld [vmem:[#allocation3 + $0x1a8] sm:$0xff]
    %v4469 = vld [vmem:[#allocation3 + $0x1b0] sm:$0xff]
    %v4470 = vld [vmem:[#allocation3 + $0x1b8] sm:$0xff]
    %v4471 = vld [vmem:[#allocation3 + $0x1c0] sm:$0xff]
    %v4472 = vld [vmem:[#allocation3 + $0x1c8] sm:$0xff]
    %v4473 = vld [vmem:[#allocation3 + $0x1d0] sm:$0xff]
    %v4474 = vld [vmem:[#allocation3 + $0x1d8] sm:$0xff]
    %v4475 = vld [vmem:[#allocation3 + $0x1e0] sm:$0xff]
    %v4476 = vld [vmem:[#allocation3 + $0x1e8] sm:$0xff]
    %v4477 = vld [vmem:[#allocation3 + $0x1f0] sm:$0xff]
    %v4478 = vld [vmem:[#allocation3 + $0x1f8] sm:$0xff]
    %v4479 = vld [vmem:[%s4] sm:$0x1]
    %v4481 = vlaneseq
    %v4482 = vshrl.u32 %v4481, 7
    %v4483 = vsub.s32 0, %v4482
    %v4484 = vrot.slane %v4479, %v4483
    %v4486 = vadd.f32 %v4415, %v4484
    %v4487 = vadd.f32 %v4416, %v4484
    %v4488 = vadd.f32 %v4417, %v4484
    %v4489 = vadd.f32 %v4418, %v4484
    %v4490 = vadd.f32 %v4419, %v4484
    %v4491 = vadd.f32 %v4420, %v4484
    %v4492 = vadd.f32 %v4421, %v4484
    %v4493 = vadd.f32 %v4422, %v4484
    %v4494 = vadd.f32 %v4423, %v4484
    %v4495 = vadd.f32 %v4424, %v4484
    %v4496 = vadd.f32 %v4425, %v4484
    %v4497 = vadd.f32 %v4426, %v4484
    %v4498 = vadd.f32 %v4427, %v4484
    %v4499 = vadd.f32 %v4428, %v4484
    %v4500 = vadd.f32 %v4429, %v4484
    %v4501 = vadd.f32 %v4430, %v4484
    %v4502 = vadd.f32 %v4431, %v4484
    %v4503 = vadd.f32 %v4432, %v4484
    %v4504 = vadd.f32 %v4433, %v4484
    %v4505 = vadd.f32 %v4434, %v4484
    %v4506 = vadd.f32 %v4435, %v4484
    %v4507 = vadd.f32 %v4436, %v4484
    %v4508 = vadd.f32 %v4437, %v4484
    %v4509 = vadd.f32 %v4438, %v4484
    %v4510 = vadd.f32 %v4439, %v4484
    %v4511 = vadd.f32 %v4440, %v4484
    %v4512 = vadd.f32 %v4441, %v4484
    %v4513 = vadd.f32 %v4442, %v4484
    %v4514 = vadd.f32 %v4443, %v4484
    %v4515 = vadd.f32 %v4444, %v4484
    %v4516 = vadd.f32 %v4445, %v4484
    %v4517 = vadd.f32 %v4446, %v4484
    %v4518 = vadd.f32 %v4447, %v4484
    %v4519 = vadd.f32 %v4448, %v4484
    %v4520 = vadd.f32 %v4449, %v4484
    %v4521 = vadd.f32 %v4450, %v4484
    %v4522 = vadd.f32 %v4451, %v4484
    %v4523 = vadd.f32 %v4452, %v4484
    %v4524 = vadd.f32 %v4453, %v4484
    %v4525 = vadd.f32 %v4454, %v4484
    %v4526 = vadd.f32 %v4455, %v4484
    %v4527 = vadd.f32 %v4456, %v4484
    %v4528 = vadd.f32 %v4457, %v4484
    %v4529 = vadd.f32 %v4458, %v4484
    %v4530 = vadd.f32 %v4459, %v4484
    %v4531 = vadd.f32 %v4460, %v4484
    %v4532 = vadd.f32 %v4461, %v4484
    %v4533 = vadd.f32 %v4462, %v4484
    %v4534 = vadd.f32 %v4463, %v4484
    %v4535 = vadd.f32 %v4464, %v4484
    %v4536 = vadd.f32 %v4465, %v4484
    %v4537 = vadd.f32 %v4466, %v4484
    %v4538 = vadd.f32 %v4467, %v4484
    %v4539 = vadd.f32 %v4468, %v4484
    %v4540 = vadd.f32 %v4469, %v4484
    %v4541 = vadd.f32 %v4470, %v4484
    %v4542 = vadd.f32 %v4471, %v4484
    %v4543 = vadd.f32 %v4472, %v4484
    %v4544 = vadd.f32 %v4473, %v4484
    %v4545 = vadd.f32 %v4474, %v4484
    %v4546 = vadd.f32 %v4475, %v4484
    %v4547 = vadd.f32 %v4476, %v4484
    %v4548 = vadd.f32 %v4477, %v4484
    %v4549 = vadd.f32 %v4478, %v4484
    %v4550 = vmax.f32 %v4486, 0.0
    %v4551 = vmax.f32 %v4487, 0.0
    %v4552 = vmax.f32 %v4488, 0.0
    %v4553 = vmax.f32 %v4489, 0.0
    %v4554 = vmax.f32 %v4490, 0.0
    %v4555 = vmax.f32 %v4491, 0.0
    %v4556 = vmax.f32 %v4492, 0.0
    %v4557 = vmax.f32 %v4493, 0.0
    %v4558 = vmax.f32 %v4494, 0.0
    %v4559 = vmax.f32 %v4495, 0.0
    %v4560 = vmax.f32 %v4496, 0.0
    %v4561 = vmax.f32 %v4497, 0.0
    %v4562 = vmax.f32 %v4498, 0.0
    %v4563 = vmax.f32 %v4499, 0.0
    %v4564 = vmax.f32 %v4500, 0.0
    %v4565 = vmax.f32 %v4501, 0.0
    %v4566 = vmax.f32 %v4502, 0.0
    %v4567 = vmax.f32 %v4503, 0.0
    %v4568 = vmax.f32 %v4504, 0.0
    %v4569 = vmax.f32 %v4505, 0.0
    %v4570 = vmax.f32 %v4506, 0.0
    %v4571 = vmax.f32 %v4507, 0.0
    %v4572 = vmax.f32 %v4508, 0.0
    %v4573 = vmax.f32 %v4509, 0.0
    %v4574 = vmax.f32 %v4510, 0.0
    %v4575 = vmax.f32 %v4511, 0.0
    %v4576 = vmax.f32 %v4512, 0.0
    %v4577 = vmax.f32 %v4513, 0.0
    %v4578 = vmax.f32 %v4514, 0.0
    %v4579 = vmax.f32 %v4515, 0.0
    %v4580 = vmax.f32 %v4516, 0.0
    %v4581 = vmax.f32 %v4517, 0.0
    %v4582 = vmax.f32 %v4518, 0.0
    %v4583 = vmax.f32 %v4519, 0.0
    %v4584 = vmax.f32 %v4520, 0.0
    %v4585 = vmax.f32 %v4521, 0.0
    %v4586 = vmax.f32 %v4522, 0.0
    %v4587 = vmax.f32 %v4523, 0.0
    %v4588 = vmax.f32 %v4524, 0.0
    %v4589 = vmax.f32 %v4525, 0.0
    %v4590 = vmax.f32 %v4526, 0.0
    %v4591 = vmax.f32 %v4527, 0.0
    %v4592 = vmax.f32 %v4528, 0.0
    %v4593 = vmax.f32 %v4529, 0.0
    %v4594 = vmax.f32 %v4530, 0.0
    %v4595 = vmax.f32 %v4531, 0.0
    %v4596 = vmax.f32 %v4532, 0.0
    %v4597 = vmax.f32 %v4533, 0.0
    %v4598 = vmax.f32 %v4534, 0.0
    %v4599 = vmax.f32 %v4535, 0.0
    %v4600 = vmax.f32 %v4536, 0.0
    %v4601 = vmax.f32 %v4537, 0.0
    %v4602 = vmax.f32 %v4538, 0.0
    %v4603 = vmax.f32 %v4539, 0.0
    %v4604 = vmax.f32 %v4540, 0.0
    %v4605 = vmax.f32 %v4541, 0.0
    %v4606 = vmax.f32 %v4542, 0.0
    %v4607 = vmax.f32 %v4543, 0.0
    %v4608 = vmax.f32 %v4544, 0.0
    %v4609 = vmax.f32 %v4545, 0.0
    %v4610 = vmax.f32 %v4546, 0.0
    %v4611 = vmax.f32 %v4547, 0.0
    %v4612 = vmax.f32 %v4548, 0.0
    %v4613 = vmax.f32 %v4549, 0.0
    %v4614 = vpack.c.bf16 %v4551, %v4550
    %v4615 = vpack.c.bf16 %v4553, %v4552
    %v4616 = vpack.c.bf16 %v4555, %v4554
    %v4617 = vpack.c.bf16 %v4557, %v4556
    %v4618 = vpack.c.bf16 %v4559, %v4558
    %v4619 = vpack.c.bf16 %v4561, %v4560
    %v4620 = vpack.c.bf16 %v4563, %v4562
    %v4621 = vpack.c.bf16 %v4565, %v4564
    %v4622 = vpack.c.bf16 %v4567, %v4566
    %v4623 = vpack.c.bf16 %v4569, %v4568
    %v4624 = vpack.c.bf16 %v4571, %v4570
    %v4625 = vpack.c.bf16 %v4573, %v4572
    %v4626 = vpack.c.bf16 %v4575, %v4574
    %v4627 = vpack.c.bf16 %v4577, %v4576
    %v4628 = vpack.c.bf16 %v4579, %v4578
    %v4629 = vpack.c.bf16 %v4581, %v4580
    %v4630 = vpack.c.bf16 %v4583, %v4582
    %v4631 = vpack.c.bf16 %v4585, %v4584
    %v4632 = vpack.c.bf16 %v4587, %v4586
    %v4633 = vpack.c.bf16 %v4589, %v4588
    %v4634 = vpack.c.bf16 %v4591, %v4590
    %v4635 = vpack.c.bf16 %v4593, %v4592
    %v4636 = vpack.c.bf16 %v4595, %v4594
    %v4637 = vpack.c.bf16 %v4597, %v4596
    %v4638 = vpack.c.bf16 %v4599, %v4598
    %v4639 = vpack.c.bf16 %v4601, %v4600
    %v4640 = vpack.c.bf16 %v4603, %v4602
    %v4641 = vpack.c.bf16 %v4605, %v4604
    %v4642 = vpack.c.bf16 %v4607, %v4606
    %v4643 = vpack.c.bf16 %v4609, %v4608
    %v4644 = vpack.c.bf16 %v4611, %v4610
    %v4645 = vpack.c.bf16 %v4613, %v4612
    %v4646 = vld [vmem:[%s5] sm:$0x3]
    %v4647 = vld [vmem:[%s6] sm:$0x1]
    %v4649 = vlaneseq
    %v4650 = vshrl.u32 %v4649, 7
    %v4651 = vsub.s32 0, %v4650
    %v4652 = vrot.slane %v4647, %v4651
    %v4655 = vsel %vm1644, %v4614, 0
    %v4658 = vsel %vm1644, %v4615, 0
    %v4661 = vsel %vm1644, %v4616, 0
    %v4664 = vsel %vm1644, %v4617, 0
    %v4667 = vsel %vm1644, %v4618, 0
    %v4670 = vsel %vm1644, %v4619, 0
    %v4673 = vsel %vm1644, %v4620, 0
    %v4676 = vsel %vm1644, %v4621, 0
    %v4679 = vsel %vm1644, %v4622, 0
    %v4682 = vsel %vm1644, %v4623, 0
    %v4685 = vsel %vm1644, %v4624, 0
    %v4688 = vsel %vm1644, %v4625, 0
    %v4691 = vsel %vm1644, %v4626, 0
    %v4694 = vsel %vm1644, %v4627, 0
    %v4697 = vsel %vm1644, %v4628, 0
    %v4700 = vsel %vm1644, %v4629, 0
    %v4703 = vsel %vm1644, %v4630, 0
    %v4706 = vsel %vm1644, %v4631, 0
    %v4709 = vsel %vm1644, %v4632, 0
    %v4712 = vsel %vm1644, %v4633, 0
    %v4715 = vsel %vm1644, %v4634, 0
    %v4718 = vsel %vm1644, %v4635, 0
    %v4721 = vsel %vm1644, %v4636, 0
    %v4724 = vsel %vm1644, %v4637, 0
    %v4727 = vsel %vm1644, %v4638, 0
    %v4730 = vsel %vm1644, %v4639, 0
    %v4733 = vsel %vm1644, %v4640, 0
    %v4736 = vsel %vm1644, %v4641, 0
    %v4739 = vsel %vm1644, %v4642, 0
    %v4742 = vsel %vm1644, %v4643, 0
    %v4745 = vsel %vm1644, %v4644, 0
    %v4748 = vsel %vm1644, %v4645, 0
    %vm4750 = vcmask 1041408
    %v4752 = vsel %vm4750, %v4646, 0
    %4754 = vmatprep.subr.bf16.mxu0 0
    %4755 = vmatpush1.bf16.msra.mxu0 0
    %4756 = vmatprep.subr.bf16.mxu0 0
    %4757 = vmatpush1.bf16.msra.mxu0 0
    %4758 = vmatprep.subr.bf16.mxu0 0
    %4759 = vmatpush1.bf16.msra.mxu0 0
    %4760 = vmatprep.subr.bf16.mxu0 0
    %4761 = vmatpush1.bf16.msra.mxu0 0
    %4762 = vmatprep.subr.bf16.mxu0 0
    %4763 = vmatpush1.bf16.msra.mxu0 0
    %4764 = vmatprep.subr.bf16.mxu0 0
    %4765 = vmatpush1.bf16.msra.mxu0 0
    %4766 = vmatprep.subr.bf16.mxu0 0
    %4767 = vmatpush1.bf16.msra.mxu0 0
    %4768 = vmatprep.subr.bf16.mxu0 0
    %4769 = vmatpush1.bf16.msra.mxu0 %v4752
    %4770 = vmatprep.subr.bf16.mxu0 0
    %4771 = vmatpush2.bf16.msra.mxu0 0
    %4772 = vmatprep.subr.bf16.mxu0 0
    %4773 = vmatpush2.bf16.msra.mxu0 0
    %4774 = vmatprep.subr.bf16.mxu0 0
    %4775 = vmatpush2.bf16.msra.mxu0 0
    %4776 = vmatprep.subr.bf16.mxu0 0
    %4777 = vmatpush2.bf16.msra.mxu0 0
    %4778 = vmatprep.subr.bf16.mxu0 0
    %4779 = vmatpush2.bf16.msra.mxu0 0
    %4780 = vmatprep.subr.bf16.mxu0 0
    %4781 = vmatpush2.bf16.msra.mxu0 0
    %4782 = vmatprep.subr.bf16.mxu0 0
    %4783 = vmatpush2.bf16.msra.mxu0 0
    %4784 = vmatprep.subr.bf16.mxu0 0
    %4785 = vmatpush2.bf16.msra.mxu0 0
    %4786 = vmatprep.mubr.bf16.mxu0 0
    %4787 = vmatmul.mubr.bf16.gmra.mxu0 %v4655
    %v4788 = vpop.f32.mrf.mxu0
    %v4789 = vadd.f32 %v4652, %v4788
    %v4790 = vpop.f32.mrf.mxu0
    %v4791 = vpop.f32.mrf.mxu0
    %v4792 = vadd.f32 %v4652, %v4791
    %v4793 = vpop.f32.mrf.mxu0
    %4794 = vmatprep.mubr.bf16.mxu0 0
    %4795 = vmatmul.mubr.bf16.gmra.mxu0 %v4658
    %v4796 = vpop.f32.mrf.mxu0
    %v4797 = vadd.f32 %v4652, %v4796
    %v4798 = vpop.f32.mrf.mxu0
    %v4799 = vpop.f32.mrf.mxu0
    %v4800 = vadd.f32 %v4652, %v4799
    %v4801 = vpop.f32.mrf.mxu0
    %4802 = vmatprep.mubr.bf16.mxu0 0
    %4803 = vmatmul.mubr.bf16.gmra.mxu0 %v4661
    %v4804 = vpop.f32.mrf.mxu0
    %v4805 = vadd.f32 %v4652, %v4804
    %v4806 = vpop.f32.mrf.mxu0
    %v4807 = vpop.f32.mrf.mxu0
    %v4808 = vadd.f32 %v4652, %v4807
    %v4809 = vpop.f32.mrf.mxu0
    %4810 = vmatprep.mubr.bf16.mxu0 0
    %4811 = vmatmul.mubr.bf16.gmra.mxu0 %v4664
    %v4812 = vpop.f32.mrf.mxu0
    %v4813 = vadd.f32 %v4652, %v4812
    %v4814 = vpop.f32.mrf.mxu0
    %v4815 = vpop.f32.mrf.mxu0
    %v4816 = vadd.f32 %v4652, %v4815
    %v4817 = vpop.f32.mrf.mxu0
    %4818 = vmatprep.mubr.bf16.mxu0 0
    %4819 = vmatmul.mubr.bf16.gmra.mxu0 %v4667
    %v4820 = vpop.f32.mrf.mxu0
    %v4821 = vadd.f32 %v4652, %v4820
    %v4822 = vpop.f32.mrf.mxu0
    %v4823 = vpop.f32.mrf.mxu0
    %v4824 = vadd.f32 %v4652, %v4823
    %v4825 = vpop.f32.mrf.mxu0
    %4826 = vmatprep.mubr.bf16.mxu0 0
    %4827 = vmatmul.mubr.bf16.gmra.mxu0 %v4670
    %v4828 = vpop.f32.mrf.mxu0
    %v4829 = vadd.f32 %v4652, %v4828
    %v4830 = vpop.f32.mrf.mxu0
    %v4831 = vpop.f32.mrf.mxu0
    %v4832 = vadd.f32 %v4652, %v4831
    %v4833 = vpop.f32.mrf.mxu0
    %4834 = vmatprep.mubr.bf16.mxu0 0
    %4835 = vmatmul.mubr.bf16.gmra.mxu0 %v4673
    %v4836 = vpop.f32.mrf.mxu0
    %v4837 = vadd.f32 %v4652, %v4836
    %v4838 = vpop.f32.mrf.mxu0
    %v4839 = vpop.f32.mrf.mxu0
    %v4840 = vadd.f32 %v4652, %v4839
    %v4841 = vpop.f32.mrf.mxu0
    %4842 = vmatprep.mubr.bf16.mxu0 0
    %4843 = vmatmul.mubr.bf16.gmra.mxu0 %v4676
    %v4844 = vpop.f32.mrf.mxu0
    %v4845 = vadd.f32 %v4652, %v4844
    %v4846 = vpop.f32.mrf.mxu0
    %v4847 = vpop.f32.mrf.mxu0
    %v4848 = vadd.f32 %v4652, %v4847
    %v4849 = vpop.f32.mrf.mxu0
    %4850 = vmatprep.mubr.bf16.mxu0 0
    %4851 = vmatmul.mubr.bf16.gmra.mxu0 %v4679
    %v4852 = vpop.f32.mrf.mxu0
    %v4853 = vadd.f32 %v4652, %v4852
    %v4854 = vpop.f32.mrf.mxu0
    %v4855 = vpop.f32.mrf.mxu0
    %v4856 = vadd.f32 %v4652, %v4855
    %v4857 = vpop.f32.mrf.mxu0
    %4858 = vmatprep.mubr.bf16.mxu0 0
    %4859 = vmatmul.mubr.bf16.gmra.mxu0 %v4682
    %v4860 = vpop.f32.mrf.mxu0
    %v4861 = vadd.f32 %v4652, %v4860
    %v4862 = vpop.f32.mrf.mxu0
    %v4863 = vpop.f32.mrf.mxu0
    %v4864 = vadd.f32 %v4652, %v4863
    %v4865 = vpop.f32.mrf.mxu0
    %4866 = vmatprep.mubr.bf16.mxu0 0
    %4867 = vmatmul.mubr.bf16.gmra.mxu0 %v4685
    %v4868 = vpop.f32.mrf.mxu0
    %v4869 = vadd.f32 %v4652, %v4868
    %v4870 = vpop.f32.mrf.mxu0
    %v4871 = vpop.f32.mrf.mxu0
    %v4872 = vadd.f32 %v4652, %v4871
    %v4873 = vpop.f32.mrf.mxu0
    %4874 = vmatprep.mubr.bf16.mxu0 0
    %4875 = vmatmul.mubr.bf16.gmra.mxu0 %v4688
    %v4876 = vpop.f32.mrf.mxu0
    %v4877 = vadd.f32 %v4652, %v4876
    %v4878 = vpop.f32.mrf.mxu0
    %v4879 = vpop.f32.mrf.mxu0
    %v4880 = vadd.f32 %v4652, %v4879
    %v4881 = vpop.f32.mrf.mxu0
    %4882 = vmatprep.mubr.bf16.mxu0 0
    %4883 = vmatmul.mubr.bf16.gmra.mxu0 %v4691
    %v4884 = vpop.f32.mrf.mxu0
    %v4885 = vadd.f32 %v4652, %v4884
    %v4886 = vpop.f32.mrf.mxu0
    %v4887 = vpop.f32.mrf.mxu0
    %v4888 = vadd.f32 %v4652, %v4887
    %v4889 = vpop.f32.mrf.mxu0
    %4890 = vmatprep.mubr.bf16.mxu0 0
    %4891 = vmatmul.mubr.bf16.gmra.mxu0 %v4694
    %v4892 = vpop.f32.mrf.mxu0
    %v4893 = vadd.f32 %v4652, %v4892
    %v4894 = vpop.f32.mrf.mxu0
    %v4895 = vpop.f32.mrf.mxu0
    %v4896 = vadd.f32 %v4652, %v4895
    %v4897 = vpop.f32.mrf.mxu0
    %4898 = vmatprep.mubr.bf16.mxu0 0
    %4899 = vmatmul.mubr.bf16.gmra.mxu0 %v4697
    %v4900 = vpop.f32.mrf.mxu0
    %v4901 = vadd.f32 %v4652, %v4900
    %v4902 = vpop.f32.mrf.mxu0
    %v4903 = vpop.f32.mrf.mxu0
    %v4904 = vadd.f32 %v4652, %v4903
    %v4905 = vpop.f32.mrf.mxu0
    %4906 = vmatprep.mubr.bf16.mxu0 0
    %4907 = vmatmul.mubr.bf16.gmra.mxu0 %v4700
    %v4908 = vpop.f32.mrf.mxu0
    %v4909 = vadd.f32 %v4652, %v4908
    %v4910 = vpop.f32.mrf.mxu0
    %v4911 = vpop.f32.mrf.mxu0
    %v4912 = vadd.f32 %v4652, %v4911
    %v4913 = vpop.f32.mrf.mxu0
    %4914 = vmatprep.mubr.bf16.mxu0 0
    %4915 = vmatmul.mubr.bf16.gmra.mxu0 %v4703
    %v4916 = vpop.f32.mrf.mxu0
    %v4917 = vadd.f32 %v4652, %v4916
    %v4918 = vpop.f32.mrf.mxu0
    %v4919 = vpop.f32.mrf.mxu0
    %v4920 = vadd.f32 %v4652, %v4919
    %v4921 = vpop.f32.mrf.mxu0
    %4922 = vmatprep.mubr.bf16.mxu0 0
    %4923 = vmatmul.mubr.bf16.gmra.mxu0 %v4706
    %v4924 = vpop.f32.mrf.mxu0
    %v4925 = vadd.f32 %v4652, %v4924
    %v4926 = vpop.f32.mrf.mxu0
    %v4927 = vpop.f32.mrf.mxu0
    %v4928 = vadd.f32 %v4652, %v4927
    %v4929 = vpop.f32.mrf.mxu0
    %4930 = vmatprep.mubr.bf16.mxu0 0
    %4931 = vmatmul.mubr.bf16.gmra.mxu0 %v4709
    %v4932 = vpop.f32.mrf.mxu0
    %v4933 = vadd.f32 %v4652, %v4932
    %v4934 = vpop.f32.mrf.mxu0
    %v4935 = vpop.f32.mrf.mxu0
    %v4936 = vadd.f32 %v4652, %v4935
    %v4937 = vpop.f32.mrf.mxu0
    %4938 = vmatprep.mubr.bf16.mxu0 0
    %4939 = vmatmul.mubr.bf16.gmra.mxu0 %v4712
    %v4940 = vpop.f32.mrf.mxu0
    %v4941 = vadd.f32 %v4652, %v4940
    %v4942 = vpop.f32.mrf.mxu0
    %v4943 = vpop.f32.mrf.mxu0
    %v4944 = vadd.f32 %v4652, %v4943
    %v4945 = vpop.f32.mrf.mxu0
    %4946 = vmatprep.mubr.bf16.mxu0 0
    %4947 = vmatmul.mubr.bf16.gmra.mxu0 %v4715
    %v4948 = vpop.f32.mrf.mxu0
    %v4949 = vadd.f32 %v4652, %v4948
    %v4950 = vpop.f32.mrf.mxu0
    %v4951 = vpop.f32.mrf.mxu0
    %v4952 = vadd.f32 %v4652, %v4951
    %v4953 = vpop.f32.mrf.mxu0
    %4954 = vmatprep.mubr.bf16.mxu0 0
    %4955 = vmatmul.mubr.bf16.gmra.mxu0 %v4718
    %v4956 = vpop.f32.mrf.mxu0
    %v4957 = vadd.f32 %v4652, %v4956
    %v4958 = vpop.f32.mrf.mxu0
    %v4959 = vpop.f32.mrf.mxu0
    %v4960 = vadd.f32 %v4652, %v4959
    %v4961 = vpop.f32.mrf.mxu0
    %4962 = vmatprep.mubr.bf16.mxu0 0
    %4963 = vmatmul.mubr.bf16.gmra.mxu0 %v4721
    %v4964 = vpop.f32.mrf.mxu0
    %v4965 = vadd.f32 %v4652, %v4964
    %v4966 = vpop.f32.mrf.mxu0
    %v4967 = vpop.f32.mrf.mxu0
    %v4968 = vadd.f32 %v4652, %v4967
    %v4969 = vpop.f32.mrf.mxu0
    %4970 = vmatprep.mubr.bf16.mxu0 0
    %4971 = vmatmul.mubr.bf16.gmra.mxu0 %v4724
    %v4972 = vpop.f32.mrf.mxu0
    %v4973 = vadd.f32 %v4652, %v4972
    %v4974 = vpop.f32.mrf.mxu0
    %v4975 = vpop.f32.mrf.mxu0
    %v4976 = vadd.f32 %v4652, %v4975
    %v4977 = vpop.f32.mrf.mxu0
    %4978 = vmatprep.mubr.bf16.mxu0 0
    %4979 = vmatmul.mubr.bf16.gmra.mxu0 %v4727
    %v4980 = vpop.f32.mrf.mxu0
    %v4981 = vadd.f32 %v4652, %v4980
    %v4982 = vpop.f32.mrf.mxu0
    %v4983 = vpop.f32.mrf.mxu0
    %v4984 = vadd.f32 %v4652, %v4983
    %v4985 = vpop.f32.mrf.mxu0
    %4986 = vmatprep.mubr.bf16.mxu0 0
    %4987 = vmatmul.mubr.bf16.gmra.mxu0 %v4730
    %v4988 = vpop.f32.mrf.mxu0
    %v4989 = vadd.f32 %v4652, %v4988
    %v4990 = vpop.f32.mrf.mxu0
    %v4991 = vpop.f32.mrf.mxu0
    %v4992 = vadd.f32 %v4652, %v4991
    %v4993 = vpop.f32.mrf.mxu0
    %4994 = vmatprep.mubr.bf16.mxu0 0
    %4995 = vmatmul.mubr.bf16.gmra.mxu0 %v4733
    %v4996 = vpop.f32.mrf.mxu0
    %v4997 = vadd.f32 %v4652, %v4996
    %v4998 = vpop.f32.mrf.mxu0
    %v4999 = vpop.f32.mrf.mxu0
    %v5000 = vadd.f32 %v4652, %v4999
    %v5001 = vpop.f32.mrf.mxu0
    %5002 = vmatprep.mubr.bf16.mxu0 0
    %5003 = vmatmul.mubr.bf16.gmra.mxu0 %v4736
    %v5004 = vpop.f32.mrf.mxu0
    %v5005 = vadd.f32 %v4652, %v5004
    %v5006 = vpop.f32.mrf.mxu0
    %v5007 = vpop.f32.mrf.mxu0
    %v5008 = vadd.f32 %v4652, %v5007
    %v5009 = vpop.f32.mrf.mxu0
    %5010 = vmatprep.mubr.bf16.mxu0 0
    %5011 = vmatmul.mubr.bf16.gmra.mxu0 %v4739
    %v5012 = vpop.f32.mrf.mxu0
    %v5013 = vadd.f32 %v4652, %v5012
    %v5014 = vpop.f32.mrf.mxu0
    %v5015 = vpop.f32.mrf.mxu0
    %v5016 = vadd.f32 %v4652, %v5015
    %v5017 = vpop.f32.mrf.mxu0
    %5018 = vmatprep.mubr.bf16.mxu0 0
    %5019 = vmatmul.mubr.bf16.gmra.mxu0 %v4742
    %v5020 = vpop.f32.mrf.mxu0
    %v5021 = vadd.f32 %v4652, %v5020
    %v5022 = vpop.f32.mrf.mxu0
    %v5023 = vpop.f32.mrf.mxu0
    %v5024 = vadd.f32 %v4652, %v5023
    %v5025 = vpop.f32.mrf.mxu0
    %5026 = vmatprep.mubr.bf16.mxu0 0
    %5027 = vmatmul.mubr.bf16.gmra.mxu0 %v4745
    %v5028 = vpop.f32.mrf.mxu0
    %v5029 = vadd.f32 %v4652, %v5028
    %v5030 = vpop.f32.mrf.mxu0
    %v5031 = vpop.f32.mrf.mxu0
    %v5032 = vadd.f32 %v4652, %v5031
    %v5033 = vpop.f32.mrf.mxu0
    %5034 = vmatprep.mubr.bf16.mxu0 0
    %5035 = vmatmul.mubr.bf16.gmra.mxu0 %v4748
    %v5036 = vpop.f32.mrf.mxu0
    %v5037 = vadd.f32 %v4652, %v5036
    %v5038 = vpop.f32.mrf.mxu0
    %v5039 = vpop.f32.mrf.mxu0
    %v5040 = vadd.f32 %v4652, %v5039
    %v5041 = vpop.f32.mrf.mxu0
    %5042 = vdwg.mxu0
    %v5043 = vld [vmem:[#allocation4] sm:$0xf]
    %v5044 = vld [vmem:[#allocation4 + $0x4] sm:$0xf]
    %v5045 = vld [vmem:[#allocation4 + $0x8] sm:$0xf]
    %v5046 = vld [vmem:[#allocation4 + $0xc] sm:$0xf]
    %v5047 = vld [vmem:[#allocation4 + $0x10] sm:$0xf]
    %v5048 = vld [vmem:[#allocation4 + $0x14] sm:$0xf]
    %v5049 = vld [vmem:[#allocation4 + $0x18] sm:$0xf]
    %v5050 = vld [vmem:[#allocation4 + $0x1c] sm:$0xf]
    %v5051 = vld [vmem:[#allocation4 + $0x20] sm:$0xf]
    %v5052 = vld [vmem:[#allocation4 + $0x24] sm:$0xf]
    %v5053 = vld [vmem:[#allocation4 + $0x28] sm:$0xf]
    %v5054 = vld [vmem:[#allocation4 + $0x2c] sm:$0xf]
    %v5055 = vld [vmem:[#allocation4 + $0x30] sm:$0xf]
    %v5056 = vld [vmem:[#allocation4 + $0x34] sm:$0xf]
    %v5057 = vld [vmem:[#allocation4 + $0x38] sm:$0xf]
    %v5058 = vld [vmem:[#allocation4 + $0x3c] sm:$0xf]
    %v5059 = vld [vmem:[#allocation4 + $0x40] sm:$0xf]
    %v5060 = vld [vmem:[#allocation4 + $0x44] sm:$0xf]
    %v5061 = vld [vmem:[#allocation4 + $0x48] sm:$0xf]
    %v5062 = vld [vmem:[#allocation4 + $0x4c] sm:$0xf]
    %v5063 = vld [vmem:[#allocation4 + $0x50] sm:$0xf]
    %v5064 = vld [vmem:[#allocation4 + $0x54] sm:$0xf]
    %v5065 = vld [vmem:[#allocation4 + $0x58] sm:$0xf]
    %v5066 = vld [vmem:[#allocation4 + $0x5c] sm:$0xf]
    %v5067 = vld [vmem:[#allocation4 + $0x60] sm:$0xf]
    %v5068 = vld [vmem:[#allocation4 + $0x64] sm:$0xf]
    %v5069 = vld [vmem:[#allocation4 + $0x68] sm:$0xf]
    %v5070 = vld [vmem:[#allocation4 + $0x6c] sm:$0xf]
    %v5071 = vld [vmem:[#allocation4 + $0x70] sm:$0xf]
    %v5072 = vld [vmem:[#allocation4 + $0x74] sm:$0xf]
    %v5073 = vld [vmem:[#allocation4 + $0x78] sm:$0xf]
    %v5074 = vld [vmem:[#allocation4 + $0x7c] sm:$0xf]
    %v5075 = vld [vmem:[#allocation4 + $0x80] sm:$0xf]
    %v5076 = vld [vmem:[#allocation4 + $0x84] sm:$0xf]
    %v5077 = vld [vmem:[#allocation4 + $0x88] sm:$0xf]
    %v5078 = vld [vmem:[#allocation4 + $0x8c] sm:$0xf]
    %v5079 = vld [vmem:[#allocation4 + $0x90] sm:$0xf]
    %v5080 = vld [vmem:[#allocation4 + $0x94] sm:$0xf]
    %v5081 = vld [vmem:[#allocation4 + $0x98] sm:$0xf]
    %v5082 = vld [vmem:[#allocation4 + $0x9c] sm:$0xf]
    %v5083 = vld [vmem:[#allocation4 + $0xa0] sm:$0xf]
    %v5084 = vld [vmem:[#allocation4 + $0xa4] sm:$0xf]
    %v5085 = vld [vmem:[#allocation4 + $0xa8] sm:$0xf]
    %v5086 = vld [vmem:[#allocation4 + $0xac] sm:$0xf]
    %v5087 = vld [vmem:[#allocation4 + $0xb0] sm:$0xf]
    %v5088 = vld [vmem:[#allocation4 + $0xb4] sm:$0xf]
    %v5089 = vld [vmem:[#allocation4 + $0xb8] sm:$0xf]
    %v5090 = vld [vmem:[#allocation4 + $0xbc] sm:$0xf]
    %v5091 = vld [vmem:[#allocation4 + $0xc0] sm:$0xf]
    %v5092 = vld [vmem:[#allocation4 + $0xc4] sm:$0xf]
    %v5093 = vld [vmem:[#allocation4 + $0xc8] sm:$0xf]
    %v5094 = vld [vmem:[#allocation4 + $0xcc] sm:$0xf]
    %v5095 = vld [vmem:[#allocation4 + $0xd0] sm:$0xf]
    %v5096 = vld [vmem:[#allocation4 + $0xd4] sm:$0xf]
    %v5097 = vld [vmem:[#allocation4 + $0xd8] sm:$0xf]
    %v5098 = vld [vmem:[#allocation4 + $0xdc] sm:$0xf]
    %v5099 = vld [vmem:[#allocation4 + $0xe0] sm:$0xf]
    %v5100 = vld [vmem:[#allocation4 + $0xe4] sm:$0xf]
    %v5101 = vld [vmem:[#allocation4 + $0xe8] sm:$0xf]
    %v5102 = vld [vmem:[#allocation4 + $0xec] sm:$0xf]
    %v5103 = vld [vmem:[#allocation4 + $0xf0] sm:$0xf]
    %v5104 = vld [vmem:[#allocation4 + $0xf4] sm:$0xf]
    %v5105 = vld [vmem:[#allocation4 + $0xf8] sm:$0xf]
    %v5106 = vld [vmem:[#allocation4 + $0xfc] sm:$0xf]
    %v5107 = vunpack.c.l.bf16 %v5043
    %v5108 = vunpack.c.l.bf16 %v5044
    %v5109 = vunpack.c.l.bf16 %v5045
    %v5110 = vunpack.c.l.bf16 %v5046
    %v5111 = vunpack.c.l.bf16 %v5047
    %v5112 = vunpack.c.l.bf16 %v5048
    %v5113 = vunpack.c.l.bf16 %v5049
    %v5114 = vunpack.c.l.bf16 %v5050
    %v5115 = vunpack.c.l.bf16 %v5051
    %v5116 = vunpack.c.l.bf16 %v5052
    %v5117 = vunpack.c.l.bf16 %v5053
    %v5118 = vunpack.c.l.bf16 %v5054
    %v5119 = vunpack.c.l.bf16 %v5055
    %v5120 = vunpack.c.l.bf16 %v5056
    %v5121 = vunpack.c.l.bf16 %v5057
    %v5122 = vunpack.c.l.bf16 %v5058
    %v5123 = vunpack.c.l.bf16 %v5059
    %v5124 = vunpack.c.l.bf16 %v5060
    %v5125 = vunpack.c.l.bf16 %v5061
    %v5126 = vunpack.c.l.bf16 %v5062
    %v5127 = vunpack.c.l.bf16 %v5063
    %v5128 = vunpack.c.l.bf16 %v5064
    %v5129 = vunpack.c.l.bf16 %v5065
    %v5130 = vunpack.c.l.bf16 %v5066
    %v5131 = vunpack.c.l.bf16 %v5067
    %v5132 = vunpack.c.l.bf16 %v5068
    %v5133 = vunpack.c.l.bf16 %v5069
    %v5134 = vunpack.c.l.bf16 %v5070
    %v5135 = vunpack.c.l.bf16 %v5071
    %v5136 = vunpack.c.l.bf16 %v5072
    %v5137 = vunpack.c.l.bf16 %v5073
    %v5138 = vunpack.c.l.bf16 %v5074
    %v5139 = vunpack.c.l.bf16 %v5075
    %v5140 = vunpack.c.l.bf16 %v5076
    %v5141 = vunpack.c.l.bf16 %v5077
    %v5142 = vunpack.c.l.bf16 %v5078
    %v5143 = vunpack.c.l.bf16 %v5079
    %v5144 = vunpack.c.l.bf16 %v5080
    %v5145 = vunpack.c.l.bf16 %v5081
    %v5146 = vunpack.c.l.bf16 %v5082
    %v5147 = vunpack.c.l.bf16 %v5083
    %v5148 = vunpack.c.l.bf16 %v5084
    %v5149 = vunpack.c.l.bf16 %v5085
    %v5150 = vunpack.c.l.bf16 %v5086
    %v5151 = vunpack.c.l.bf16 %v5087
    %v5152 = vunpack.c.l.bf16 %v5088
    %v5153 = vunpack.c.l.bf16 %v5089
    %v5154 = vunpack.c.l.bf16 %v5090
    %v5155 = vunpack.c.l.bf16 %v5091
    %v5156 = vunpack.c.l.bf16 %v5092
    %v5157 = vunpack.c.l.bf16 %v5093
    %v5158 = vunpack.c.l.bf16 %v5094
    %v5159 = vunpack.c.l.bf16 %v5095
    %v5160 = vunpack.c.l.bf16 %v5096
    %v5161 = vunpack.c.l.bf16 %v5097
    %v5162 = vunpack.c.l.bf16 %v5098
    %v5163 = vunpack.c.l.bf16 %v5099
    %v5164 = vunpack.c.l.bf16 %v5100
    %v5165 = vunpack.c.l.bf16 %v5101
    %v5166 = vunpack.c.l.bf16 %v5102
    %v5167 = vunpack.c.l.bf16 %v5103
    %v5168 = vunpack.c.l.bf16 %v5104
    %v5169 = vunpack.c.l.bf16 %v5105
    %v5170 = vunpack.c.l.bf16 %v5106
    %v5171 = vadd.f32 %v4789, %v5107
    %v5172 = vadd.f32 %v4792, %v5108
    %v5173 = vadd.f32 %v4797, %v5109
    %v5174 = vadd.f32 %v4800, %v5110
    %v5175 = vadd.f32 %v4805, %v5111
    %v5176 = vadd.f32 %v4808, %v5112
    %v5177 = vadd.f32 %v4813, %v5113
    %v5178 = vadd.f32 %v4816, %v5114
    %v5179 = vadd.f32 %v4821, %v5115
    %v5180 = vadd.f32 %v4824, %v5116
    %v5181 = vadd.f32 %v4829, %v5117
    %v5182 = vadd.f32 %v4832, %v5118
    %v5183 = vadd.f32 %v4837, %v5119
    %v5184 = vadd.f32 %v4840, %v5120
    %v5185 = vadd.f32 %v4845, %v5121
    %v5186 = vadd.f32 %v4848, %v5122
    %v5187 = vadd.f32 %v4853, %v5123
    %v5188 = vadd.f32 %v4856, %v5124
    %v5189 = vadd.f32 %v4861, %v5125
    %v5190 = vadd.f32 %v4864, %v5126
    %v5191 = vadd.f32 %v4869, %v5127
    %v5192 = vadd.f32 %v4872, %v5128
    %v5193 = vadd.f32 %v4877, %v5129
    %v5194 = vadd.f32 %v4880, %v5130
    %v5195 = vadd.f32 %v4885, %v5131
    %v5196 = vadd.f32 %v4888, %v5132
    %v5197 = vadd.f32 %v4893, %v5133
    %v5198 = vadd.f32 %v4896, %v5134
    %v5199 = vadd.f32 %v4901, %v5135
    %v5200 = vadd.f32 %v4904, %v5136
    %v5201 = vadd.f32 %v4909, %v5137
    %v5202 = vadd.f32 %v4912, %v5138
    %v5203 = vadd.f32 %v4917, %v5139
    %v5204 = vadd.f32 %v4920, %v5140
    %v5205 = vadd.f32 %v4925, %v5141
    %v5206 = vadd.f32 %v4928, %v5142
    %v5207 = vadd.f32 %v4933, %v5143
    %v5208 = vadd.f32 %v4936, %v5144
    %v5209 = vadd.f32 %v4941, %v5145
    %v5210 = vadd.f32 %v4944, %v5146
    %v5211 = vadd.f32 %v4949, %v5147
    %v5212 = vadd.f32 %v4952, %v5148
    %v5213 = vadd.f32 %v4957, %v5149
    %v5214 = vadd.f32 %v4960, %v5150
    %v5215 = vadd.f32 %v4965, %v5151
    %v5216 = vadd.f32 %v4968, %v5152
    %v5217 = vadd.f32 %v4973, %v5153
    %v5218 = vadd.f32 %v4976, %v5154
    %v5219 = vadd.f32 %v4981, %v5155
    %v5220 = vadd.f32 %v4984, %v5156
    %v5221 = vadd.f32 %v4989, %v5157
    %v5222 = vadd.f32 %v4992, %v5158
    %v5223 = vadd.f32 %v4997, %v5159
    %v5224 = vadd.f32 %v5000, %v5160
    %v5225 = vadd.f32 %v5005, %v5161
    %v5226 = vadd.f32 %v5008, %v5162
    %v5227 = vadd.f32 %v5013, %v5163
    %v5228 = vadd.f32 %v5016, %v5164
    %v5229 = vadd.f32 %v5021, %v5165
    %v5230 = vadd.f32 %v5024, %v5166
    %v5231 = vadd.f32 %v5029, %v5167
    %v5232 = vadd.f32 %v5032, %v5168
    %v5233 = vadd.f32 %v5037, %v5169
    %v5234 = vadd.f32 %v5040, %v5170
    %v5235 = vmax.f32 %v5171, 0.0
    %v5236 = vmax.f32 %v5172, 0.0
    %v5237 = vmax.f32 %v5173, 0.0
    %v5238 = vmax.f32 %v5174, 0.0
    %v5239 = vmax.f32 %v5175, 0.0
    %v5240 = vmax.f32 %v5176, 0.0
    %v5241 = vmax.f32 %v5177, 0.0
    %v5242 = vmax.f32 %v5178, 0.0
    %v5243 = vmax.f32 %v5179, 0.0
    %v5244 = vmax.f32 %v5180, 0.0
    %v5245 = vmax.f32 %v5181, 0.0
    %v5246 = vmax.f32 %v5182, 0.0
    %v5247 = vmax.f32 %v5183, 0.0
    %v5248 = vmax.f32 %v5184, 0.0
    %v5249 = vmax.f32 %v5185, 0.0
    %v5250 = vmax.f32 %v5186, 0.0
    %v5251 = vmax.f32 %v5187, 0.0
    %v5252 = vmax.f32 %v5188, 0.0
    %v5253 = vmax.f32 %v5189, 0.0
    %v5254 = vmax.f32 %v5190, 0.0
    %v5255 = vmax.f32 %v5191, 0.0
    %v5256 = vmax.f32 %v5192, 0.0
    %v5257 = vmax.f32 %v5193, 0.0
    %v5258 = vmax.f32 %v5194, 0.0
    %v5259 = vmax.f32 %v5195, 0.0
    %v5260 = vmax.f32 %v5196, 0.0
    %v5261 = vmax.f32 %v5197, 0.0
    %v5262 = vmax.f32 %v5198, 0.0
    %v5263 = vmax.f32 %v5199, 0.0
    %v5264 = vmax.f32 %v5200, 0.0
    %v5265 = vmax.f32 %v5201, 0.0
    %v5266 = vmax.f32 %v5202, 0.0
    %v5267 = vmax.f32 %v5203, 0.0
    %v5268 = vmax.f32 %v5204, 0.0
    %v5269 = vmax.f32 %v5205, 0.0
    %v5270 = vmax.f32 %v5206, 0.0
    %v5271 = vmax.f32 %v5207, 0.0
    %v5272 = vmax.f32 %v5208, 0.0
    %v5273 = vmax.f32 %v5209, 0.0
    %v5274 = vmax.f32 %v5210, 0.0
    %v5275 = vmax.f32 %v5211, 0.0
    %v5276 = vmax.f32 %v5212, 0.0
    %v5277 = vmax.f32 %v5213, 0.0
    %v5278 = vmax.f32 %v5214, 0.0
    %v5279 = vmax.f32 %v5215, 0.0
    %v5280 = vmax.f32 %v5216, 0.0
    %v5281 = vmax.f32 %v5217, 0.0
    %v5282 = vmax.f32 %v5218, 0.0
    %v5283 = vmax.f32 %v5219, 0.0
    %v5284 = vmax.f32 %v5220, 0.0
    %v5285 = vmax.f32 %v5221, 0.0
    %v5286 = vmax.f32 %v5222, 0.0
    %v5287 = vmax.f32 %v5223, 0.0
    %v5288 = vmax.f32 %v5224, 0.0
    %v5289 = vmax.f32 %v5225, 0.0
    %v5290 = vmax.f32 %v5226, 0.0
    %v5291 = vmax.f32 %v5227, 0.0
    %v5292 = vmax.f32 %v5228, 0.0
    %v5293 = vmax.f32 %v5229, 0.0
    %v5294 = vmax.f32 %v5230, 0.0
    %v5295 = vmax.f32 %v5231, 0.0
    %v5296 = vmax.f32 %v5232, 0.0
    %v5297 = vmax.f32 %v5233, 0.0
    %v5298 = vmax.f32 %v5234, 0.0
    %v5299 = vpack.c.bf16 %v5236, %v5235
    %v5300 = vpack.c.bf16 %v5238, %v5237
    %v5301 = vpack.c.bf16 %v5240, %v5239
    %v5302 = vpack.c.bf16 %v5242, %v5241
    %v5303 = vpack.c.bf16 %v5244, %v5243
    %v5304 = vpack.c.bf16 %v5246, %v5245
    %v5305 = vpack.c.bf16 %v5248, %v5247
    %v5306 = vpack.c.bf16 %v5250, %v5249
    %v5307 = vpack.c.bf16 %v5252, %v5251
    %v5308 = vpack.c.bf16 %v5254, %v5253
    %v5309 = vpack.c.bf16 %v5256, %v5255
    %v5310 = vpack.c.bf16 %v5258, %v5257
    %v5311 = vpack.c.bf16 %v5260, %v5259
    %v5312 = vpack.c.bf16 %v5262, %v5261
    %v5313 = vpack.c.bf16 %v5264, %v5263
    %v5314 = vpack.c.bf16 %v5266, %v5265
    %v5315 = vpack.c.bf16 %v5268, %v5267
    %v5316 = vpack.c.bf16 %v5270, %v5269
    %v5317 = vpack.c.bf16 %v5272, %v5271
    %v5318 = vpack.c.bf16 %v5274, %v5273
    %v5319 = vpack.c.bf16 %v5276, %v5275
    %v5320 = vpack.c.bf16 %v5278, %v5277
    %v5321 = vpack.c.bf16 %v5280, %v5279
    %v5322 = vpack.c.bf16 %v5282, %v5281
    %v5323 = vpack.c.bf16 %v5284, %v5283
    %v5324 = vpack.c.bf16 %v5286, %v5285
    %v5325 = vpack.c.bf16 %v5288, %v5287
    %v5326 = vpack.c.bf16 %v5290, %v5289
    %v5327 = vpack.c.bf16 %v5292, %v5291
    %v5328 = vpack.c.bf16 %v5294, %v5293
    %v5329 = vpack.c.bf16 %v5296, %v5295
    %v5330 = vpack.c.bf16 %v5298, %v5297
    %v5363 = vunpack.c.l.b16 %v5299
    %v5364 = vunpack.c.h.b16 %v5299
    %v5365 = vunpack.c.l.b16 %v5300
    %v5366 = vunpack.c.h.b16 %v5300
    %v5367 = vunpack.c.l.b16 %v5301
    %v5368 = vunpack.c.h.b16 %v5301
    %v5369 = vunpack.c.l.b16 %v5302
    %v5370 = vunpack.c.h.b16 %v5302
    %v5371 = vunpack.c.l.b16 %v5303
    %v5372 = vunpack.c.h.b16 %v5303
    %v5373 = vunpack.c.l.b16 %v5304
    %v5374 = vunpack.c.h.b16 %v5304
    %v5375 = vunpack.c.l.b16 %v5305
    %v5376 = vunpack.c.h.b16 %v5305
    %v5377 = vunpack.c.l.b16 %v5306
    %v5378 = vunpack.c.h.b16 %v5306
    %v5379 = vunpack.c.l.b16 %v5307
    %v5380 = vunpack.c.h.b16 %v5307
    %v5381 = vunpack.c.l.b16 %v5308
    %v5382 = vunpack.c.h.b16 %v5308
    %v5383 = vunpack.c.l.b16 %v5309
    %v5384 = vunpack.c.h.b16 %v5309
    %v5385 = vunpack.c.l.b16 %v5310
    %v5386 = vunpack.c.h.b16 %v5310
    %v5387 = vunpack.c.l.b16 %v5311
    %v5388 = vunpack.c.h.b16 %v5311
    %v5389 = vunpack.c.l.b16 %v5312
    %v5390 = vunpack.c.h.b16 %v5312
    %v5391 = vunpack.c.l.b16 %v5313
    %v5392 = vunpack.c.h.b16 %v5313
    %v5393 = vunpack.c.l.b16 %v5314
    %v5394 = vunpack.c.h.b16 %v5314
    %v5395 = vunpack.c.l.b16 %v5315
    %v5396 = vunpack.c.h.b16 %v5315
    %v5397 = vunpack.c.l.b16 %v5316
    %v5398 = vunpack.c.h.b16 %v5316
    %v5399 = vunpack.c.l.b16 %v5317
    %v5400 = vunpack.c.h.b16 %v5317
    %v5401 = vunpack.c.l.b16 %v5318
    %v5402 = vunpack.c.h.b16 %v5318
    %v5403 = vunpack.c.l.b16 %v5319
    %v5404 = vunpack.c.h.b16 %v5319
    %v5405 = vunpack.c.l.b16 %v5320
    %v5406 = vunpack.c.h.b16 %v5320
    %v5407 = vunpack.c.l.b16 %v5321
    %v5408 = vunpack.c.h.b16 %v5321
    %v5409 = vunpack.c.l.b16 %v5322
    %v5410 = vunpack.c.h.b16 %v5322
    %v5411 = vunpack.c.l.b16 %v5323
    %v5412 = vunpack.c.h.b16 %v5323
    %v5413 = vunpack.c.l.b16 %v5324
    %v5414 = vunpack.c.h.b16 %v5324
    %v5415 = vunpack.c.l.b16 %v5325
    %v5416 = vunpack.c.h.b16 %v5325
    %v5417 = vunpack.c.l.b16 %v5326
    %v5418 = vunpack.c.h.b16 %v5326
    %v5419 = vunpack.c.l.b16 %v5327
    %v5420 = vunpack.c.h.b16 %v5327
    %v5421 = vunpack.c.l.b16 %v5328
    %v5422 = vunpack.c.h.b16 %v5328
    %v5423 = vunpack.c.l.b16 %v5329
    %v5424 = vunpack.c.h.b16 %v5329
    %v5425 = vunpack.c.l.b16 %v5330
    %v5426 = vunpack.c.h.b16 %v5330
    %v5427 = vpack.c.b16 %v5363, %v5363
    %v5428 = vpack.c.b16 %v5364, %v5364
    %v5429 = vpack.c.b16 %v5365, %v5365
    %v5430 = vpack.c.b16 %v5366, %v5366
    %v5431 = vpack.c.b16 %v5367, %v5367
    %v5432 = vpack.c.b16 %v5368, %v5368
    %v5433 = vpack.c.b16 %v5369, %v5369
    %v5434 = vpack.c.b16 %v5370, %v5370
    %v5435 = vpack.c.b16 %v5371, %v5371
    %v5436 = vpack.c.b16 %v5372, %v5372
    %v5437 = vpack.c.b16 %v5373, %v5373
    %v5438 = vpack.c.b16 %v5374, %v5374
    %v5439 = vpack.c.b16 %v5375, %v5375
    %v5440 = vpack.c.b16 %v5376, %v5376
    %v5441 = vpack.c.b16 %v5377, %v5377
    %v5442 = vpack.c.b16 %v5378, %v5378
    %v5443 = vpack.c.b16 %v5379, %v5379
    %v5444 = vpack.c.b16 %v5380, %v5380
    %v5445 = vpack.c.b16 %v5381, %v5381
    %v5446 = vpack.c.b16 %v5382, %v5382
    %v5447 = vpack.c.b16 %v5383, %v5383
    %v5448 = vpack.c.b16 %v5384, %v5384
    %v5449 = vpack.c.b16 %v5385, %v5385
    %v5450 = vpack.c.b16 %v5386, %v5386
    %v5451 = vpack.c.b16 %v5387, %v5387
    %v5452 = vpack.c.b16 %v5388, %v5388
    %v5453 = vpack.c.b16 %v5389, %v5389
    %v5454 = vpack.c.b16 %v5390, %v5390
    %v5455 = vpack.c.b16 %v5391, %v5391
    %v5456 = vpack.c.b16 %v5392, %v5392
    %v5457 = vpack.c.b16 %v5393, %v5393
    %v5458 = vpack.c.b16 %v5394, %v5394
    %v5459 = vpack.c.b16 %v5395, %v5395
    %v5460 = vpack.c.b16 %v5396, %v5396
    %v5461 = vpack.c.b16 %v5397, %v5397
    %v5462 = vpack.c.b16 %v5398, %v5398
    %v5463 = vpack.c.b16 %v5399, %v5399
    %v5464 = vpack.c.b16 %v5400, %v5400
    %v5465 = vpack.c.b16 %v5401, %v5401
    %v5466 = vpack.c.b16 %v5402, %v5402
    %v5467 = vpack.c.b16 %v5403, %v5403
    %v5468 = vpack.c.b16 %v5404, %v5404
    %v5469 = vpack.c.b16 %v5405, %v5405
    %v5470 = vpack.c.b16 %v5406, %v5406
    %v5471 = vpack.c.b16 %v5407, %v5407
    %v5472 = vpack.c.b16 %v5408, %v5408
    %v5473 = vpack.c.b16 %v5409, %v5409
    %v5474 = vpack.c.b16 %v5410, %v5410
    %v5475 = vpack.c.b16 %v5411, %v5411
    %v5476 = vpack.c.b16 %v5412, %v5412
    %v5477 = vpack.c.b16 %v5413, %v5413
    %v5478 = vpack.c.b16 %v5414, %v5414
    %v5479 = vpack.c.b16 %v5415, %v5415
    %v5480 = vpack.c.b16 %v5416, %v5416
    %v5481 = vpack.c.b16 %v5417, %v5417
    %v5482 = vpack.c.b16 %v5418, %v5418
    %v5483 = vpack.c.b16 %v5419, %v5419
    %v5484 = vpack.c.b16 %v5420, %v5420
    %v5485 = vpack.c.b16 %v5421, %v5421
    %v5486 = vpack.c.b16 %v5422, %v5422
    %v5487 = vpack.c.b16 %v5423, %v5423
    %v5488 = vpack.c.b16 %v5424, %v5424
    %v5489 = vpack.c.b16 %v5425, %v5425
    %v5490 = vpack.c.b16 %v5426, %v5426
    %vm5555 = vcmask 125952
    %5556 = vst.msk [vmem:[#allocation7] sm:$0xf] %vm5555, %v5427
    %5557 = vst.msk [vmem:[#allocation7 + $0x4] sm:$0xf] %vm5555, %v5428
    %5558 = vst.msk [vmem:[#allocation7 + $0x8] sm:$0xf] %vm5555, %v5429
    %5559 = vst.msk [vmem:[#allocation7 + $0xc] sm:$0xf] %vm5555, %v5430
    %5560 = vst.msk [vmem:[#allocation7 + $0x10] sm:$0xf] %vm5555, %v5431
    %5561 = vst.msk [vmem:[#allocation7 + $0x14] sm:$0xf] %vm5555, %v5432
    %5562 = vst.msk [vmem:[#allocation7 + $0x18] sm:$0xf] %vm5555, %v5433
    %5563 = vst.msk [vmem:[#allocation7 + $0x1c] sm:$0xf] %vm5555, %v5434
    %5564 = vst.msk [vmem:[#allocation7 + $0x20] sm:$0xf] %vm5555, %v5435
    %5565 = vst.msk [vmem:[#allocation7 + $0x24] sm:$0xf] %vm5555, %v5436
    %5566 = vst.msk [vmem:[#allocation7 + $0x28] sm:$0xf] %vm5555, %v5437
    %5567 = vst.msk [vmem:[#allocation7 + $0x2c] sm:$0xf] %vm5555, %v5438
    %5568 = vst.msk [vmem:[#allocation7 + $0x30] sm:$0xf] %vm5555, %v5439
    %5569 = vst.msk [vmem:[#allocation7 + $0x34] sm:$0xf] %vm5555, %v5440
    %5570 = vst.msk [vmem:[#allocation7 + $0x38] sm:$0xf] %vm5555, %v5441
    %5571 = vst.msk [vmem:[#allocation7 + $0x3c] sm:$0xf] %vm5555, %v5442
    %5572 = vst.msk [vmem:[#allocation7 + $0x40] sm:$0xf] %vm5555, %v5443
    %5573 = vst.msk [vmem:[#allocation7 + $0x44] sm:$0xf] %vm5555, %v5444
    %5574 = vst.msk [vmem:[#allocation7 + $0x48] sm:$0xf] %vm5555, %v5445
    %5575 = vst.msk [vmem:[#allocation7 + $0x4c] sm:$0xf] %vm5555, %v5446
    %5576 = vst.msk [vmem:[#allocation7 + $0x50] sm:$0xf] %vm5555, %v5447
    %5577 = vst.msk [vmem:[#allocation7 + $0x54] sm:$0xf] %vm5555, %v5448
    %5578 = vst.msk [vmem:[#allocation7 + $0x58] sm:$0xf] %vm5555, %v5449
    %5579 = vst.msk [vmem:[#allocation7 + $0x5c] sm:$0xf] %vm5555, %v5450
    %5580 = vst.msk [vmem:[#allocation7 + $0x60] sm:$0xf] %vm5555, %v5451
    %5581 = vst.msk [vmem:[#allocation7 + $0x64] sm:$0xf] %vm5555, %v5452
    %5582 = vst.msk [vmem:[#allocation7 + $0x68] sm:$0xf] %vm5555, %v5453
    %5583 = vst.msk [vmem:[#allocation7 + $0x6c] sm:$0xf] %vm5555, %v5454
    %5584 = vst.msk [vmem:[#allocation7 + $0x70] sm:$0xf] %vm5555, %v5455
    %5585 = vst.msk [vmem:[#allocation7 + $0x74] sm:$0xf] %vm5555, %v5456
    %5586 = vst.msk [vmem:[#allocation7 + $0x78] sm:$0xf] %vm5555, %v5457
    %5587 = vst.msk [vmem:[#allocation7 + $0x7c] sm:$0xf] %vm5555, %v5458
    %5588 = vst.msk [vmem:[#allocation7 + $0x80] sm:$0xf] %vm5555, %v5459
    %5589 = vst.msk [vmem:[#allocation7 + $0x84] sm:$0xf] %vm5555, %v5460
    %5590 = vst.msk [vmem:[#allocation7 + $0x88] sm:$0xf] %vm5555, %v5461
    %5591 = vst.msk [vmem:[#allocation7 + $0x8c] sm:$0xf] %vm5555, %v5462
    %5592 = vst.msk [vmem:[#allocation7 + $0x90] sm:$0xf] %vm5555, %v5463
    %5593 = vst.msk [vmem:[#allocation7 + $0x94] sm:$0xf] %vm5555, %v5464
    %5594 = vst.msk [vmem:[#allocation7 + $0x98] sm:$0xf] %vm5555, %v5465
    %5595 = vst.msk [vmem:[#allocation7 + $0x9c] sm:$0xf] %vm5555, %v5466
    %5596 = vst.msk [vmem:[#allocation7 + $0xa0] sm:$0xf] %vm5555, %v5467
    %5597 = vst.msk [vmem:[#allocation7 + $0xa4] sm:$0xf] %vm5555, %v5468
    %5598 = vst.msk [vmem:[#allocation7 + $0xa8] sm:$0xf] %vm5555, %v5469
    %5599 = vst.msk [vmem:[#allocation7 + $0xac] sm:$0xf] %vm5555, %v5470
    %5600 = vst.msk [vmem:[#allocation7 + $0xb0] sm:$0xf] %vm5555, %v5471
    %5601 = vst.msk [vmem:[#allocation7 + $0xb4] sm:$0xf] %vm5555, %v5472
    %5602 = vst.msk [vmem:[#allocation7 + $0xb8] sm:$0xf] %vm5555, %v5473
    %5603 = vst.msk [vmem:[#allocation7 + $0xbc] sm:$0xf] %vm5555, %v5474
    %5604 = vst.msk [vmem:[#allocation7 + $0xc0] sm:$0xf] %vm5555, %v5475
    %5605 = vst.msk [vmem:[#allocation7 + $0xc4] sm:$0xf] %vm5555, %v5476
    %5606 = vst.msk [vmem:[#allocation7 + $0xc8] sm:$0xf] %vm5555, %v5477
    %5607 = vst.msk [vmem:[#allocation7 + $0xcc] sm:$0xf] %vm5555, %v5478
    %5608 = vst.msk [vmem:[#allocation7 + $0xd0] sm:$0xf] %vm5555, %v5479
    %5609 = vst.msk [vmem:[#allocation7 + $0xd4] sm:$0xf] %vm5555, %v5480
    %5610 = vst.msk [vmem:[#allocation7 + $0xd8] sm:$0xf] %vm5555, %v5481
    %5611 = vst.msk [vmem:[#allocation7 + $0xdc] sm:$0xf] %vm5555, %v5482
    %5612 = vst.msk [vmem:[#allocation7 + $0xe0] sm:$0xf] %vm5555, %v5483
    %5613 = vst.msk [vmem:[#allocation7 + $0xe4] sm:$0xf] %vm5555, %v5484
    %5614 = vst.msk [vmem:[#allocation7 + $0xe8] sm:$0xf] %vm5555, %v5485
    %5615 = vst.msk [vmem:[#allocation7 + $0xec] sm:$0xf] %vm5555, %v5486
    %5616 = vst.msk [vmem:[#allocation7 + $0xf0] sm:$0xf] %vm5555, %v5487
    %5617 = vst.msk [vmem:[#allocation7 + $0xf4] sm:$0xf] %vm5555, %v5488
    %5618 = vst.msk [vmem:[#allocation7 + $0xf8] sm:$0xf] %vm5555, %v5489
    %5619 = vst.msk [vmem:[#allocation7 + $0xfc] sm:$0xf] %vm5555, %v5490
    // Predicated region
    $region34: #{tpu_custom_call.1} parent=1 // pred_check
      _
    $region35: #{tpu_custom_call.1} parent=1 // pred_check_branch
      %5621 = sbr.rel (0) target = $region37
    $region36: #{tpu_custom_call.1} parent=1 // pred_region
      %s5623 = ssub.s32 4096, 4096
      %5624 = vsyncadd [#allocation6], %s5623
      %s5625 = sshll.u32 [#allocation7], 4
      %s5626 = int_to_ptr.vmem [resolvable:$true] %s5625
      %5631 = dma.vmem_to_hbm [thread:$0]  %s5626, 4096, %s7, [#allocation6], 64, 64, 4
    $region37: #{tpu_custom_call.1} parent=1 // pred_fallthru
      _
    // Predicated region
    $region38: #{tpu_custom_call.1} parent=1 // pred_check
      _
    $region39: #{tpu_custom_call.1} parent=1 // pred_check_branch
      %5633 = sbr.rel (0) target = $region41
    $region40: #{tpu_custom_call.1} parent=1 // pred_region
      %5634 = dma.done [#allocation6], 4096
    $region41: #{tpu_custom_call.1} parent=1 // pred_fallthru
      _
    %5635 = vsyncpa [#allocation5], 1
    %5636 = vsyncpa [#allocation6], 1

// kernel: tpu_custom_call.1
$region0: #{tpu_custom_call.1}
  #allocation0 [shape = 'u32[]', space=smem, size = 0x4, offset = 0x4, fixed_abs, tag = 'smem constant byte address 0x4 - core index']
  #allocation1 [shape = 'u32[144,128]{1,0:T(1,128)}', space=vmem, size = 0x12000, scoped, tag = 'internal scratch']
  #allocation2 [shape = 'bf16[2,18,16,12]{3,2,1,0:T(8,128)(2,1)}', space=vmem, size = 0x24000, scoped, tag = 'scratch operand']
  #allocation3 [shape = 'f32[512,4]{1,0:T(8,128)}', space=vmem, size = 0x40000, scoped, tag = 'scratch operand']
  %s0 = inlined_call_operand.hbm [shape: bf16[2,16,16,16], index: 0, kind: input, shape index: {}]
  %s1 = inlined_call_operand.vmem [shape: bf16[16,4], index: 1, kind: input, shape index: {}]
  %s2 = inlined_call_operand.vmem [shape: f32[1,4], index: 2, kind: input, shape index: {}]
  %s3 = inlined_call_operand.vmem [shape: bf16[3,12,4], index: 3, kind: input, shape index: {}]
  %s4 = inlined_call_operand.vmem [shape: f32[1,4], index: 4, kind: input, shape index: {}]
  %s5 = inlined_call_operand.vmem [shape: bf16[4,16], index: 5, kind: input, shape index: {}]
  %s6 = inlined_call_operand.vmem [shape: f32[1,16], index: 6, kind: input, shape index: {}]
  %s7 = inlined_call_operand.hbm [shape: bf16[2,16,16,16], index: 7, kind: output, shape index: {}]
  %s8 = sld [smem:[#allocation0]]
  $region42: #{tpu_custom_call.1} parent=0
    _
  %s10 = ssub.s32 1, %s8
  %s11 = scalar_select 0, %s10, %s8
  $region1: #{tpu_custom_call.1} parent=0
    #allocation4 [shape = 'u8[131072]{0}', space=vmem, size = 0x20000, scoped, tag = 'input window, operand 0, single buffered']
    #allocation5 [shape = 's32[1]{0}', space=sflag, size = 0x4, scoped, tag = 'scoped memory for tpu_custom_call.1']
    #allocation6 [shape = 's32[1]{0}', space=sflag, size = 0x4, scoped, tag = 'scoped memory for tpu_custom_call.1']
    #allocation7 [shape = 'u8[131072]{0}', space=vmem, size = 0x20000, scoped, tag = 'output window, operand 0, single buffered']
    %12 = vsyncpa [#allocation5], 0
    %13 = vsyncpa [#allocation6], 0
    // Predicated region
    $region2: #{tpu_custom_call.1} parent=1 // pred_check
      _
    $region3: #{tpu_custom_call.1} parent=1 // pred_check_branch
      %15 = sbr.rel (0) target = $region5
    $region4: #{tpu_custom_call.1} parent=1 // pred_region
      %s17 = ssub.s32 4096, 4096
      %18 = vsyncadd [#allocation5], %s17
      %s19 = sshll.u32 [#allocation4], 4
      %s20 = int_to_ptr.vmem [resolvable:$true] %s19
      %25 = dma.hbm_to_vmem [thread:$0]  %s0, 4096, %s20, [#allocation5], 64, 64, 4
    $region5: #{tpu_custom_call.1} parent=1 // pred_fallthru
      _
    // Predicated region
    $region6: #{tpu_custom_call.1} parent=1 // pred_check
      _
    $region7: #{tpu_custom_call.1} parent=1 // pred_check_branch
      %27 = sbr.rel (0) target = $region9
    $region8: #{tpu_custom_call.1} parent=1 // pred_region
      _
    $region9: #{tpu_custom_call.1} parent=1 // pred_fallthru
      _
    // Predicated region
    $region10: #{tpu_custom_call.1} parent=1 // pred_check
      _
    $region11: #{tpu_custom_call.1} parent=1 // pred_check_branch
      %29 = sbr.rel (0) target = $region13
    $region12: #{tpu_custom_call.1} parent=1 // pred_region
      _
    $region13: #{tpu_custom_call.1} parent=1 // pred_fallthru
      _
    // Predicated region
    $region14: #{tpu_custom_call.1} parent=1 // pred_check
      _
    $region15: #{tpu_custom_call.1} parent=1 // pred_check_branch
      %31 = sbr.rel (0) target = $region17
    $region16: #{tpu_custom_call.1} parent=1 // pred_region
      _
    $region17: #{tpu_custom_call.1} parent=1 // pred_fallthru
      _
    // Predicated region
    $region18: #{tpu_custom_call.1} parent=1 // pred_check
      _
    $region19: #{tpu_custom_call.1} parent=1 // pred_check_branch
      %33 = sbr.rel (0) target = $region21
    $region20: #{tpu_custom_call.1} parent=1 // pred_region
      _
    $region21: #{tpu_custom_call.1} parent=1 // pred_fallthru
      _
    // Predicated region
    $region22: #{tpu_custom_call.1} parent=1 // pred_check
      _
    $region23: #{tpu_custom_call.1} parent=1 // pred_check_branch
      %35 = sbr.rel (0) target = $region25
    $region24: #{tpu_custom_call.1} parent=1 // pred_region
      _
    $region25: #{tpu_custom_call.1} parent=1 // pred_fallthru
      _
    // Predicated region
    $region26: #{tpu_custom_call.1} parent=1 // pred_check
      _
    $region27: #{tpu_custom_call.1} parent=1 // pred_check_branch
      %37 = sbr.rel (0) target = $region29
    $region28: #{tpu_custom_call.1} parent=1 // pred_region
      _
    $region29: #{tpu_custom_call.1} parent=1 // pred_fallthru
      _
    // Predicated region
    $region30: #{tpu_custom_call.1} parent=1 // pred_check
      _
    $region31: #{tpu_custom_call.1} parent=1 // pred_check_branch
      %39 = sbr.rel (0) target = $region33
    $region32: #{tpu_custom_call.1} parent=1 // pred_region
      %40 = dma.done [#allocation5], 4096
    $region33: #{tpu_custom_call.1} parent=1 // pred_fallthru
      _
    %v42 = vld [vmem:[#allocation4] sm:$0xf]
    %v43 = vld [vmem:[#allocation4 + $0x4] sm:$0xf]
    %v44 = vld [vmem:[#allocation4 + $0x8] sm:$0xf]
    %v45 = vld [vmem:[#allocation4 + $0xc] sm:$0xf]
    %v46 = vld [vmem:[#allocation4 + $0x10] sm:$0xf]
    %v47 = vld [vmem:[#allocation4 + $0x14] sm:$0xf]
    %v48 = vld [vmem:[#allocation4 + $0x18] sm:$0xf]
    %v49 = vld [vmem:[#allocation4 + $0x1c] sm:$0xf]
    %v50 = vld [vmem:[#allocation4 + $0x20] sm:$0xf]
    %v51 = vld [vmem:[#allocation4 + $0x24] sm:$0xf]
    %v52 = vld [vmem:[#allocation4 + $0x28] sm:$0xf]
    %v53 = vld [vmem:[#allocation4 + $0x2c] sm:$0xf]
    %v54 = vld [vmem:[#allocation4 + $0x30] sm:$0xf]
    %v55 = vld [vmem:[#allocation4 + $0x34] sm:$0xf]
    %v56 = vld [vmem:[#allocation4 + $0x38] sm:$0xf]
    %v57 = vld [vmem:[#allocation4 + $0x3c] sm:$0xf]
    %v58 = vld [vmem:[#allocation4 + $0x40] sm:$0xf]
    %v59 = vld [vmem:[#allocation4 + $0x44] sm:$0xf]
    %v60 = vld [vmem:[#allocation4 + $0x48] sm:$0xf]
    %v61 = vld [vmem:[#allocation4 + $0x4c] sm:$0xf]
    %v62 = vld [vmem:[#allocation4 + $0x50] sm:$0xf]
    %v63 = vld [vmem:[#allocation4 + $0x54] sm:$0xf]
    %v64 = vld [vmem:[#allocation4 + $0x58] sm:$0xf]
    %v65 = vld [vmem:[#allocation4 + $0x5c] sm:$0xf]
    %v66 = vld [vmem:[#allocation4 + $0x60] sm:$0xf]
    %v67 = vld [vmem:[#allocation4 + $0x64] sm:$0xf]
    %v68 = vld [vmem:[#allocation4 + $0x68] sm:$0xf]
    %v69 = vld [vmem:[#allocation4 + $0x6c] sm:$0xf]
    %v70 = vld [vmem:[#allocation4 + $0x70] sm:$0xf]
    %v71 = vld [vmem:[#allocation4 + $0x74] sm:$0xf]
    %v72 = vld [vmem:[#allocation4 + $0x78] sm:$0xf]
    %v73 = vld [vmem:[#allocation4 + $0x7c] sm:$0xf]
    %v74 = vld [vmem:[#allocation4 + $0x80] sm:$0xf]
    %v75 = vld [vmem:[#allocation4 + $0x84] sm:$0xf]
    %v76 = vld [vmem:[#allocation4 + $0x88] sm:$0xf]
    %v77 = vld [vmem:[#allocation4 + $0x8c] sm:$0xf]
    %v78 = vld [vmem:[#allocation4 + $0x90] sm:$0xf]
    %v79 = vld [vmem:[#allocation4 + $0x94] sm:$0xf]
    %v80 = vld [vmem:[#allocation4 + $0x98] sm:$0xf]
    %v81 = vld [vmem:[#allocation4 + $0x9c] sm:$0xf]
    %v82 = vld [vmem:[#allocation4 + $0xa0] sm:$0xf]
    %v83 = vld [vmem:[#allocation4 + $0xa4] sm:$0xf]
    %v84 = vld [vmem:[#allocation4 + $0xa8] sm:$0xf]
    %v85 = vld [vmem:[#allocation4 + $0xac] sm:$0xf]
    %v86 = vld [vmem:[#allocation4 + $0xb0] sm:$0xf]
    %v87 = vld [vmem:[#allocation4 + $0xb4] sm:$0xf]
    %v88 = vld [vmem:[#allocation4 + $0xb8] sm:$0xf]
    %v89 = vld [vmem:[#allocation4 + $0xbc] sm:$0xf]
    %v90 = vld [vmem:[#allocation4 + $0xc0] sm:$0xf]
    %v91 = vld [vmem:[#allocation4 + $0xc4] sm:$0xf]
    %v92 = vld [vmem:[#allocation4 + $0xc8] sm:$0xf]
    %v93 = vld [vmem:[#allocation4 + $0xcc] sm:$0xf]
    %v94 = vld [vmem:[#allocation4 + $0xd0] sm:$0xf]
    %v95 = vld [vmem:[#allocation4 + $0xd4] sm:$0xf]
    %v96 = vld [vmem:[#allocation4 + $0xd8] sm:$0xf]
    %v97 = vld [vmem:[#allocation4 + $0xdc] sm:$0xf]
    %v98 = vld [vmem:[#allocation4 + $0xe0] sm:$0xf]
    %v99 = vld [vmem:[#allocation4 + $0xe4] sm:$0xf]
    %v100 = vld [vmem:[#allocation4 + $0xe8] sm:$0xf]
    %v101 = vld [vmem:[#allocation4 + $0xec] sm:$0xf]
    %v102 = vld [vmem:[#allocation4 + $0xf0] sm:$0xf]
    %v103 = vld [vmem:[#allocation4 + $0xf4] sm:$0xf]
    %v104 = vld [vmem:[#allocation4 + $0xf8] sm:$0xf]
    %v105 = vld [vmem:[#allocation4 + $0xfc] sm:$0xf]
    %v106 = vld [vmem:[%s1] sm:$0xf]
    %v107 = vld [vmem:[%s1 + $0x4] sm:$0xf]
    %v108 = vld [vmem:[%s2] sm:$0x1]
    %v110 = vlaneseq
    %v111 = vshrl.u32 %v110, 7
    %v112 = vsub.s32 0, %v111
    %v113 = vrot.slane %v108, %v112
    %v179 = vunpack.c.l.b16 %v42
    %v180 = vunpack.c.l.b16 %v43
    %v181 = vunpack.c.l.b16 %v44
    %v182 = vunpack.c.l.b16 %v45
    %v183 = vunpack.c.l.b16 %v46
    %v184 = vunpack.c.l.b16 %v47
    %v185 = vunpack.c.l.b16 %v48
    %v186 = vunpack.c.l.b16 %v49
    %v187 = vunpack.c.l.b16 %v50
    %v188 = vunpack.c.l.b16 %v51
    %v189 = vunpack.c.l.b16 %v52
    %v190 = vunpack.c.l.b16 %v53
    %v191 = vunpack.c.l.b16 %v54
    %v192 = vunpack.c.l.b16 %v55
    %v193 = vunpack.c.l.b16 %v56
    %v194 = vunpack.c.l.b16 %v57
    %v195 = vunpack.c.l.b16 %v58
    %v196 = vunpack.c.l.b16 %v59
    %v197 = vunpack.c.l.b16 %v60
    %v198 = vunpack.c.l.b16 %v61
    %v199 = vunpack.c.l.b16 %v62
    %v200 = vunpack.c.l.b16 %v63
    %v201 = vunpack.c.l.b16 %v64
    %v202 = vunpack.c.l.b16 %v65
    %v203 = vunpack.c.l.b16 %v66
    %v204 = vunpack.c.l.b16 %v67
    %v205 = vunpack.c.l.b16 %v68
    %v206 = vunpack.c.l.b16 %v69
    %v207 = vunpack.c.l.b16 %v70
    %v208 = vunpack.c.l.b16 %v71
    %v209 = vunpack.c.l.b16 %v72
    %v210 = vunpack.c.l.b16 %v73
    %v211 = vunpack.c.l.b16 %v74
    %v212 = vunpack.c.l.b16 %v75
    %v213 = vunpack.c.l.b16 %v76
    %v214 = vunpack.c.l.b16 %v77
    %v215 = vunpack.c.l.b16 %v78
    %v216 = vunpack.c.l.b16 %v79
    %v217 = vunpack.c.l.b16 %v80
    %v218 = vunpack.c.l.b16 %v81
    %v219 = vunpack.c.l.b16 %v82
    %v220 = vunpack.c.l.b16 %v83
    %v221 = vunpack.c.l.b16 %v84
    %v222 = vunpack.c.l.b16 %v85
    %v223 = vunpack.c.l.b16 %v86
    %v224 = vunpack.c.l.b16 %v87
    %v225 = vunpack.c.l.b16 %v88
    %v226 = vunpack.c.l.b16 %v89
    %v227 = vunpack.c.l.b16 %v90
    %v228 = vunpack.c.l.b16 %v91
    %v229 = vunpack.c.l.b16 %v92
    %v230 = vunpack.c.l.b16 %v93
    %v231 = vunpack.c.l.b16 %v94
    %v232 = vunpack.c.l.b16 %v95
    %v233 = vunpack.c.l.b16 %v96
    %v234 = vunpack.c.l.b16 %v97
    %v235 = vunpack.c.l.b16 %v98
    %v236 = vunpack.c.l.b16 %v99
    %v237 = vunpack.c.l.b16 %v100
    %v238 = vunpack.c.l.b16 %v101
    %v239 = vunpack.c.l.b16 %v102
    %v240 = vunpack.c.l.b16 %v103
    %v241 = vunpack.c.l.b16 %v104
    %v242 = vunpack.c.l.b16 %v105
    %v243 = vpack.c.b16 %v180, %v179
    %v244 = vpack.c.b16 %v182, %v181
    %v245 = vpack.c.b16 %v184, %v183
    %v246 = vpack.c.b16 %v186, %v185
    %v247 = vpack.c.b16 %v188, %v187
    %v248 = vpack.c.b16 %v190, %v189
    %v249 = vpack.c.b16 %v192, %v191
    %v250 = vpack.c.b16 %v194, %v193
    %v251 = vpack.c.b16 %v196, %v195
    %v252 = vpack.c.b16 %v198, %v197
    %v253 = vpack.c.b16 %v200, %v199
    %v254 = vpack.c.b16 %v202, %v201
    %v255 = vpack.c.b16 %v204, %v203
    %v256 = vpack.c.b16 %v206, %v205
    %v257 = vpack.c.b16 %v208, %v207
    %v258 = vpack.c.b16 %v210, %v209
    %v259 = vpack.c.b16 %v212, %v211
    %v260 = vpack.c.b16 %v214, %v213
    %v261 = vpack.c.b16 %v216, %v215
    %v262 = vpack.c.b16 %v218, %v217
    %v263 = vpack.c.b16 %v220, %v219
    %v264 = vpack.c.b16 %v222, %v221
    %v265 = vpack.c.b16 %v224, %v223
    %v266 = vpack.c.b16 %v226, %v225
    %v267 = vpack.c.b16 %v228, %v227
    %v268 = vpack.c.b16 %v230, %v229
    %v269 = vpack.c.b16 %v232, %v231
    %v270 = vpack.c.b16 %v234, %v233
    %v271 = vpack.c.b16 %v236, %v235
    %v272 = vpack.c.b16 %v238, %v237
    %v273 = vpack.c.b16 %v240, %v239
    %v274 = vpack.c.b16 %v242, %v241
    %v277 = vunpack.c.l.b16 %v106
    %v278 = vunpack.c.l.b16 %v107
    %v279 = vpack.c.b16 %v278, %v277
    %vm281 = vcmask 130048
    %v283 = vsel %vm281, %v243, 0
    %v286 = vsel %vm281, %v244, 0
    %v289 = vsel %vm281, %v245, 0
    %v292 = vsel %vm281, %v246, 0
    %v295 = vsel %vm281, %v247, 0
    %v298 = vsel %vm281, %v248, 0
    %v301 = vsel %vm281, %v249, 0
    %v304 = vsel %vm281, %v250, 0
    %v307 = vsel %vm281, %v251, 0
    %v310 = vsel %vm281, %v252, 0
    %v313 = vsel %vm281, %v253, 0
    %v316 = vsel %vm281, %v254, 0
    %v319 = vsel %vm281, %v255, 0
    %v322 = vsel %vm281, %v256, 0
    %v325 = vsel %vm281, %v257, 0
    %v328 = vsel %vm281, %v258, 0
    %v331 = vsel %vm281, %v259, 0
    %v334 = vsel %vm281, %v260, 0
    %v337 = vsel %vm281, %v261, 0
    %v340 = vsel %vm281, %v262, 0
    %v343 = vsel %vm281, %v263, 0
    %v346 = vsel %vm281, %v264, 0
    %v349 = vsel %vm281, %v265, 0
    %v352 = vsel %vm281, %v266, 0
    %v355 = vsel %vm281, %v267, 0
    %v358 = vsel %vm281, %v268, 0
    %v361 = vsel %vm281, %v269, 0
    %v364 = vsel %vm281, %v270, 0
    %v367 = vsel %vm281, %v271, 0
    %v370 = vsel %vm281, %v272, 0
    %v373 = vsel %vm281, %v273, 0
    %v376 = vsel %vm281, %v274, 0
    %378 = vmatprep.subr.bf16.mxu0 0
    %379 = vmatpush1.bf16.msra.mxu0 0
    %380 = vmatprep.subr.bf16.mxu0 0
    %381 = vmatpush1.bf16.msra.mxu0 0
    %382 = vmatprep.subr.bf16.mxu0 0
    %383 = vmatpush1.bf16.msra.mxu0 0
    %384 = vmatprep.subr.bf16.mxu0 0
    %385 = vmatpush1.bf16.msra.mxu0 0
    %386 = vmatprep.subr.bf16.mxu0 0
    %387 = vmatpush1.bf16.msra.mxu0 0
    %388 = vmatprep.subr.bf16.mxu0 0
    %389 = vmatpush1.bf16.msra.mxu0 0
    %390 = vmatprep.subr.bf16.mxu0 0
    %391 = vmatpush1.bf16.msra.mxu0 0
    %392 = vmatprep.subr.bf16.mxu0 0
    %393 = vmatpush1.bf16.msra.mxu0 %v279
    %394 = vmatprep.subr.bf16.mxu0 0
    %395 = vmatpush2.bf16.msra.mxu0 0
    %396 = vmatprep.subr.bf16.mxu0 0
    %397 = vmatpush2.bf16.msra.mxu0 0
    %398 = vmatprep.subr.bf16.mxu0 0
    %399 = vmatpush2.bf16.msra.mxu0 0
    %400 = vmatprep.subr.bf16.mxu0 0
    %401 = vmatpush2.bf16.msra.mxu0 0
    %402 = vmatprep.subr.bf16.mxu0 0
    %403 = vmatpush2.bf16.msra.mxu0 0
    %404 = vmatprep.subr.bf16.mxu0 0
    %405 = vmatpush2.bf16.msra.mxu0 0
    %406 = vmatprep.subr.bf16.mxu0 0
    %407 = vmatpush2.bf16.msra.mxu0 0
    %408 = vmatprep.subr.bf16.mxu0 0
    %409 = vmatpush2.bf16.msra.mxu0 0
    %410 = vmatprep.mubr.bf16.mxu0 0
    %411 = vmatmul.mubr.bf16.gmra.mxu0 %v283
    %v412 = vpop.f32.mrf.mxu0
    %v413 = vadd.f32 %v113, %v412
    %v414 = vpop.f32.mrf.mxu0
    %v415 = vpop.f32.mrf.mxu0
    %v416 = vadd.f32 %v113, %v415
    %v417 = vpop.f32.mrf.mxu0
    %418 = vmatprep.mubr.bf16.mxu0 0
    %419 = vmatmul.mubr.bf16.gmra.mxu0 %v286
    %v420 = vpop.f32.mrf.mxu0
    %v421 = vadd.f32 %v113, %v420
    %v422 = vpop.f32.mrf.mxu0
    %v423 = vpop.f32.mrf.mxu0
    %v424 = vadd.f32 %v113, %v423
    %v425 = vpop.f32.mrf.mxu0
    %426 = vmatprep.mubr.bf16.mxu0 0
    %427 = vmatmul.mubr.bf16.gmra.mxu0 %v289
    %v428 = vpop.f32.mrf.mxu0
    %v429 = vadd.f32 %v113, %v428
    %v430 = vpop.f32.mrf.mxu0
    %v431 = vpop.f32.mrf.mxu0
    %v432 = vadd.f32 %v113, %v431
    %v433 = vpop.f32.mrf.mxu0
    %434 = vmatprep.mubr.bf16.mxu0 0
    %435 = vmatmul.mubr.bf16.gmra.mxu0 %v292
    %v436 = vpop.f32.mrf.mxu0
    %v437 = vadd.f32 %v113, %v436
    %v438 = vpop.f32.mrf.mxu0
    %v439 = vpop.f32.mrf.mxu0
    %v440 = vadd.f32 %v113, %v439
    %v441 = vpop.f32.mrf.mxu0
    %442 = vmatprep.mubr.bf16.mxu0 0
    %443 = vmatmul.mubr.bf16.gmra.mxu0 %v295
    %v444 = vpop.f32.mrf.mxu0
    %v445 = vadd.f32 %v113, %v444
    %v446 = vpop.f32.mrf.mxu0
    %v447 = vpop.f32.mrf.mxu0
    %v448 = vadd.f32 %v113, %v447
    %v449 = vpop.f32.mrf.mxu0
    %450 = vmatprep.mubr.bf16.mxu0 0
    %451 = vmatmul.mubr.bf16.gmra.mxu0 %v298
    %v452 = vpop.f32.mrf.mxu0
    %v453 = vadd.f32 %v113, %v452
    %v454 = vpop.f32.mrf.mxu0
    %v455 = vpop.f32.mrf.mxu0
    %v456 = vadd.f32 %v113, %v455
    %v457 = vpop.f32.mrf.mxu0
    %458 = vmatprep.mubr.bf16.mxu0 0
    %459 = vmatmul.mubr.bf16.gmra.mxu0 %v301
    %v460 = vpop.f32.mrf.mxu0
    %v461 = vadd.f32 %v113, %v460
    %v462 = vpop.f32.mrf.mxu0
    %v463 = vpop.f32.mrf.mxu0
    %v464 = vadd.f32 %v113, %v463
    %v465 = vpop.f32.mrf.mxu0
    %466 = vmatprep.mubr.bf16.mxu0 0
    %467 = vmatmul.mubr.bf16.gmra.mxu0 %v304
    %v468 = vpop.f32.mrf.mxu0
    %v469 = vadd.f32 %v113, %v468
    %v470 = vpop.f32.mrf.mxu0
    %v471 = vpop.f32.mrf.mxu0
    %v472 = vadd.f32 %v113, %v471
    %v473 = vpop.f32.mrf.mxu0
    %474 = vmatprep.mubr.bf16.mxu0 0
    %475 = vmatmul.mubr.bf16.gmra.mxu0 %v307
    %v476 = vpop.f32.mrf.mxu0
    %v477 = vadd.f32 %v113, %v476
    %v478 = vpop.f32.mrf.mxu0
    %v479 = vpop.f32.mrf.mxu0
    %v480 = vadd.f32 %v113, %v479
    %v481 = vpop.f32.mrf.mxu0
    %482 = vmatprep.mubr.bf16.mxu0 0
    %483 = vmatmul.mubr.bf16.gmra.mxu0 %v310
    %v484 = vpop.f32.mrf.mxu0
    %v485 = vadd.f32 %v113, %v484
    %v486 = vpop.f32.mrf.mxu0
    %v487 = vpop.f32.mrf.mxu0
    %v488 = vadd.f32 %v113, %v487
    %v489 = vpop.f32.mrf.mxu0
    %490 = vmatprep.mubr.bf16.mxu0 0
    %491 = vmatmul.mubr.bf16.gmra.mxu0 %v313
    %v492 = vpop.f32.mrf.mxu0
    %v493 = vadd.f32 %v113, %v492
    %v494 = vpop.f32.mrf.mxu0
    %v495 = vpop.f32.mrf.mxu0
    %v496 = vadd.f32 %v113, %v495
    %v497 = vpop.f32.mrf.mxu0
    %498 = vmatprep.mubr.bf16.mxu0 0
    %499 = vmatmul.mubr.bf16.gmra.mxu0 %v316
    %v500 = vpop.f32.mrf.mxu0
    %v501 = vadd.f32 %v113, %v500
    %v502 = vpop.f32.mrf.mxu0
    %v503 = vpop.f32.mrf.mxu0
    %v504 = vadd.f32 %v113, %v503
    %v505 = vpop.f32.mrf.mxu0
    %506 = vmatprep.mubr.bf16.mxu0 0
    %507 = vmatmul.mubr.bf16.gmra.mxu0 %v319
    %v508 = vpop.f32.mrf.mxu0
    %v509 = vadd.f32 %v113, %v508
    %v510 = vpop.f32.mrf.mxu0
    %v511 = vpop.f32.mrf.mxu0
    %v512 = vadd.f32 %v113, %v511
    %v513 = vpop.f32.mrf.mxu0
    %514 = vmatprep.mubr.bf16.mxu0 0
    %515 = vmatmul.mubr.bf16.gmra.mxu0 %v322
    %v516 = vpop.f32.mrf.mxu0
    %v517 = vadd.f32 %v113, %v516
    %v518 = vpop.f32.mrf.mxu0
    %v519 = vpop.f32.mrf.mxu0
    %v520 = vadd.f32 %v113, %v519
    %v521 = vpop.f32.mrf.mxu0
    %522 = vmatprep.mubr.bf16.mxu0 0
    %523 = vmatmul.mubr.bf16.gmra.mxu0 %v325
    %v524 = vpop.f32.mrf.mxu0
    %v525 = vadd.f32 %v113, %v524
    %v526 = vpop.f32.mrf.mxu0
    %v527 = vpop.f32.mrf.mxu0
    %v528 = vadd.f32 %v113, %v527
    %v529 = vpop.f32.mrf.mxu0
    %530 = vmatprep.mubr.bf16.mxu0 0
    %531 = vmatmul.mubr.bf16.gmra.mxu0 %v328
    %v532 = vpop.f32.mrf.mxu0
    %v533 = vadd.f32 %v113, %v532
    %v534 = vpop.f32.mrf.mxu0
    %v535 = vpop.f32.mrf.mxu0
    %v536 = vadd.f32 %v113, %v535
    %v537 = vpop.f32.mrf.mxu0
    %538 = vmatprep.mubr.bf16.mxu0 0
    %539 = vmatmul.mubr.bf16.gmra.mxu0 %v331
    %v540 = vpop.f32.mrf.mxu0
    %v541 = vadd.f32 %v113, %v540
    %v542 = vpop.f32.mrf.mxu0
    %v543 = vpop.f32.mrf.mxu0
    %v544 = vadd.f32 %v113, %v543
    %v545 = vpop.f32.mrf.mxu0
    %546 = vmatprep.mubr.bf16.mxu0 0
    %547 = vmatmul.mubr.bf16.gmra.mxu0 %v334
    %v548 = vpop.f32.mrf.mxu0
    %v549 = vadd.f32 %v113, %v548
    %v550 = vpop.f32.mrf.mxu0
    %v551 = vpop.f32.mrf.mxu0
    %v552 = vadd.f32 %v113, %v551
    %v553 = vpop.f32.mrf.mxu0
    %554 = vmatprep.mubr.bf16.mxu0 0
    %555 = vmatmul.mubr.bf16.gmra.mxu0 %v337
    %v556 = vpop.f32.mrf.mxu0
    %v557 = vadd.f32 %v113, %v556
    %v558 = vpop.f32.mrf.mxu0
    %v559 = vpop.f32.mrf.mxu0
    %v560 = vadd.f32 %v113, %v559
    %v561 = vpop.f32.mrf.mxu0
    %562 = vmatprep.mubr.bf16.mxu0 0
    %563 = vmatmul.mubr.bf16.gmra.mxu0 %v340
    %v564 = vpop.f32.mrf.mxu0
    %v565 = vadd.f32 %v113, %v564
    %v566 = vpop.f32.mrf.mxu0
    %v567 = vpop.f32.mrf.mxu0
    %v568 = vadd.f32 %v113, %v567
    %v569 = vpop.f32.mrf.mxu0
    %570 = vmatprep.mubr.bf16.mxu0 0
    %571 = vmatmul.mubr.bf16.gmra.mxu0 %v343
    %v572 = vpop.f32.mrf.mxu0
    %v573 = vadd.f32 %v113, %v572
    %v574 = vpop.f32.mrf.mxu0
    %v575 = vpop.f32.mrf.mxu0
    %v576 = vadd.f32 %v113, %v575
    %v577 = vpop.f32.mrf.mxu0
    %578 = vmatprep.mubr.bf16.mxu0 0
    %579 = vmatmul.mubr.bf16.gmra.mxu0 %v346
    %v580 = vpop.f32.mrf.mxu0
    %v581 = vadd.f32 %v113, %v580
    %v582 = vpop.f32.mrf.mxu0
    %v583 = vpop.f32.mrf.mxu0
    %v584 = vadd.f32 %v113, %v583
    %v585 = vpop.f32.mrf.mxu0
    %586 = vmatprep.mubr.bf16.mxu0 0
    %587 = vmatmul.mubr.bf16.gmra.mxu0 %v349
    %v588 = vpop.f32.mrf.mxu0
    %v589 = vadd.f32 %v113, %v588
    %v590 = vpop.f32.mrf.mxu0
    %v591 = vpop.f32.mrf.mxu0
    %v592 = vadd.f32 %v113, %v591
    %v593 = vpop.f32.mrf.mxu0
    %594 = vmatprep.mubr.bf16.mxu0 0
    %595 = vmatmul.mubr.bf16.gmra.mxu0 %v352
    %v596 = vpop.f32.mrf.mxu0
    %v597 = vadd.f32 %v113, %v596
    %v598 = vpop.f32.mrf.mxu0
    %v599 = vpop.f32.mrf.mxu0
    %v600 = vadd.f32 %v113, %v599
    %v601 = vpop.f32.mrf.mxu0
    %602 = vmatprep.mubr.bf16.mxu0 0
    %603 = vmatmul.mubr.bf16.gmra.mxu0 %v355
    %v604 = vpop.f32.mrf.mxu0
    %v605 = vadd.f32 %v113, %v604
    %v606 = vpop.f32.mrf.mxu0
    %v607 = vpop.f32.mrf.mxu0
    %v608 = vadd.f32 %v113, %v607
    %v609 = vpop.f32.mrf.mxu0
    %610 = vmatprep.mubr.bf16.mxu0 0
    %611 = vmatmul.mubr.bf16.gmra.mxu0 %v358
    %v612 = vpop.f32.mrf.mxu0
    %v613 = vadd.f32 %v113, %v612
    %v614 = vpop.f32.mrf.mxu0
    %v615 = vpop.f32.mrf.mxu0
    %v616 = vadd.f32 %v113, %v615
    %v617 = vpop.f32.mrf.mxu0
    %618 = vmatprep.mubr.bf16.mxu0 0
    %619 = vmatmul.mubr.bf16.gmra.mxu0 %v361
    %v620 = vpop.f32.mrf.mxu0
    %v621 = vadd.f32 %v113, %v620
    %v622 = vpop.f32.mrf.mxu0
    %v623 = vpop.f32.mrf.mxu0
    %v624 = vadd.f32 %v113, %v623
    %v625 = vpop.f32.mrf.mxu0
    %626 = vmatprep.mubr.bf16.mxu0 0
    %627 = vmatmul.mubr.bf16.gmra.mxu0 %v364
    %v628 = vpop.f32.mrf.mxu0
    %v629 = vadd.f32 %v113, %v628
    %v630 = vpop.f32.mrf.mxu0
    %v631 = vpop.f32.mrf.mxu0
    %v632 = vadd.f32 %v113, %v631
    %v633 = vpop.f32.mrf.mxu0
    %634 = vmatprep.mubr.bf16.mxu0 0
    %635 = vmatmul.mubr.bf16.gmra.mxu0 %v367
    %v636 = vpop.f32.mrf.mxu0
    %v637 = vadd.f32 %v113, %v636
    %v638 = vpop.f32.mrf.mxu0
    %v639 = vpop.f32.mrf.mxu0
    %v640 = vadd.f32 %v113, %v639
    %v641 = vpop.f32.mrf.mxu0
    %642 = vmatprep.mubr.bf16.mxu0 0
    %643 = vmatmul.mubr.bf16.gmra.mxu0 %v370
    %v644 = vpop.f32.mrf.mxu0
    %v645 = vadd.f32 %v113, %v644
    %v646 = vpop.f32.mrf.mxu0
    %v647 = vpop.f32.mrf.mxu0
    %v648 = vadd.f32 %v113, %v647
    %v649 = vpop.f32.mrf.mxu0
    %650 = vmatprep.mubr.bf16.mxu0 0
    %651 = vmatmul.mubr.bf16.gmra.mxu0 %v373
    %v652 = vpop.f32.mrf.mxu0
    %v653 = vadd.f32 %v113, %v652
    %v654 = vpop.f32.mrf.mxu0
    %v655 = vpop.f32.mrf.mxu0
    %v656 = vadd.f32 %v113, %v655
    %v657 = vpop.f32.mrf.mxu0
    %658 = vmatprep.mubr.bf16.mxu0 0
    %659 = vmatmul.mubr.bf16.gmra.mxu0 %v376
    %v660 = vpop.f32.mrf.mxu0
    %v661 = vadd.f32 %v113, %v660
    %v662 = vpop.f32.mrf.mxu0
    %v663 = vpop.f32.mrf.mxu0
    %v664 = vadd.f32 %v113, %v663
    %v665 = vpop.f32.mrf.mxu0
    %666 = vdwg.mxu0
    %v667 = vmax.f32 %v413, 0.0
    %v668 = vmax.f32 %v416, 0.0
    %v669 = vmax.f32 %v421, 0.0
    %v670 = vmax.f32 %v424, 0.0
    %v671 = vmax.f32 %v429, 0.0
    %v672 = vmax.f32 %v432, 0.0
    %v673 = vmax.f32 %v437, 0.0
    %v674 = vmax.f32 %v440, 0.0
    %v675 = vmax.f32 %v445, 0.0
    %v676 = vmax.f32 %v448, 0.0
    %v677 = vmax.f32 %v453, 0.0
    %v678 = vmax.f32 %v456, 0.0
    %v679 = vmax.f32 %v461, 0.0
    %v680 = vmax.f32 %v464, 0.0
    %v681 = vmax.f32 %v469, 0.0
    %v682 = vmax.f32 %v472, 0.0
    %v683 = vmax.f32 %v477, 0.0
    %v684 = vmax.f32 %v480, 0.0
    %v685 = vmax.f32 %v485, 0.0
    %v686 = vmax.f32 %v488, 0.0
    %v687 = vmax.f32 %v493, 0.0
    %v688 = vmax.f32 %v496, 0.0
    %v689 = vmax.f32 %v501, 0.0
    %v690 = vmax.f32 %v504, 0.0
    %v691 = vmax.f32 %v509, 0.0
    %v692 = vmax.f32 %v512, 0.0
    %v693 = vmax.f32 %v517, 0.0
    %v694 = vmax.f32 %v520, 0.0
    %v695 = vmax.f32 %v525, 0.0
    %v696 = vmax.f32 %v528, 0.0
    %v697 = vmax.f32 %v533, 0.0
    %v698 = vmax.f32 %v536, 0.0
    %v699 = vmax.f32 %v541, 0.0
    %v700 = vmax.f32 %v544, 0.0
    %v701 = vmax.f32 %v549, 0.0
    %v702 = vmax.f32 %v552, 0.0
    %v703 = vmax.f32 %v557, 0.0
    %v704 = vmax.f32 %v560, 0.0
    %v705 = vmax.f32 %v565, 0.0
    %v706 = vmax.f32 %v568, 0.0
    %v707 = vmax.f32 %v573, 0.0
    %v708 = vmax.f32 %v576, 0.0
    %v709 = vmax.f32 %v581, 0.0
    %v710 = vmax.f32 %v584, 0.0
    %v711 = vmax.f32 %v589, 0.0
    %v712 = vmax.f32 %v592, 0.0
    %v713 = vmax.f32 %v597, 0.0
    %v714 = vmax.f32 %v600, 0.0
    %v715 = vmax.f32 %v605, 0.0
    %v716 = vmax.f32 %v608, 0.0
    %v717 = vmax.f32 %v613, 0.0
    %v718 = vmax.f32 %v616, 0.0
    %v719 = vmax.f32 %v621, 0.0
    %v720 = vmax.f32 %v624, 0.0
    %v721 = vmax.f32 %v629, 0.0
    %v722 = vmax.f32 %v632, 0.0
    %v723 = vmax.f32 %v637, 0.0
    %v724 = vmax.f32 %v640, 0.0
    %v725 = vmax.f32 %v645, 0.0
    %v726 = vmax.f32 %v648, 0.0
    %v727 = vmax.f32 %v653, 0.0
    %v728 = vmax.f32 %v656, 0.0
    %v729 = vmax.f32 %v661, 0.0
    %v730 = vmax.f32 %v664, 0.0
    %v731 = vlaneseq
    %v732 = vshrl.u32 %v731, 7
    %v733 = vadd.s32 %v732, 8
    %vm734 = vcmp.eq.s32.totalorder %v732, 0
    %vm735 = vcmp.eq.s32.totalorder %v733, 0
    %v736 = vrot.slane %v667, 7
    %v737 = vrot.slane %v669, 7
    %v738 = vrot.slane %v671, 7
    %v739 = vrot.slane %v673, 7
    %v740 = vrot.slane %v675, 7
    %v741 = vrot.slane %v677, 7
    %v742 = vrot.slane %v679, 7
    %v743 = vrot.slane %v681, 7
    %v744 = vrot.slane %v683, 7
    %v745 = vrot.slane %v685, 7
    %v746 = vrot.slane %v687, 7
    %v747 = vrot.slane %v689, 7
    %v748 = vrot.slane %v691, 7
    %v749 = vrot.slane %v693, 7
    %v750 = vrot.slane %v695, 7
    %v751 = vrot.slane %v697, 7
    %v752 = vrot.slane %v699, 7
    %v753 = vrot.slane %v701, 7
    %v754 = vrot.slane %v703, 7
    %v755 = vrot.slane %v705, 7
    %v756 = vrot.slane %v707, 7
    %v757 = vrot.slane %v709, 7
    %v758 = vrot.slane %v711, 7
    %v759 = vrot.slane %v713, 7
    %v760 = vrot.slane %v715, 7
    %v761 = vrot.slane %v717, 7
    %v762 = vrot.slane %v719, 7
    %v763 = vrot.slane %v721, 7
    %v764 = vrot.slane %v723, 7
    %v765 = vrot.slane %v725, 7
    %v766 = vrot.slane %v727, 7
    %v767 = vrot.slane %v729, 7
    %v768 = vrot.slane %v668, 7
    %v769 = vrot.slane %v670, 7
    %v770 = vrot.slane %v672, 7
    %v771 = vrot.slane %v674, 7
    %v772 = vrot.slane %v676, 7
    %v773 = vrot.slane %v678, 7
    %v774 = vrot.slane %v680, 7
    %v775 = vrot.slane %v682, 7
    %v776 = vrot.slane %v684, 7
    %v777 = vrot.slane %v686, 7
    %v778 = vrot.slane %v688, 7
    %v779 = vrot.slane %v690, 7
    %v780 = vrot.slane %v692, 7
    %v781 = vrot.slane %v694, 7
    %v782 = vrot.slane %v696, 7
    %v783 = vrot.slane %v698, 7
    %v784 = vrot.slane %v700, 7
    %v785 = vrot.slane %v702, 7
    %v786 = vrot.slane %v704, 7
    %v787 = vrot.slane %v706, 7
    %v788 = vrot.slane %v708, 7
    %v789 = vrot.slane %v710, 7
    %v790 = vrot.slane %v712, 7
    %v791 = vrot.slane %v714, 7
    %v792 = vrot.slane %v716, 7
    %v793 = vrot.slane %v718, 7
    %v794 = vrot.slane %v720, 7
    %v795 = vrot.slane %v722, 7
    %v796 = vrot.slane %v724, 7
    %v797 = vrot.slane %v726, 7
    %v798 = vrot.slane %v728, 7
    %v799 = vrot.slane %v730, 7
    %vm800 = vcmp.lt.s32.totalorder %v732, 1
    %v801 = vsel %vm800, %v736, %v768
    %v802 = vsel %vm800, %v737, %v769
    %v803 = vsel %vm800, %v738, %v770
    %v804 = vsel %vm800, %v739, %v771
    %v805 = vsel %vm800, %v740, %v772
    %v806 = vsel %vm800, %v741, %v773
    %v807 = vsel %vm800, %v742, %v774
    %v808 = vsel %vm800, %v743, %v775
    %v809 = vsel %vm800, %v744, %v776
    %v810 = vsel %vm800, %v745, %v777
    %v811 = vsel %vm800, %v746, %v778
    %v812 = vsel %vm800, %v747, %v779
    %v813 = vsel %vm800, %v748, %v780
    %v814 = vsel %vm800, %v749, %v781
    %v815 = vsel %vm800, %v750, %v782
    %v816 = vsel %vm800, %v751, %v783
    %v817 = vsel %vm800, %v752, %v784
    %v818 = vsel %vm800, %v753, %v785
    %v819 = vsel %vm800, %v754, %v786
    %v820 = vsel %vm800, %v755, %v787
    %v821 = vsel %vm800, %v756, %v788
    %v822 = vsel %vm800, %v757, %v789
    %v823 = vsel %vm800, %v758, %v790
    %v824 = vsel %vm800, %v759, %v791
    %v825 = vsel %vm800, %v760, %v792
    %v826 = vsel %vm800, %v761, %v793
    %v827 = vsel %vm800, %v762, %v794
    %v828 = vsel %vm800, %v763, %v795
    %v829 = vsel %vm800, %v764, %v796
    %v830 = vsel %vm800, %v765, %v797
    %v831 = vsel %vm800, %v766, %v798
    %v832 = vsel %vm800, %v767, %v799
    %v833 = vsel %vm800, %v768, %v736
    %v834 = vsel %vm800, %v769, %v737
    %v835 = vsel %vm800, %v770, %v738
    %v836 = vsel %vm800, %v771, %v739
    %v837 = vsel %vm800, %v772, %v740
    %v838 = vsel %vm800, %v773, %v741
    %v839 = vsel %vm800, %v774, %v742
    %v840 = vsel %vm800, %v775, %v743
    %v841 = vsel %vm800, %v776, %v744
    %v842 = vsel %vm800, %v777, %v745
    %v843 = vsel %vm800, %v778, %v746
    %v844 = vsel %vm800, %v779, %v747
    %v845 = vsel %vm800, %v780, %v748
    %v846 = vsel %vm800, %v781, %v749
    %v847 = vsel %vm800, %v782, %v750
    %v848 = vsel %vm800, %v783, %v751
    %v849 = vsel %vm800, %v784, %v752
    %v850 = vsel %vm800, %v785, %v753
    %v851 = vsel %vm800, %v786, %v754
    %v852 = vsel %vm800, %v787, %v755
    %v853 = vsel %vm800, %v788, %v756
    %v854 = vsel %vm800, %v789, %v757
    %v855 = vsel %vm800, %v790, %v758
    %v856 = vsel %vm800, %v791, %v759
    %v857 = vsel %vm800, %v792, %v760
    %v858 = vsel %vm800, %v793, %v761
    %v859 = vsel %vm800, %v794, %v762
    %v860 = vsel %vm800, %v795, %v763
    %v861 = vsel %vm800, %v796, %v764
    %v862 = vsel %vm800, %v797, %v765
    %v863 = vsel %vm800, %v798, %v766
    %v864 = vsel %vm800, %v799, %v767
    %v865 = vsel %vm734, 1, 0
    %v866 = vsel %vm735, 1, 0
    %vm867 = vcmp.eq.s32.totalorder %v865, 1
    %vm868 = vcmp.eq.s32.totalorder %v866, 1
    %v869 = vsel %vm867, 0.0, %v833
    %v870 = vsel %vm868, 0.0, %v801
    %v871 = vsel %vm867, 0.0, %v834
    %v872 = vsel %vm868, 0.0, %v802
    %v873 = vsel %vm867, 0.0, %v835
    %v874 = vsel %vm868, 0.0, %v803
    %v875 = vsel %vm867, 0.0, %v836
    %v876 = vsel %vm868, 0.0, %v804
    %v877 = vsel %vm867, 0.0, %v837
    %v878 = vsel %vm868, 0.0, %v805
    %v879 = vsel %vm867, 0.0, %v838
    %v880 = vsel %vm868, 0.0, %v806
    %v881 = vsel %vm867, 0.0, %v839
    %v882 = vsel %vm868, 0.0, %v807
    %v883 = vsel %vm867, 0.0, %v840
    %v884 = vsel %vm868, 0.0, %v808
    %v885 = vsel %vm867, 0.0, %v841
    %v886 = vsel %vm868, 0.0, %v809
    %v887 = vsel %vm867, 0.0, %v842
    %v888 = vsel %vm868, 0.0, %v810
    %v889 = vsel %vm867, 0.0, %v843
    %v890 = vsel %vm868, 0.0, %v811
    %v891 = vsel %vm867, 0.0, %v844
    %v892 = vsel %vm868, 0.0, %v812
    %v893 = vsel %vm867, 0.0, %v845
    %v894 = vsel %vm868, 0.0, %v813
    %v895 = vsel %vm867, 0.0, %v846
    %v896 = vsel %vm868, 0.0, %v814
    %v897 = vsel %vm867, 0.0, %v847
    %v898 = vsel %vm868, 0.0, %v815
    %v899 = vsel %vm867, 0.0, %v848
    %v900 = vsel %vm868, 0.0, %v816
    %v901 = vsel %vm867, 0.0, %v849
    %v902 = vsel %vm868, 0.0, %v817
    %v903 = vsel %vm867, 0.0, %v850
    %v904 = vsel %vm868, 0.0, %v818
    %v905 = vsel %vm867, 0.0, %v851
    %v906 = vsel %vm868, 0.0, %v819
    %v907 = vsel %vm867, 0.0, %v852
    %v908 = vsel %vm868, 0.0, %v820
    %v909 = vsel %vm867, 0.0, %v853
    %v910 = vsel %vm868, 0.0, %v821
    %v911 = vsel %vm867, 0.0, %v854
    %v912 = vsel %vm868, 0.0, %v822
    %v913 = vsel %vm867, 0.0, %v855
    %v914 = vsel %vm868, 0.0, %v823
    %v915 = vsel %vm867, 0.0, %v856
    %v916 = vsel %vm868, 0.0, %v824
    %v917 = vsel %vm867, 0.0, %v857
    %v918 = vsel %vm868, 0.0, %v825
    %v919 = vsel %vm867, 0.0, %v858
    %v920 = vsel %vm868, 0.0, %v826
    %v921 = vsel %vm867, 0.0, %v859
    %v922 = vsel %vm868, 0.0, %v827
    %v923 = vsel %vm867, 0.0, %v860
    %v924 = vsel %vm868, 0.0, %v828
    %v925 = vsel %vm867, 0.0, %v861
    %v926 = vsel %vm868, 0.0, %v829
    %v927 = vsel %vm867, 0.0, %v862
    %v928 = vsel %vm868, 0.0, %v830
    %v929 = vsel %vm867, 0.0, %v863
    %v930 = vsel %vm868, 0.0, %v831
    %v931 = vsel %vm867, 0.0, %v864
    %v932 = vsel %vm868, 0.0, %v832
    %vm933 = vcmp.eq.s32.totalorder %v732, 15
    %vm934 = vcmp.eq.s32.totalorder %v733, 15
    %v935 = vrot.slane %v667, 1
    %v936 = vrot.slane %v669, 1
    %v937 = vrot.slane %v671, 1
    %v938 = vrot.slane %v673, 1
    %v939 = vrot.slane %v675, 1
    %v940 = vrot.slane %v677, 1
    %v941 = vrot.slane %v679, 1
    %v942 = vrot.slane %v681, 1
    %v943 = vrot.slane %v683, 1
    %v944 = vrot.slane %v685, 1
    %v945 = vrot.slane %v687, 1
    %v946 = vrot.slane %v689, 1
    %v947 = vrot.slane %v691, 1
    %v948 = vrot.slane %v693, 1
    %v949 = vrot.slane %v695, 1
    %v950 = vrot.slane %v697, 1
    %v951 = vrot.slane %v699, 1
    %v952 = vrot.slane %v701, 1
    %v953 = vrot.slane %v703, 1
    %v954 = vrot.slane %v705, 1
    %v955 = vrot.slane %v707, 1
    %v956 = vrot.slane %v709, 1
    %v957 = vrot.slane %v711, 1
    %v958 = vrot.slane %v713, 1
    %v959 = vrot.slane %v715, 1
    %v960 = vrot.slane %v717, 1
    %v961 = vrot.slane %v719, 1
    %v962 = vrot.slane %v721, 1
    %v963 = vrot.slane %v723, 1
    %v964 = vrot.slane %v725, 1
    %v965 = vrot.slane %v727, 1
    %v966 = vrot.slane %v729, 1
    %v967 = vrot.slane %v668, 1
    %v968 = vrot.slane %v670, 1
    %v969 = vrot.slane %v672, 1
    %v970 = vrot.slane %v674, 1
    %v971 = vrot.slane %v676, 1
    %v972 = vrot.slane %v678, 1
    %v973 = vrot.slane %v680, 1
    %v974 = vrot.slane %v682, 1
    %v975 = vrot.slane %v684, 1
    %v976 = vrot.slane %v686, 1
    %v977 = vrot.slane %v688, 1
    %v978 = vrot.slane %v690, 1
    %v979 = vrot.slane %v692, 1
    %v980 = vrot.slane %v694, 1
    %v981 = vrot.slane %v696, 1
    %v982 = vrot.slane %v698, 1
    %v983 = vrot.slane %v700, 1
    %v984 = vrot.slane %v702, 1
    %v985 = vrot.slane %v704, 1
    %v986 = vrot.slane %v706, 1
    %v987 = vrot.slane %v708, 1
    %v988 = vrot.slane %v710, 1
    %v989 = vrot.slane %v712, 1
    %v990 = vrot.slane %v714, 1
    %v991 = vrot.slane %v716, 1
    %v992 = vrot.slane %v718, 1
    %v993 = vrot.slane %v720, 1
    %v994 = vrot.slane %v722, 1
    %v995 = vrot.slane %v724, 1
    %v996 = vrot.slane %v726, 1
    %v997 = vrot.slane %v728, 1
    %v998 = vrot.slane %v730, 1
    %vm999 = vcmp.lt.s32.totalorder %v732, 7
    %v1000 = vsel %vm999, %v935, %v967
    %v1001 = vsel %vm999, %v936, %v968
    %v1002 = vsel %vm999, %v937, %v969
    %v1003 = vsel %vm999, %v938, %v970
    %v1004 = vsel %vm999, %v939, %v971
    %v1005 = vsel %vm999, %v940, %v972
    %v1006 = vsel %vm999, %v941, %v973
    %v1007 = vsel %vm999, %v942, %v974
    %v1008 = vsel %vm999, %v943, %v975
    %v1009 = vsel %vm999, %v944, %v976
    %v1010 = vsel %vm999, %v945, %v977
    %v1011 = vsel %vm999, %v946, %v978
    %v1012 = vsel %vm999, %v947, %v979
    %v1013 = vsel %vm999, %v948, %v980
    %v1014 = vsel %vm999, %v949, %v981
    %v1015 = vsel %vm999, %v950, %v982
    %v1016 = vsel %vm999, %v951, %v983
    %v1017 = vsel %vm999, %v952, %v984
    %v1018 = vsel %vm999, %v953, %v985
    %v1019 = vsel %vm999, %v954, %v986
    %v1020 = vsel %vm999, %v955, %v987
    %v1021 = vsel %vm999, %v956, %v988
    %v1022 = vsel %vm999, %v957, %v989
    %v1023 = vsel %vm999, %v958, %v990
    %v1024 = vsel %vm999, %v959, %v991
    %v1025 = vsel %vm999, %v960, %v992
    %v1026 = vsel %vm999, %v961, %v993
    %v1027 = vsel %vm999, %v962, %v994
    %v1028 = vsel %vm999, %v963, %v995
    %v1029 = vsel %vm999, %v964, %v996
    %v1030 = vsel %vm999, %v965, %v997
    %v1031 = vsel %vm999, %v966, %v998
    %v1032 = vsel %vm999, %v967, %v935
    %v1033 = vsel %vm999, %v968, %v936
    %v1034 = vsel %vm999, %v969, %v937
    %v1035 = vsel %vm999, %v970, %v938
    %v1036 = vsel %vm999, %v971, %v939
    %v1037 = vsel %vm999, %v972, %v940
    %v1038 = vsel %vm999, %v973, %v941
    %v1039 = vsel %vm999, %v974, %v942
    %v1040 = vsel %vm999, %v975, %v943
    %v1041 = vsel %vm999, %v976, %v944
    %v1042 = vsel %vm999, %v977, %v945
    %v1043 = vsel %vm999, %v978, %v946
    %v1044 = vsel %vm999, %v979, %v947
    %v1045 = vsel %vm999, %v980, %v948
    %v1046 = vsel %vm999, %v981, %v949
    %v1047 = vsel %vm999, %v982, %v950
    %v1048 = vsel %vm999, %v983, %v951
    %v1049 = vsel %vm999, %v984, %v952
    %v1050 = vsel %vm999, %v985, %v953
    %v1051 = vsel %vm999, %v986, %v954
    %v1052 = vsel %vm999, %v987, %v955
    %v1053 = vsel %vm999, %v988, %v956
    %v1054 = vsel %vm999, %v989, %v957
    %v1055 = vsel %vm999, %v990, %v958
    %v1056 = vsel %vm999, %v991, %v959
    %v1057 = vsel %vm999, %v992, %v960
    %v1058 = vsel %vm999, %v993, %v961
    %v1059 = vsel %vm999, %v994, %v962
    %v1060 = vsel %vm999, %v995, %v963
    %v1061 = vsel %vm999, %v996, %v964
    %v1062 = vsel %vm999, %v997, %v965
    %v1063 = vsel %vm999, %v998, %v966
    %v1064 = vsel %vm933, 1, 0
    %v1065 = vsel %vm934, 1, 0
    %vm1066 = vcmp.eq.s32.totalorder %v1064, 1
    %vm1067 = vcmp.eq.s32.totalorder %v1065, 1
    %v1068 = vsel %vm1066, 0.0, %v1000
    %v1069 = vsel %vm1067, 0.0, %v1032
    %v1070 = vsel %vm1066, 0.0, %v1001
    %v1071 = vsel %vm1067, 0.0, %v1033
    %v1072 = vsel %vm1066, 0.0, %v1002
    %v1073 = vsel %vm1067, 0.0, %v1034
    %v1074 = vsel %vm1066, 0.0, %v1003
    %v1075 = vsel %vm1067, 0.0, %v1035
    %v1076 = vsel %vm1066, 0.0, %v1004
    %v1077 = vsel %vm1067, 0.0, %v1036
    %v1078 = vsel %vm1066, 0.0, %v1005
    %v1079 = vsel %vm1067, 0.0, %v1037
    %v1080 = vsel %vm1066, 0.0, %v1006
    %v1081 = vsel %vm1067, 0.0, %v1038
    %v1082 = vsel %vm1066, 0.0, %v1007
    %v1083 = vsel %vm1067, 0.0, %v1039
    %v1084 = vsel %vm1066, 0.0, %v1008
    %v1085 = vsel %vm1067, 0.0, %v1040
    %v1086 = vsel %vm1066, 0.0, %v1009
    %v1087 = vsel %vm1067, 0.0, %v1041
    %v1088 = vsel %vm1066, 0.0, %v1010
    %v1089 = vsel %vm1067, 0.0, %v1042
    %v1090 = vsel %vm1066, 0.0, %v1011
    %v1091 = vsel %vm1067, 0.0, %v1043
    %v1092 = vsel %vm1066, 0.0, %v1012
    %v1093 = vsel %vm1067, 0.0, %v1044
    %v1094 = vsel %vm1066, 0.0, %v1013
    %v1095 = vsel %vm1067, 0.0, %v1045
    %v1096 = vsel %vm1066, 0.0, %v1014
    %v1097 = vsel %vm1067, 0.0, %v1046
    %v1098 = vsel %vm1066, 0.0, %v1015
    %v1099 = vsel %vm1067, 0.0, %v1047
    %v1100 = vsel %vm1066, 0.0, %v1016
    %v1101 = vsel %vm1067, 0.0, %v1048
    %v1102 = vsel %vm1066, 0.0, %v1017
    %v1103 = vsel %vm1067, 0.0, %v1049
    %v1104 = vsel %vm1066, 0.0, %v1018
    %v1105 = vsel %vm1067, 0.0, %v1050
    %v1106 = vsel %vm1066, 0.0, %v1019
    %v1107 = vsel %vm1067, 0.0, %v1051
    %v1108 = vsel %vm1066, 0.0, %v1020
    %v1109 = vsel %vm1067, 0.0, %v1052
    %v1110 = vsel %vm1066, 0.0, %v1021
    %v1111 = vsel %vm1067, 0.0, %v1053
    %v1112 = vsel %vm1066, 0.0, %v1022
    %v1113 = vsel %vm1067, 0.0, %v1054
    %v1114 = vsel %vm1066, 0.0, %v1023
    %v1115 = vsel %vm1067, 0.0, %v1055
    %v1116 = vsel %vm1066, 0.0, %v1024
    %v1117 = vsel %vm1067, 0.0, %v1056
    %v1118 = vsel %vm1066, 0.0, %v1025
    %v1119 = vsel %vm1067, 0.0, %v1057
    %v1120 = vsel %vm1066, 0.0, %v1026
    %v1121 = vsel %vm1067, 0.0, %v1058
    %v1122 = vsel %vm1066, 0.0, %v1027
    %v1123 = vsel %vm1067, 0.0, %v1059
    %v1124 = vsel %vm1066, 0.0, %v1028
    %v1125 = vsel %vm1067, 0.0, %v1060
    %v1126 = vsel %vm1066, 0.0, %v1029
    %v1127 = vsel %vm1067, 0.0, %v1061
    %v1128 = vsel %vm1066, 0.0, %v1030
    %v1129 = vsel %vm1067, 0.0, %v1062
    %v1130 = vsel %vm1066, 0.0, %v1031
    %v1131 = vsel %vm1067, 0.0, %v1063
    %1196 = vrot.lane.b32.xlu0 %v667, 4
    %v1197 = vpop.permute.xlu0 %1196
    %1198 = vrot.lane.b32.xlu0 %v668, 4
    %v1199 = vpop.permute.xlu0 %1198
    %1200 = vrot.lane.b32.xlu0 %v669, 4
    %v1201 = vpop.permute.xlu0 %1200
    %1202 = vrot.lane.b32.xlu0 %v670, 4
    %v1203 = vpop.permute.xlu0 %1202
    %1204 = vrot.lane.b32.xlu0 %v671, 4
    %v1205 = vpop.permute.xlu0 %1204
    %1206 = vrot.lane.b32.xlu0 %v672, 4
    %v1207 = vpop.permute.xlu0 %1206
    %1208 = vrot.lane.b32.xlu0 %v673, 4
    %v1209 = vpop.permute.xlu0 %1208
    %1210 = vrot.lane.b32.xlu0 %v674, 4
    %v1211 = vpop.permute.xlu0 %1210
    %1212 = vrot.lane.b32.xlu0 %v675, 4
    %v1213 = vpop.permute.xlu0 %1212
    %1214 = vrot.lane.b32.xlu0 %v676, 4
    %v1215 = vpop.permute.xlu0 %1214
    %1216 = vrot.lane.b32.xlu0 %v677, 4
    %v1217 = vpop.permute.xlu0 %1216
    %1218 = vrot.lane.b32.xlu0 %v678, 4
    %v1219 = vpop.permute.xlu0 %1218
    %1220 = vrot.lane.b32.xlu0 %v679, 4
    %v1221 = vpop.permute.xlu0 %1220
    %1222 = vrot.lane.b32.xlu0 %v680, 4
    %v1223 = vpop.permute.xlu0 %1222
    %1224 = vrot.lane.b32.xlu0 %v681, 4
    %v1225 = vpop.permute.xlu0 %1224
    %1226 = vrot.lane.b32.xlu0 %v682, 4
    %v1227 = vpop.permute.xlu0 %1226
    %1228 = vrot.lane.b32.xlu0 %v683, 4
    %v1229 = vpop.permute.xlu0 %1228
    %1230 = vrot.lane.b32.xlu0 %v684, 4
    %v1231 = vpop.permute.xlu0 %1230
    %1232 = vrot.lane.b32.xlu0 %v685, 4
    %v1233 = vpop.permute.xlu0 %1232
    %1234 = vrot.lane.b32.xlu0 %v686, 4
    %v1235 = vpop.permute.xlu0 %1234
    %1236 = vrot.lane.b32.xlu0 %v687, 4
    %v1237 = vpop.permute.xlu0 %1236
    %1238 = vrot.lane.b32.xlu0 %v688, 4
    %v1239 = vpop.permute.xlu0 %1238
    %1240 = vrot.lane.b32.xlu0 %v689, 4
    %v1241 = vpop.permute.xlu0 %1240
    %1242 = vrot.lane.b32.xlu0 %v690, 4
    %v1243 = vpop.permute.xlu0 %1242
    %1244 = vrot.lane.b32.xlu0 %v691, 4
    %v1245 = vpop.permute.xlu0 %1244
    %1246 = vrot.lane.b32.xlu0 %v692, 4
    %v1247 = vpop.permute.xlu0 %1246
    %1248 = vrot.lane.b32.xlu0 %v693, 4
    %v1249 = vpop.permute.xlu0 %1248
    %1250 = vrot.lane.b32.xlu0 %v694, 4
    %v1251 = vpop.permute.xlu0 %1250
    %1252 = vrot.lane.b32.xlu0 %v695, 4
    %v1253 = vpop.permute.xlu0 %1252
    %1254 = vrot.lane.b32.xlu0 %v696, 4
    %v1255 = vpop.permute.xlu0 %1254
    %1256 = vrot.lane.b32.xlu0 %v697, 4
    %v1257 = vpop.permute.xlu0 %1256
    %1258 = vrot.lane.b32.xlu0 %v698, 4
    %v1259 = vpop.permute.xlu0 %1258
    %1260 = vrot.lane.b32.xlu0 %v699, 4
    %v1261 = vpop.permute.xlu0 %1260
    %1262 = vrot.lane.b32.xlu0 %v700, 4
    %v1263 = vpop.permute.xlu0 %1262
    %1264 = vrot.lane.b32.xlu0 %v701, 4
    %v1265 = vpop.permute.xlu0 %1264
    %1266 = vrot.lane.b32.xlu0 %v702, 4
    %v1267 = vpop.permute.xlu0 %1266
    %1268 = vrot.lane.b32.xlu0 %v703, 4
    %v1269 = vpop.permute.xlu0 %1268
    %1270 = vrot.lane.b32.xlu0 %v704, 4
    %v1271 = vpop.permute.xlu0 %1270
    %1272 = vrot.lane.b32.xlu0 %v705, 4
    %v1273 = vpop.permute.xlu0 %1272
    %1274 = vrot.lane.b32.xlu0 %v706, 4
    %v1275 = vpop.permute.xlu0 %1274
    %1276 = vrot.lane.b32.xlu0 %v707, 4
    %v1277 = vpop.permute.xlu0 %1276
    %1278 = vrot.lane.b32.xlu0 %v708, 4
    %v1279 = vpop.permute.xlu0 %1278
    %1280 = vrot.lane.b32.xlu0 %v709, 4
    %v1281 = vpop.permute.xlu0 %1280
    %1282 = vrot.lane.b32.xlu0 %v710, 4
    %v1283 = vpop.permute.xlu0 %1282
    %1284 = vrot.lane.b32.xlu0 %v711, 4
    %v1285 = vpop.permute.xlu0 %1284
    %1286 = vrot.lane.b32.xlu0 %v712, 4
    %v1287 = vpop.permute.xlu0 %1286
    %1288 = vrot.lane.b32.xlu0 %v713, 4
    %v1289 = vpop.permute.xlu0 %1288
    %1290 = vrot.lane.b32.xlu0 %v714, 4
    %v1291 = vpop.permute.xlu0 %1290
    %1292 = vrot.lane.b32.xlu0 %v715, 4
    %v1293 = vpop.permute.xlu0 %1292
    %1294 = vrot.lane.b32.xlu0 %v716, 4
    %v1295 = vpop.permute.xlu0 %1294
    %1296 = vrot.lane.b32.xlu0 %v717, 4
    %v1297 = vpop.permute.xlu0 %1296
    %1298 = vrot.lane.b32.xlu0 %v718, 4
    %v1299 = vpop.permute.xlu0 %1298
    %1300 = vrot.lane.b32.xlu0 %v719, 4
    %v1301 = vpop.permute.xlu0 %1300
    %1302 = vrot.lane.b32.xlu0 %v720, 4
    %v1303 = vpop.permute.xlu0 %1302
    %1304 = vrot.lane.b32.xlu0 %v721, 4
    %v1305 = vpop.permute.xlu0 %1304
    %1306 = vrot.lane.b32.xlu0 %v722, 4
    %v1307 = vpop.permute.xlu0 %1306
    %1308 = vrot.lane.b32.xlu0 %v723, 4
    %v1309 = vpop.permute.xlu0 %1308
    %1310 = vrot.lane.b32.xlu0 %v724, 4
    %v1311 = vpop.permute.xlu0 %1310
    %1312 = vrot.lane.b32.xlu0 %v725, 4
    %v1313 = vpop.permute.xlu0 %1312
    %1314 = vrot.lane.b32.xlu0 %v726, 4
    %v1315 = vpop.permute.xlu0 %1314
    %1316 = vrot.lane.b32.xlu0 %v727, 4
    %v1317 = vpop.permute.xlu0 %1316
    %1318 = vrot.lane.b32.xlu0 %v728, 4
    %v1319 = vpop.permute.xlu0 %1318
    %1320 = vrot.lane.b32.xlu0 %v729, 4
    %v1321 = vpop.permute.xlu0 %1320
    %1322 = vrot.lane.b32.xlu0 %v730, 4
    %v1323 = vpop.permute.xlu0 %1322
    %1452 = vrot.lane.b32.xlu0 %v1068, 8
    %v1453 = vpop.permute.xlu0 %1452
    %1454 = vrot.lane.b32.xlu0 %v1069, 8
    %v1455 = vpop.permute.xlu0 %1454
    %1456 = vrot.lane.b32.xlu0 %v1070, 8
    %v1457 = vpop.permute.xlu0 %1456
    %1458 = vrot.lane.b32.xlu0 %v1071, 8
    %v1459 = vpop.permute.xlu0 %1458
    %1460 = vrot.lane.b32.xlu0 %v1072, 8
    %v1461 = vpop.permute.xlu0 %1460
    %1462 = vrot.lane.b32.xlu0 %v1073, 8
    %v1463 = vpop.permute.xlu0 %1462
    %1464 = vrot.lane.b32.xlu0 %v1074, 8
    %v1465 = vpop.permute.xlu0 %1464
    %1466 = vrot.lane.b32.xlu0 %v1075, 8
    %v1467 = vpop.permute.xlu0 %1466
    %1468 = vrot.lane.b32.xlu0 %v1076, 8
    %v1469 = vpop.permute.xlu0 %1468
    %1470 = vrot.lane.b32.xlu0 %v1077, 8
    %v1471 = vpop.permute.xlu0 %1470
    %1472 = vrot.lane.b32.xlu0 %v1078, 8
    %v1473 = vpop.permute.xlu0 %1472
    %1474 = vrot.lane.b32.xlu0 %v1079, 8
    %v1475 = vpop.permute.xlu0 %1474
    %1476 = vrot.lane.b32.xlu0 %v1080, 8
    %v1477 = vpop.permute.xlu0 %1476
    %1478 = vrot.lane.b32.xlu0 %v1081, 8
    %v1479 = vpop.permute.xlu0 %1478
    %1480 = vrot.lane.b32.xlu0 %v1082, 8
    %v1481 = vpop.permute.xlu0 %1480
    %1482 = vrot.lane.b32.xlu0 %v1083, 8
    %v1483 = vpop.permute.xlu0 %1482
    %1484 = vrot.lane.b32.xlu0 %v1084, 8
    %v1485 = vpop.permute.xlu0 %1484
    %1486 = vrot.lane.b32.xlu0 %v1085, 8
    %v1487 = vpop.permute.xlu0 %1486
    %1488 = vrot.lane.b32.xlu0 %v1086, 8
    %v1489 = vpop.permute.xlu0 %1488
    %1490 = vrot.lane.b32.xlu0 %v1087, 8
    %v1491 = vpop.permute.xlu0 %1490
    %1492 = vrot.lane.b32.xlu0 %v1088, 8
    %v1493 = vpop.permute.xlu0 %1492
    %1494 = vrot.lane.b32.xlu0 %v1089, 8
    %v1495 = vpop.permute.xlu0 %1494
    %1496 = vrot.lane.b32.xlu0 %v1090, 8
    %v1497 = vpop.permute.xlu0 %1496
    %1498 = vrot.lane.b32.xlu0 %v1091, 8
    %v1499 = vpop.permute.xlu0 %1498
    %1500 = vrot.lane.b32.xlu0 %v1092, 8
    %v1501 = vpop.permute.xlu0 %1500
    %1502 = vrot.lane.b32.xlu0 %v1093, 8
    %v1503 = vpop.permute.xlu0 %1502
    %1504 = vrot.lane.b32.xlu0 %v1094, 8
    %v1505 = vpop.permute.xlu0 %1504
    %1506 = vrot.lane.b32.xlu0 %v1095, 8
    %v1507 = vpop.permute.xlu0 %1506
    %1508 = vrot.lane.b32.xlu0 %v1096, 8
    %v1509 = vpop.permute.xlu0 %1508
    %1510 = vrot.lane.b32.xlu0 %v1097, 8
    %v1511 = vpop.permute.xlu0 %1510
    %1512 = vrot.lane.b32.xlu0 %v1098, 8
    %v1513 = vpop.permute.xlu0 %1512
    %1514 = vrot.lane.b32.xlu0 %v1099, 8
    %v1515 = vpop.permute.xlu0 %1514
    %1516 = vrot.lane.b32.xlu0 %v1100, 8
    %v1517 = vpop.permute.xlu0 %1516
    %1518 = vrot.lane.b32.xlu0 %v1101, 8
    %v1519 = vpop.permute.xlu0 %1518
    %1520 = vrot.lane.b32.xlu0 %v1102, 8
    %v1521 = vpop.permute.xlu0 %1520
    %1522 = vrot.lane.b32.xlu0 %v1103, 8
    %v1523 = vpop.permute.xlu0 %1522
    %1524 = vrot.lane.b32.xlu0 %v1104, 8
    %v1525 = vpop.permute.xlu0 %1524
    %1526 = vrot.lane.b32.xlu0 %v1105, 8
    %v1527 = vpop.permute.xlu0 %1526
    %1528 = vrot.lane.b32.xlu0 %v1106, 8
    %v1529 = vpop.permute.xlu0 %1528
    %1530 = vrot.lane.b32.xlu0 %v1107, 8
    %v1531 = vpop.permute.xlu0 %1530
    %1532 = vrot.lane.b32.xlu0 %v1108, 8
    %v1533 = vpop.permute.xlu0 %1532
    %1534 = vrot.lane.b32.xlu0 %v1109, 8
    %v1535 = vpop.permute.xlu0 %1534
    %1536 = vrot.lane.b32.xlu0 %v1110, 8
    %v1537 = vpop.permute.xlu0 %1536
    %1538 = vrot.lane.b32.xlu0 %v1111, 8
    %v1539 = vpop.permute.xlu0 %1538
    %1540 = vrot.lane.b32.xlu0 %v1112, 8
    %v1541 = vpop.permute.xlu0 %1540
    %1542 = vrot.lane.b32.xlu0 %v1113, 8
    %v1543 = vpop.permute.xlu0 %1542
    %1544 = vrot.lane.b32.xlu0 %v1114, 8
    %v1545 = vpop.permute.xlu0 %1544
    %1546 = vrot.lane.b32.xlu0 %v1115, 8
    %v1547 = vpop.permute.xlu0 %1546
    %1548 = vrot.lane.b32.xlu0 %v1116, 8
    %v1549 = vpop.permute.xlu0 %1548
    %1550 = vrot.lane.b32.xlu0 %v1117, 8
    %v1551 = vpop.permute.xlu0 %1550
    %1552 = vrot.lane.b32.xlu0 %v1118, 8
    %v1553 = vpop.permute.xlu0 %1552
    %1554 = vrot.lane.b32.xlu0 %v1119, 8
    %v1555 = vpop.permute.xlu0 %1554
    %1556 = vrot.lane.b32.xlu0 %v1120, 8
    %v1557 = vpop.permute.xlu0 %1556
    %1558 = vrot.lane.b32.xlu0 %v1121, 8
    %v1559 = vpop.permute.xlu0 %1558
    %1560 = vrot.lane.b32.xlu0 %v1122, 8
    %v1561 = vpop.permute.xlu0 %1560
    %1562 = vrot.lane.b32.xlu0 %v1123, 8
    %v1563 = vpop.permute.xlu0 %1562
    %1564 = vrot.lane.b32.xlu0 %v1124, 8
    %v1565 = vpop.permute.xlu0 %1564
    %1566 = vrot.lane.b32.xlu0 %v1125, 8
    %v1567 = vpop.permute.xlu0 %1566
    %1568 = vrot.lane.b32.xlu0 %v1126, 8
    %v1569 = vpop.permute.xlu0 %1568
    %1570 = vrot.lane.b32.xlu0 %v1127, 8
    %v1571 = vpop.permute.xlu0 %1570
    %1572 = vrot.lane.b32.xlu0 %v1128, 8
    %v1573 = vpop.permute.xlu0 %1572
    %1574 = vrot.lane.b32.xlu0 %v1129, 8
    %v1575 = vpop.permute.xlu0 %1574
    %1576 = vrot.lane.b32.xlu0 %v1130, 8
    %v1577 = vpop.permute.xlu0 %1576
    %1578 = vrot.lane.b32.xlu0 %v1131, 8
    %v1579 = vpop.permute.xlu0 %1578
    %vm1644 = vcmask 31744
    %v1645 = vsel %vm1644, %v869, %v1197
    %v1646 = vsel %vm1644, %v870, %v1199
    %v1647 = vsel %vm1644, %v871, %v1201
    %v1648 = vsel %vm1644, %v872, %v1203
    %v1649 = vsel %vm1644, %v873, %v1205
    %v1650 = vsel %vm1644, %v874, %v1207
    %v1651 = vsel %vm1644, %v875, %v1209
    %v1652 = vsel %vm1644, %v876, %v1211
    %v1653 = vsel %vm1644, %v877, %v1213
    %v1654 = vsel %vm1644, %v878, %v1215
    %v1655 = vsel %vm1644, %v879, %v1217
    %v1656 = vsel %vm1644, %v880, %v1219
    %v1657 = vsel %vm1644, %v881, %v1221
    %v1658 = vsel %vm1644, %v882, %v1223
    %v1659 = vsel %vm1644, %v883, %v1225
    %v1660 = vsel %vm1644, %v884, %v1227
    %v1661 = vsel %vm1644, %v885, %v1229
    %v1662 = vsel %vm1644, %v886, %v1231
    %v1663 = vsel %vm1644, %v887, %v1233
    %v1664 = vsel %vm1644, %v888, %v1235
    %v1665 = vsel %vm1644, %v889, %v1237
    %v1666 = vsel %vm1644, %v890, %v1239
    %v1667 = vsel %vm1644, %v891, %v1241
    %v1668 = vsel %vm1644, %v892, %v1243
    %v1669 = vsel %vm1644, %v893, %v1245
    %v1670 = vsel %vm1644, %v894, %v1247
    %v1671 = vsel %vm1644, %v895, %v1249
    %v1672 = vsel %vm1644, %v896, %v1251
    %v1673 = vsel %vm1644, %v897, %v1253
    %v1674 = vsel %vm1644, %v898, %v1255
    %v1675 = vsel %vm1644, %v899, %v1257
    %v1676 = vsel %vm1644, %v900, %v1259
    %v1677 = vsel %vm1644, %v901, %v1261
    %v1678 = vsel %vm1644, %v902, %v1263
    %v1679 = vsel %vm1644, %v903, %v1265
    %v1680 = vsel %vm1644, %v904, %v1267
    %v1681 = vsel %vm1644, %v905, %v1269
    %v1682 = vsel %vm1644, %v906, %v1271
    %v1683 = vsel %vm1644, %v907, %v1273
    %v1684 = vsel %vm1644, %v908, %v1275
    %v1685 = vsel %vm1644, %v909, %v1277
    %v1686 = vsel %vm1644, %v910, %v1279
    %v1687 = vsel %vm1644, %v911, %v1281
    %v1688 = vsel %vm1644, %v912, %v1283
    %v1689 = vsel %vm1644, %v913, %v1285
    %v1690 = vsel %vm1644, %v914, %v1287
    %v1691 = vsel %vm1644, %v915, %v1289
    %v1692 = vsel %vm1644, %v916, %v1291
    %v1693 = vsel %vm1644, %v917, %v1293
    %v1694 = vsel %vm1644, %v918, %v1295
    %v1695 = vsel %vm1644, %v919, %v1297
    %v1696 = vsel %vm1644, %v920, %v1299
    %v1697 = vsel %vm1644, %v921, %v1301
    %v1698 = vsel %vm1644, %v922, %v1303
    %v1699 = vsel %vm1644, %v923, %v1305
    %v1700 = vsel %vm1644, %v924, %v1307
    %v1701 = vsel %vm1644, %v925, %v1309
    %v1702 = vsel %vm1644, %v926, %v1311
    %v1703 = vsel %vm1644, %v927, %v1313
    %v1704 = vsel %vm1644, %v928, %v1315
    %v1705 = vsel %vm1644, %v929, %v1317
    %v1706 = vsel %vm1644, %v930, %v1319
    %v1707 = vsel %vm1644, %v931, %v1321
    %v1708 = vsel %vm1644, %v932, %v1323
    %vm1709 = vcmask 64512
    %v1710 = vsel %vm1709, %v1645, %v1453
    %v1711 = vsel %vm1709, %v1646, %v1455
    %v1712 = vsel %vm1709, %v1647, %v1457
    %v1713 = vsel %vm1709, %v1648, %v1459
    %v1714 = vsel %vm1709, %v1649, %v1461
    %v1715 = vsel %vm1709, %v1650, %v1463
    %v1716 = vsel %vm1709, %v1651, %v1465
    %v1717 = vsel %vm1709, %v1652, %v1467
    %v1718 = vsel %vm1709, %v1653, %v1469
    %v1719 = vsel %vm1709, %v1654, %v1471
    %v1720 = vsel %vm1709, %v1655, %v1473
    %v1721 = vsel %vm1709, %v1656, %v1475
    %v1722 = vsel %vm1709, %v1657, %v1477
    %v1723 = vsel %vm1709, %v1658, %v1479
    %v1724 = vsel %vm1709, %v1659, %v1481
    %v1725 = vsel %vm1709, %v1660, %v1483
    %v1726 = vsel %vm1709, %v1661, %v1485
    %v1727 = vsel %vm1709, %v1662, %v1487
    %v1728 = vsel %vm1709, %v1663, %v1489
    %v1729 = vsel %vm1709, %v1664, %v1491
    %v1730 = vsel %vm1709, %v1665, %v1493
    %v1731 = vsel %vm1709, %v1666, %v1495
    %v1732 = vsel %vm1709, %v1667, %v1497
    %v1733 = vsel %vm1709, %v1668, %v1499
    %v1734 = vsel %vm1709, %v1669, %v1501
    %v1735 = vsel %vm1709, %v1670, %v1503
    %v1736 = vsel %vm1709, %v1671, %v1505
    %v1737 = vsel %vm1709, %v1672, %v1507
    %v1738 = vsel %vm1709, %v1673, %v1509
    %v1739 = vsel %vm1709, %v1674, %v1511
    %v1740 = vsel %vm1709, %v1675, %v1513
    %v1741 = vsel %vm1709, %v1676, %v1515
    %v1742 = vsel %vm1709, %v1677, %v1517
    %v1743 = vsel %vm1709, %v1678, %v1519
    %v1744 = vsel %vm1709, %v1679, %v1521
    %v1745 = vsel %vm1709, %v1680, %v1523
    %v1746 = vsel %vm1709, %v1681, %v1525
    %v1747 = vsel %vm1709, %v1682, %v1527
    %v1748 = vsel %vm1709, %v1683, %v1529
    %v1749 = vsel %vm1709, %v1684, %v1531
    %v1750 = vsel %vm1709, %v1685, %v1533
    %v1751 = vsel %vm1709, %v1686, %v1535
    %v1752 = vsel %vm1709, %v1687, %v1537
    %v1753 = vsel %vm1709, %v1688, %v1539
    %v1754 = vsel %vm1709, %v1689, %v1541
    %v1755 = vsel %vm1709, %v1690, %v1543
    %v1756 = vsel %vm1709, %v1691, %v1545
    %v1757 = vsel %vm1709, %v1692, %v1547
    %v1758 = vsel %vm1709, %v1693, %v1549
    %v1759 = vsel %vm1709, %v1694, %v1551
    %v1760 = vsel %vm1709, %v1695, %v1553
    %v1761 = vsel %vm1709, %v1696, %v1555
    %v1762 = vsel %vm1709, %v1697, %v1557
    %v1763 = vsel %vm1709, %v1698, %v1559
    %v1764 = vsel %vm1709, %v1699, %v1561
    %v1765 = vsel %vm1709, %v1700, %v1563
    %v1766 = vsel %vm1709, %v1701, %v1565
    %v1767 = vsel %vm1709, %v1702, %v1567
    %v1768 = vsel %vm1709, %v1703, %v1569
    %v1769 = vsel %vm1709, %v1704, %v1571
    %v1770 = vsel %vm1709, %v1705, %v1573
    %v1771 = vsel %vm1709, %v1706, %v1575
    %v1772 = vsel %vm1709, %v1707, %v1577
    %v1773 = vsel %vm1709, %v1708, %v1579
    %v1774 = vpack.c.bf16 %v1711, %v1710
    %v1775 = vpack.c.bf16 %v1713, %v1712
    %v1776 = vpack.c.bf16 %v1715, %v1714
    %v1777 = vpack.c.bf16 %v1717, %v1716
    %v1778 = vpack.c.bf16 %v1719, %v1718
    %v1779 = vpack.c.bf16 %v1721, %v1720
    %v1780 = vpack.c.bf16 %v1723, %v1722
    %v1781 = vpack.c.bf16 %v1725, %v1724
    %v1782 = vpack.c.bf16 %v1727, %v1726
    %v1783 = vpack.c.bf16 %v1729, %v1728
    %v1784 = vpack.c.bf16 %v1731, %v1730
    %v1785 = vpack.c.bf16 %v1733, %v1732
    %v1786 = vpack.c.bf16 %v1735, %v1734
    %v1787 = vpack.c.bf16 %v1737, %v1736
    %v1788 = vpack.c.bf16 %v1739, %v1738
    %v1789 = vpack.c.bf16 %v1741, %v1740
    %v1790 = vpack.c.bf16 %v1743, %v1742
    %v1791 = vpack.c.bf16 %v1745, %v1744
    %v1792 = vpack.c.bf16 %v1747, %v1746
    %v1793 = vpack.c.bf16 %v1749, %v1748
    %v1794 = vpack.c.bf16 %v1751, %v1750
    %v1795 = vpack.c.bf16 %v1753, %v1752
    %v1796 = vpack.c.bf16 %v1755, %v1754
    %v1797 = vpack.c.bf16 %v1757, %v1756
    %v1798 = vpack.c.bf16 %v1759, %v1758
    %v1799 = vpack.c.bf16 %v1761, %v1760
    %v1800 = vpack.c.bf16 %v1763, %v1762
    %v1801 = vpack.c.bf16 %v1765, %v1764
    %v1802 = vpack.c.bf16 %v1767, %v1766
    %v1803 = vpack.c.bf16 %v1769, %v1768
    %v1804 = vpack.c.bf16 %v1771, %v1770
    %v1805 = vpack.c.bf16 %v1773, %v1772
    %vm1806 = vcmask 93184
    %1807 = vst.msk [vmem:[#allocation2] sm:$0xf] %vm1806, 0
    %1808 = vst.msk [vmem:[#allocation2 + $0x4] sm:$0xf] %vm1806, 0
    %1809 = vst.msk [vmem:[#allocation2 + $0x90] sm:$0xf] %vm1806, 0
    %1810 = vst.msk [vmem:[#allocation2 + $0x94] sm:$0xf] %vm1806, 0
    %s1811 = scalar_lea.vmem [#allocation2], 136
    %1812 = vst.msk [vmem:[%s1811] sm:$0xf] %vm1806, 0
    %1813 = vst.msk [vmem:[%s1811 + $0x4] sm:$0xf] %vm1806, 0
    %1814 = vst.msk [vmem:[%s1811 + $0x90] sm:$0xf] %vm1806, 0
    %1815 = vst.msk [vmem:[%s1811 + $0x94] sm:$0xf] %vm1806, 0
    %v1848 = vunpack.c.l.b16 %v1774
    %v1849 = vunpack.c.h.b16 %v1774
    %v1850 = vunpack.c.l.b16 %v1775
    %v1851 = vunpack.c.h.b16 %v1775
    %v1852 = vunpack.c.l.b16 %v1776
    %v1853 = vunpack.c.h.b16 %v1776
    %v1854 = vunpack.c.l.b16 %v1777
    %v1855 = vunpack.c.h.b16 %v1777
    %v1856 = vunpack.c.l.b16 %v1778
    %v1857 = vunpack.c.h.b16 %v1778
    %v1858 = vunpack.c.l.b16 %v1779
    %v1859 = vunpack.c.h.b16 %v1779
    %v1860 = vunpack.c.l.b16 %v1780
    %v1861 = vunpack.c.h.b16 %v1780
    %v1862 = vunpack.c.l.b16 %v1781
    %v1863 = vunpack.c.h.b16 %v1781
    %v1864 = vunpack.c.l.b16 %v1782
    %v1865 = vunpack.c.h.b16 %v1782
    %v1866 = vunpack.c.l.b16 %v1783
    %v1867 = vunpack.c.h.b16 %v1783
    %v1868 = vunpack.c.l.b16 %v1784
    %v1869 = vunpack.c.h.b16 %v1784
    %v1870 = vunpack.c.l.b16 %v1785
    %v1871 = vunpack.c.h.b16 %v1785
    %v1872 = vunpack.c.l.b16 %v1786
    %v1873 = vunpack.c.h.b16 %v1786
    %v1874 = vunpack.c.l.b16 %v1787
    %v1875 = vunpack.c.h.b16 %v1787
    %v1876 = vunpack.c.l.b16 %v1788
    %v1877 = vunpack.c.h.b16 %v1788
    %v1878 = vunpack.c.l.b16 %v1789
    %v1879 = vunpack.c.h.b16 %v1789
    %v1880 = vunpack.c.l.b16 %v1790
    %v1881 = vunpack.c.h.b16 %v1790
    %v1882 = vunpack.c.l.b16 %v1791
    %v1883 = vunpack.c.h.b16 %v1791
    %v1884 = vunpack.c.l.b16 %v1792
    %v1885 = vunpack.c.h.b16 %v1792
    %v1886 = vunpack.c.l.b16 %v1793
    %v1887 = vunpack.c.h.b16 %v1793
    %v1888 = vunpack.c.l.b16 %v1794
    %v1889 = vunpack.c.h.b16 %v1794
    %v1890 = vunpack.c.l.b16 %v1795
    %v1891 = vunpack.c.h.b16 %v1795
    %v1892 = vunpack.c.l.b16 %v1796
    %v1893 = vunpack.c.h.b16 %v1796
    %v1894 = vunpack.c.l.b16 %v1797
    %v1895 = vunpack.c.h.b16 %v1797
    %v1896 = vunpack.c.l.b16 %v1798
    %v1897 = vunpack.c.h.b16 %v1798
    %v1898 = vunpack.c.l.b16 %v1799
    %v1899 = vunpack.c.h.b16 %v1799
    %v1900 = vunpack.c.l.b16 %v1800
    %v1901 = vunpack.c.h.b16 %v1800
    %v1902 = vunpack.c.l.b16 %v1801
    %v1903 = vunpack.c.h.b16 %v1801
    %v1904 = vunpack.c.l.b16 %v1802
    %v1905 = vunpack.c.h.b16 %v1802
    %v1906 = vunpack.c.l.b16 %v1803
    %v1907 = vunpack.c.h.b16 %v1803
    %v1908 = vunpack.c.l.b16 %v1804
    %v1909 = vunpack.c.h.b16 %v1804
    %v1910 = vunpack.c.l.b16 %v1805
    %v1911 = vunpack.c.h.b16 %v1805
    %v1912 = vpack.c.b16 %v1848, %v1848
    %v1913 = vpack.c.b16 %v1849, %v1849
    %v1914 = vpack.c.b16 %v1850, %v1850
    %v1915 = vpack.c.b16 %v1851, %v1851
    %v1916 = vpack.c.b16 %v1852, %v1852
    %v1917 = vpack.c.b16 %v1853, %v1853
    %v1918 = vpack.c.b16 %v1854, %v1854
    %v1919 = vpack.c.b16 %v1855, %v1855
    %v1920 = vpack.c.b16 %v1856, %v1856
    %v1921 = vpack.c.b16 %v1857, %v1857
    %v1922 = vpack.c.b16 %v1858, %v1858
    %v1923 = vpack.c.b16 %v1859, %v1859
    %v1924 = vpack.c.b16 %v1860, %v1860
    %v1925 = vpack.c.b16 %v1861, %v1861
    %v1926 = vpack.c.b16 %v1862, %v1862
    %v1927 = vpack.c.b16 %v1863, %v1863
    %v1928 = vpack.c.b16 %v1864, %v1864
    %v1929 = vpack.c.b16 %v1865, %v1865
    %v1930 = vpack.c.b16 %v1866, %v1866
    %v1931 = vpack.c.b16 %v1867, %v1867
    %v1932 = vpack.c.b16 %v1868, %v1868
    %v1933 = vpack.c.b16 %v1869, %v1869
    %v1934 = vpack.c.b16 %v1870, %v1870
    %v1935 = vpack.c.b16 %v1871, %v1871
    %v1936 = vpack.c.b16 %v1872, %v1872
    %v1937 = vpack.c.b16 %v1873, %v1873
    %v1938 = vpack.c.b16 %v1874, %v1874
    %v1939 = vpack.c.b16 %v1875, %v1875
    %v1940 = vpack.c.b16 %v1876, %v1876
    %v1941 = vpack.c.b16 %v1877, %v1877
    %v1942 = vpack.c.b16 %v1878, %v1878
    %v1943 = vpack.c.b16 %v1879, %v1879
    %v1944 = vpack.c.b16 %v1880, %v1880
    %v1945 = vpack.c.b16 %v1881, %v1881
    %v1946 = vpack.c.b16 %v1882, %v1882
    %v1947 = vpack.c.b16 %v1883, %v1883
    %v1948 = vpack.c.b16 %v1884, %v1884
    %v1949 = vpack.c.b16 %v1885, %v1885
    %v1950 = vpack.c.b16 %v1886, %v1886
    %v1951 = vpack.c.b16 %v1887, %v1887
    %v1952 = vpack.c.b16 %v1888, %v1888
    %v1953 = vpack.c.b16 %v1889, %v1889
    %v1954 = vpack.c.b16 %v1890, %v1890
    %v1955 = vpack.c.b16 %v1891, %v1891
    %v1956 = vpack.c.b16 %v1892, %v1892
    %v1957 = vpack.c.b16 %v1893, %v1893
    %v1958 = vpack.c.b16 %v1894, %v1894
    %v1959 = vpack.c.b16 %v1895, %v1895
    %v1960 = vpack.c.b16 %v1896, %v1896
    %v1961 = vpack.c.b16 %v1897, %v1897
    %v1962 = vpack.c.b16 %v1898, %v1898
    %v1963 = vpack.c.b16 %v1899, %v1899
    %v1964 = vpack.c.b16 %v1900, %v1900
    %v1965 = vpack.c.b16 %v1901, %v1901
    %v1966 = vpack.c.b16 %v1902, %v1902
    %v1967 = vpack.c.b16 %v1903, %v1903
    %v1968 = vpack.c.b16 %v1904, %v1904
    %v1969 = vpack.c.b16 %v1905, %v1905
    %v1970 = vpack.c.b16 %v1906, %v1906
    %v1971 = vpack.c.b16 %v1907, %v1907
    %v1972 = vpack.c.b16 %v1908, %v1908
    %v1973 = vpack.c.b16 %v1909, %v1909
    %v1974 = vpack.c.b16 %v1910, %v1910
    %v1975 = vpack.c.b16 %v1911, %v1911
    %s2040 = scalar_lea.vmem [#allocation2], 8
    %2041 = vst.msk [vmem:[%s2040] sm:$0xf] %vm1806, %v1912
    %2042 = vst.msk [vmem:[%s2040 + $0x4] sm:$0xf] %vm1806, %v1913
    %2043 = vst.msk [vmem:[%s2040 + $0x8] sm:$0xf] %vm1806, %v1914
    %2044 = vst.msk [vmem:[%s2040 + $0xc] sm:$0xf] %vm1806, %v1915
    %2045 = vst.msk [vmem:[%s2040 + $0x10] sm:$0xf] %vm1806, %v1916
    %2046 = vst.msk [vmem:[%s2040 + $0x14] sm:$0xf] %vm1806, %v1917
    %2047 = vst.msk [vmem:[%s2040 + $0x18] sm:$0xf] %vm1806, %v1918
    %2048 = vst.msk [vmem:[%s2040 + $0x1c] sm:$0xf] %vm1806, %v1919
    %2049 = vst.msk [vmem:[%s2040 + $0x20] sm:$0xf] %vm1806, %v1920
    %2050 = vst.msk [vmem:[%s2040 + $0x24] sm:$0xf] %vm1806, %v1921
    %2051 = vst.msk [vmem:[%s2040 + $0x28] sm:$0xf] %vm1806, %v1922
    %2052 = vst.msk [vmem:[%s2040 + $0x2c] sm:$0xf] %vm1806, %v1923
    %2053 = vst.msk [vmem:[%s2040 + $0x30] sm:$0xf] %vm1806, %v1924
    %2054 = vst.msk [vmem:[%s2040 + $0x34] sm:$0xf] %vm1806, %v1925
    %2055 = vst.msk [vmem:[%s2040 + $0x38] sm:$0xf] %vm1806, %v1926
    %2056 = vst.msk [vmem:[%s2040 + $0x3c] sm:$0xf] %vm1806, %v1927
    %2057 = vst.msk [vmem:[%s2040 + $0x40] sm:$0xf] %vm1806, %v1928
    %2058 = vst.msk [vmem:[%s2040 + $0x44] sm:$0xf] %vm1806, %v1929
    %2059 = vst.msk [vmem:[%s2040 + $0x48] sm:$0xf] %vm1806, %v1930
    %2060 = vst.msk [vmem:[%s2040 + $0x4c] sm:$0xf] %vm1806, %v1931
    %2061 = vst.msk [vmem:[%s2040 + $0x50] sm:$0xf] %vm1806, %v1932
    %2062 = vst.msk [vmem:[%s2040 + $0x54] sm:$0xf] %vm1806, %v1933
    %2063 = vst.msk [vmem:[%s2040 + $0x58] sm:$0xf] %vm1806, %v1934
    %2064 = vst.msk [vmem:[%s2040 + $0x5c] sm:$0xf] %vm1806, %v1935
    %2065 = vst.msk [vmem:[%s2040 + $0x60] sm:$0xf] %vm1806, %v1936
    %2066 = vst.msk [vmem:[%s2040 + $0x64] sm:$0xf] %vm1806, %v1937
    %2067 = vst.msk [vmem:[%s2040 + $0x68] sm:$0xf] %vm1806, %v1938
    %2068 = vst.msk [vmem:[%s2040 + $0x6c] sm:$0xf] %vm1806, %v1939
    %2069 = vst.msk [vmem:[%s2040 + $0x70] sm:$0xf] %vm1806, %v1940
    %2070 = vst.msk [vmem:[%s2040 + $0x74] sm:$0xf] %vm1806, %v1941
    %2071 = vst.msk [vmem:[%s2040 + $0x78] sm:$0xf] %vm1806, %v1942
    %2072 = vst.msk [vmem:[%s2040 + $0x7c] sm:$0xf] %vm1806, %v1943
    %2073 = vst.msk [vmem:[%s2040 + $0x90] sm:$0xf] %vm1806, %v1944
    %2074 = vst.msk [vmem:[%s2040 + $0x94] sm:$0xf] %vm1806, %v1945
    %2075 = vst.msk [vmem:[%s2040 + $0x98] sm:$0xf] %vm1806, %v1946
    %2076 = vst.msk [vmem:[%s2040 + $0x9c] sm:$0xf] %vm1806, %v1947
    %2077 = vst.msk [vmem:[%s2040 + $0xa0] sm:$0xf] %vm1806, %v1948
    %2078 = vst.msk [vmem:[%s2040 + $0xa4] sm:$0xf] %vm1806, %v1949
    %2079 = vst.msk [vmem:[%s2040 + $0xa8] sm:$0xf] %vm1806, %v1950
    %2080 = vst.msk [vmem:[%s2040 + $0xac] sm:$0xf] %vm1806, %v1951
    %2081 = vst.msk [vmem:[%s2040 + $0xb0] sm:$0xf] %vm1806, %v1952
    %2082 = vst.msk [vmem:[%s2040 + $0xb4] sm:$0xf] %vm1806, %v1953
    %2083 = vst.msk [vmem:[%s2040 + $0xb8] sm:$0xf] %vm1806, %v1954
    %2084 = vst.msk [vmem:[%s2040 + $0xbc] sm:$0xf] %vm1806, %v1955
    %2085 = vst.msk [vmem:[%s2040 + $0xc0] sm:$0xf] %vm1806, %v1956
    %2086 = vst.msk [vmem:[%s2040 + $0xc4] sm:$0xf] %vm1806, %v1957
    %2087 = vst.msk [vmem:[%s2040 + $0xc8] sm:$0xf] %vm1806, %v1958
    %2088 = vst.msk [vmem:[%s2040 + $0xcc] sm:$0xf] %vm1806, %v1959
    %2089 = vst.msk [vmem:[%s2040 + $0xd0] sm:$0xf] %vm1806, %v1960
    %2090 = vst.msk [vmem:[%s2040 + $0xd4] sm:$0xf] %vm1806, %v1961
    %2091 = vst.msk [vmem:[%s2040 + $0xd8] sm:$0xf] %vm1806, %v1962
    %2092 = vst.msk [vmem:[%s2040 + $0xdc] sm:$0xf] %vm1806, %v1963
    %2093 = vst.msk [vmem:[%s2040 + $0xe0] sm:$0xf] %vm1806, %v1964
    %2094 = vst.msk [vmem:[%s2040 + $0xe4] sm:$0xf] %vm1806, %v1965
    %2095 = vst.msk [vmem:[%s2040 + $0xe8] sm:$0xf] %vm1806, %v1966
    %2096 = vst.msk [vmem:[%s2040 + $0xec] sm:$0xf] %vm1806, %v1967
    %2097 = vst.msk [vmem:[%s2040 + $0xf0] sm:$0xf] %vm1806, %v1968
    %2098 = vst.msk [vmem:[%s2040 + $0xf4] sm:$0xf] %vm1806, %v1969
    %2099 = vst.msk [vmem:[%s2040 + $0xf8] sm:$0xf] %vm1806, %v1970
    %2100 = vst.msk [vmem:[%s2040 + $0xfc] sm:$0xf] %vm1806, %v1971
    %2101 = vst.msk [vmem:[%s2040 + $0x100] sm:$0xf] %vm1806, %v1972
    %2102 = vst.msk [vmem:[%s2040 + $0x104] sm:$0xf] %vm1806, %v1973
    %2103 = vst.msk [vmem:[%s2040 + $0x108] sm:$0xf] %vm1806, %v1974
    %2104 = vst.msk [vmem:[%s2040 + $0x10c] sm:$0xf] %vm1806, %v1975
    %v2105 = vld [vmem:[#allocation2] sm:$0xf]
    %v2106 = vld [vmem:[#allocation2 + $0x4] sm:$0xf]
    %v2107 = vld [vmem:[#allocation2 + $0x8] sm:$0xf]
    %v2108 = vld [vmem:[#allocation2 + $0xc] sm:$0xf]
    %v2109 = vld [vmem:[#allocation2 + $0x10] sm:$0xf]
    %v2110 = vld [vmem:[#allocation2 + $0x14] sm:$0xf]
    %v2111 = vld [vmem:[#allocation2 + $0x18] sm:$0xf]
    %v2112 = vld [vmem:[#allocation2 + $0x1c] sm:$0xf]
    %v2113 = vld [vmem:[#allocation2 + $0x20] sm:$0xf]
    %v2114 = vld [vmem:[#allocation2 + $0x24] sm:$0xf]
    %v2115 = vld [vmem:[#allocation2 + $0x28] sm:$0xf]
    %v2116 = vld [vmem:[#allocation2 + $0x2c] sm:$0xf]
    %v2117 = vld [vmem:[#allocation2 + $0x30] sm:$0xf]
    %v2118 = vld [vmem:[#allocation2 + $0x34] sm:$0xf]
    %v2119 = vld [vmem:[#allocation2 + $0x38] sm:$0xf]
    %v2120 = vld [vmem:[#allocation2 + $0x3c] sm:$0xf]
    %v2121 = vld [vmem:[#allocation2 + $0x40] sm:$0xf]
    %v2122 = vld [vmem:[#allocation2 + $0x44] sm:$0xf]
    %v2123 = vld [vmem:[#allocation2 + $0x48] sm:$0xf]
    %v2124 = vld [vmem:[#allocation2 + $0x4c] sm:$0xf]
    %v2125 = vld [vmem:[#allocation2 + $0x50] sm:$0xf]
    %v2126 = vld [vmem:[#allocation2 + $0x54] sm:$0xf]
    %v2127 = vld [vmem:[#allocation2 + $0x58] sm:$0xf]
    %v2128 = vld [vmem:[#allocation2 + $0x5c] sm:$0xf]
    %v2129 = vld [vmem:[#allocation2 + $0x60] sm:$0xf]
    %v2130 = vld [vmem:[#allocation2 + $0x64] sm:$0xf]
    %v2131 = vld [vmem:[#allocation2 + $0x68] sm:$0xf]
    %v2132 = vld [vmem:[#allocation2 + $0x6c] sm:$0xf]
    %v2133 = vld [vmem:[#allocation2 + $0x70] sm:$0xf]
    %v2134 = vld [vmem:[#allocation2 + $0x74] sm:$0xf]
    %v2135 = vld [vmem:[#allocation2 + $0x78] sm:$0xf]
    %v2136 = vld [vmem:[#allocation2 + $0x7c] sm:$0xf]
    %v2137 = vld [vmem:[#allocation2 + $0x90] sm:$0xf]
    %v2138 = vld [vmem:[#allocation2 + $0x94] sm:$0xf]
    %v2139 = vld [vmem:[#allocation2 + $0x98] sm:$0xf]
    %v2140 = vld [vmem:[#allocation2 + $0x9c] sm:$0xf]
    %v2141 = vld [vmem:[#allocation2 + $0xa0] sm:$0xf]
    %v2142 = vld [vmem:[#allocation2 + $0xa4] sm:$0xf]
    %v2143 = vld [vmem:[#allocation2 + $0xa8] sm:$0xf]
    %v2144 = vld [vmem:[#allocation2 + $0xac] sm:$0xf]
    %v2145 = vld [vmem:[#allocation2 + $0xb0] sm:$0xf]
    %v2146 = vld [vmem:[#allocation2 + $0xb4] sm:$0xf]
    %v2147 = vld [vmem:[#allocation2 + $0xb8] sm:$0xf]
    %v2148 = vld [vmem:[#allocation2 + $0xbc] sm:$0xf]
    %v2149 = vld [vmem:[#allocation2 + $0xc0] sm:$0xf]
    %v2150 = vld [vmem:[#allocation2 + $0xc4] sm:$0xf]
    %v2151 = vld [vmem:[#allocation2 + $0xc8] sm:$0xf]
    %v2152 = vld [vmem:[#allocation2 + $0xcc] sm:$0xf]
    %v2153 = vld [vmem:[#allocation2 + $0xd0] sm:$0xf]
    %v2154 = vld [vmem:[#allocation2 + $0xd4] sm:$0xf]
    %v2155 = vld [vmem:[#allocation2 + $0xd8] sm:$0xf]
    %v2156 = vld [vmem:[#allocation2 + $0xdc] sm:$0xf]
    %v2157 = vld [vmem:[#allocation2 + $0xe0] sm:$0xf]
    %v2158 = vld [vmem:[#allocation2 + $0xe4] sm:$0xf]
    %v2159 = vld [vmem:[#allocation2 + $0xe8] sm:$0xf]
    %v2160 = vld [vmem:[#allocation2 + $0xec] sm:$0xf]
    %v2161 = vld [vmem:[#allocation2 + $0xf0] sm:$0xf]
    %v2162 = vld [vmem:[#allocation2 + $0xf4] sm:$0xf]
    %v2163 = vld [vmem:[#allocation2 + $0xf8] sm:$0xf]
    %v2164 = vld [vmem:[#allocation2 + $0xfc] sm:$0xf]
    %v2165 = vld [vmem:[#allocation2 + $0x100] sm:$0xf]
    %v2166 = vld [vmem:[#allocation2 + $0x104] sm:$0xf]
    %v2167 = vld [vmem:[#allocation2 + $0x108] sm:$0xf]
    %v2168 = vld [vmem:[#allocation2 + $0x10c] sm:$0xf]
    %v2169 = vld [vmem:[%s3] sm:$0xf]
    %v2170 = vld [vmem:[%s3 + $0x4] sm:$0x3]
    %v2235 = vunpack.c.l.b16 %v2105
    %v2236 = vunpack.c.l.b16 %v2106
    %v2237 = vunpack.c.l.b16 %v2107
    %v2238 = vunpack.c.l.b16 %v2108
    %v2239 = vunpack.c.l.b16 %v2109
    %v2240 = vunpack.c.l.b16 %v2110
    %v2241 = vunpack.c.l.b16 %v2111
    %v2242 = vunpack.c.l.b16 %v2112
    %v2243 = vunpack.c.l.b16 %v2113
    %v2244 = vunpack.c.l.b16 %v2114
    %v2245 = vunpack.c.l.b16 %v2115
    %v2246 = vunpack.c.l.b16 %v2116
    %v2247 = vunpack.c.l.b16 %v2117
    %v2248 = vunpack.c.l.b16 %v2118
    %v2249 = vunpack.c.l.b16 %v2119
    %v2250 = vunpack.c.l.b16 %v2120
    %v2251 = vunpack.c.l.b16 %v2121
    %v2252 = vunpack.c.l.b16 %v2122
    %v2253 = vunpack.c.l.b16 %v2123
    %v2254 = vunpack.c.l.b16 %v2124
    %v2255 = vunpack.c.l.b16 %v2125
    %v2256 = vunpack.c.l.b16 %v2126
    %v2257 = vunpack.c.l.b16 %v2127
    %v2258 = vunpack.c.l.b16 %v2128
    %v2259 = vunpack.c.l.b16 %v2129
    %v2260 = vunpack.c.l.b16 %v2130
    %v2261 = vunpack.c.l.b16 %v2131
    %v2262 = vunpack.c.l.b16 %v2132
    %v2263 = vunpack.c.l.b16 %v2133
    %v2264 = vunpack.c.l.b16 %v2134
    %v2265 = vunpack.c.l.b16 %v2135
    %v2266 = vunpack.c.l.b16 %v2136
    %v2267 = vunpack.c.l.b16 %v2137
    %v2268 = vunpack.c.l.b16 %v2138
    %v2269 = vunpack.c.l.b16 %v2139
    %v2270 = vunpack.c.l.b16 %v2140
    %v2271 = vunpack.c.l.b16 %v2141
    %v2272 = vunpack.c.l.b16 %v2142
    %v2273 = vunpack.c.l.b16 %v2143
    %v2274 = vunpack.c.l.b16 %v2144
    %v2275 = vunpack.c.l.b16 %v2145
    %v2276 = vunpack.c.l.b16 %v2146
    %v2277 = vunpack.c.l.b16 %v2147
    %v2278 = vunpack.c.l.b16 %v2148
    %v2279 = vunpack.c.l.b16 %v2149
    %v2280 = vunpack.c.l.b16 %v2150
    %v2281 = vunpack.c.l.b16 %v2151
    %v2282 = vunpack.c.l.b16 %v2152
    %v2283 = vunpack.c.l.b16 %v2153
    %v2284 = vunpack.c.l.b16 %v2154
    %v2285 = vunpack.c.l.b16 %v2155
    %v2286 = vunpack.c.l.b16 %v2156
    %v2287 = vunpack.c.l.b16 %v2157
    %v2288 = vunpack.c.l.b16 %v2158
    %v2289 = vunpack.c.l.b16 %v2159
    %v2290 = vunpack.c.l.b16 %v2160
    %v2291 = vunpack.c.l.b16 %v2161
    %v2292 = vunpack.c.l.b16 %v2162
    %v2293 = vunpack.c.l.b16 %v2163
    %v2294 = vunpack.c.l.b16 %v2164
    %v2295 = vunpack.c.l.b16 %v2165
    %v2296 = vunpack.c.l.b16 %v2166
    %v2297 = vunpack.c.l.b16 %v2167
    %v2298 = vunpack.c.l.b16 %v2168
    %v2299 = vpack.c.b16 %v2236, %v2235
    %v2300 = vpack.c.b16 %v2238, %v2237
    %v2301 = vpack.c.b16 %v2240, %v2239
    %v2302 = vpack.c.b16 %v2242, %v2241
    %v2303 = vpack.c.b16 %v2244, %v2243
    %v2304 = vpack.c.b16 %v2246, %v2245
    %v2305 = vpack.c.b16 %v2248, %v2247
    %v2306 = vpack.c.b16 %v2250, %v2249
    %v2307 = vpack.c.b16 %v2252, %v2251
    %v2308 = vpack.c.b16 %v2254, %v2253
    %v2309 = vpack.c.b16 %v2256, %v2255
    %v2310 = vpack.c.b16 %v2258, %v2257
    %v2311 = vpack.c.b16 %v2260, %v2259
    %v2312 = vpack.c.b16 %v2262, %v2261
    %v2313 = vpack.c.b16 %v2264, %v2263
    %v2314 = vpack.c.b16 %v2266, %v2265
    %v2315 = vpack.c.b16 %v2268, %v2267
    %v2316 = vpack.c.b16 %v2270, %v2269
    %v2317 = vpack.c.b16 %v2272, %v2271
    %v2318 = vpack.c.b16 %v2274, %v2273
    %v2319 = vpack.c.b16 %v2276, %v2275
    %v2320 = vpack.c.b16 %v2278, %v2277
    %v2321 = vpack.c.b16 %v2280, %v2279
    %v2322 = vpack.c.b16 %v2282, %v2281
    %v2323 = vpack.c.b16 %v2284, %v2283
    %v2324 = vpack.c.b16 %v2286, %v2285
    %v2325 = vpack.c.b16 %v2288, %v2287
    %v2326 = vpack.c.b16 %v2290, %v2289
    %v2327 = vpack.c.b16 %v2292, %v2291
    %v2328 = vpack.c.b16 %v2294, %v2293
    %v2329 = vpack.c.b16 %v2296, %v2295
    %v2330 = vpack.c.b16 %v2298, %v2297
    %v2333 = vunpack.c.l.b16 %v2169
    %v2334 = vunpack.c.l.b16 %v2170
    %v2335 = vpack.c.b16 %v2334, %v2333
    %vm2336 = vcmask 97280
    %v2338 = vsel %vm2336, %v2299, 0
    %v2341 = vsel %vm2336, %v2300, 0
    %v2344 = vsel %vm2336, %v2301, 0
    %v2347 = vsel %vm2336, %v2302, 0
    %v2350 = vsel %vm2336, %v2303, 0
    %v2353 = vsel %vm2336, %v2304, 0
    %v2356 = vsel %vm2336, %v2305, 0
    %v2359 = vsel %vm2336, %v2306, 0
    %v2362 = vsel %vm2336, %v2307, 0
    %v2365 = vsel %vm2336, %v2308, 0
    %v2368 = vsel %vm2336, %v2309, 0
    %v2371 = vsel %vm2336, %v2310, 0
    %v2374 = vsel %vm2336, %v2311, 0
    %v2377 = vsel %vm2336, %v2312, 0
    %v2380 = vsel %vm2336, %v2313, 0
    %v2383 = vsel %vm2336, %v2314, 0
    %v2386 = vsel %vm2336, %v2315, 0
    %v2389 = vsel %vm2336, %v2316, 0
    %v2392 = vsel %vm2336, %v2317, 0
    %v2395 = vsel %vm2336, %v2318, 0
    %v2398 = vsel %vm2336, %v2319, 0
    %v2401 = vsel %vm2336, %v2320, 0
    %v2404 = vsel %vm2336, %v2321, 0
    %v2407 = vsel %vm2336, %v2322, 0
    %v2410 = vsel %vm2336, %v2323, 0
    %v2413 = vsel %vm2336, %v2324, 0
    %v2416 = vsel %vm2336, %v2325, 0
    %v2419 = vsel %vm2336, %v2326, 0
    %v2422 = vsel %vm2336, %v2327, 0
    %v2425 = vsel %vm2336, %v2328, 0
    %v2428 = vsel %vm2336, %v2329, 0
    %v2431 = vsel %vm2336, %v2330, 0
    %vm2433 = vcmask 1045504
    %v2435 = vsel %vm2433, %v2335, 0
    %2437 = vmatprep.subr.bf16.mxu0 0
    %2438 = vmatpush1.bf16.msra.mxu0 0
    %2439 = vmatprep.subr.bf16.mxu0 0
    %2440 = vmatpush1.bf16.msra.mxu0 0
    %2441 = vmatprep.subr.bf16.mxu0 0
    %2442 = vmatpush1.bf16.msra.mxu0 0
    %2443 = vmatprep.subr.bf16.mxu0 0
    %2444 = vmatpush1.bf16.msra.mxu0 0
    %2445 = vmatprep.subr.bf16.mxu0 0
    %2446 = vmatpush1.bf16.msra.mxu0 0
    %2447 = vmatprep.subr.bf16.mxu0 0
    %2448 = vmatpush1.bf16.msra.mxu0 0
    %2449 = vmatprep.subr.bf16.mxu0 0
    %2450 = vmatpush1.bf16.msra.mxu0 0
    %2451 = vmatprep.subr.bf16.mxu0 0
    %2452 = vmatpush1.bf16.msra.mxu0 %v2435
    %2453 = vmatprep.subr.bf16.mxu0 0
    %2454 = vmatpush2.bf16.msra.mxu0 0
    %2455 = vmatprep.subr.bf16.mxu0 0
    %2456 = vmatpush2.bf16.msra.mxu0 0
    %2457 = vmatprep.subr.bf16.mxu0 0
    %2458 = vmatpush2.bf16.msra.mxu0 0
    %2459 = vmatprep.subr.bf16.mxu0 0
    %2460 = vmatpush2.bf16.msra.mxu0 0
    %2461 = vmatprep.subr.bf16.mxu0 0
    %2462 = vmatpush2.bf16.msra.mxu0 0
    %2463 = vmatprep.subr.bf16.mxu0 0
    %2464 = vmatpush2.bf16.msra.mxu0 0
    %2465 = vmatprep.subr.bf16.mxu0 0
    %2466 = vmatpush2.bf16.msra.mxu0 0
    %2467 = vmatprep.subr.bf16.mxu0 0
    %2468 = vmatpush2.bf16.msra.mxu0 0
    %2469 = vmatprep.mubr.bf16.mxu0 0
    %2470 = vmatmul.mubr.bf16.gmra.mxu0 %v2338
    %v2471 = vpop.f32.mrf.mxu0
    %v2472 = vadd.f32 0.0, %v2471
    %v2473 = vpop.f32.mrf.mxu0
    %v2474 = vpop.f32.mrf.mxu0
    %v2475 = vadd.f32 0.0, %v2474
    %v2476 = vpop.f32.mrf.mxu0
    %2477 = vmatprep.mubr.bf16.mxu0 0
    %2478 = vmatmul.mubr.bf16.gmra.mxu0 %v2341
    %v2479 = vpop.f32.mrf.mxu0
    %v2480 = vadd.f32 0.0, %v2479
    %v2481 = vpop.f32.mrf.mxu0
    %v2482 = vpop.f32.mrf.mxu0
    %v2483 = vadd.f32 0.0, %v2482
    %v2484 = vpop.f32.mrf.mxu0
    %2485 = vmatprep.mubr.bf16.mxu0 0
    %2486 = vmatmul.mubr.bf16.gmra.mxu0 %v2344
    %v2487 = vpop.f32.mrf.mxu0
    %v2488 = vadd.f32 0.0, %v2487
    %v2489 = vpop.f32.mrf.mxu0
    %v2490 = vpop.f32.mrf.mxu0
    %v2491 = vadd.f32 0.0, %v2490
    %v2492 = vpop.f32.mrf.mxu0
    %2493 = vmatprep.mubr.bf16.mxu0 0
    %2494 = vmatmul.mubr.bf16.gmra.mxu0 %v2347
    %v2495 = vpop.f32.mrf.mxu0
    %v2496 = vadd.f32 0.0, %v2495
    %v2497 = vpop.f32.mrf.mxu0
    %v2498 = vpop.f32.mrf.mxu0
    %v2499 = vadd.f32 0.0, %v2498
    %v2500 = vpop.f32.mrf.mxu0
    %2501 = vmatprep.mubr.bf16.mxu0 0
    %2502 = vmatmul.mubr.bf16.gmra.mxu0 %v2350
    %v2503 = vpop.f32.mrf.mxu0
    %v2504 = vadd.f32 0.0, %v2503
    %v2505 = vpop.f32.mrf.mxu0
    %v2506 = vpop.f32.mrf.mxu0
    %v2507 = vadd.f32 0.0, %v2506
    %v2508 = vpop.f32.mrf.mxu0
    %2509 = vmatprep.mubr.bf16.mxu0 0
    %2510 = vmatmul.mubr.bf16.gmra.mxu0 %v2353
    %v2511 = vpop.f32.mrf.mxu0
    %v2512 = vadd.f32 0.0, %v2511
    %v2513 = vpop.f32.mrf.mxu0
    %v2514 = vpop.f32.mrf.mxu0
    %v2515 = vadd.f32 0.0, %v2514
    %v2516 = vpop.f32.mrf.mxu0
    %2517 = vmatprep.mubr.bf16.mxu0 0
    %2518 = vmatmul.mubr.bf16.gmra.mxu0 %v2356
    %v2519 = vpop.f32.mrf.mxu0
    %v2520 = vadd.f32 0.0, %v2519
    %v2521 = vpop.f32.mrf.mxu0
    %v2522 = vpop.f32.mrf.mxu0
    %v2523 = vadd.f32 0.0, %v2522
    %v2524 = vpop.f32.mrf.mxu0
    %2525 = vmatprep.mubr.bf16.mxu0 0
    %2526 = vmatmul.mubr.bf16.gmra.mxu0 %v2359
    %v2527 = vpop.f32.mrf.mxu0
    %v2528 = vadd.f32 0.0, %v2527
    %v2529 = vpop.f32.mrf.mxu0
    %v2530 = vpop.f32.mrf.mxu0
    %v2531 = vadd.f32 0.0, %v2530
    %v2532 = vpop.f32.mrf.mxu0
    %2533 = vmatprep.mubr.bf16.mxu0 0
    %2534 = vmatmul.mubr.bf16.gmra.mxu0 %v2362
    %v2535 = vpop.f32.mrf.mxu0
    %v2536 = vadd.f32 0.0, %v2535
    %v2537 = vpop.f32.mrf.mxu0
    %v2538 = vpop.f32.mrf.mxu0
    %v2539 = vadd.f32 0.0, %v2538
    %v2540 = vpop.f32.mrf.mxu0
    %2541 = vmatprep.mubr.bf16.mxu0 0
    %2542 = vmatmul.mubr.bf16.gmra.mxu0 %v2365
    %v2543 = vpop.f32.mrf.mxu0
    %v2544 = vadd.f32 0.0, %v2543
    %v2545 = vpop.f32.mrf.mxu0
    %v2546 = vpop.f32.mrf.mxu0
    %v2547 = vadd.f32 0.0, %v2546
    %v2548 = vpop.f32.mrf.mxu0
    %2549 = vmatprep.mubr.bf16.mxu0 0
    %2550 = vmatmul.mubr.bf16.gmra.mxu0 %v2368
    %v2551 = vpop.f32.mrf.mxu0
    %v2552 = vadd.f32 0.0, %v2551
    %v2553 = vpop.f32.mrf.mxu0
    %v2554 = vpop.f32.mrf.mxu0
    %v2555 = vadd.f32 0.0, %v2554
    %v2556 = vpop.f32.mrf.mxu0
    %2557 = vmatprep.mubr.bf16.mxu0 0
    %2558 = vmatmul.mubr.bf16.gmra.mxu0 %v2371
    %v2559 = vpop.f32.mrf.mxu0
    %v2560 = vadd.f32 0.0, %v2559
    %v2561 = vpop.f32.mrf.mxu0
    %v2562 = vpop.f32.mrf.mxu0
    %v2563 = vadd.f32 0.0, %v2562
    %v2564 = vpop.f32.mrf.mxu0
    %2565 = vmatprep.mubr.bf16.mxu0 0
    %2566 = vmatmul.mubr.bf16.gmra.mxu0 %v2374
    %v2567 = vpop.f32.mrf.mxu0
    %v2568 = vadd.f32 0.0, %v2567
    %v2569 = vpop.f32.mrf.mxu0
    %v2570 = vpop.f32.mrf.mxu0
    %v2571 = vadd.f32 0.0, %v2570
    %v2572 = vpop.f32.mrf.mxu0
    %2573 = vmatprep.mubr.bf16.mxu0 0
    %2574 = vmatmul.mubr.bf16.gmra.mxu0 %v2377
    %v2575 = vpop.f32.mrf.mxu0
    %v2576 = vadd.f32 0.0, %v2575
    %v2577 = vpop.f32.mrf.mxu0
    %v2578 = vpop.f32.mrf.mxu0
    %v2579 = vadd.f32 0.0, %v2578
    %v2580 = vpop.f32.mrf.mxu0
    %2581 = vmatprep.mubr.bf16.mxu0 0
    %2582 = vmatmul.mubr.bf16.gmra.mxu0 %v2380
    %v2583 = vpop.f32.mrf.mxu0
    %v2584 = vadd.f32 0.0, %v2583
    %v2585 = vpop.f32.mrf.mxu0
    %v2586 = vpop.f32.mrf.mxu0
    %v2587 = vadd.f32 0.0, %v2586
    %v2588 = vpop.f32.mrf.mxu0
    %2589 = vmatprep.mubr.bf16.mxu0 0
    %2590 = vmatmul.mubr.bf16.gmra.mxu0 %v2383
    %v2591 = vpop.f32.mrf.mxu0
    %v2592 = vadd.f32 0.0, %v2591
    %v2593 = vpop.f32.mrf.mxu0
    %v2594 = vpop.f32.mrf.mxu0
    %v2595 = vadd.f32 0.0, %v2594
    %v2596 = vpop.f32.mrf.mxu0
    %2597 = vmatprep.mubr.bf16.mxu0 0
    %2598 = vmatmul.mubr.bf16.gmra.mxu0 %v2386
    %v2599 = vpop.f32.mrf.mxu0
    %v2600 = vadd.f32 0.0, %v2599
    %v2601 = vpop.f32.mrf.mxu0
    %v2602 = vpop.f32.mrf.mxu0
    %v2603 = vadd.f32 0.0, %v2602
    %v2604 = vpop.f32.mrf.mxu0
    %2605 = vmatprep.mubr.bf16.mxu0 0
    %2606 = vmatmul.mubr.bf16.gmra.mxu0 %v2389
    %v2607 = vpop.f32.mrf.mxu0
    %v2608 = vadd.f32 0.0, %v2607
    %v2609 = vpop.f32.mrf.mxu0
    %v2610 = vpop.f32.mrf.mxu0
    %v2611 = vadd.f32 0.0, %v2610
    %v2612 = vpop.f32.mrf.mxu0
    %2613 = vmatprep.mubr.bf16.mxu0 0
    %2614 = vmatmul.mubr.bf16.gmra.mxu0 %v2392
    %v2615 = vpop.f32.mrf.mxu0
    %v2616 = vadd.f32 0.0, %v2615
    %v2617 = vpop.f32.mrf.mxu0
    %v2618 = vpop.f32.mrf.mxu0
    %v2619 = vadd.f32 0.0, %v2618
    %v2620 = vpop.f32.mrf.mxu0
    %2621 = vmatprep.mubr.bf16.mxu0 0
    %2622 = vmatmul.mubr.bf16.gmra.mxu0 %v2395
    %v2623 = vpop.f32.mrf.mxu0
    %v2624 = vadd.f32 0.0, %v2623
    %v2625 = vpop.f32.mrf.mxu0
    %v2626 = vpop.f32.mrf.mxu0
    %v2627 = vadd.f32 0.0, %v2626
    %v2628 = vpop.f32.mrf.mxu0
    %2629 = vmatprep.mubr.bf16.mxu0 0
    %2630 = vmatmul.mubr.bf16.gmra.mxu0 %v2398
    %v2631 = vpop.f32.mrf.mxu0
    %v2632 = vadd.f32 0.0, %v2631
    %v2633 = vpop.f32.mrf.mxu0
    %v2634 = vpop.f32.mrf.mxu0
    %v2635 = vadd.f32 0.0, %v2634
    %v2636 = vpop.f32.mrf.mxu0
    %2637 = vmatprep.mubr.bf16.mxu0 0
    %2638 = vmatmul.mubr.bf16.gmra.mxu0 %v2401
    %v2639 = vpop.f32.mrf.mxu0
    %v2640 = vadd.f32 0.0, %v2639
    %v2641 = vpop.f32.mrf.mxu0
    %v2642 = vpop.f32.mrf.mxu0
    %v2643 = vadd.f32 0.0, %v2642
    %v2644 = vpop.f32.mrf.mxu0
    %2645 = vmatprep.mubr.bf16.mxu0 0
    %2646 = vmatmul.mubr.bf16.gmra.mxu0 %v2404
    %v2647 = vpop.f32.mrf.mxu0
    %v2648 = vadd.f32 0.0, %v2647
    %v2649 = vpop.f32.mrf.mxu0
    %v2650 = vpop.f32.mrf.mxu0
    %v2651 = vadd.f32 0.0, %v2650
    %v2652 = vpop.f32.mrf.mxu0
    %2653 = vmatprep.mubr.bf16.mxu0 0
    %2654 = vmatmul.mubr.bf16.gmra.mxu0 %v2407
    %v2655 = vpop.f32.mrf.mxu0
    %v2656 = vadd.f32 0.0, %v2655
    %v2657 = vpop.f32.mrf.mxu0
    %v2658 = vpop.f32.mrf.mxu0
    %v2659 = vadd.f32 0.0, %v2658
    %v2660 = vpop.f32.mrf.mxu0
    %2661 = vmatprep.mubr.bf16.mxu0 0
    %2662 = vmatmul.mubr.bf16.gmra.mxu0 %v2410
    %v2663 = vpop.f32.mrf.mxu0
    %v2664 = vadd.f32 0.0, %v2663
    %v2665 = vpop.f32.mrf.mxu0
    %v2666 = vpop.f32.mrf.mxu0
    %v2667 = vadd.f32 0.0, %v2666
    %v2668 = vpop.f32.mrf.mxu0
    %2669 = vmatprep.mubr.bf16.mxu0 0
    %2670 = vmatmul.mubr.bf16.gmra.mxu0 %v2413
    %v2671 = vpop.f32.mrf.mxu0
    %v2672 = vadd.f32 0.0, %v2671
    %v2673 = vpop.f32.mrf.mxu0
    %v2674 = vpop.f32.mrf.mxu0
    %v2675 = vadd.f32 0.0, %v2674
    %v2676 = vpop.f32.mrf.mxu0
    %2677 = vmatprep.mubr.bf16.mxu0 0
    %2678 = vmatmul.mubr.bf16.gmra.mxu0 %v2416
    %v2679 = vpop.f32.mrf.mxu0
    %v2680 = vadd.f32 0.0, %v2679
    %v2681 = vpop.f32.mrf.mxu0
    %v2682 = vpop.f32.mrf.mxu0
    %v2683 = vadd.f32 0.0, %v2682
    %v2684 = vpop.f32.mrf.mxu0
    %2685 = vmatprep.mubr.bf16.mxu0 0
    %2686 = vmatmul.mubr.bf16.gmra.mxu0 %v2419
    %v2687 = vpop.f32.mrf.mxu0
    %v2688 = vadd.f32 0.0, %v2687
    %v2689 = vpop.f32.mrf.mxu0
    %v2690 = vpop.f32.mrf.mxu0
    %v2691 = vadd.f32 0.0, %v2690
    %v2692 = vpop.f32.mrf.mxu0
    %2693 = vmatprep.mubr.bf16.mxu0 0
    %2694 = vmatmul.mubr.bf16.gmra.mxu0 %v2422
    %v2695 = vpop.f32.mrf.mxu0
    %v2696 = vadd.f32 0.0, %v2695
    %v2697 = vpop.f32.mrf.mxu0
    %v2698 = vpop.f32.mrf.mxu0
    %v2699 = vadd.f32 0.0, %v2698
    %v2700 = vpop.f32.mrf.mxu0
    %2701 = vmatprep.mubr.bf16.mxu0 0
    %2702 = vmatmul.mubr.bf16.gmra.mxu0 %v2425
    %v2703 = vpop.f32.mrf.mxu0
    %v2704 = vadd.f32 0.0, %v2703
    %v2705 = vpop.f32.mrf.mxu0
    %v2706 = vpop.f32.mrf.mxu0
    %v2707 = vadd.f32 0.0, %v2706
    %v2708 = vpop.f32.mrf.mxu0
    %2709 = vmatprep.mubr.bf16.mxu0 0
    %2710 = vmatmul.mubr.bf16.gmra.mxu0 %v2428
    %v2711 = vpop.f32.mrf.mxu0
    %v2712 = vadd.f32 0.0, %v2711
    %v2713 = vpop.f32.mrf.mxu0
    %v2714 = vpop.f32.mrf.mxu0
    %v2715 = vadd.f32 0.0, %v2714
    %v2716 = vpop.f32.mrf.mxu0
    %2717 = vmatprep.mubr.bf16.mxu0 0
    %2718 = vmatmul.mubr.bf16.gmra.mxu0 %v2431
    %v2719 = vpop.f32.mrf.mxu0
    %v2720 = vadd.f32 0.0, %v2719
    %v2721 = vpop.f32.mrf.mxu0
    %v2722 = vpop.f32.mrf.mxu0
    %v2723 = vadd.f32 0.0, %v2722
    %v2724 = vpop.f32.mrf.mxu0
    %2725 = vdwg.mxu0
    %2726 = vst.msk [vmem:[#allocation3] sm:$0xff] %vm1644, %v2472
    %2727 = vst.msk [vmem:[#allocation3 + $0x8] sm:$0xff] %vm1644, %v2475
    %2728 = vst.msk [vmem:[#allocation3 + $0x10] sm:$0xff] %vm1644, %v2480
    %2729 = vst.msk [vmem:[#allocation3 + $0x18] sm:$0xff] %vm1644, %v2483
    %2730 = vst.msk [vmem:[#allocation3 + $0x20] sm:$0xff] %vm1644, %v2488
    %2731 = vst.msk [vmem:[#allocation3 + $0x28] sm:$0xff] %vm1644, %v2491
    %2732 = vst.msk [vmem:[#allocation3 + $0x30] sm:$0xff] %vm1644, %v2496
    %2733 = vst.msk [vmem:[#allocation3 + $0x38] sm:$0xff] %vm1644, %v2499
    %2734 = vst.msk [vmem:[#allocation3 + $0x40] sm:$0xff] %vm1644, %v2504
    %2735 = vst.msk [vmem:[#allocation3 + $0x48] sm:$0xff] %vm1644, %v2507
    %2736 = vst.msk [vmem:[#allocation3 + $0x50] sm:$0xff] %vm1644, %v2512
    %2737 = vst.msk [vmem:[#allocation3 + $0x58] sm:$0xff] %vm1644, %v2515
    %2738 = vst.msk [vmem:[#allocation3 + $0x60] sm:$0xff] %vm1644, %v2520
    %2739 = vst.msk [vmem:[#allocation3 + $0x68] sm:$0xff] %vm1644, %v2523
    %2740 = vst.msk [vmem:[#allocation3 + $0x70] sm:$0xff] %vm1644, %v2528
    %2741 = vst.msk [vmem:[#allocation3 + $0x78] sm:$0xff] %vm1644, %v2531
    %2742 = vst.msk [vmem:[#allocation3 + $0x80] sm:$0xff] %vm1644, %v2536
    %2743 = vst.msk [vmem:[#allocation3 + $0x88] sm:$0xff] %vm1644, %v2539
    %2744 = vst.msk [vmem:[#allocation3 + $0x90] sm:$0xff] %vm1644, %v2544
    %2745 = vst.msk [vmem:[#allocation3 + $0x98] sm:$0xff] %vm1644, %v2547
    %2746 = vst.msk [vmem:[#allocation3 + $0xa0] sm:$0xff] %vm1644, %v2552
    %2747 = vst.msk [vmem:[#allocation3 + $0xa8] sm:$0xff] %vm1644, %v2555
    %2748 = vst.msk [vmem:[#allocation3 + $0xb0] sm:$0xff] %vm1644, %v2560
    %2749 = vst.msk [vmem:[#allocation3 + $0xb8] sm:$0xff] %vm1644, %v2563
    %2750 = vst.msk [vmem:[#allocation3 + $0xc0] sm:$0xff] %vm1644, %v2568
    %2751 = vst.msk [vmem:[#allocation3 + $0xc8] sm:$0xff] %vm1644, %v2571
    %2752 = vst.msk [vmem:[#allocation3 + $0xd0] sm:$0xff] %vm1644, %v2576
    %2753 = vst.msk [vmem:[#allocation3 + $0xd8] sm:$0xff] %vm1644, %v2579
    %2754 = vst.msk [vmem:[#allocation3 + $0xe0] sm:$0xff] %vm1644, %v2584
    %2755 = vst.msk [vmem:[#allocation3 + $0xe8] sm:$0xff] %vm1644, %v2587
    %2756 = vst.msk [vmem:[#allocation3 + $0xf0] sm:$0xff] %vm1644, %v2592
    %2757 = vst.msk [vmem:[#allocation3 + $0xf8] sm:$0xff] %vm1644, %v2595
    %2758 = vst.msk [vmem:[#allocation3 + $0x100] sm:$0xff] %vm1644, %v2600
    %2759 = vst.msk [vmem:[#allocation3 + $0x108] sm:$0xff] %vm1644, %v2603
    %2760 = vst.msk [vmem:[#allocation3 + $0x110] sm:$0xff] %vm1644, %v2608
    %2761 = vst.msk [vmem:[#allocation3 + $0x118] sm:$0xff] %vm1644, %v2611
    %2762 = vst.msk [vmem:[#allocation3 + $0x120] sm:$0xff] %vm1644, %v2616
    %2763 = vst.msk [vmem:[#allocation3 + $0x128] sm:$0xff] %vm1644, %v2619
    %2764 = vst.msk [vmem:[#allocation3 + $0x130] sm:$0xff] %vm1644, %v2624
    %2765 = vst.msk [vmem:[#allocation3 + $0x138] sm:$0xff] %vm1644, %v2627
    %2766 = vst.msk [vmem:[#allocation3 + $0x140] sm:$0xff] %vm1644, %v2632
    %2767 = vst.msk [vmem:[#allocation3 + $0x148] sm:$0xff] %vm1644, %v2635
    %2768 = vst.msk [vmem:[#allocation3 + $0x150] sm:$0xff] %vm1644, %v2640
    %2769 = vst.msk [vmem:[#allocation3 + $0x158] sm:$0xff] %vm1644, %v2643
    %2770 = vst.msk [vmem:[#allocation3 + $0x160] sm:$0xff] %vm1644, %v2648
    %2771 = vst.msk [vmem:[#allocation3 + $0x168] sm:$0xff] %vm1644, %v2651
    %2772 = vst.msk [vmem:[#allocation3 + $0x170] sm:$0xff] %vm1644, %v2656
    %2773 = vst.msk [vmem:[#allocation3 + $0x178] sm:$0xff] %vm1644, %v2659
    %2774 = vst.msk [vmem:[#allocation3 + $0x180] sm:$0xff] %vm1644, %v2664
    %2775 = vst.msk [vmem:[#allocation3 + $0x188] sm:$0xff] %vm1644, %v2667
    %2776 = vst.msk [vmem:[#allocation3 + $0x190] sm:$0xff] %vm1644, %v2672
    %2777 = vst.msk [vmem:[#allocation3 + $0x198] sm:$0xff] %vm1644, %v2675
    %2778 = vst.msk [vmem:[#allocation3 + $0x1a0] sm:$0xff] %vm1644, %v2680
    %2779 = vst.msk [vmem:[#allocation3 + $0x1a8] sm:$0xff] %vm1644, %v2683
    %2780 = vst.msk [vmem:[#allocation3 + $0x1b0] sm:$0xff] %vm1644, %v2688
    %2781 = vst.msk [vmem:[#allocation3 + $0x1b8] sm:$0xff] %vm1644, %v2691
    %2782 = vst.msk [vmem:[#allocation3 + $0x1c0] sm:$0xff] %vm1644, %v2696
    %2783 = vst.msk [vmem:[#allocation3 + $0x1c8] sm:$0xff] %vm1644, %v2699
    %2784 = vst.msk [vmem:[#allocation3 + $0x1d0] sm:$0xff] %vm1644, %v2704
    %2785 = vst.msk [vmem:[#allocation3 + $0x1d8] sm:$0xff] %vm1644, %v2707
    %2786 = vst.msk [vmem:[#allocation3 + $0x1e0] sm:$0xff] %vm1644, %v2712
    %2787 = vst.msk [vmem:[#allocation3 + $0x1e8] sm:$0xff] %vm1644, %v2715
    %2788 = vst.msk [vmem:[#allocation3 + $0x1f0] sm:$0xff] %vm1644, %v2720
    %2789 = vst.msk [vmem:[#allocation3 + $0x1f8] sm:$0xff] %vm1644, %v2723
    %v2790 = vld [vmem:[#allocation3] sm:$0xff]
    %v2791 = vld [vmem:[#allocation3 + $0x8] sm:$0xff]
    %v2792 = vld [vmem:[#allocation3 + $0x10] sm:$0xff]
    %v2793 = vld [vmem:[#allocation3 + $0x18] sm:$0xff]
    %v2794 = vld [vmem:[#allocation3 + $0x20] sm:$0xff]
    %v2795 = vld [vmem:[#allocation3 + $0x28] sm:$0xff]
    %v2796 = vld [vmem:[#allocation3 + $0x30] sm:$0xff]
    %v2797 = vld [vmem:[#allocation3 + $0x38] sm:$0xff]
    %v2798 = vld [vmem:[#allocation3 + $0x40] sm:$0xff]
    %v2799 = vld [vmem:[#allocation3 + $0x48] sm:$0xff]
    %v2800 = vld [vmem:[#allocation3 + $0x50] sm:$0xff]
    %v2801 = vld [vmem:[#allocation3 + $0x58] sm:$0xff]
    %v2802 = vld [vmem:[#allocation3 + $0x60] sm:$0xff]
    %v2803 = vld [vmem:[#allocation3 + $0x68] sm:$0xff]
    %v2804 = vld [vmem:[#allocation3 + $0x70] sm:$0xff]
    %v2805 = vld [vmem:[#allocation3 + $0x78] sm:$0xff]
    %v2806 = vld [vmem:[#allocation3 + $0x80] sm:$0xff]
    %v2807 = vld [vmem:[#allocation3 + $0x88] sm:$0xff]
    %v2808 = vld [vmem:[#allocation3 + $0x90] sm:$0xff]
    %v2809 = vld [vmem:[#allocation3 + $0x98] sm:$0xff]
    %v2810 = vld [vmem:[#allocation3 + $0xa0] sm:$0xff]
    %v2811 = vld [vmem:[#allocation3 + $0xa8] sm:$0xff]
    %v2812 = vld [vmem:[#allocation3 + $0xb0] sm:$0xff]
    %v2813 = vld [vmem:[#allocation3 + $0xb8] sm:$0xff]
    %v2814 = vld [vmem:[#allocation3 + $0xc0] sm:$0xff]
    %v2815 = vld [vmem:[#allocation3 + $0xc8] sm:$0xff]
    %v2816 = vld [vmem:[#allocation3 + $0xd0] sm:$0xff]
    %v2817 = vld [vmem:[#allocation3 + $0xd8] sm:$0xff]
    %v2818 = vld [vmem:[#allocation3 + $0xe0] sm:$0xff]
    %v2819 = vld [vmem:[#allocation3 + $0xe8] sm:$0xff]
    %v2820 = vld [vmem:[#allocation3 + $0xf0] sm:$0xff]
    %v2821 = vld [vmem:[#allocation3 + $0xf8] sm:$0xff]
    %v2822 = vld [vmem:[#allocation3 + $0x100] sm:$0xff]
    %v2823 = vld [vmem:[#allocation3 + $0x108] sm:$0xff]
    %v2824 = vld [vmem:[#allocation3 + $0x110] sm:$0xff]
    %v2825 = vld [vmem:[#allocation3 + $0x118] sm:$0xff]
    %v2826 = vld [vmem:[#allocation3 + $0x120] sm:$0xff]
    %v2827 = vld [vmem:[#allocation3 + $0x128] sm:$0xff]
    %v2828 = vld [vmem:[#allocation3 + $0x130] sm:$0xff]
    %v2829 = vld [vmem:[#allocation3 + $0x138] sm:$0xff]
    %v2830 = vld [vmem:[#allocation3 + $0x140] sm:$0xff]
    %v2831 = vld [vmem:[#allocation3 + $0x148] sm:$0xff]
    %v2832 = vld [vmem:[#allocation3 + $0x150] sm:$0xff]
    %v2833 = vld [vmem:[#allocation3 + $0x158] sm:$0xff]
    %v2834 = vld [vmem:[#allocation3 + $0x160] sm:$0xff]
    %v2835 = vld [vmem:[#allocation3 + $0x168] sm:$0xff]
    %v2836 = vld [vmem:[#allocation3 + $0x170] sm:$0xff]
    %v2837 = vld [vmem:[#allocation3 + $0x178] sm:$0xff]
    %v2838 = vld [vmem:[#allocation3 + $0x180] sm:$0xff]
    %v2839 = vld [vmem:[#allocation3 + $0x188] sm:$0xff]
    %v2840 = vld [vmem:[#allocation3 + $0x190] sm:$0xff]
    %v2841 = vld [vmem:[#allocation3 + $0x198] sm:$0xff]
    %v2842 = vld [vmem:[#allocation3 + $0x1a0] sm:$0xff]
    %v2843 = vld [vmem:[#allocation3 + $0x1a8] sm:$0xff]
    %v2844 = vld [vmem:[#allocation3 + $0x1b0] sm:$0xff]
    %v2845 = vld [vmem:[#allocation3 + $0x1b8] sm:$0xff]
    %v2846 = vld [vmem:[#allocation3 + $0x1c0] sm:$0xff]
    %v2847 = vld [vmem:[#allocation3 + $0x1c8] sm:$0xff]
    %v2848 = vld [vmem:[#allocation3 + $0x1d0] sm:$0xff]
    %v2849 = vld [vmem:[#allocation3 + $0x1d8] sm:$0xff]
    %v2850 = vld [vmem:[#allocation3 + $0x1e0] sm:$0xff]
    %v2851 = vld [vmem:[#allocation3 + $0x1e8] sm:$0xff]
    %v2852 = vld [vmem:[#allocation3 + $0x1f0] sm:$0xff]
    %v2853 = vld [vmem:[#allocation3 + $0x1f8] sm:$0xff]
    %v2854 = vld [vmem:[%s2040] sm:$0xf]
    %v2855 = vld [vmem:[%s2040 + $0x4] sm:$0xf]
    %v2856 = vld [vmem:[%s2040 + $0x8] sm:$0xf]
    %v2857 = vld [vmem:[%s2040 + $0xc] sm:$0xf]
    %v2858 = vld [vmem:[%s2040 + $0x10] sm:$0xf]
    %v2859 = vld [vmem:[%s2040 + $0x14] sm:$0xf]
    %v2860 = vld [vmem:[%s2040 + $0x18] sm:$0xf]
    %v2861 = vld [vmem:[%s2040 + $0x1c] sm:$0xf]
    %v2862 = vld [vmem:[%s2040 + $0x20] sm:$0xf]
    %v2863 = vld [vmem:[%s2040 + $0x24] sm:$0xf]
    %v2864 = vld [vmem:[%s2040 + $0x28] sm:$0xf]
    %v2865 = vld [vmem:[%s2040 + $0x2c] sm:$0xf]
    %v2866 = vld [vmem:[%s2040 + $0x30] sm:$0xf]
    %v2867 = vld [vmem:[%s2040 + $0x34] sm:$0xf]
    %v2868 = vld [vmem:[%s2040 + $0x38] sm:$0xf]
    %v2869 = vld [vmem:[%s2040 + $0x3c] sm:$0xf]
    %v2870 = vld [vmem:[%s2040 + $0x40] sm:$0xf]
    %v2871 = vld [vmem:[%s2040 + $0x44] sm:$0xf]
    %v2872 = vld [vmem:[%s2040 + $0x48] sm:$0xf]
    %v2873 = vld [vmem:[%s2040 + $0x4c] sm:$0xf]
    %v2874 = vld [vmem:[%s2040 + $0x50] sm:$0xf]
    %v2875 = vld [vmem:[%s2040 + $0x54] sm:$0xf]
    %v2876 = vld [vmem:[%s2040 + $0x58] sm:$0xf]
    %v2877 = vld [vmem:[%s2040 + $0x5c] sm:$0xf]
    %v2878 = vld [vmem:[%s2040 + $0x60] sm:$0xf]
    %v2879 = vld [vmem:[%s2040 + $0x64] sm:$0xf]
    %v2880 = vld [vmem:[%s2040 + $0x68] sm:$0xf]
    %v2881 = vld [vmem:[%s2040 + $0x6c] sm:$0xf]
    %v2882 = vld [vmem:[%s2040 + $0x70] sm:$0xf]
    %v2883 = vld [vmem:[%s2040 + $0x74] sm:$0xf]
    %v2884 = vld [vmem:[%s2040 + $0x78] sm:$0xf]
    %v2885 = vld [vmem:[%s2040 + $0x7c] sm:$0xf]
    %v2886 = vld [vmem:[%s2040 + $0x90] sm:$0xf]
    %v2887 = vld [vmem:[%s2040 + $0x94] sm:$0xf]
    %v2888 = vld [vmem:[%s2040 + $0x98] sm:$0xf]
    %v2889 = vld [vmem:[%s2040 + $0x9c] sm:$0xf]
    %v2890 = vld [vmem:[%s2040 + $0xa0] sm:$0xf]
    %v2891 = vld [vmem:[%s2040 + $0xa4] sm:$0xf]
    %v2892 = vld [vmem:[%s2040 + $0xa8] sm:$0xf]
    %v2893 = vld [vmem:[%s2040 + $0xac] sm:$0xf]
    %v2894 = vld [vmem:[%s2040 + $0xb0] sm:$0xf]
    %v2895 = vld [vmem:[%s2040 + $0xb4] sm:$0xf]
    %v2896 = vld [vmem:[%s2040 + $0xb8] sm:$0xf]
    %v2897 = vld [vmem:[%s2040 + $0xbc] sm:$0xf]
    %v2898 = vld [vmem:[%s2040 + $0xc0] sm:$0xf]
    %v2899 = vld [vmem:[%s2040 + $0xc4] sm:$0xf]
    %v2900 = vld [vmem:[%s2040 + $0xc8] sm:$0xf]
    %v2901 = vld [vmem:[%s2040 + $0xcc] sm:$0xf]
    %v2902 = vld [vmem:[%s2040 + $0xd0] sm:$0xf]
    %v2903 = vld [vmem:[%s2040 + $0xd4] sm:$0xf]
    %v2904 = vld [vmem:[%s2040 + $0xd8] sm:$0xf]
    %v2905 = vld [vmem:[%s2040 + $0xdc] sm:$0xf]
    %v2906 = vld [vmem:[%s2040 + $0xe0] sm:$0xf]
    %v2907 = vld [vmem:[%s2040 + $0xe4] sm:$0xf]
    %v2908 = vld [vmem:[%s2040 + $0xe8] sm:$0xf]
    %v2909 = vld [vmem:[%s2040 + $0xec] sm:$0xf]
    %v2910 = vld [vmem:[%s2040 + $0xf0] sm:$0xf]
    %v2911 = vld [vmem:[%s2040 + $0xf4] sm:$0xf]
    %v2912 = vld [vmem:[%s2040 + $0xf8] sm:$0xf]
    %v2913 = vld [vmem:[%s2040 + $0xfc] sm:$0xf]
    %v2914 = vld [vmem:[%s2040 + $0x100] sm:$0xf]
    %v2915 = vld [vmem:[%s2040 + $0x104] sm:$0xf]
    %v2916 = vld [vmem:[%s2040 + $0x108] sm:$0xf]
    %v2917 = vld [vmem:[%s2040 + $0x10c] sm:$0xf]
    %s2918 = scalar_lea.vmem %s3, 8
    %v2919 = vld [vmem:[%s2918] sm:$0xf]
    %v2920 = vld [vmem:[%s2918 + $0x4] sm:$0x3]
    %v2985 = vunpack.c.l.b16 %v2854
    %v2986 = vunpack.c.l.b16 %v2855
    %v2987 = vunpack.c.l.b16 %v2856
    %v2988 = vunpack.c.l.b16 %v2857
    %v2989 = vunpack.c.l.b16 %v2858
    %v2990 = vunpack.c.l.b16 %v2859
    %v2991 = vunpack.c.l.b16 %v2860
    %v2992 = vunpack.c.l.b16 %v2861
    %v2993 = vunpack.c.l.b16 %v2862
    %v2994 = vunpack.c.l.b16 %v2863
    %v2995 = vunpack.c.l.b16 %v2864
    %v2996 = vunpack.c.l.b16 %v2865
    %v2997 = vunpack.c.l.b16 %v2866
    %v2998 = vunpack.c.l.b16 %v2867
    %v2999 = vunpack.c.l.b16 %v2868
    %v3000 = vunpack.c.l.b16 %v2869
    %v3001 = vunpack.c.l.b16 %v2870
    %v3002 = vunpack.c.l.b16 %v2871
    %v3003 = vunpack.c.l.b16 %v2872
    %v3004 = vunpack.c.l.b16 %v2873
    %v3005 = vunpack.c.l.b16 %v2874
    %v3006 = vunpack.c.l.b16 %v2875
    %v3007 = vunpack.c.l.b16 %v2876
    %v3008 = vunpack.c.l.b16 %v2877
    %v3009 = vunpack.c.l.b16 %v2878
    %v3010 = vunpack.c.l.b16 %v2879
    %v3011 = vunpack.c.l.b16 %v2880
    %v3012 = vunpack.c.l.b16 %v2881
    %v3013 = vunpack.c.l.b16 %v2882
    %v3014 = vunpack.c.l.b16 %v2883
    %v3015 = vunpack.c.l.b16 %v2884
    %v3016 = vunpack.c.l.b16 %v2885
    %v3017 = vunpack.c.l.b16 %v2886
    %v3018 = vunpack.c.l.b16 %v2887
    %v3019 = vunpack.c.l.b16 %v2888
    %v3020 = vunpack.c.l.b16 %v2889
    %v3021 = vunpack.c.l.b16 %v2890
    %v3022 = vunpack.c.l.b16 %v2891
    %v3023 = vunpack.c.l.b16 %v2892
    %v3024 = vunpack.c.l.b16 %v2893
    %v3025 = vunpack.c.l.b16 %v2894
    %v3026 = vunpack.c.l.b16 %v2895
    %v3027 = vunpack.c.l.b16 %v2896
    %v3028 = vunpack.c.l.b16 %v2897
    %v3029 = vunpack.c.l.b16 %v2898
    %v3030 = vunpack.c.l.b16 %v2899
    %v3031 = vunpack.c.l.b16 %v2900
    %v3032 = vunpack.c.l.b16 %v2901
    %v3033 = vunpack.c.l.b16 %v2902
    %v3034 = vunpack.c.l.b16 %v2903
    %v3035 = vunpack.c.l.b16 %v2904
    %v3036 = vunpack.c.l.b16 %v2905
    %v3037 = vunpack.c.l.b16 %v2906
    %v3038 = vunpack.c.l.b16 %v2907
    %v3039 = vunpack.c.l.b16 %v2908
    %v3040 = vunpack.c.l.b16 %v2909
    %v3041 = vunpack.c.l.b16 %v2910
    %v3042 = vunpack.c.l.b16 %v2911
    %v3043 = vunpack.c.l.b16 %v2912
    %v3044 = vunpack.c.l.b16 %v2913
    %v3045 = vunpack.c.l.b16 %v2914
    %v3046 = vunpack.c.l.b16 %v2915
    %v3047 = vunpack.c.l.b16 %v2916
    %v3048 = vunpack.c.l.b16 %v2917
    %v3049 = vpack.c.b16 %v2986, %v2985
    %v3050 = vpack.c.b16 %v2988, %v2987
    %v3051 = vpack.c.b16 %v2990, %v2989
    %v3052 = vpack.c.b16 %v2992, %v2991
    %v3053 = vpack.c.b16 %v2994, %v2993
    %v3054 = vpack.c.b16 %v2996, %v2995
    %v3055 = vpack.c.b16 %v2998, %v2997
    %v3056 = vpack.c.b16 %v3000, %v2999
    %v3057 = vpack.c.b16 %v3002, %v3001
    %v3058 = vpack.c.b16 %v3004, %v3003
    %v3059 = vpack.c.b16 %v3006, %v3005
    %v3060 = vpack.c.b16 %v3008, %v3007
    %v3061 = vpack.c.b16 %v3010, %v3009
    %v3062 = vpack.c.b16 %v3012, %v3011
    %v3063 = vpack.c.b16 %v3014, %v3013
    %v3064 = vpack.c.b16 %v3016, %v3015
    %v3065 = vpack.c.b16 %v3018, %v3017
    %v3066 = vpack.c.b16 %v3020, %v3019
    %v3067 = vpack.c.b16 %v3022, %v3021
    %v3068 = vpack.c.b16 %v3024, %v3023
    %v3069 = vpack.c.b16 %v3026, %v3025
    %v3070 = vpack.c.b16 %v3028, %v3027
    %v3071 = vpack.c.b16 %v3030, %v3029
    %v3072 = vpack.c.b16 %v3032, %v3031
    %v3073 = vpack.c.b16 %v3034, %v3033
    %v3074 = vpack.c.b16 %v3036, %v3035
    %v3075 = vpack.c.b16 %v3038, %v3037
    %v3076 = vpack.c.b16 %v3040, %v3039
    %v3077 = vpack.c.b16 %v3042, %v3041
    %v3078 = vpack.c.b16 %v3044, %v3043
    %v3079 = vpack.c.b16 %v3046, %v3045
    %v3080 = vpack.c.b16 %v3048, %v3047
    %v3083 = vunpack.c.l.b16 %v2919
    %v3084 = vunpack.c.l.b16 %v2920
    %v3085 = vpack.c.b16 %v3084, %v3083
    %v3087 = vsel %vm2336, %v3049, 0
    %v3090 = vsel %vm2336, %v3050, 0
    %v3093 = vsel %vm2336, %v3051, 0
    %v3096 = vsel %vm2336, %v3052, 0
    %v3099 = vsel %vm2336, %v3053, 0
    %v3102 = vsel %vm2336, %v3054, 0
    %v3105 = vsel %vm2336, %v3055, 0
    %v3108 = vsel %vm2336, %v3056, 0
    %v3111 = vsel %vm2336, %v3057, 0
    %v3114 = vsel %vm2336, %v3058, 0
    %v3117 = vsel %vm2336, %v3059, 0
    %v3120 = vsel %vm2336, %v3060, 0
    %v3123 = vsel %vm2336, %v3061, 0
    %v3126 = vsel %vm2336, %v3062, 0
    %v3129 = vsel %vm2336, %v3063, 0
    %v3132 = vsel %vm2336, %v3064, 0
    %v3135 = vsel %vm2336, %v3065, 0
    %v3138 = vsel %vm2336, %v3066, 0
    %v3141 = vsel %vm2336, %v3067, 0
    %v3144 = vsel %vm2336, %v3068, 0
    %v3147 = vsel %vm2336, %v3069, 0
    %v3150 = vsel %vm2336, %v3070, 0
    %v3153 = vsel %vm2336, %v3071, 0
    %v3156 = vsel %vm2336, %v3072, 0
    %v3159 = vsel %vm2336, %v3073, 0
    %v3162 = vsel %vm2336, %v3074, 0
    %v3165 = vsel %vm2336, %v3075, 0
    %v3168 = vsel %vm2336, %v3076, 0
    %v3171 = vsel %vm2336, %v3077, 0
    %v3174 = vsel %vm2336, %v3078, 0
    %v3177 = vsel %vm2336, %v3079, 0
    %v3180 = vsel %vm2336, %v3080, 0
    %v3183 = vsel %vm2433, %v3085, 0
    %3185 = vmatprep.subr.bf16.mxu0 0
    %3186 = vmatpush1.bf16.msra.mxu0 0
    %3187 = vmatprep.subr.bf16.mxu0 0
    %3188 = vmatpush1.bf16.msra.mxu0 0
    %3189 = vmatprep.subr.bf16.mxu0 0
    %3190 = vmatpush1.bf16.msra.mxu0 0
    %3191 = vmatprep.subr.bf16.mxu0 0
    %3192 = vmatpush1.bf16.msra.mxu0 0
    %3193 = vmatprep.subr.bf16.mxu0 0
    %3194 = vmatpush1.bf16.msra.mxu0 0
    %3195 = vmatprep.subr.bf16.mxu0 0
    %3196 = vmatpush1.bf16.msra.mxu0 0
    %3197 = vmatprep.subr.bf16.mxu0 0
    %3198 = vmatpush1.bf16.msra.mxu0 0
    %3199 = vmatprep.subr.bf16.mxu0 0
    %3200 = vmatpush1.bf16.msra.mxu0 %v3183
    %3201 = vmatprep.subr.bf16.mxu0 0
    %3202 = vmatpush2.bf16.msra.mxu0 0
    %3203 = vmatprep.subr.bf16.mxu0 0
    %3204 = vmatpush2.bf16.msra.mxu0 0
    %3205 = vmatprep.subr.bf16.mxu0 0
    %3206 = vmatpush2.bf16.msra.mxu0 0
    %3207 = vmatprep.subr.bf16.mxu0 0
    %3208 = vmatpush2.bf16.msra.mxu0 0
    %3209 = vmatprep.subr.bf16.mxu0 0
    %3210 = vmatpush2.bf16.msra.mxu0 0
    %3211 = vmatprep.subr.bf16.mxu0 0
    %3212 = vmatpush2.bf16.msra.mxu0 0
    %3213 = vmatprep.subr.bf16.mxu0 0
    %3214 = vmatpush2.bf16.msra.mxu0 0
    %3215 = vmatprep.subr.bf16.mxu0 0
    %3216 = vmatpush2.bf16.msra.mxu0 0
    %3217 = vmatprep.mubr.bf16.mxu0 0
    %3218 = vmatmul.mubr.bf16.gmra.mxu0 %v3087
    %v3219 = vpop.f32.mrf.mxu0
    %v3220 = vadd.f32 0.0, %v3219
    %v3221 = vpop.f32.mrf.mxu0
    %v3222 = vpop.f32.mrf.mxu0
    %v3223 = vadd.f32 0.0, %v3222
    %v3224 = vpop.f32.mrf.mxu0
    %3225 = vmatprep.mubr.bf16.mxu0 0
    %3226 = vmatmul.mubr.bf16.gmra.mxu0 %v3090
    %v3227 = vpop.f32.mrf.mxu0
    %v3228 = vadd.f32 0.0, %v3227
    %v3229 = vpop.f32.mrf.mxu0
    %v3230 = vpop.f32.mrf.mxu0
    %v3231 = vadd.f32 0.0, %v3230
    %v3232 = vpop.f32.mrf.mxu0
    %3233 = vmatprep.mubr.bf16.mxu0 0
    %3234 = vmatmul.mubr.bf16.gmra.mxu0 %v3093
    %v3235 = vpop.f32.mrf.mxu0
    %v3236 = vadd.f32 0.0, %v3235
    %v3237 = vpop.f32.mrf.mxu0
    %v3238 = vpop.f32.mrf.mxu0
    %v3239 = vadd.f32 0.0, %v3238
    %v3240 = vpop.f32.mrf.mxu0
    %3241 = vmatprep.mubr.bf16.mxu0 0
    %3242 = vmatmul.mubr.bf16.gmra.mxu0 %v3096
    %v3243 = vpop.f32.mrf.mxu0
    %v3244 = vadd.f32 0.0, %v3243
    %v3245 = vpop.f32.mrf.mxu0
    %v3246 = vpop.f32.mrf.mxu0
    %v3247 = vadd.f32 0.0, %v3246
    %v3248 = vpop.f32.mrf.mxu0
    %3249 = vmatprep.mubr.bf16.mxu0 0
    %3250 = vmatmul.mubr.bf16.gmra.mxu0 %v3099
    %v3251 = vpop.f32.mrf.mxu0
    %v3252 = vadd.f32 0.0, %v3251
    %v3253 = vpop.f32.mrf.mxu0
    %v3254 = vpop.f32.mrf.mxu0
    %v3255 = vadd.f32 0.0, %v3254
    %v3256 = vpop.f32.mrf.mxu0
    %3257 = vmatprep.mubr.bf16.mxu0 0
    %3258 = vmatmul.mubr.bf16.gmra.mxu0 %v3102
    %v3259 = vpop.f32.mrf.mxu0
    %v3260 = vadd.f32 0.0, %v3259
    %v3261 = vpop.f32.mrf.mxu0
    %v3262 = vpop.f32.mrf.mxu0
    %v3263 = vadd.f32 0.0, %v3262
    %v3264 = vpop.f32.mrf.mxu0
    %3265 = vmatprep.mubr.bf16.mxu0 0
    %3266 = vmatmul.mubr.bf16.gmra.mxu0 %v3105
    %v3267 = vpop.f32.mrf.mxu0
    %v3268 = vadd.f32 0.0, %v3267
    %v3269 = vpop.f32.mrf.mxu0
    %v3270 = vpop.f32.mrf.mxu0
    %v3271 = vadd.f32 0.0, %v3270
    %v3272 = vpop.f32.mrf.mxu0
    %3273 = vmatprep.mubr.bf16.mxu0 0
    %3274 = vmatmul.mubr.bf16.gmra.mxu0 %v3108
    %v3275 = vpop.f32.mrf.mxu0
    %v3276 = vadd.f32 0.0, %v3275
    %v3277 = vpop.f32.mrf.mxu0
    %v3278 = vpop.f32.mrf.mxu0
    %v3279 = vadd.f32 0.0, %v3278
    %v3280 = vpop.f32.mrf.mxu0
    %3281 = vmatprep.mubr.bf16.mxu0 0
    %3282 = vmatmul.mubr.bf16.gmra.mxu0 %v3111
    %v3283 = vpop.f32.mrf.mxu0
    %v3284 = vadd.f32 0.0, %v3283
    %v3285 = vpop.f32.mrf.mxu0
    %v3286 = vpop.f32.mrf.mxu0
    %v3287 = vadd.f32 0.0, %v3286
    %v3288 = vpop.f32.mrf.mxu0
    %3289 = vmatprep.mubr.bf16.mxu0 0
    %3290 = vmatmul.mubr.bf16.gmra.mxu0 %v3114
    %v3291 = vpop.f32.mrf.mxu0
    %v3292 = vadd.f32 0.0, %v3291
    %v3293 = vpop.f32.mrf.mxu0
    %v3294 = vpop.f32.mrf.mxu0
    %v3295 = vadd.f32 0.0, %v3294
    %v3296 = vpop.f32.mrf.mxu0
    %3297 = vmatprep.mubr.bf16.mxu0 0
    %3298 = vmatmul.mubr.bf16.gmra.mxu0 %v3117
    %v3299 = vpop.f32.mrf.mxu0
    %v3300 = vadd.f32 0.0, %v3299
    %v3301 = vpop.f32.mrf.mxu0
    %v3302 = vpop.f32.mrf.mxu0
    %v3303 = vadd.f32 0.0, %v3302
    %v3304 = vpop.f32.mrf.mxu0
    %3305 = vmatprep.mubr.bf16.mxu0 0
    %3306 = vmatmul.mubr.bf16.gmra.mxu0 %v3120
    %v3307 = vpop.f32.mrf.mxu0
    %v3308 = vadd.f32 0.0, %v3307
    %v3309 = vpop.f32.mrf.mxu0
    %v3310 = vpop.f32.mrf.mxu0
    %v3311 = vadd.f32 0.0, %v3310
    %v3312 = vpop.f32.mrf.mxu0
    %3313 = vmatprep.mubr.bf16.mxu0 0
    %3314 = vmatmul.mubr.bf16.gmra.mxu0 %v3123
    %v3315 = vpop.f32.mrf.mxu0
    %v3316 = vadd.f32 0.0, %v3315
    %v3317 = vpop.f32.mrf.mxu0
    %v3318 = vpop.f32.mrf.mxu0
    %v3319 = vadd.f32 0.0, %v3318
    %v3320 = vpop.f32.mrf.mxu0
    %3321 = vmatprep.mubr.bf16.mxu0 0
    %3322 = vmatmul.mubr.bf16.gmra.mxu0 %v3126
    %v3323 = vpop.f32.mrf.mxu0
    %v3324 = vadd.f32 0.0, %v3323
    %v3325 = vpop.f32.mrf.mxu0
    %v3326 = vpop.f32.mrf.mxu0
    %v3327 = vadd.f32 0.0, %v3326
    %v3328 = vpop.f32.mrf.mxu0
    %3329 = vmatprep.mubr.bf16.mxu0 0
    %3330 = vmatmul.mubr.bf16.gmra.mxu0 %v3129
    %v3331 = vpop.f32.mrf.mxu0
    %v3332 = vadd.f32 0.0, %v3331
    %v3333 = vpop.f32.mrf.mxu0
    %v3334 = vpop.f32.mrf.mxu0
    %v3335 = vadd.f32 0.0, %v3334
    %v3336 = vpop.f32.mrf.mxu0
    %3337 = vmatprep.mubr.bf16.mxu0 0
    %3338 = vmatmul.mubr.bf16.gmra.mxu0 %v3132
    %v3339 = vpop.f32.mrf.mxu0
    %v3340 = vadd.f32 0.0, %v3339
    %v3341 = vpop.f32.mrf.mxu0
    %v3342 = vpop.f32.mrf.mxu0
    %v3343 = vadd.f32 0.0, %v3342
    %v3344 = vpop.f32.mrf.mxu0
    %3345 = vmatprep.mubr.bf16.mxu0 0
    %3346 = vmatmul.mubr.bf16.gmra.mxu0 %v3135
    %v3347 = vpop.f32.mrf.mxu0
    %v3348 = vadd.f32 0.0, %v3347
    %v3349 = vpop.f32.mrf.mxu0
    %v3350 = vpop.f32.mrf.mxu0
    %v3351 = vadd.f32 0.0, %v3350
    %v3352 = vpop.f32.mrf.mxu0
    %3353 = vmatprep.mubr.bf16.mxu0 0
    %3354 = vmatmul.mubr.bf16.gmra.mxu0 %v3138
    %v3355 = vpop.f32.mrf.mxu0
    %v3356 = vadd.f32 0.0, %v3355
    %v3357 = vpop.f32.mrf.mxu0
    %v3358 = vpop.f32.mrf.mxu0
    %v3359 = vadd.f32 0.0, %v3358
    %v3360 = vpop.f32.mrf.mxu0
    %3361 = vmatprep.mubr.bf16.mxu0 0
    %3362 = vmatmul.mubr.bf16.gmra.mxu0 %v3141
    %v3363 = vpop.f32.mrf.mxu0
    %v3364 = vadd.f32 0.0, %v3363
    %v3365 = vpop.f32.mrf.mxu0
    %v3366 = vpop.f32.mrf.mxu0
    %v3367 = vadd.f32 0.0, %v3366
    %v3368 = vpop.f32.mrf.mxu0
    %3369 = vmatprep.mubr.bf16.mxu0 0
    %3370 = vmatmul.mubr.bf16.gmra.mxu0 %v3144
    %v3371 = vpop.f32.mrf.mxu0
    %v3372 = vadd.f32 0.0, %v3371
    %v3373 = vpop.f32.mrf.mxu0
    %v3374 = vpop.f32.mrf.mxu0
    %v3375 = vadd.f32 0.0, %v3374
    %v3376 = vpop.f32.mrf.mxu0
    %3377 = vmatprep.mubr.bf16.mxu0 0
    %3378 = vmatmul.mubr.bf16.gmra.mxu0 %v3147
    %v3379 = vpop.f32.mrf.mxu0
    %v3380 = vadd.f32 0.0, %v3379
    %v3381 = vpop.f32.mrf.mxu0
    %v3382 = vpop.f32.mrf.mxu0
    %v3383 = vadd.f32 0.0, %v3382
    %v3384 = vpop.f32.mrf.mxu0
    %3385 = vmatprep.mubr.bf16.mxu0 0
    %3386 = vmatmul.mubr.bf16.gmra.mxu0 %v3150
    %v3387 = vpop.f32.mrf.mxu0
    %v3388 = vadd.f32 0.0, %v3387
    %v3389 = vpop.f32.mrf.mxu0
    %v3390 = vpop.f32.mrf.mxu0
    %v3391 = vadd.f32 0.0, %v3390
    %v3392 = vpop.f32.mrf.mxu0
    %3393 = vmatprep.mubr.bf16.mxu0 0
    %3394 = vmatmul.mubr.bf16.gmra.mxu0 %v3153
    %v3395 = vpop.f32.mrf.mxu0
    %v3396 = vadd.f32 0.0, %v3395
    %v3397 = vpop.f32.mrf.mxu0
    %v3398 = vpop.f32.mrf.mxu0
    %v3399 = vadd.f32 0.0, %v3398
    %v3400 = vpop.f32.mrf.mxu0
    %3401 = vmatprep.mubr.bf16.mxu0 0
    %3402 = vmatmul.mubr.bf16.gmra.mxu0 %v3156
    %v3403 = vpop.f32.mrf.mxu0
    %v3404 = vadd.f32 0.0, %v3403
    %v3405 = vpop.f32.mrf.mxu0
    %v3406 = vpop.f32.mrf.mxu0
    %v3407 = vadd.f32 0.0, %v3406
    %v3408 = vpop.f32.mrf.mxu0
    %3409 = vmatprep.mubr.bf16.mxu0 0
    %3410 = vmatmul.mubr.bf16.gmra.mxu0 %v3159
    %v3411 = vpop.f32.mrf.mxu0
    %v3412 = vadd.f32 0.0, %v3411
    %v3413 = vpop.f32.mrf.mxu0
    %v3414 = vpop.f32.mrf.mxu0
    %v3415 = vadd.f32 0.0, %v3414
    %v3416 = vpop.f32.mrf.mxu0
    %3417 = vmatprep.mubr.bf16.mxu0 0
    %3418 = vmatmul.mubr.bf16.gmra.mxu0 %v3162
    %v3419 = vpop.f32.mrf.mxu0
    %v3420 = vadd.f32 0.0, %v3419
    %v3421 = vpop.f32.mrf.mxu0
    %v3422 = vpop.f32.mrf.mxu0
    %v3423 = vadd.f32 0.0, %v3422
    %v3424 = vpop.f32.mrf.mxu0
    %3425 = vmatprep.mubr.bf16.mxu0 0
    %3426 = vmatmul.mubr.bf16.gmra.mxu0 %v3165
    %v3427 = vpop.f32.mrf.mxu0
    %v3428 = vadd.f32 0.0, %v3427
    %v3429 = vpop.f32.mrf.mxu0
    %v3430 = vpop.f32.mrf.mxu0
    %v3431 = vadd.f32 0.0, %v3430
    %v3432 = vpop.f32.mrf.mxu0
    %3433 = vmatprep.mubr.bf16.mxu0 0
    %3434 = vmatmul.mubr.bf16.gmra.mxu0 %v3168
    %v3435 = vpop.f32.mrf.mxu0
    %v3436 = vadd.f32 0.0, %v3435
    %v3437 = vpop.f32.mrf.mxu0
    %v3438 = vpop.f32.mrf.mxu0
    %v3439 = vadd.f32 0.0, %v3438
    %v3440 = vpop.f32.mrf.mxu0
    %3441 = vmatprep.mubr.bf16.mxu0 0
    %3442 = vmatmul.mubr.bf16.gmra.mxu0 %v3171
    %v3443 = vpop.f32.mrf.mxu0
    %v3444 = vadd.f32 0.0, %v3443
    %v3445 = vpop.f32.mrf.mxu0
    %v3446 = vpop.f32.mrf.mxu0
    %v3447 = vadd.f32 0.0, %v3446
    %v3448 = vpop.f32.mrf.mxu0
    %3449 = vmatprep.mubr.bf16.mxu0 0
    %3450 = vmatmul.mubr.bf16.gmra.mxu0 %v3174
    %v3451 = vpop.f32.mrf.mxu0
    %v3452 = vadd.f32 0.0, %v3451
    %v3453 = vpop.f32.mrf.mxu0
    %v3454 = vpop.f32.mrf.mxu0
    %v3455 = vadd.f32 0.0, %v3454
    %v3456 = vpop.f32.mrf.mxu0
    %3457 = vmatprep.mubr.bf16.mxu0 0
    %3458 = vmatmul.mubr.bf16.gmra.mxu0 %v3177
    %v3459 = vpop.f32.mrf.mxu0
    %v3460 = vadd.f32 0.0, %v3459
    %v3461 = vpop.f32.mrf.mxu0
    %v3462 = vpop.f32.mrf.mxu0
    %v3463 = vadd.f32 0.0, %v3462
    %v3464 = vpop.f32.mrf.mxu0
    %3465 = vmatprep.mubr.bf16.mxu0 0
    %3466 = vmatmul.mubr.bf16.gmra.mxu0 %v3180
    %v3467 = vpop.f32.mrf.mxu0
    %v3468 = vadd.f32 0.0, %v3467
    %v3469 = vpop.f32.mrf.mxu0
    %v3470 = vpop.f32.mrf.mxu0
    %v3471 = vadd.f32 0.0, %v3470
    %v3472 = vpop.f32.mrf.mxu0
    %3473 = vdwg.mxu0
    %v3474 = vadd.f32 %v2790, %v3220
    %v3475 = vadd.f32 %v2791, %v3223
    %v3476 = vadd.f32 %v2792, %v3228
    %v3477 = vadd.f32 %v2793, %v3231
    %v3478 = vadd.f32 %v2794, %v3236
    %v3479 = vadd.f32 %v2795, %v3239
    %v3480 = vadd.f32 %v2796, %v3244
    %v3481 = vadd.f32 %v2797, %v3247
    %v3482 = vadd.f32 %v2798, %v3252
    %v3483 = vadd.f32 %v2799, %v3255
    %v3484 = vadd.f32 %v2800, %v3260
    %v3485 = vadd.f32 %v2801, %v3263
    %v3486 = vadd.f32 %v2802, %v3268
    %v3487 = vadd.f32 %v2803, %v3271
    %v3488 = vadd.f32 %v2804, %v3276
    %v3489 = vadd.f32 %v2805, %v3279
    %v3490 = vadd.f32 %v2806, %v3284
    %v3491 = vadd.f32 %v2807, %v3287
    %v3492 = vadd.f32 %v2808, %v3292
    %v3493 = vadd.f32 %v2809, %v3295
    %v3494 = vadd.f32 %v2810, %v3300
    %v3495 = vadd.f32 %v2811, %v3303
    %v3496 = vadd.f32 %v2812, %v3308
    %v3497 = vadd.f32 %v2813, %v3311
    %v3498 = vadd.f32 %v2814, %v3316
    %v3499 = vadd.f32 %v2815, %v3319
    %v3500 = vadd.f32 %v2816, %v3324
    %v3501 = vadd.f32 %v2817, %v3327
    %v3502 = vadd.f32 %v2818, %v3332
    %v3503 = vadd.f32 %v2819, %v3335
    %v3504 = vadd.f32 %v2820, %v3340
    %v3505 = vadd.f32 %v2821, %v3343
    %v3506 = vadd.f32 %v2822, %v3348
    %v3507 = vadd.f32 %v2823, %v3351
    %v3508 = vadd.f32 %v2824, %v3356
    %v3509 = vadd.f32 %v2825, %v3359
    %v3510 = vadd.f32 %v2826, %v3364
    %v3511 = vadd.f32 %v2827, %v3367
    %v3512 = vadd.f32 %v2828, %v3372
    %v3513 = vadd.f32 %v2829, %v3375
    %v3514 = vadd.f32 %v2830, %v3380
    %v3515 = vadd.f32 %v2831, %v3383
    %v3516 = vadd.f32 %v2832, %v3388
    %v3517 = vadd.f32 %v2833, %v3391
    %v3518 = vadd.f32 %v2834, %v3396
    %v3519 = vadd.f32 %v2835, %v3399
    %v3520 = vadd.f32 %v2836, %v3404
    %v3521 = vadd.f32 %v2837, %v3407
    %v3522 = vadd.f32 %v2838, %v3412
    %v3523 = vadd.f32 %v2839, %v3415
    %v3524 = vadd.f32 %v2840, %v3420
    %v3525 = vadd.f32 %v2841, %v3423
    %v3526 = vadd.f32 %v2842, %v3428
    %v3527 = vadd.f32 %v2843, %v3431
    %v3528 = vadd.f32 %v2844, %v3436
    %v3529 = vadd.f32 %v2845, %v3439
    %v3530 = vadd.f32 %v2846, %v3444
    %v3531 = vadd.f32 %v2847, %v3447
    %v3532 = vadd.f32 %v2848, %v3452
    %v3533 = vadd.f32 %v2849, %v3455
    %v3534 = vadd.f32 %v2850, %v3460
    %v3535 = vadd.f32 %v2851, %v3463
    %v3536 = vadd.f32 %v2852, %v3468
    %v3537 = vadd.f32 %v2853, %v3471
    %3538 = vst.msk [vmem:[#allocation3] sm:$0xff] %vm1644, %v3474
    %3539 = vst.msk [vmem:[#allocation3 + $0x8] sm:$0xff] %vm1644, %v3475
    %3540 = vst.msk [vmem:[#allocation3 + $0x10] sm:$0xff] %vm1644, %v3476
    %3541 = vst.msk [vmem:[#allocation3 + $0x18] sm:$0xff] %vm1644, %v3477
    %3542 = vst.msk [vmem:[#allocation3 + $0x20] sm:$0xff] %vm1644, %v3478
    %3543 = vst.msk [vmem:[#allocation3 + $0x28] sm:$0xff] %vm1644, %v3479
    %3544 = vst.msk [vmem:[#allocation3 + $0x30] sm:$0xff] %vm1644, %v3480
    %3545 = vst.msk [vmem:[#allocation3 + $0x38] sm:$0xff] %vm1644, %v3481
    %3546 = vst.msk [vmem:[#allocation3 + $0x40] sm:$0xff] %vm1644, %v3482
    %3547 = vst.msk [vmem:[#allocation3 + $0x48] sm:$0xff] %vm1644, %v3483
    %3548 = vst.msk [vmem:[#allocation3 + $0x50] sm:$0xff] %vm1644, %v3484
    %3549 = vst.msk [vmem:[#allocation3 + $0x58] sm:$0xff] %vm1644, %v3485
    %3550 = vst.msk [vmem:[#allocation3 + $0x60] sm:$0xff] %vm1644, %v3486
    %3551 = vst.msk [vmem:[#allocation3 + $0x68] sm:$0xff] %vm1644, %v3487
    %3552 = vst.msk [vmem:[#allocation3 + $0x70] sm:$0xff] %vm1644, %v3488
    %3553 = vst.msk [vmem:[#allocation3 + $0x78] sm:$0xff] %vm1644, %v3489
    %3554 = vst.msk [vmem:[#allocation3 + $0x80] sm:$0xff] %vm1644, %v3490
    %3555 = vst.msk [vmem:[#allocation3 + $0x88] sm:$0xff] %vm1644, %v3491
    %3556 = vst.msk [vmem:[#allocation3 + $0x90] sm:$0xff] %vm1644, %v3492
    %3557 = vst.msk [vmem:[#allocation3 + $0x98] sm:$0xff] %vm1644, %v3493
    %3558 = vst.msk [vmem:[#allocation3 + $0xa0] sm:$0xff] %vm1644, %v3494
    %3559 = vst.msk [vmem:[#allocation3 + $0xa8] sm:$0xff] %vm1644, %v3495
    %3560 = vst.msk [vmem:[#allocation3 + $0xb0] sm:$0xff] %vm1644, %v3496
    %3561 = vst.msk [vmem:[#allocation3 + $0xb8] sm:$0xff] %vm1644, %v3497
    %3562 = vst.msk [vmem:[#allocation3 + $0xc0] sm:$0xff] %vm1644, %v3498
    %3563 = vst.msk [vmem:[#allocation3 + $0xc8] sm:$0xff] %vm1644, %v3499
    %3564 = vst.msk [vmem:[#allocation3 + $0xd0] sm:$0xff] %vm1644, %v3500
    %3565 = vst.msk [vmem:[#allocation3 + $0xd8] sm:$0xff] %vm1644, %v3501
    %3566 = vst.msk [vmem:[#allocation3 + $0xe0] sm:$0xff] %vm1644, %v3502
    %3567 = vst.msk [vmem:[#allocation3 + $0xe8] sm:$0xff] %vm1644, %v3503
    %3568 = vst.msk [vmem:[#allocation3 + $0xf0] sm:$0xff] %vm1644, %v3504
    %3569 = vst.msk [vmem:[#allocation3 + $0xf8] sm:$0xff] %vm1644, %v3505
    %3570 = vst.msk [vmem:[#allocation3 + $0x100] sm:$0xff] %vm1644, %v3506
    %3571 = vst.msk [vmem:[#allocation3 + $0x108] sm:$0xff] %vm1644, %v3507
    %3572 = vst.msk [vmem:[#allocation3 + $0x110] sm:$0xff] %vm1644, %v3508
    %3573 = vst.msk [vmem:[#allocation3 + $0x118] sm:$0xff] %vm1644, %v3509
    %3574 = vst.msk [vmem:[#allocation3 + $0x120] sm:$0xff] %vm1644, %v3510
    %3575 = vst.msk [vmem:[#allocation3 + $0x128] sm:$0xff] %vm1644, %v3511
    %3576 = vst.msk [vmem:[#allocation3 + $0x130] sm:$0xff] %vm1644, %v3512
    %3577 = vst.msk [vmem:[#allocation3 + $0x138] sm:$0xff] %vm1644, %v3513
    %3578 = vst.msk [vmem:[#allocation3 + $0x140] sm:$0xff] %vm1644, %v3514
    %3579 = vst.msk [vmem:[#allocation3 + $0x148] sm:$0xff] %vm1644, %v3515
    %3580 = vst.msk [vmem:[#allocation3 + $0x150] sm:$0xff] %vm1644, %v3516
    %3581 = vst.msk [vmem:[#allocation3 + $0x158] sm:$0xff] %vm1644, %v3517
    %3582 = vst.msk [vmem:[#allocation3 + $0x160] sm:$0xff] %vm1644, %v3518
    %3583 = vst.msk [vmem:[#allocation3 + $0x168] sm:$0xff] %vm1644, %v3519
    %3584 = vst.msk [vmem:[#allocation3 + $0x170] sm:$0xff] %vm1644, %v3520
    %3585 = vst.msk [vmem:[#allocation3 + $0x178] sm:$0xff] %vm1644, %v3521
    %3586 = vst.msk [vmem:[#allocation3 + $0x180] sm:$0xff] %vm1644, %v3522
    %3587 = vst.msk [vmem:[#allocation3 + $0x188] sm:$0xff] %vm1644, %v3523
    %3588 = vst.msk [vmem:[#allocation3 + $0x190] sm:$0xff] %vm1644, %v3524
    %3589 = vst.msk [vmem:[#allocation3 + $0x198] sm:$0xff] %vm1644, %v3525
    %3590 = vst.msk [vmem:[#allocation3 + $0x1a0] sm:$0xff] %vm1644, %v3526
    %3591 = vst.msk [vmem:[#allocation3 + $0x1a8] sm:$0xff] %vm1644, %v3527
    %3592 = vst.msk [vmem:[#allocation3 + $0x1b0] sm:$0xff] %vm1644, %v3528
    %3593 = vst.msk [vmem:[#allocation3 + $0x1b8] sm:$0xff] %vm1644, %v3529
    %3594 = vst.msk [vmem:[#allocation3 + $0x1c0] sm:$0xff] %vm1644, %v3530
    %3595 = vst.msk [vmem:[#allocation3 + $0x1c8] sm:$0xff] %vm1644, %v3531
    %3596 = vst.msk [vmem:[#allocation3 + $0x1d0] sm:$0xff] %vm1644, %v3532
    %3597 = vst.msk [vmem:[#allocation3 + $0x1d8] sm:$0xff] %vm1644, %v3533
    %3598 = vst.msk [vmem:[#allocation3 + $0x1e0] sm:$0xff] %vm1644, %v3534
    %3599 = vst.msk [vmem:[#allocation3 + $0x1e8] sm:$0xff] %vm1644, %v3535
    %3600 = vst.msk [vmem:[#allocation3 + $0x1f0] sm:$0xff] %vm1644, %v3536
    %3601 = vst.msk [vmem:[#allocation3 + $0x1f8] sm:$0xff] %vm1644, %v3537
    %v3602 = vld [vmem:[#allocation3] sm:$0xff]
    %v3603 = vld [vmem:[#allocation3 + $0x8] sm:$0xff]
    %v3604 = vld [vmem:[#allocation3 + $0x10] sm:$0xff]
    %v3605 = vld [vmem:[#allocation3 + $0x18] sm:$0xff]
    %v3606 = vld [vmem:[#allocation3 + $0x20] sm:$0xff]
    %v3607 = vld [vmem:[#allocation3 + $0x28] sm:$0xff]
    %v3608 = vld [vmem:[#allocation3 + $0x30] sm:$0xff]
    %v3609 = vld [vmem:[#allocation3 + $0x38] sm:$0xff]
    %v3610 = vld [vmem:[#allocation3 + $0x40] sm:$0xff]
    %v3611 = vld [vmem:[#allocation3 + $0x48] sm:$0xff]
    %v3612 = vld [vmem:[#allocation3 + $0x50] sm:$0xff]
    %v3613 = vld [vmem:[#allocation3 + $0x58] sm:$0xff]
    %v3614 = vld [vmem:[#allocation3 + $0x60] sm:$0xff]
    %v3615 = vld [vmem:[#allocation3 + $0x68] sm:$0xff]
    %v3616 = vld [vmem:[#allocation3 + $0x70] sm:$0xff]
    %v3617 = vld [vmem:[#allocation3 + $0x78] sm:$0xff]
    %v3618 = vld [vmem:[#allocation3 + $0x80] sm:$0xff]
    %v3619 = vld [vmem:[#allocation3 + $0x88] sm:$0xff]
    %v3620 = vld [vmem:[#allocation3 + $0x90] sm:$0xff]
    %v3621 = vld [vmem:[#allocation3 + $0x98] sm:$0xff]
    %v3622 = vld [vmem:[#allocation3 + $0xa0] sm:$0xff]
    %v3623 = vld [vmem:[#allocation3 + $0xa8] sm:$0xff]
    %v3624 = vld [vmem:[#allocation3 + $0xb0] sm:$0xff]
    %v3625 = vld [vmem:[#allocation3 + $0xb8] sm:$0xff]
    %v3626 = vld [vmem:[#allocation3 + $0xc0] sm:$0xff]
    %v3627 = vld [vmem:[#allocation3 + $0xc8] sm:$0xff]
    %v3628 = vld [vmem:[#allocation3 + $0xd0] sm:$0xff]
    %v3629 = vld [vmem:[#allocation3 + $0xd8] sm:$0xff]
    %v3630 = vld [vmem:[#allocation3 + $0xe0] sm:$0xff]
    %v3631 = vld [vmem:[#allocation3 + $0xe8] sm:$0xff]
    %v3632 = vld [vmem:[#allocation3 + $0xf0] sm:$0xff]
    %v3633 = vld [vmem:[#allocation3 + $0xf8] sm:$0xff]
    %v3634 = vld [vmem:[#allocation3 + $0x100] sm:$0xff]
    %v3635 = vld [vmem:[#allocation3 + $0x108] sm:$0xff]
    %v3636 = vld [vmem:[#allocation3 + $0x110] sm:$0xff]
    %v3637 = vld [vmem:[#allocation3 + $0x118] sm:$0xff]
    %v3638 = vld [vmem:[#allocation3 + $0x120] sm:$0xff]
    %v3639 = vld [vmem:[#allocation3 + $0x128] sm:$0xff]
    %v3640 = vld [vmem:[#allocation3 + $0x130] sm:$0xff]
    %v3641 = vld [vmem:[#allocation3 + $0x138] sm:$0xff]
    %v3642 = vld [vmem:[#allocation3 + $0x140] sm:$0xff]
    %v3643 = vld [vmem:[#allocation3 + $0x148] sm:$0xff]
    %v3644 = vld [vmem:[#allocation3 + $0x150] sm:$0xff]
    %v3645 = vld [vmem:[#allocation3 + $0x158] sm:$0xff]
    %v3646 = vld [vmem:[#allocation3 + $0x160] sm:$0xff]
    %v3647 = vld [vmem:[#allocation3 + $0x168] sm:$0xff]
    %v3648 = vld [vmem:[#allocation3 + $0x170] sm:$0xff]
    %v3649 = vld [vmem:[#allocation3 + $0x178] sm:$0xff]
    %v3650 = vld [vmem:[#allocation3 + $0x180] sm:$0xff]
    %v3651 = vld [vmem:[#allocation3 + $0x188] sm:$0xff]
    %v3652 = vld [vmem:[#allocation3 + $0x190] sm:$0xff]
    %v3653 = vld [vmem:[#allocation3 + $0x198] sm:$0xff]
    %v3654 = vld [vmem:[#allocation3 + $0x1a0] sm:$0xff]
    %v3655 = vld [vmem:[#allocation3 + $0x1a8] sm:$0xff]
    %v3656 = vld [vmem:[#allocation3 + $0x1b0] sm:$0xff]
    %v3657 = vld [vmem:[#allocation3 + $0x1b8] sm:$0xff]
    %v3658 = vld [vmem:[#allocation3 + $0x1c0] sm:$0xff]
    %v3659 = vld [vmem:[#allocation3 + $0x1c8] sm:$0xff]
    %v3660 = vld [vmem:[#allocation3 + $0x1d0] sm:$0xff]
    %v3661 = vld [vmem:[#allocation3 + $0x1d8] sm:$0xff]
    %v3662 = vld [vmem:[#allocation3 + $0x1e0] sm:$0xff]
    %v3663 = vld [vmem:[#allocation3 + $0x1e8] sm:$0xff]
    %v3664 = vld [vmem:[#allocation3 + $0x1f0] sm:$0xff]
    %v3665 = vld [vmem:[#allocation3 + $0x1f8] sm:$0xff]
    %s3666 = scalar_lea.vmem [#allocation2], 16
    %v3667 = vld [vmem:[%s3666] sm:$0xf]
    %v3668 = vld [vmem:[%s3666 + $0x4] sm:$0xf]
    %v3669 = vld [vmem:[%s3666 + $0x8] sm:$0xf]
    %v3670 = vld [vmem:[%s3666 + $0xc] sm:$0xf]
    %v3671 = vld [vmem:[%s3666 + $0x10] sm:$0xf]
    %v3672 = vld [vmem:[%s3666 + $0x14] sm:$0xf]
    %v3673 = vld [vmem:[%s3666 + $0x18] sm:$0xf]
    %v3674 = vld [vmem:[%s3666 + $0x1c] sm:$0xf]
    %v3675 = vld [vmem:[%s3666 + $0x20] sm:$0xf]
    %v3676 = vld [vmem:[%s3666 + $0x24] sm:$0xf]
    %v3677 = vld [vmem:[%s3666 + $0x28] sm:$0xf]
    %v3678 = vld [vmem:[%s3666 + $0x2c] sm:$0xf]
    %v3679 = vld [vmem:[%s3666 + $0x30] sm:$0xf]
    %v3680 = vld [vmem:[%s3666 + $0x34] sm:$0xf]
    %v3681 = vld [vmem:[%s3666 + $0x38] sm:$0xf]
    %v3682 = vld [vmem:[%s3666 + $0x3c] sm:$0xf]
    %v3683 = vld [vmem:[%s3666 + $0x40] sm:$0xf]
    %v3684 = vld [vmem:[%s3666 + $0x44] sm:$0xf]
    %v3685 = vld [vmem:[%s3666 + $0x48] sm:$0xf]
    %v3686 = vld [vmem:[%s3666 + $0x4c] sm:$0xf]
    %v3687 = vld [vmem:[%s3666 + $0x50] sm:$0xf]
    %v3688 = vld [vmem:[%s3666 + $0x54] sm:$0xf]
    %v3689 = vld [vmem:[%s3666 + $0x58] sm:$0xf]
    %v3690 = vld [vmem:[%s3666 + $0x5c] sm:$0xf]
    %v3691 = vld [vmem:[%s3666 + $0x60] sm:$0xf]
    %v3692 = vld [vmem:[%s3666 + $0x64] sm:$0xf]
    %v3693 = vld [vmem:[%s3666 + $0x68] sm:$0xf]
    %v3694 = vld [vmem:[%s3666 + $0x6c] sm:$0xf]
    %v3695 = vld [vmem:[%s3666 + $0x70] sm:$0xf]
    %v3696 = vld [vmem:[%s3666 + $0x74] sm:$0xf]
    %v3697 = vld [vmem:[%s3666 + $0x78] sm:$0xf]
    %v3698 = vld [vmem:[%s3666 + $0x7c] sm:$0xf]
    %v3699 = vld [vmem:[%s3666 + $0x90] sm:$0xf]
    %v3700 = vld [vmem:[%s3666 + $0x94] sm:$0xf]
    %v3701 = vld [vmem:[%s3666 + $0x98] sm:$0xf]
    %v3702 = vld [vmem:[%s3666 + $0x9c] sm:$0xf]
    %v3703 = vld [vmem:[%s3666 + $0xa0] sm:$0xf]
    %v3704 = vld [vmem:[%s3666 + $0xa4] sm:$0xf]
    %v3705 = vld [vmem:[%s3666 + $0xa8] sm:$0xf]
    %v3706 = vld [vmem:[%s3666 + $0xac] sm:$0xf]
    %v3707 = vld [vmem:[%s3666 + $0xb0] sm:$0xf]
    %v3708 = vld [vmem:[%s3666 + $0xb4] sm:$0xf]
    %v3709 = vld [vmem:[%s3666 + $0xb8] sm:$0xf]
    %v3710 = vld [vmem:[%s3666 + $0xbc] sm:$0xf]
    %v3711 = vld [vmem:[%s3666 + $0xc0] sm:$0xf]
    %v3712 = vld [vmem:[%s3666 + $0xc4] sm:$0xf]
    %v3713 = vld [vmem:[%s3666 + $0xc8] sm:$0xf]
    %v3714 = vld [vmem:[%s3666 + $0xcc] sm:$0xf]
    %v3715 = vld [vmem:[%s3666 + $0xd0] sm:$0xf]
    %v3716 = vld [vmem:[%s3666 + $0xd4] sm:$0xf]
    %v3717 = vld [vmem:[%s3666 + $0xd8] sm:$0xf]
    %v3718 = vld [vmem:[%s3666 + $0xdc] sm:$0xf]
    %v3719 = vld [vmem:[%s3666 + $0xe0] sm:$0xf]
    %v3720 = vld [vmem:[%s3666 + $0xe4] sm:$0xf]
    %v3721 = vld [vmem:[%s3666 + $0xe8] sm:$0xf]
    %v3722 = vld [vmem:[%s3666 + $0xec] sm:$0xf]
    %v3723 = vld [vmem:[%s3666 + $0xf0] sm:$0xf]
    %v3724 = vld [vmem:[%s3666 + $0xf4] sm:$0xf]
    %v3725 = vld [vmem:[%s3666 + $0xf8] sm:$0xf]
    %v3726 = vld [vmem:[%s3666 + $0xfc] sm:$0xf]
    %v3727 = vld [vmem:[%s3666 + $0x100] sm:$0xf]
    %v3728 = vld [vmem:[%s3666 + $0x104] sm:$0xf]
    %v3729 = vld [vmem:[%s3666 + $0x108] sm:$0xf]
    %v3730 = vld [vmem:[%s3666 + $0x10c] sm:$0xf]
    %s3731 = scalar_lea.vmem %s3, 16
    %v3732 = vld [vmem:[%s3731] sm:$0xf]
    %v3733 = vld [vmem:[%s3731 + $0x4] sm:$0x3]
    %v3798 = vunpack.c.l.b16 %v3667
    %v3799 = vunpack.c.l.b16 %v3668
    %v3800 = vunpack.c.l.b16 %v3669
    %v3801 = vunpack.c.l.b16 %v3670
    %v3802 = vunpack.c.l.b16 %v3671
    %v3803 = vunpack.c.l.b16 %v3672
    %v3804 = vunpack.c.l.b16 %v3673
    %v3805 = vunpack.c.l.b16 %v3674
    %v3806 = vunpack.c.l.b16 %v3675
    %v3807 = vunpack.c.l.b16 %v3676
    %v3808 = vunpack.c.l.b16 %v3677
    %v3809 = vunpack.c.l.b16 %v3678
    %v3810 = vunpack.c.l.b16 %v3679
    %v3811 = vunpack.c.l.b16 %v3680
    %v3812 = vunpack.c.l.b16 %v3681
    %v3813 = vunpack.c.l.b16 %v3682
    %v3814 = vunpack.c.l.b16 %v3683
    %v3815 = vunpack.c.l.b16 %v3684
    %v3816 = vunpack.c.l.b16 %v3685
    %v3817 = vunpack.c.l.b16 %v3686
    %v3818 = vunpack.c.l.b16 %v3687
    %v3819 = vunpack.c.l.b16 %v3688
    %v3820 = vunpack.c.l.b16 %v3689
    %v3821 = vunpack.c.l.b16 %v3690
    %v3822 = vunpack.c.l.b16 %v3691
    %v3823 = vunpack.c.l.b16 %v3692
    %v3824 = vunpack.c.l.b16 %v3693
    %v3825 = vunpack.c.l.b16 %v3694
    %v3826 = vunpack.c.l.b16 %v3695
    %v3827 = vunpack.c.l.b16 %v3696
    %v3828 = vunpack.c.l.b16 %v3697
    %v3829 = vunpack.c.l.b16 %v3698
    %v3830 = vunpack.c.l.b16 %v3699
    %v3831 = vunpack.c.l.b16 %v3700
    %v3832 = vunpack.c.l.b16 %v3701
    %v3833 = vunpack.c.l.b16 %v3702
    %v3834 = vunpack.c.l.b16 %v3703
    %v3835 = vunpack.c.l.b16 %v3704
    %v3836 = vunpack.c.l.b16 %v3705
    %v3837 = vunpack.c.l.b16 %v3706
    %v3838 = vunpack.c.l.b16 %v3707
    %v3839 = vunpack.c.l.b16 %v3708
    %v3840 = vunpack.c.l.b16 %v3709
    %v3841 = vunpack.c.l.b16 %v3710
    %v3842 = vunpack.c.l.b16 %v3711
    %v3843 = vunpack.c.l.b16 %v3712
    %v3844 = vunpack.c.l.b16 %v3713
    %v3845 = vunpack.c.l.b16 %v3714
    %v3846 = vunpack.c.l.b16 %v3715
    %v3847 = vunpack.c.l.b16 %v3716
    %v3848 = vunpack.c.l.b16 %v3717
    %v3849 = vunpack.c.l.b16 %v3718
    %v3850 = vunpack.c.l.b16 %v3719
    %v3851 = vunpack.c.l.b16 %v3720
    %v3852 = vunpack.c.l.b16 %v3721
    %v3853 = vunpack.c.l.b16 %v3722
    %v3854 = vunpack.c.l.b16 %v3723
    %v3855 = vunpack.c.l.b16 %v3724
    %v3856 = vunpack.c.l.b16 %v3725
    %v3857 = vunpack.c.l.b16 %v3726
    %v3858 = vunpack.c.l.b16 %v3727
    %v3859 = vunpack.c.l.b16 %v3728
    %v3860 = vunpack.c.l.b16 %v3729
    %v3861 = vunpack.c.l.b16 %v3730
    %v3862 = vpack.c.b16 %v3799, %v3798
    %v3863 = vpack.c.b16 %v3801, %v3800
    %v3864 = vpack.c.b16 %v3803, %v3802
    %v3865 = vpack.c.b16 %v3805, %v3804
    %v3866 = vpack.c.b16 %v3807, %v3806
    %v3867 = vpack.c.b16 %v3809, %v3808
    %v3868 = vpack.c.b16 %v3811, %v3810
    %v3869 = vpack.c.b16 %v3813, %v3812
    %v3870 = vpack.c.b16 %v3815, %v3814
    %v3871 = vpack.c.b16 %v3817, %v3816
    %v3872 = vpack.c.b16 %v3819, %v3818
    %v3873 = vpack.c.b16 %v3821, %v3820
    %v3874 = vpack.c.b16 %v3823, %v3822
    %v3875 = vpack.c.b16 %v3825, %v3824
    %v3876 = vpack.c.b16 %v3827, %v3826
    %v3877 = vpack.c.b16 %v3829, %v3828
    %v3878 = vpack.c.b16 %v3831, %v3830
    %v3879 = vpack.c.b16 %v3833, %v3832
    %v3880 = vpack.c.b16 %v3835, %v3834
    %v3881 = vpack.c.b16 %v3837, %v3836
    %v3882 = vpack.c.b16 %v3839, %v3838
    %v3883 = vpack.c.b16 %v3841, %v3840
    %v3884 = vpack.c.b16 %v3843, %v3842
    %v3885 = vpack.c.b16 %v3845, %v3844
    %v3886 = vpack.c.b16 %v3847, %v3846
    %v3887 = vpack.c.b16 %v3849, %v3848
    %v3888 = vpack.c.b16 %v3851, %v3850
    %v3889 = vpack.c.b16 %v3853, %v3852
    %v3890 = vpack.c.b16 %v3855, %v3854
    %v3891 = vpack.c.b16 %v3857, %v3856
    %v3892 = vpack.c.b16 %v3859, %v3858
    %v3893 = vpack.c.b16 %v3861, %v3860
    %v3896 = vunpack.c.l.b16 %v3732
    %v3897 = vunpack.c.l.b16 %v3733
    %v3898 = vpack.c.b16 %v3897, %v3896
    %v3900 = vsel %vm2336, %v3862, 0
    %v3903 = vsel %vm2336, %v3863, 0
    %v3906 = vsel %vm2336, %v3864, 0
    %v3909 = vsel %vm2336, %v3865, 0
    %v3912 = vsel %vm2336, %v3866, 0
    %v3915 = vsel %vm2336, %v3867, 0
    %v3918 = vsel %vm2336, %v3868, 0
    %v3921 = vsel %vm2336, %v3869, 0
    %v3924 = vsel %vm2336, %v3870, 0
    %v3927 = vsel %vm2336, %v3871, 0
    %v3930 = vsel %vm2336, %v3872, 0
    %v3933 = vsel %vm2336, %v3873, 0
    %v3936 = vsel %vm2336, %v3874, 0
    %v3939 = vsel %vm2336, %v3875, 0
    %v3942 = vsel %vm2336, %v3876, 0
    %v3945 = vsel %vm2336, %v3877, 0
    %v3948 = vsel %vm2336, %v3878, 0
    %v3951 = vsel %vm2336, %v3879, 0
    %v3954 = vsel %vm2336, %v3880, 0
    %v3957 = vsel %vm2336, %v3881, 0
    %v3960 = vsel %vm2336, %v3882, 0
    %v3963 = vsel %vm2336, %v3883, 0
    %v3966 = vsel %vm2336, %v3884, 0
    %v3969 = vsel %vm2336, %v3885, 0
    %v3972 = vsel %vm2336, %v3886, 0
    %v3975 = vsel %vm2336, %v3887, 0
    %v3978 = vsel %vm2336, %v3888, 0
    %v3981 = vsel %vm2336, %v3889, 0
    %v3984 = vsel %vm2336, %v3890, 0
    %v3987 = vsel %vm2336, %v3891, 0
    %v3990 = vsel %vm2336, %v3892, 0
    %v3993 = vsel %vm2336, %v3893, 0
    %v3996 = vsel %vm2433, %v3898, 0
    %3998 = vmatprep.subr.bf16.mxu0 0
    %3999 = vmatpush1.bf16.msra.mxu0 0
    %4000 = vmatprep.subr.bf16.mxu0 0
    %4001 = vmatpush1.bf16.msra.mxu0 0
    %4002 = vmatprep.subr.bf16.mxu0 0
    %4003 = vmatpush1.bf16.msra.mxu0 0
    %4004 = vmatprep.subr.bf16.mxu0 0
    %4005 = vmatpush1.bf16.msra.mxu0 0
    %4006 = vmatprep.subr.bf16.mxu0 0
    %4007 = vmatpush1.bf16.msra.mxu0 0
    %4008 = vmatprep.subr.bf16.mxu0 0
    %4009 = vmatpush1.bf16.msra.mxu0 0
    %4010 = vmatprep.subr.bf16.mxu0 0
    %4011 = vmatpush1.bf16.msra.mxu0 0
    %4012 = vmatprep.subr.bf16.mxu0 0
    %4013 = vmatpush1.bf16.msra.mxu0 %v3996
    %4014 = vmatprep.subr.bf16.mxu0 0
    %4015 = vmatpush2.bf16.msra.mxu0 0
    %4016 = vmatprep.subr.bf16.mxu0 0
    %4017 = vmatpush2.bf16.msra.mxu0 0
    %4018 = vmatprep.subr.bf16.mxu0 0
    %4019 = vmatpush2.bf16.msra.mxu0 0
    %4020 = vmatprep.subr.bf16.mxu0 0
    %4021 = vmatpush2.bf16.msra.mxu0 0
    %4022 = vmatprep.subr.bf16.mxu0 0
    %4023 = vmatpush2.bf16.msra.mxu0 0
    %4024 = vmatprep.subr.bf16.mxu0 0
    %4025 = vmatpush2.bf16.msra.mxu0 0
    %4026 = vmatprep.subr.bf16.mxu0 0
    %4027 = vmatpush2.bf16.msra.mxu0 0
    %4028 = vmatprep.subr.bf16.mxu0 0
    %4029 = vmatpush2.bf16.msra.mxu0 0
    %4030 = vmatprep.mubr.bf16.mxu0 0
    %4031 = vmatmul.mubr.bf16.gmra.mxu0 %v3900
    %v4032 = vpop.f32.mrf.mxu0
    %v4033 = vadd.f32 0.0, %v4032
    %v4034 = vpop.f32.mrf.mxu0
    %v4035 = vpop.f32.mrf.mxu0
    %v4036 = vadd.f32 0.0, %v4035
    %v4037 = vpop.f32.mrf.mxu0
    %4038 = vmatprep.mubr.bf16.mxu0 0
    %4039 = vmatmul.mubr.bf16.gmra.mxu0 %v3903
    %v4040 = vpop.f32.mrf.mxu0
    %v4041 = vadd.f32 0.0, %v4040
    %v4042 = vpop.f32.mrf.mxu0
    %v4043 = vpop.f32.mrf.mxu0
    %v4044 = vadd.f32 0.0, %v4043
    %v4045 = vpop.f32.mrf.mxu0
    %4046 = vmatprep.mubr.bf16.mxu0 0
    %4047 = vmatmul.mubr.bf16.gmra.mxu0 %v3906
    %v4048 = vpop.f32.mrf.mxu0
    %v4049 = vadd.f32 0.0, %v4048
    %v4050 = vpop.f32.mrf.mxu0
    %v4051 = vpop.f32.mrf.mxu0
    %v4052 = vadd.f32 0.0, %v4051
    %v4053 = vpop.f32.mrf.mxu0
    %4054 = vmatprep.mubr.bf16.mxu0 0
    %4055 = vmatmul.mubr.bf16.gmra.mxu0 %v3909
    %v4056 = vpop.f32.mrf.mxu0
    %v4057 = vadd.f32 0.0, %v4056
    %v4058 = vpop.f32.mrf.mxu0
    %v4059 = vpop.f32.mrf.mxu0
    %v4060 = vadd.f32 0.0, %v4059
    %v4061 = vpop.f32.mrf.mxu0
    %4062 = vmatprep.mubr.bf16.mxu0 0
    %4063 = vmatmul.mubr.bf16.gmra.mxu0 %v3912
    %v4064 = vpop.f32.mrf.mxu0
    %v4065 = vadd.f32 0.0, %v4064
    %v4066 = vpop.f32.mrf.mxu0
    %v4067 = vpop.f32.mrf.mxu0
    %v4068 = vadd.f32 0.0, %v4067
    %v4069 = vpop.f32.mrf.mxu0
    %4070 = vmatprep.mubr.bf16.mxu0 0
    %4071 = vmatmul.mubr.bf16.gmra.mxu0 %v3915
    %v4072 = vpop.f32.mrf.mxu0
    %v4073 = vadd.f32 0.0, %v4072
    %v4074 = vpop.f32.mrf.mxu0
    %v4075 = vpop.f32.mrf.mxu0
    %v4076 = vadd.f32 0.0, %v4075
    %v4077 = vpop.f32.mrf.mxu0
    %4078 = vmatprep.mubr.bf16.mxu0 0
    %4079 = vmatmul.mubr.bf16.gmra.mxu0 %v3918
    %v4080 = vpop.f32.mrf.mxu0
    %v4081 = vadd.f32 0.0, %v4080
    %v4082 = vpop.f32.mrf.mxu0
    %v4083 = vpop.f32.mrf.mxu0
    %v4084 = vadd.f32 0.0, %v4083
    %v4085 = vpop.f32.mrf.mxu0
    %4086 = vmatprep.mubr.bf16.mxu0 0
    %4087 = vmatmul.mubr.bf16.gmra.mxu0 %v3921
    %v4088 = vpop.f32.mrf.mxu0
    %v4089 = vadd.f32 0.0, %v4088
    %v4090 = vpop.f32.mrf.mxu0
    %v4091 = vpop.f32.mrf.mxu0
    %v4092 = vadd.f32 0.0, %v4091
    %v4093 = vpop.f32.mrf.mxu0
    %4094 = vmatprep.mubr.bf16.mxu0 0
    %4095 = vmatmul.mubr.bf16.gmra.mxu0 %v3924
    %v4096 = vpop.f32.mrf.mxu0
    %v4097 = vadd.f32 0.0, %v4096
    %v4098 = vpop.f32.mrf.mxu0
    %v4099 = vpop.f32.mrf.mxu0
    %v4100 = vadd.f32 0.0, %v4099
    %v4101 = vpop.f32.mrf.mxu0
    %4102 = vmatprep.mubr.bf16.mxu0 0
    %4103 = vmatmul.mubr.bf16.gmra.mxu0 %v3927
    %v4104 = vpop.f32.mrf.mxu0
    %v4105 = vadd.f32 0.0, %v4104
    %v4106 = vpop.f32.mrf.mxu0
    %v4107 = vpop.f32.mrf.mxu0
    %v4108 = vadd.f32 0.0, %v4107
    %v4109 = vpop.f32.mrf.mxu0
    %4110 = vmatprep.mubr.bf16.mxu0 0
    %4111 = vmatmul.mubr.bf16.gmra.mxu0 %v3930
    %v4112 = vpop.f32.mrf.mxu0
    %v4113 = vadd.f32 0.0, %v4112
    %v4114 = vpop.f32.mrf.mxu0
    %v4115 = vpop.f32.mrf.mxu0
    %v4116 = vadd.f32 0.0, %v4115
    %v4117 = vpop.f32.mrf.mxu0
    %4118 = vmatprep.mubr.bf16.mxu0 0
    %4119 = vmatmul.mubr.bf16.gmra.mxu0 %v3933
    %v4120 = vpop.f32.mrf.mxu0
    %v4121 = vadd.f32 0.0, %v4120
    %v4122 = vpop.f32.mrf.mxu0
    %v4123 = vpop.f32.mrf.mxu0
    %v4124 = vadd.f32 0.0, %v4123
    %v4125 = vpop.f32.mrf.mxu0
    %4126 = vmatprep.mubr.bf16.mxu0 0
    %4127 = vmatmul.mubr.bf16.gmra.mxu0 %v3936
    %v4128 = vpop.f32.mrf.mxu0
    %v4129 = vadd.f32 0.0, %v4128
    %v4130 = vpop.f32.mrf.mxu0
    %v4131 = vpop.f32.mrf.mxu0
    %v4132 = vadd.f32 0.0, %v4131
    %v4133 = vpop.f32.mrf.mxu0
    %4134 = vmatprep.mubr.bf16.mxu0 0
    %4135 = vmatmul.mubr.bf16.gmra.mxu0 %v3939
    %v4136 = vpop.f32.mrf.mxu0
    %v4137 = vadd.f32 0.0, %v4136
    %v4138 = vpop.f32.mrf.mxu0
    %v4139 = vpop.f32.mrf.mxu0
    %v4140 = vadd.f32 0.0, %v4139
    %v4141 = vpop.f32.mrf.mxu0
    %4142 = vmatprep.mubr.bf16.mxu0 0
    %4143 = vmatmul.mubr.bf16.gmra.mxu0 %v3942
    %v4144 = vpop.f32.mrf.mxu0
    %v4145 = vadd.f32 0.0, %v4144
    %v4146 = vpop.f32.mrf.mxu0
    %v4147 = vpop.f32.mrf.mxu0
    %v4148 = vadd.f32 0.0, %v4147
    %v4149 = vpop.f32.mrf.mxu0
    %4150 = vmatprep.mubr.bf16.mxu0 0
    %4151 = vmatmul.mubr.bf16.gmra.mxu0 %v3945
    %v4152 = vpop.f32.mrf.mxu0
    %v4153 = vadd.f32 0.0, %v4152
    %v4154 = vpop.f32.mrf.mxu0
    %v4155 = vpop.f32.mrf.mxu0
    %v4156 = vadd.f32 0.0, %v4155
    %v4157 = vpop.f32.mrf.mxu0
    %4158 = vmatprep.mubr.bf16.mxu0 0
    %4159 = vmatmul.mubr.bf16.gmra.mxu0 %v3948
    %v4160 = vpop.f32.mrf.mxu0
    %v4161 = vadd.f32 0.0, %v4160
    %v4162 = vpop.f32.mrf.mxu0
    %v4163 = vpop.f32.mrf.mxu0
    %v4164 = vadd.f32 0.0, %v4163
    %v4165 = vpop.f32.mrf.mxu0
    %4166 = vmatprep.mubr.bf16.mxu0 0
    %4167 = vmatmul.mubr.bf16.gmra.mxu0 %v3951
    %v4168 = vpop.f32.mrf.mxu0
    %v4169 = vadd.f32 0.0, %v4168
    %v4170 = vpop.f32.mrf.mxu0
    %v4171 = vpop.f32.mrf.mxu0
    %v4172 = vadd.f32 0.0, %v4171
    %v4173 = vpop.f32.mrf.mxu0
    %4174 = vmatprep.mubr.bf16.mxu0 0
    %4175 = vmatmul.mubr.bf16.gmra.mxu0 %v3954
    %v4176 = vpop.f32.mrf.mxu0
    %v4177 = vadd.f32 0.0, %v4176
    %v4178 = vpop.f32.mrf.mxu0
    %v4179 = vpop.f32.mrf.mxu0
    %v4180 = vadd.f32 0.0, %v4179
    %v4181 = vpop.f32.mrf.mxu0
    %4182 = vmatprep.mubr.bf16.mxu0 0
    %4183 = vmatmul.mubr.bf16.gmra.mxu0 %v3957
    %v4184 = vpop.f32.mrf.mxu0
    %v4185 = vadd.f32 0.0, %v4184
    %v4186 = vpop.f32.mrf.mxu0
    %v4187 = vpop.f32.mrf.mxu0
    %v4188 = vadd.f32 0.0, %v4187
    %v4189 = vpop.f32.mrf.mxu0
    %4190 = vmatprep.mubr.bf16.mxu0 0
    %4191 = vmatmul.mubr.bf16.gmra.mxu0 %v3960
    %v4192 = vpop.f32.mrf.mxu0
    %v4193 = vadd.f32 0.0, %v4192
    %v4194 = vpop.f32.mrf.mxu0
    %v4195 = vpop.f32.mrf.mxu0
    %v4196 = vadd.f32 0.0, %v4195
    %v4197 = vpop.f32.mrf.mxu0
    %4198 = vmatprep.mubr.bf16.mxu0 0
    %4199 = vmatmul.mubr.bf16.gmra.mxu0 %v3963
    %v4200 = vpop.f32.mrf.mxu0
    %v4201 = vadd.f32 0.0, %v4200
    %v4202 = vpop.f32.mrf.mxu0
    %v4203 = vpop.f32.mrf.mxu0
    %v4204 = vadd.f32 0.0, %v4203
    %v4205 = vpop.f32.mrf.mxu0
    %4206 = vmatprep.mubr.bf16.mxu0 0
    %4207 = vmatmul.mubr.bf16.gmra.mxu0 %v3966
    %v4208 = vpop.f32.mrf.mxu0
    %v4209 = vadd.f32 0.0, %v4208
    %v4210 = vpop.f32.mrf.mxu0
    %v4211 = vpop.f32.mrf.mxu0
    %v4212 = vadd.f32 0.0, %v4211
    %v4213 = vpop.f32.mrf.mxu0
    %4214 = vmatprep.mubr.bf16.mxu0 0
    %4215 = vmatmul.mubr.bf16.gmra.mxu0 %v3969
    %v4216 = vpop.f32.mrf.mxu0
    %v4217 = vadd.f32 0.0, %v4216
    %v4218 = vpop.f32.mrf.mxu0
    %v4219 = vpop.f32.mrf.mxu0
    %v4220 = vadd.f32 0.0, %v4219
    %v4221 = vpop.f32.mrf.mxu0
    %4222 = vmatprep.mubr.bf16.mxu0 0
    %4223 = vmatmul.mubr.bf16.gmra.mxu0 %v3972
    %v4224 = vpop.f32.mrf.mxu0
    %v4225 = vadd.f32 0.0, %v4224
    %v4226 = vpop.f32.mrf.mxu0
    %v4227 = vpop.f32.mrf.mxu0
    %v4228 = vadd.f32 0.0, %v4227
    %v4229 = vpop.f32.mrf.mxu0
    %4230 = vmatprep.mubr.bf16.mxu0 0
    %4231 = vmatmul.mubr.bf16.gmra.mxu0 %v3975
    %v4232 = vpop.f32.mrf.mxu0
    %v4233 = vadd.f32 0.0, %v4232
    %v4234 = vpop.f32.mrf.mxu0
    %v4235 = vpop.f32.mrf.mxu0
    %v4236 = vadd.f32 0.0, %v4235
    %v4237 = vpop.f32.mrf.mxu0
    %4238 = vmatprep.mubr.bf16.mxu0 0
    %4239 = vmatmul.mubr.bf16.gmra.mxu0 %v3978
    %v4240 = vpop.f32.mrf.mxu0
    %v4241 = vadd.f32 0.0, %v4240
    %v4242 = vpop.f32.mrf.mxu0
    %v4243 = vpop.f32.mrf.mxu0
    %v4244 = vadd.f32 0.0, %v4243
    %v4245 = vpop.f32.mrf.mxu0
    %4246 = vmatprep.mubr.bf16.mxu0 0
    %4247 = vmatmul.mubr.bf16.gmra.mxu0 %v3981
    %v4248 = vpop.f32.mrf.mxu0
    %v4249 = vadd.f32 0.0, %v4248
    %v4250 = vpop.f32.mrf.mxu0
    %v4251 = vpop.f32.mrf.mxu0
    %v4252 = vadd.f32 0.0, %v4251
    %v4253 = vpop.f32.mrf.mxu0
    %4254 = vmatprep.mubr.bf16.mxu0 0
    %4255 = vmatmul.mubr.bf16.gmra.mxu0 %v3984
    %v4256 = vpop.f32.mrf.mxu0
    %v4257 = vadd.f32 0.0, %v4256
    %v4258 = vpop.f32.mrf.mxu0
    %v4259 = vpop.f32.mrf.mxu0
    %v4260 = vadd.f32 0.0, %v4259
    %v4261 = vpop.f32.mrf.mxu0
    %4262 = vmatprep.mubr.bf16.mxu0 0
    %4263 = vmatmul.mubr.bf16.gmra.mxu0 %v3987
    %v4264 = vpop.f32.mrf.mxu0
    %v4265 = vadd.f32 0.0, %v4264
    %v4266 = vpop.f32.mrf.mxu0
    %v4267 = vpop.f32.mrf.mxu0
    %v4268 = vadd.f32 0.0, %v4267
    %v4269 = vpop.f32.mrf.mxu0
    %4270 = vmatprep.mubr.bf16.mxu0 0
    %4271 = vmatmul.mubr.bf16.gmra.mxu0 %v3990
    %v4272 = vpop.f32.mrf.mxu0
    %v4273 = vadd.f32 0.0, %v4272
    %v4274 = vpop.f32.mrf.mxu0
    %v4275 = vpop.f32.mrf.mxu0
    %v4276 = vadd.f32 0.0, %v4275
    %v4277 = vpop.f32.mrf.mxu0
    %4278 = vmatprep.mubr.bf16.mxu0 0
    %4279 = vmatmul.mubr.bf16.gmra.mxu0 %v3993
    %v4280 = vpop.f32.mrf.mxu0
    %v4281 = vadd.f32 0.0, %v4280
    %v4282 = vpop.f32.mrf.mxu0
    %v4283 = vpop.f32.mrf.mxu0
    %v4284 = vadd.f32 0.0, %v4283
    %v4285 = vpop.f32.mrf.mxu0
    %4286 = vdwg.mxu0
    %v4287 = vadd.f32 %v3602, %v4033
    %v4288 = vadd.f32 %v3603, %v4036
    %v4289 = vadd.f32 %v3604, %v4041
    %v4290 = vadd.f32 %v3605, %v4044
    %v4291 = vadd.f32 %v3606, %v4049
    %v4292 = vadd.f32 %v3607, %v4052
    %v4293 = vadd.f32 %v3608, %v4057
    %v4294 = vadd.f32 %v3609, %v4060
    %v4295 = vadd.f32 %v3610, %v4065
    %v4296 = vadd.f32 %v3611, %v4068
    %v4297 = vadd.f32 %v3612, %v4073
    %v4298 = vadd.f32 %v3613, %v4076
    %v4299 = vadd.f32 %v3614, %v4081
    %v4300 = vadd.f32 %v3615, %v4084
    %v4301 = vadd.f32 %v3616, %v4089
    %v4302 = vadd.f32 %v3617, %v4092
    %v4303 = vadd.f32 %v3618, %v4097
    %v4304 = vadd.f32 %v3619, %v4100
    %v4305 = vadd.f32 %v3620, %v4105
    %v4306 = vadd.f32 %v3621, %v4108
    %v4307 = vadd.f32 %v3622, %v4113
    %v4308 = vadd.f32 %v3623, %v4116
    %v4309 = vadd.f32 %v3624, %v4121
    %v4310 = vadd.f32 %v3625, %v4124
    %v4311 = vadd.f32 %v3626, %v4129
    %v4312 = vadd.f32 %v3627, %v4132
    %v4313 = vadd.f32 %v3628, %v4137
    %v4314 = vadd.f32 %v3629, %v4140
    %v4315 = vadd.f32 %v3630, %v4145
    %v4316 = vadd.f32 %v3631, %v4148
    %v4317 = vadd.f32 %v3632, %v4153
    %v4318 = vadd.f32 %v3633, %v4156
    %v4319 = vadd.f32 %v3634, %v4161
    %v4320 = vadd.f32 %v3635, %v4164
    %v4321 = vadd.f32 %v3636, %v4169
    %v4322 = vadd.f32 %v3637, %v4172
    %v4323 = vadd.f32 %v3638, %v4177
    %v4324 = vadd.f32 %v3639, %v4180
    %v4325 = vadd.f32 %v3640, %v4185
    %v4326 = vadd.f32 %v3641, %v4188
    %v4327 = vadd.f32 %v3642, %v4193
    %v4328 = vadd.f32 %v3643, %v4196
    %v4329 = vadd.f32 %v3644, %v4201
    %v4330 = vadd.f32 %v3645, %v4204
    %v4331 = vadd.f32 %v3646, %v4209
    %v4332 = vadd.f32 %v3647, %v4212
    %v4333 = vadd.f32 %v3648, %v4217
    %v4334 = vadd.f32 %v3649, %v4220
    %v4335 = vadd.f32 %v3650, %v4225
    %v4336 = vadd.f32 %v3651, %v4228
    %v4337 = vadd.f32 %v3652, %v4233
    %v4338 = vadd.f32 %v3653, %v4236
    %v4339 = vadd.f32 %v3654, %v4241
    %v4340 = vadd.f32 %v3655, %v4244
    %v4341 = vadd.f32 %v3656, %v4249
    %v4342 = vadd.f32 %v3657, %v4252
    %v4343 = vadd.f32 %v3658, %v4257
    %v4344 = vadd.f32 %v3659, %v4260
    %v4345 = vadd.f32 %v3660, %v4265
    %v4346 = vadd.f32 %v3661, %v4268
    %v4347 = vadd.f32 %v3662, %v4273
    %v4348 = vadd.f32 %v3663, %v4276
    %v4349 = vadd.f32 %v3664, %v4281
    %v4350 = vadd.f32 %v3665, %v4284
    %4351 = vst.msk [vmem:[#allocation3] sm:$0xff] %vm1644, %v4287
    %4352 = vst.msk [vmem:[#allocation3 + $0x8] sm:$0xff] %vm1644, %v4288
    %4353 = vst.msk [vmem:[#allocation3 + $0x10] sm:$0xff] %vm1644, %v4289
    %4354 = vst.msk [vmem:[#allocation3 + $0x18] sm:$0xff] %vm1644, %v4290
    %4355 = vst.msk [vmem:[#allocation3 + $0x20] sm:$0xff] %vm1644, %v4291
    %4356 = vst.msk [vmem:[#allocation3 + $0x28] sm:$0xff] %vm1644, %v4292
    %4357 = vst.msk [vmem:[#allocation3 + $0x30] sm:$0xff] %vm1644, %v4293
    %4358 = vst.msk [vmem:[#allocation3 + $0x38] sm:$0xff] %vm1644, %v4294
    %4359 = vst.msk [vmem:[#allocation3 + $0x40] sm:$0xff] %vm1644, %v4295
    %4360 = vst.msk [vmem:[#allocation3 + $0x48] sm:$0xff] %vm1644, %v4296
    %4361 = vst.msk [vmem:[#allocation3 + $0x50] sm:$0xff] %vm1644, %v4297
    %4362 = vst.msk [vmem:[#allocation3 + $0x58] sm:$0xff] %vm1644, %v4298
    %4363 = vst.msk [vmem:[#allocation3 + $0x60] sm:$0xff] %vm1644, %v4299
    %4364 = vst.msk [vmem:[#allocation3 + $0x68] sm:$0xff] %vm1644, %v4300
    %4365 = vst.msk [vmem:[#allocation3 + $0x70] sm:$0xff] %vm1644, %v4301
    %4366 = vst.msk [vmem:[#allocation3 + $0x78] sm:$0xff] %vm1644, %v4302
    %4367 = vst.msk [vmem:[#allocation3 + $0x80] sm:$0xff] %vm1644, %v4303
    %4368 = vst.msk [vmem:[#allocation3 + $0x88] sm:$0xff] %vm1644, %v4304
    %4369 = vst.msk [vmem:[#allocation3 + $0x90] sm:$0xff] %vm1644, %v4305
    %4370 = vst.msk [vmem:[#allocation3 + $0x98] sm:$0xff] %vm1644, %v4306
    %4371 = vst.msk [vmem:[#allocation3 + $0xa0] sm:$0xff] %vm1644, %v4307
    %4372 = vst.msk [vmem:[#allocation3 + $0xa8] sm:$0xff] %vm1644, %v4308
    %4373 = vst.msk [vmem:[#allocation3 + $0xb0] sm:$0xff] %vm1644, %v4309
    %4374 = vst.msk [vmem:[#allocation3 + $0xb8] sm:$0xff] %vm1644, %v4310
    %4375 = vst.msk [vmem:[#allocation3 + $0xc0] sm:$0xff] %vm1644, %v4311
    %4376 = vst.msk [vmem:[#allocation3 + $0xc8] sm:$0xff] %vm1644, %v4312
    %4377 = vst.msk [vmem:[#allocation3 + $0xd0] sm:$0xff] %vm1644, %v4313
    %4378 = vst.msk [vmem:[#allocation3 + $0xd8] sm:$0xff] %vm1644, %v4314
    %4379 = vst.msk [vmem:[#allocation3 + $0xe0] sm:$0xff] %vm1644, %v4315
    %4380 = vst.msk [vmem:[#allocation3 + $0xe8] sm:$0xff] %vm1644, %v4316
    %4381 = vst.msk [vmem:[#allocation3 + $0xf0] sm:$0xff] %vm1644, %v4317
    %4382 = vst.msk [vmem:[#allocation3 + $0xf8] sm:$0xff] %vm1644, %v4318
    %4383 = vst.msk [vmem:[#allocation3 + $0x100] sm:$0xff] %vm1644, %v4319
    %4384 = vst.msk [vmem:[#allocation3 + $0x108] sm:$0xff] %vm1644, %v4320
    %4385 = vst.msk [vmem:[#allocation3 + $0x110] sm:$0xff] %vm1644, %v4321
    %4386 = vst.msk [vmem:[#allocation3 + $0x118] sm:$0xff] %vm1644, %v4322
    %4387 = vst.msk [vmem:[#allocation3 + $0x120] sm:$0xff] %vm1644, %v4323
    %4388 = vst.msk [vmem:[#allocation3 + $0x128] sm:$0xff] %vm1644, %v4324
    %4389 = vst.msk [vmem:[#allocation3 + $0x130] sm:$0xff] %vm1644, %v4325
    %4390 = vst.msk [vmem:[#allocation3 + $0x138] sm:$0xff] %vm1644, %v4326
    %4391 = vst.msk [vmem:[#allocation3 + $0x140] sm:$0xff] %vm1644, %v4327
    %4392 = vst.msk [vmem:[#allocation3 + $0x148] sm:$0xff] %vm1644, %v4328
    %4393 = vst.msk [vmem:[#allocation3 + $0x150] sm:$0xff] %vm1644, %v4329
    %4394 = vst.msk [vmem:[#allocation3 + $0x158] sm:$0xff] %vm1644, %v4330
    %4395 = vst.msk [vmem:[#allocation3 + $0x160] sm:$0xff] %vm1644, %v4331
    %4396 = vst.msk [vmem:[#allocation3 + $0x168] sm:$0xff] %vm1644, %v4332
    %4397 = vst.msk [vmem:[#allocation3 + $0x170] sm:$0xff] %vm1644, %v4333
    %4398 = vst.msk [vmem:[#allocation3 + $0x178] sm:$0xff] %vm1644, %v4334
    %4399 = vst.msk [vmem:[#allocation3 + $0x180] sm:$0xff] %vm1644, %v4335
    %4400 = vst.msk [vmem:[#allocation3 + $0x188] sm:$0xff] %vm1644, %v4336
    %4401 = vst.msk [vmem:[#allocation3 + $0x190] sm:$0xff] %vm1644, %v4337
    %4402 = vst.msk [vmem:[#allocation3 + $0x198] sm:$0xff] %vm1644, %v4338
    %4403 = vst.msk [vmem:[#allocation3 + $0x1a0] sm:$0xff] %vm1644, %v4339
    %4404 = vst.msk [vmem:[#allocation3 + $0x1a8] sm:$0xff] %vm1644, %v4340
    %4405 = vst.msk [vmem:[#allocation3 + $0x1b0] sm:$0xff] %vm1644, %v4341
    %4406 = vst.msk [vmem:[#allocation3 + $0x1b8] sm:$0xff] %vm1644, %v4342
    %4407 = vst.msk [vmem:[#allocation3 + $0x1c0] sm:$0xff] %vm1644, %v4343
    %4408 = vst.msk [vmem:[#allocation3 + $0x1c8] sm:$0xff] %vm1644, %v4344
    %4409 = vst.msk [vmem:[#allocation3 + $0x1d0] sm:$0xff] %vm1644, %v4345
    %4410 = vst.msk [vmem:[#allocation3 + $0x1d8] sm:$0xff] %vm1644, %v4346
    %4411 = vst.msk [vmem:[#allocation3 + $0x1e0] sm:$0xff] %vm1644, %v4347
    %4412 = vst.msk [vmem:[#allocation3 + $0x1e8] sm:$0xff] %vm1644, %v4348
    %4413 = vst.msk [vmem:[#allocation3 + $0x1f0] sm:$0xff] %vm1644, %v4349
    %4414 = vst.msk [vmem:[#allocation3 + $0x1f8] sm:$0xff] %vm1644, %v4350
    %v4415 = vld [vmem:[#allocation3] sm:$0xff]
    %v4416 = vld [vmem:[#allocation3 + $0x8] sm:$0xff]
    %v4417 = vld [vmem:[#allocation3 + $0x10] sm:$0xff]
    %v4418 = vld [vmem:[#allocation3 + $0x18] sm:$0xff]
    %v4419 = vld [vmem:[#allocation3 + $0x20] sm:$0xff]
    %v4420 = vld [vmem:[#allocation3 + $0x28] sm:$0xff]
    %v4421 = vld [vmem:[#allocation3 + $0x30] sm:$0xff]
    %v4422 = vld [vmem:[#allocation3 + $0x38] sm:$0xff]
    %v4423 = vld [vmem:[#allocation3 + $0x40] sm:$0xff]
    %v4424 = vld [vmem:[#allocation3 + $0x48] sm:$0xff]
    %v4425 = vld [vmem:[#allocation3 + $0x50] sm:$0xff]
    %v4426 = vld [vmem:[#allocation3 + $0x58] sm:$0xff]
    %v4427 = vld [vmem:[#allocation3 + $0x60] sm:$0xff]
    %v4428 = vld [vmem:[#allocation3 + $0x68] sm:$0xff]
    %v4429 = vld [vmem:[#allocation3 + $0x70] sm:$0xff]
    %v4430 = vld [vmem:[#allocation3 + $0x78] sm:$0xff]
    %v4431 = vld [vmem:[#allocation3 + $0x80] sm:$0xff]
    %v4432 = vld [vmem:[#allocation3 + $0x88] sm:$0xff]
    %v4433 = vld [vmem:[#allocation3 + $0x90] sm:$0xff]
    %v4434 = vld [vmem:[#allocation3 + $0x98] sm:$0xff]
    %v4435 = vld [vmem:[#allocation3 + $0xa0] sm:$0xff]
    %v4436 = vld [vmem:[#allocation3 + $0xa8] sm:$0xff]
    %v4437 = vld [vmem:[#allocation3 + $0xb0] sm:$0xff]
    %v4438 = vld [vmem:[#allocation3 + $0xb8] sm:$0xff]
    %v4439 = vld [vmem:[#allocation3 + $0xc0] sm:$0xff]
    %v4440 = vld [vmem:[#allocation3 + $0xc8] sm:$0xff]
    %v4441 = vld [vmem:[#allocation3 + $0xd0] sm:$0xff]
    %v4442 = vld [vmem:[#allocation3 + $0xd8] sm:$0xff]
    %v4443 = vld [vmem:[#allocation3 + $0xe0] sm:$0xff]
    %v4444 = vld [vmem:[#allocation3 + $0xe8] sm:$0xff]
    %v4445 = vld [vmem:[#allocation3 + $0xf0] sm:$0xff]
    %v4446 = vld [vmem:[#allocation3 + $0xf8] sm:$0xff]
    %v4447 = vld [vmem:[#allocation3 + $0x100] sm:$0xff]
    %v4448 = vld [vmem:[#allocation3 + $0x108] sm:$0xff]
    %v4449 = vld [vmem:[#allocation3 + $0x110] sm:$0xff]
    %v4450 = vld [vmem:[#allocation3 + $0x118] sm:$0xff]
    %v4451 = vld [vmem:[#allocation3 + $0x120] sm:$0xff]
    %v4452 = vld [vmem:[#allocation3 + $0x128] sm:$0xff]
    %v4453 = vld [vmem:[#allocation3 + $0x130] sm:$0xff]
    %v4454 = vld [vmem:[#allocation3 + $0x138] sm:$0xff]
    %v4455 = vld [vmem:[#allocation3 + $0x140] sm:$0xff]
    %v4456 = vld [vmem:[#allocation3 + $0x148] sm:$0xff]
    %v4457 = vld [vmem:[#allocation3 + $0x150] sm:$0xff]
    %v4458 = vld [vmem:[#allocation3 + $0x158] sm:$0xff]
    %v4459 = vld [vmem:[#allocation3 + $0x160] sm:$0xff]
    %v4460 = vld [vmem:[#allocation3 + $0x168] sm:$0xff]
    %v4461 = vld [vmem:[#allocation3 + $0x170] sm:$0xff]
    %v4462 = vld [vmem:[#allocation3 + $0x178] sm:$0xff]
    %v4463 = vld [vmem:[#allocation3 + $0x180] sm:$0xff]
    %v4464 = vld [vmem:[#allocation3 + $0x188] sm:$0xff]
    %v4465 = vld [vmem:[#allocation3 + $0x190] sm:$0xff]
    %v4466 = vld [vmem:[#allocation3 + $0x198] sm:$0xff]
    %v4467 = vld [vmem:[#allocation3 + $0x1a0] sm:$0xff]
    %v4468 = vld [vmem:[#allocation3 + $0x1a8] sm:$0xff]
    %v4469 = vld [vmem:[#allocation3 + $0x1b0] sm:$0xff]
    %v4470 = vld [vmem:[#allocation3 + $0x1b8] sm:$0xff]
    %v4471 = vld [vmem:[#allocation3 + $0x1c0] sm:$0xff]
    %v4472 = vld [vmem:[#allocation3 + $0x1c8] sm:$0xff]
    %v4473 = vld [vmem:[#allocation3 + $0x1d0] sm:$0xff]
    %v4474 = vld [vmem:[#allocation3 + $0x1d8] sm:$0xff]
    %v4475 = vld [vmem:[#allocation3 + $0x1e0] sm:$0xff]
    %v4476 = vld [vmem:[#allocation3 + $0x1e8] sm:$0xff]
    %v4477 = vld [vmem:[#allocation3 + $0x1f0] sm:$0xff]
    %v4478 = vld [vmem:[#allocation3 + $0x1f8] sm:$0xff]
    %v4479 = vld [vmem:[%s4] sm:$0x1]
    %v4481 = vlaneseq
    %v4482 = vshrl.u32 %v4481, 7
    %v4483 = vsub.s32 0, %v4482
    %v4484 = vrot.slane %v4479, %v4483
    %v4486 = vadd.f32 %v4415, %v4484
    %v4487 = vadd.f32 %v4416, %v4484
    %v4488 = vadd.f32 %v4417, %v4484
    %v4489 = vadd.f32 %v4418, %v4484
    %v4490 = vadd.f32 %v4419, %v4484
    %v4491 = vadd.f32 %v4420, %v4484
    %v4492 = vadd.f32 %v4421, %v4484
    %v4493 = vadd.f32 %v4422, %v4484
    %v4494 = vadd.f32 %v4423, %v4484
    %v4495 = vadd.f32 %v4424, %v4484
    %v4496 = vadd.f32 %v4425, %v4484
    %v4497 = vadd.f32 %v4426, %v4484
    %v4498 = vadd.f32 %v4427, %v4484
    %v4499 = vadd.f32 %v4428, %v4484
    %v4500 = vadd.f32 %v4429, %v4484
    %v4501 = vadd.f32 %v4430, %v4484
    %v4502 = vadd.f32 %v4431, %v4484
    %v4503 = vadd.f32 %v4432, %v4484
    %v4504 = vadd.f32 %v4433, %v4484
    %v4505 = vadd.f32 %v4434, %v4484
    %v4506 = vadd.f32 %v4435, %v4484
    %v4507 = vadd.f32 %v4436, %v4484
    %v4508 = vadd.f32 %v4437, %v4484
    %v4509 = vadd.f32 %v4438, %v4484
    %v4510 = vadd.f32 %v4439, %v4484
    %v4511 = vadd.f32 %v4440, %v4484
    %v4512 = vadd.f32 %v4441, %v4484
    %v4513 = vadd.f32 %v4442, %v4484
    %v4514 = vadd.f32 %v4443, %v4484
    %v4515 = vadd.f32 %v4444, %v4484
    %v4516 = vadd.f32 %v4445, %v4484
    %v4517 = vadd.f32 %v4446, %v4484
    %v4518 = vadd.f32 %v4447, %v4484
    %v4519 = vadd.f32 %v4448, %v4484
    %v4520 = vadd.f32 %v4449, %v4484
    %v4521 = vadd.f32 %v4450, %v4484
    %v4522 = vadd.f32 %v4451, %v4484
    %v4523 = vadd.f32 %v4452, %v4484
    %v4524 = vadd.f32 %v4453, %v4484
    %v4525 = vadd.f32 %v4454, %v4484
    %v4526 = vadd.f32 %v4455, %v4484
    %v4527 = vadd.f32 %v4456, %v4484
    %v4528 = vadd.f32 %v4457, %v4484
    %v4529 = vadd.f32 %v4458, %v4484
    %v4530 = vadd.f32 %v4459, %v4484
    %v4531 = vadd.f32 %v4460, %v4484
    %v4532 = vadd.f32 %v4461, %v4484
    %v4533 = vadd.f32 %v4462, %v4484
    %v4534 = vadd.f32 %v4463, %v4484
    %v4535 = vadd.f32 %v4464, %v4484
    %v4536 = vadd.f32 %v4465, %v4484
    %v4537 = vadd.f32 %v4466, %v4484
    %v4538 = vadd.f32 %v4467, %v4484
    %v4539 = vadd.f32 %v4468, %v4484
    %v4540 = vadd.f32 %v4469, %v4484
    %v4541 = vadd.f32 %v4470, %v4484
    %v4542 = vadd.f32 %v4471, %v4484
    %v4543 = vadd.f32 %v4472, %v4484
    %v4544 = vadd.f32 %v4473, %v4484
    %v4545 = vadd.f32 %v4474, %v4484
    %v4546 = vadd.f32 %v4475, %v4484
    %v4547 = vadd.f32 %v4476, %v4484
    %v4548 = vadd.f32 %v4477, %v4484
    %v4549 = vadd.f32 %v4478, %v4484
    %v4550 = vmax.f32 %v4486, 0.0
    %v4551 = vmax.f32 %v4487, 0.0
    %v4552 = vmax.f32 %v4488, 0.0
    %v4553 = vmax.f32 %v4489, 0.0
    %v4554 = vmax.f32 %v4490, 0.0
    %v4555 = vmax.f32 %v4491, 0.0
    %v4556 = vmax.f32 %v4492, 0.0
    %v4557 = vmax.f32 %v4493, 0.0
    %v4558 = vmax.f32 %v4494, 0.0
    %v4559 = vmax.f32 %v4495, 0.0
    %v4560 = vmax.f32 %v4496, 0.0
    %v4561 = vmax.f32 %v4497, 0.0
    %v4562 = vmax.f32 %v4498, 0.0
    %v4563 = vmax.f32 %v4499, 0.0
    %v4564 = vmax.f32 %v4500, 0.0
    %v4565 = vmax.f32 %v4501, 0.0
    %v4566 = vmax.f32 %v4502, 0.0
    %v4567 = vmax.f32 %v4503, 0.0
    %v4568 = vmax.f32 %v4504, 0.0
    %v4569 = vmax.f32 %v4505, 0.0
    %v4570 = vmax.f32 %v4506, 0.0
    %v4571 = vmax.f32 %v4507, 0.0
    %v4572 = vmax.f32 %v4508, 0.0
    %v4573 = vmax.f32 %v4509, 0.0
    %v4574 = vmax.f32 %v4510, 0.0
    %v4575 = vmax.f32 %v4511, 0.0
    %v4576 = vmax.f32 %v4512, 0.0
    %v4577 = vmax.f32 %v4513, 0.0
    %v4578 = vmax.f32 %v4514, 0.0
    %v4579 = vmax.f32 %v4515, 0.0
    %v4580 = vmax.f32 %v4516, 0.0
    %v4581 = vmax.f32 %v4517, 0.0
    %v4582 = vmax.f32 %v4518, 0.0
    %v4583 = vmax.f32 %v4519, 0.0
    %v4584 = vmax.f32 %v4520, 0.0
    %v4585 = vmax.f32 %v4521, 0.0
    %v4586 = vmax.f32 %v4522, 0.0
    %v4587 = vmax.f32 %v4523, 0.0
    %v4588 = vmax.f32 %v4524, 0.0
    %v4589 = vmax.f32 %v4525, 0.0
    %v4590 = vmax.f32 %v4526, 0.0
    %v4591 = vmax.f32 %v4527, 0.0
    %v4592 = vmax.f32 %v4528, 0.0
    %v4593 = vmax.f32 %v4529, 0.0
    %v4594 = vmax.f32 %v4530, 0.0
    %v4595 = vmax.f32 %v4531, 0.0
    %v4596 = vmax.f32 %v4532, 0.0
    %v4597 = vmax.f32 %v4533, 0.0
    %v4598 = vmax.f32 %v4534, 0.0
    %v4599 = vmax.f32 %v4535, 0.0
    %v4600 = vmax.f32 %v4536, 0.0
    %v4601 = vmax.f32 %v4537, 0.0
    %v4602 = vmax.f32 %v4538, 0.0
    %v4603 = vmax.f32 %v4539, 0.0
    %v4604 = vmax.f32 %v4540, 0.0
    %v4605 = vmax.f32 %v4541, 0.0
    %v4606 = vmax.f32 %v4542, 0.0
    %v4607 = vmax.f32 %v4543, 0.0
    %v4608 = vmax.f32 %v4544, 0.0
    %v4609 = vmax.f32 %v4545, 0.0
    %v4610 = vmax.f32 %v4546, 0.0
    %v4611 = vmax.f32 %v4547, 0.0
    %v4612 = vmax.f32 %v4548, 0.0
    %v4613 = vmax.f32 %v4549, 0.0
    %v4614 = vpack.c.bf16 %v4551, %v4550
    %v4615 = vpack.c.bf16 %v4553, %v4552
    %v4616 = vpack.c.bf16 %v4555, %v4554
    %v4617 = vpack.c.bf16 %v4557, %v4556
    %v4618 = vpack.c.bf16 %v4559, %v4558
    %v4619 = vpack.c.bf16 %v4561, %v4560
    %v4620 = vpack.c.bf16 %v4563, %v4562
    %v4621 = vpack.c.bf16 %v4565, %v4564
    %v4622 = vpack.c.bf16 %v4567, %v4566
    %v4623 = vpack.c.bf16 %v4569, %v4568
    %v4624 = vpack.c.bf16 %v4571, %v4570
    %v4625 = vpack.c.bf16 %v4573, %v4572
    %v4626 = vpack.c.bf16 %v4575, %v4574
    %v4627 = vpack.c.bf16 %v4577, %v4576
    %v4628 = vpack.c.bf16 %v4579, %v4578
    %v4629 = vpack.c.bf16 %v4581, %v4580
    %v4630 = vpack.c.bf16 %v4583, %v4582
    %v4631 = vpack.c.bf16 %v4585, %v4584
    %v4632 = vpack.c.bf16 %v4587, %v4586
    %v4633 = vpack.c.bf16 %v4589, %v4588
    %v4634 = vpack.c.bf16 %v4591, %v4590
    %v4635 = vpack.c.bf16 %v4593, %v4592
    %v4636 = vpack.c.bf16 %v4595, %v4594
    %v4637 = vpack.c.bf16 %v4597, %v4596
    %v4638 = vpack.c.bf16 %v4599, %v4598
    %v4639 = vpack.c.bf16 %v4601, %v4600
    %v4640 = vpack.c.bf16 %v4603, %v4602
    %v4641 = vpack.c.bf16 %v4605, %v4604
    %v4642 = vpack.c.bf16 %v4607, %v4606
    %v4643 = vpack.c.bf16 %v4609, %v4608
    %v4644 = vpack.c.bf16 %v4611, %v4610
    %v4645 = vpack.c.bf16 %v4613, %v4612
    %v4646 = vld [vmem:[%s5] sm:$0x3]
    %v4647 = vld [vmem:[%s6] sm:$0x1]
    %v4649 = vlaneseq
    %v4650 = vshrl.u32 %v4649, 7
    %v4651 = vsub.s32 0, %v4650
    %v4652 = vrot.slane %v4647, %v4651
    %v4655 = vsel %vm1644, %v4614, 0
    %v4658 = vsel %vm1644, %v4615, 0
    %v4661 = vsel %vm1644, %v4616, 0
    %v4664 = vsel %vm1644, %v4617, 0
    %v4667 = vsel %vm1644, %v4618, 0
    %v4670 = vsel %vm1644, %v4619, 0
    %v4673 = vsel %vm1644, %v4620, 0
    %v4676 = vsel %vm1644, %v4621, 0
    %v4679 = vsel %vm1644, %v4622, 0
    %v4682 = vsel %vm1644, %v4623, 0
    %v4685 = vsel %vm1644, %v4624, 0
    %v4688 = vsel %vm1644, %v4625, 0
    %v4691 = vsel %vm1644, %v4626, 0
    %v4694 = vsel %vm1644, %v4627, 0
    %v4697 = vsel %vm1644, %v4628, 0
    %v4700 = vsel %vm1644, %v4629, 0
    %v4703 = vsel %vm1644, %v4630, 0
    %v4706 = vsel %vm1644, %v4631, 0
    %v4709 = vsel %vm1644, %v4632, 0
    %v4712 = vsel %vm1644, %v4633, 0
    %v4715 = vsel %vm1644, %v4634, 0
    %v4718 = vsel %vm1644, %v4635, 0
    %v4721 = vsel %vm1644, %v4636, 0
    %v4724 = vsel %vm1644, %v4637, 0
    %v4727 = vsel %vm1644, %v4638, 0
    %v4730 = vsel %vm1644, %v4639, 0
    %v4733 = vsel %vm1644, %v4640, 0
    %v4736 = vsel %vm1644, %v4641, 0
    %v4739 = vsel %vm1644, %v4642, 0
    %v4742 = vsel %vm1644, %v4643, 0
    %v4745 = vsel %vm1644, %v4644, 0
    %v4748 = vsel %vm1644, %v4645, 0
    %vm4750 = vcmask 1041408
    %v4752 = vsel %vm4750, %v4646, 0
    %4754 = vmatprep.subr.bf16.mxu0 0
    %4755 = vmatpush1.bf16.msra.mxu0 0
    %4756 = vmatprep.subr.bf16.mxu0 0
    %4757 = vmatpush1.bf16.msra.mxu0 0
    %4758 = vmatprep.subr.bf16.mxu0 0
    %4759 = vmatpush1.bf16.msra.mxu0 0
    %4760 = vmatprep.subr.bf16.mxu0 0
    %4761 = vmatpush1.bf16.msra.mxu0 0
    %4762 = vmatprep.subr.bf16.mxu0 0
    %4763 = vmatpush1.bf16.msra.mxu0 0
    %4764 = vmatprep.subr.bf16.mxu0 0
    %4765 = vmatpush1.bf16.msra.mxu0 0
    %4766 = vmatprep.subr.bf16.mxu0 0
    %4767 = vmatpush1.bf16.msra.mxu0 0
    %4768 = vmatprep.subr.bf16.mxu0 0
    %4769 = vmatpush1.bf16.msra.mxu0 %v4752
    %4770 = vmatprep.subr.bf16.mxu0 0
    %4771 = vmatpush2.bf16.msra.mxu0 0
    %4772 = vmatprep.subr.bf16.mxu0 0
    %4773 = vmatpush2.bf16.msra.mxu0 0
    %4774 = vmatprep.subr.bf16.mxu0 0
    %4775 = vmatpush2.bf16.msra.mxu0 0
    %4776 = vmatprep.subr.bf16.mxu0 0
    %4777 = vmatpush2.bf16.msra.mxu0 0
    %4778 = vmatprep.subr.bf16.mxu0 0
    %4779 = vmatpush2.bf16.msra.mxu0 0
    %4780 = vmatprep.subr.bf16.mxu0 0
    %4781 = vmatpush2.bf16.msra.mxu0 0
    %4782 = vmatprep.subr.bf16.mxu0 0
    %4783 = vmatpush2.bf16.msra.mxu0 0
    %4784 = vmatprep.subr.bf16.mxu0 0
    %4785 = vmatpush2.bf16.msra.mxu0 0
    %4786 = vmatprep.mubr.bf16.mxu0 0
    %4787 = vmatmul.mubr.bf16.gmra.mxu0 %v4655
    %v4788 = vpop.f32.mrf.mxu0
    %v4789 = vadd.f32 %v4652, %v4788
    %v4790 = vpop.f32.mrf.mxu0
    %v4791 = vpop.f32.mrf.mxu0
    %v4792 = vadd.f32 %v4652, %v4791
    %v4793 = vpop.f32.mrf.mxu0
    %4794 = vmatprep.mubr.bf16.mxu0 0
    %4795 = vmatmul.mubr.bf16.gmra.mxu0 %v4658
    %v4796 = vpop.f32.mrf.mxu0
    %v4797 = vadd.f32 %v4652, %v4796
    %v4798 = vpop.f32.mrf.mxu0
    %v4799 = vpop.f32.mrf.mxu0
    %v4800 = vadd.f32 %v4652, %v4799
    %v4801 = vpop.f32.mrf.mxu0
    %4802 = vmatprep.mubr.bf16.mxu0 0
    %4803 = vmatmul.mubr.bf16.gmra.mxu0 %v4661
    %v4804 = vpop.f32.mrf.mxu0
    %v4805 = vadd.f32 %v4652, %v4804
    %v4806 = vpop.f32.mrf.mxu0
    %v4807 = vpop.f32.mrf.mxu0
    %v4808 = vadd.f32 %v4652, %v4807
    %v4809 = vpop.f32.mrf.mxu0
    %4810 = vmatprep.mubr.bf16.mxu0 0
    %4811 = vmatmul.mubr.bf16.gmra.mxu0 %v4664
    %v4812 = vpop.f32.mrf.mxu0
    %v4813 = vadd.f32 %v4652, %v4812
    %v4814 = vpop.f32.mrf.mxu0
    %v4815 = vpop.f32.mrf.mxu0
    %v4816 = vadd.f32 %v4652, %v4815
    %v4817 = vpop.f32.mrf.mxu0
    %4818 = vmatprep.mubr.bf16.mxu0 0
    %4819 = vmatmul.mubr.bf16.gmra.mxu0 %v4667
    %v4820 = vpop.f32.mrf.mxu0
    %v4821 = vadd.f32 %v4652, %v4820
    %v4822 = vpop.f32.mrf.mxu0
    %v4823 = vpop.f32.mrf.mxu0
    %v4824 = vadd.f32 %v4652, %v4823
    %v4825 = vpop.f32.mrf.mxu0
    %4826 = vmatprep.mubr.bf16.mxu0 0
    %4827 = vmatmul.mubr.bf16.gmra.mxu0 %v4670
    %v4828 = vpop.f32.mrf.mxu0
    %v4829 = vadd.f32 %v4652, %v4828
    %v4830 = vpop.f32.mrf.mxu0
    %v4831 = vpop.f32.mrf.mxu0
    %v4832 = vadd.f32 %v4652, %v4831
    %v4833 = vpop.f32.mrf.mxu0
    %4834 = vmatprep.mubr.bf16.mxu0 0
    %4835 = vmatmul.mubr.bf16.gmra.mxu0 %v4673
    %v4836 = vpop.f32.mrf.mxu0
    %v4837 = vadd.f32 %v4652, %v4836
    %v4838 = vpop.f32.mrf.mxu0
    %v4839 = vpop.f32.mrf.mxu0
    %v4840 = vadd.f32 %v4652, %v4839
    %v4841 = vpop.f32.mrf.mxu0
    %4842 = vmatprep.mubr.bf16.mxu0 0
    %4843 = vmatmul.mubr.bf16.gmra.mxu0 %v4676
    %v4844 = vpop.f32.mrf.mxu0
    %v4845 = vadd.f32 %v4652, %v4844
    %v4846 = vpop.f32.mrf.mxu0
    %v4847 = vpop.f32.mrf.mxu0
    %v4848 = vadd.f32 %v4652, %v4847
    %v4849 = vpop.f32.mrf.mxu0
    %4850 = vmatprep.mubr.bf16.mxu0 0
    %4851 = vmatmul.mubr.bf16.gmra.mxu0 %v4679
    %v4852 = vpop.f32.mrf.mxu0
    %v4853 = vadd.f32 %v4652, %v4852
    %v4854 = vpop.f32.mrf.mxu0
    %v4855 = vpop.f32.mrf.mxu0
    %v4856 = vadd.f32 %v4652, %v4855
    %v4857 = vpop.f32.mrf.mxu0
    %4858 = vmatprep.mubr.bf16.mxu0 0
    %4859 = vmatmul.mubr.bf16.gmra.mxu0 %v4682
    %v4860 = vpop.f32.mrf.mxu0
    %v4861 = vadd.f32 %v4652, %v4860
    %v4862 = vpop.f32.mrf.mxu0
    %v4863 = vpop.f32.mrf.mxu0
    %v4864 = vadd.f32 %v4652, %v4863
    %v4865 = vpop.f32.mrf.mxu0
    %4866 = vmatprep.mubr.bf16.mxu0 0
    %4867 = vmatmul.mubr.bf16.gmra.mxu0 %v4685
    %v4868 = vpop.f32.mrf.mxu0
    %v4869 = vadd.f32 %v4652, %v4868
    %v4870 = vpop.f32.mrf.mxu0
    %v4871 = vpop.f32.mrf.mxu0
    %v4872 = vadd.f32 %v4652, %v4871
    %v4873 = vpop.f32.mrf.mxu0
    %4874 = vmatprep.mubr.bf16.mxu0 0
    %4875 = vmatmul.mubr.bf16.gmra.mxu0 %v4688
    %v4876 = vpop.f32.mrf.mxu0
    %v4877 = vadd.f32 %v4652, %v4876
    %v4878 = vpop.f32.mrf.mxu0
    %v4879 = vpop.f32.mrf.mxu0
    %v4880 = vadd.f32 %v4652, %v4879
    %v4881 = vpop.f32.mrf.mxu0
    %4882 = vmatprep.mubr.bf16.mxu0 0
    %4883 = vmatmul.mubr.bf16.gmra.mxu0 %v4691
    %v4884 = vpop.f32.mrf.mxu0
    %v4885 = vadd.f32 %v4652, %v4884
    %v4886 = vpop.f32.mrf.mxu0
    %v4887 = vpop.f32.mrf.mxu0
    %v4888 = vadd.f32 %v4652, %v4887
    %v4889 = vpop.f32.mrf.mxu0
    %4890 = vmatprep.mubr.bf16.mxu0 0
    %4891 = vmatmul.mubr.bf16.gmra.mxu0 %v4694
    %v4892 = vpop.f32.mrf.mxu0
    %v4893 = vadd.f32 %v4652, %v4892
    %v4894 = vpop.f32.mrf.mxu0
    %v4895 = vpop.f32.mrf.mxu0
    %v4896 = vadd.f32 %v4652, %v4895
    %v4897 = vpop.f32.mrf.mxu0
    %4898 = vmatprep.mubr.bf16.mxu0 0
    %4899 = vmatmul.mubr.bf16.gmra.mxu0 %v4697
    %v4900 = vpop.f32.mrf.mxu0
    %v4901 = vadd.f32 %v4652, %v4900
    %v4902 = vpop.f32.mrf.mxu0
    %v4903 = vpop.f32.mrf.mxu0
    %v4904 = vadd.f32 %v4652, %v4903
    %v4905 = vpop.f32.mrf.mxu0
    %4906 = vmatprep.mubr.bf16.mxu0 0
    %4907 = vmatmul.mubr.bf16.gmra.mxu0 %v4700
    %v4908 = vpop.f32.mrf.mxu0
    %v4909 = vadd.f32 %v4652, %v4908
    %v4910 = vpop.f32.mrf.mxu0
    %v4911 = vpop.f32.mrf.mxu0
    %v4912 = vadd.f32 %v4652, %v4911
    %v4913 = vpop.f32.mrf.mxu0
    %4914 = vmatprep.mubr.bf16.mxu0 0
    %4915 = vmatmul.mubr.bf16.gmra.mxu0 %v4703
    %v4916 = vpop.f32.mrf.mxu0
    %v4917 = vadd.f32 %v4652, %v4916
    %v4918 = vpop.f32.mrf.mxu0
    %v4919 = vpop.f32.mrf.mxu0
    %v4920 = vadd.f32 %v4652, %v4919
    %v4921 = vpop.f32.mrf.mxu0
    %4922 = vmatprep.mubr.bf16.mxu0 0
    %4923 = vmatmul.mubr.bf16.gmra.mxu0 %v4706
    %v4924 = vpop.f32.mrf.mxu0
    %v4925 = vadd.f32 %v4652, %v4924
    %v4926 = vpop.f32.mrf.mxu0
    %v4927 = vpop.f32.mrf.mxu0
    %v4928 = vadd.f32 %v4652, %v4927
    %v4929 = vpop.f32.mrf.mxu0
    %4930 = vmatprep.mubr.bf16.mxu0 0
    %4931 = vmatmul.mubr.bf16.gmra.mxu0 %v4709
    %v4932 = vpop.f32.mrf.mxu0
    %v4933 = vadd.f32 %v4652, %v4932
    %v4934 = vpop.f32.mrf.mxu0
    %v4935 = vpop.f32.mrf.mxu0
    %v4936 = vadd.f32 %v4652, %v4935
    %v4937 = vpop.f32.mrf.mxu0
    %4938 = vmatprep.mubr.bf16.mxu0 0
    %4939 = vmatmul.mubr.bf16.gmra.mxu0 %v4712
    %v4940 = vpop.f32.mrf.mxu0
    %v4941 = vadd.f32 %v4652, %v4940
    %v4942 = vpop.f32.mrf.mxu0
    %v4943 = vpop.f32.mrf.mxu0
    %v4944 = vadd.f32 %v4652, %v4943
    %v4945 = vpop.f32.mrf.mxu0
    %4946 = vmatprep.mubr.bf16.mxu0 0
    %4947 = vmatmul.mubr.bf16.gmra.mxu0 %v4715
    %v4948 = vpop.f32.mrf.mxu0
    %v4949 = vadd.f32 %v4652, %v4948
    %v4950 = vpop.f32.mrf.mxu0
    %v4951 = vpop.f32.mrf.mxu0
    %v4952 = vadd.f32 %v4652, %v4951
    %v4953 = vpop.f32.mrf.mxu0
    %4954 = vmatprep.mubr.bf16.mxu0 0
    %4955 = vmatmul.mubr.bf16.gmra.mxu0 %v4718
    %v4956 = vpop.f32.mrf.mxu0
    %v4957 = vadd.f32 %v4652, %v4956
    %v4958 = vpop.f32.mrf.mxu0
    %v4959 = vpop.f32.mrf.mxu0
    %v4960 = vadd.f32 %v4652, %v4959
    %v4961 = vpop.f32.mrf.mxu0
    %4962 = vmatprep.mubr.bf16.mxu0 0
    %4963 = vmatmul.mubr.bf16.gmra.mxu0 %v4721
    %v4964 = vpop.f32.mrf.mxu0
    %v4965 = vadd.f32 %v4652, %v4964
    %v4966 = vpop.f32.mrf.mxu0
    %v4967 = vpop.f32.mrf.mxu0
    %v4968 = vadd.f32 %v4652, %v4967
    %v4969 = vpop.f32.mrf.mxu0
    %4970 = vmatprep.mubr.bf16.mxu0 0
    %4971 = vmatmul.mubr.bf16.gmra.mxu0 %v4724
    %v4972 = vpop.f32.mrf.mxu0
    %v4973 = vadd.f32 %v4652, %v4972
    %v4974 = vpop.f32.mrf.mxu0
    %v4975 = vpop.f32.mrf.mxu0
    %v4976 = vadd.f32 %v4652, %v4975
    %v4977 = vpop.f32.mrf.mxu0
    %4978 = vmatprep.mubr.bf16.mxu0 0
    %4979 = vmatmul.mubr.bf16.gmra.mxu0 %v4727
    %v4980 = vpop.f32.mrf.mxu0
    %v4981 = vadd.f32 %v4652, %v4980
    %v4982 = vpop.f32.mrf.mxu0
    %v4983 = vpop.f32.mrf.mxu0
    %v4984 = vadd.f32 %v4652, %v4983
    %v4985 = vpop.f32.mrf.mxu0
    %4986 = vmatprep.mubr.bf16.mxu0 0
    %4987 = vmatmul.mubr.bf16.gmra.mxu0 %v4730
    %v4988 = vpop.f32.mrf.mxu0
    %v4989 = vadd.f32 %v4652, %v4988
    %v4990 = vpop.f32.mrf.mxu0
    %v4991 = vpop.f32.mrf.mxu0
    %v4992 = vadd.f32 %v4652, %v4991
    %v4993 = vpop.f32.mrf.mxu0
    %4994 = vmatprep.mubr.bf16.mxu0 0
    %4995 = vmatmul.mubr.bf16.gmra.mxu0 %v4733
    %v4996 = vpop.f32.mrf.mxu0
    %v4997 = vadd.f32 %v4652, %v4996
    %v4998 = vpop.f32.mrf.mxu0
    %v4999 = vpop.f32.mrf.mxu0
    %v5000 = vadd.f32 %v4652, %v4999
    %v5001 = vpop.f32.mrf.mxu0
    %5002 = vmatprep.mubr.bf16.mxu0 0
    %5003 = vmatmul.mubr.bf16.gmra.mxu0 %v4736
    %v5004 = vpop.f32.mrf.mxu0
    %v5005 = vadd.f32 %v4652, %v5004
    %v5006 = vpop.f32.mrf.mxu0
    %v5007 = vpop.f32.mrf.mxu0
    %v5008 = vadd.f32 %v4652, %v5007
    %v5009 = vpop.f32.mrf.mxu0
    %5010 = vmatprep.mubr.bf16.mxu0 0
    %5011 = vmatmul.mubr.bf16.gmra.mxu0 %v4739
    %v5012 = vpop.f32.mrf.mxu0
    %v5013 = vadd.f32 %v4652, %v5012
    %v5014 = vpop.f32.mrf.mxu0
    %v5015 = vpop.f32.mrf.mxu0
    %v5016 = vadd.f32 %v4652, %v5015
    %v5017 = vpop.f32.mrf.mxu0
    %5018 = vmatprep.mubr.bf16.mxu0 0
    %5019 = vmatmul.mubr.bf16.gmra.mxu0 %v4742
    %v5020 = vpop.f32.mrf.mxu0
    %v5021 = vadd.f32 %v4652, %v5020
    %v5022 = vpop.f32.mrf.mxu0
    %v5023 = vpop.f32.mrf.mxu0
    %v5024 = vadd.f32 %v4652, %v5023
    %v5025 = vpop.f32.mrf.mxu0
    %5026 = vmatprep.mubr.bf16.mxu0 0
    %5027 = vmatmul.mubr.bf16.gmra.mxu0 %v4745
    %v5028 = vpop.f32.mrf.mxu0
    %v5029 = vadd.f32 %v4652, %v5028
    %v5030 = vpop.f32.mrf.mxu0
    %v5031 = vpop.f32.mrf.mxu0
    %v5032 = vadd.f32 %v4652, %v5031
    %v5033 = vpop.f32.mrf.mxu0
    %5034 = vmatprep.mubr.bf16.mxu0 0
    %5035 = vmatmul.mubr.bf16.gmra.mxu0 %v4748
    %v5036 = vpop.f32.mrf.mxu0
    %v5037 = vadd.f32 %v4652, %v5036
    %v5038 = vpop.f32.mrf.mxu0
    %v5039 = vpop.f32.mrf.mxu0
    %v5040 = vadd.f32 %v4652, %v5039
    %v5041 = vpop.f32.mrf.mxu0
    %5042 = vdwg.mxu0
    %v5043 = vld [vmem:[#allocation4] sm:$0xf]
    %v5044 = vld [vmem:[#allocation4 + $0x4] sm:$0xf]
    %v5045 = vld [vmem:[#allocation4 + $0x8] sm:$0xf]
    %v5046 = vld [vmem:[#allocation4 + $0xc] sm:$0xf]
    %v5047 = vld [vmem:[#allocation4 + $0x10] sm:$0xf]
    %v5048 = vld [vmem:[#allocation4 + $0x14] sm:$0xf]
    %v5049 = vld [vmem:[#allocation4 + $0x18] sm:$0xf]
    %v5050 = vld [vmem:[#allocation4 + $0x1c] sm:$0xf]
    %v5051 = vld [vmem:[#allocation4 + $0x20] sm:$0xf]
    %v5052 = vld [vmem:[#allocation4 + $0x24] sm:$0xf]
    %v5053 = vld [vmem:[#allocation4 + $0x28] sm:$0xf]
    %v5054 = vld [vmem:[#allocation4 + $0x2c] sm:$0xf]
    %v5055 = vld [vmem:[#allocation4 + $0x30] sm:$0xf]
    %v5056 = vld [vmem:[#allocation4 + $0x34] sm:$0xf]
    %v5057 = vld [vmem:[#allocation4 + $0x38] sm:$0xf]
    %v5058 = vld [vmem:[#allocation4 + $0x3c] sm:$0xf]
    %v5059 = vld [vmem:[#allocation4 + $0x40] sm:$0xf]
    %v5060 = vld [vmem:[#allocation4 + $0x44] sm:$0xf]
    %v5061 = vld [vmem:[#allocation4 + $0x48] sm:$0xf]
    %v5062 = vld [vmem:[#allocation4 + $0x4c] sm:$0xf]
    %v5063 = vld [vmem:[#allocation4 + $0x50] sm:$0xf]
    %v5064 = vld [vmem:[#allocation4 + $0x54] sm:$0xf]
    %v5065 = vld [vmem:[#allocation4 + $0x58] sm:$0xf]
    %v5066 = vld [vmem:[#allocation4 + $0x5c] sm:$0xf]
    %v5067 = vld [vmem:[#allocation4 + $0x60] sm:$0xf]
    %v5068 = vld [vmem:[#allocation4 + $0x64] sm:$0xf]
    %v5069 = vld [vmem:[#allocation4 + $0x68] sm:$0xf]
    %v5070 = vld [vmem:[#allocation4 + $0x6c] sm:$0xf]
    %v5071 = vld [vmem:[#allocation4 + $0x70] sm:$0xf]
    %v5072 = vld [vmem:[#allocation4 + $0x74] sm:$0xf]
    %v5073 = vld [vmem:[#allocation4 + $0x78] sm:$0xf]
    %v5074 = vld [vmem:[#allocation4 + $0x7c] sm:$0xf]
    %v5075 = vld [vmem:[#allocation4 + $0x80] sm:$0xf]
    %v5076 = vld [vmem:[#allocation4 + $0x84] sm:$0xf]
    %v5077 = vld [vmem:[#allocation4 + $0x88] sm:$0xf]
    %v5078 = vld [vmem:[#allocation4 + $0x8c] sm:$0xf]
    %v5079 = vld [vmem:[#allocation4 + $0x90] sm:$0xf]
    %v5080 = vld [vmem:[#allocation4 + $0x94] sm:$0xf]
    %v5081 = vld [vmem:[#allocation4 + $0x98] sm:$0xf]
    %v5082 = vld [vmem:[#allocation4 + $0x9c] sm:$0xf]
    %v5083 = vld [vmem:[#allocation4 + $0xa0] sm:$0xf]
    %v5084 = vld [vmem:[#allocation4 + $0xa4] sm:$0xf]
    %v5085 = vld [vmem:[#allocation4 + $0xa8] sm:$0xf]
    %v5086 = vld [vmem:[#allocation4 + $0xac] sm:$0xf]
    %v5087 = vld [vmem:[#allocation4 + $0xb0] sm:$0xf]
    %v5088 = vld [vmem:[#allocation4 + $0xb4] sm:$0xf]
    %v5089 = vld [vmem:[#allocation4 + $0xb8] sm:$0xf]
    %v5090 = vld [vmem:[#allocation4 + $0xbc] sm:$0xf]
    %v5091 = vld [vmem:[#allocation4 + $0xc0] sm:$0xf]
    %v5092 = vld [vmem:[#allocation4 + $0xc4] sm:$0xf]
    %v5093 = vld [vmem:[#allocation4 + $0xc8] sm:$0xf]
    %v5094 = vld [vmem:[#allocation4 + $0xcc] sm:$0xf]
    %v5095 = vld [vmem:[#allocation4 + $0xd0] sm:$0xf]
    %v5096 = vld [vmem:[#allocation4 + $0xd4] sm:$0xf]
    %v5097 = vld [vmem:[#allocation4 + $0xd8] sm:$0xf]
    %v5098 = vld [vmem:[#allocation4 + $0xdc] sm:$0xf]
    %v5099 = vld [vmem:[#allocation4 + $0xe0] sm:$0xf]
    %v5100 = vld [vmem:[#allocation4 + $0xe4] sm:$0xf]
    %v5101 = vld [vmem:[#allocation4 + $0xe8] sm:$0xf]
    %v5102 = vld [vmem:[#allocation4 + $0xec] sm:$0xf]
    %v5103 = vld [vmem:[#allocation4 + $0xf0] sm:$0xf]
    %v5104 = vld [vmem:[#allocation4 + $0xf4] sm:$0xf]
    %v5105 = vld [vmem:[#allocation4 + $0xf8] sm:$0xf]
    %v5106 = vld [vmem:[#allocation4 + $0xfc] sm:$0xf]
    %v5107 = vunpack.c.l.bf16 %v5043
    %v5108 = vunpack.c.l.bf16 %v5044
    %v5109 = vunpack.c.l.bf16 %v5045
    %v5110 = vunpack.c.l.bf16 %v5046
    %v5111 = vunpack.c.l.bf16 %v5047
    %v5112 = vunpack.c.l.bf16 %v5048
    %v5113 = vunpack.c.l.bf16 %v5049
    %v5114 = vunpack.c.l.bf16 %v5050
    %v5115 = vunpack.c.l.bf16 %v5051
    %v5116 = vunpack.c.l.bf16 %v5052
    %v5117 = vunpack.c.l.bf16 %v5053
    %v5118 = vunpack.c.l.bf16 %v5054
    %v5119 = vunpack.c.l.bf16 %v5055
    %v5120 = vunpack.c.l.bf16 %v5056
    %v5121 = vunpack.c.l.bf16 %v5057
    %v5122 = vunpack.c.l.bf16 %v5058
    %v5123 = vunpack.c.l.bf16 %v5059
    %v5124 = vunpack.c.l.bf16 %v5060
    %v5125 = vunpack.c.l.bf16 %v5061
    %v5126 = vunpack.c.l.bf16 %v5062
    %v5127 = vunpack.c.l.bf16 %v5063
    %v5128 = vunpack.c.l.bf16 %v5064
    %v5129 = vunpack.c.l.bf16 %v5065
    %v5130 = vunpack.c.l.bf16 %v5066
    %v5131 = vunpack.c.l.bf16 %v5067
    %v5132 = vunpack.c.l.bf16 %v5068
    %v5133 = vunpack.c.l.bf16 %v5069
    %v5134 = vunpack.c.l.bf16 %v5070
    %v5135 = vunpack.c.l.bf16 %v5071
    %v5136 = vunpack.c.l.bf16 %v5072
    %v5137 = vunpack.c.l.bf16 %v5073
    %v5138 = vunpack.c.l.bf16 %v5074
    %v5139 = vunpack.c.l.bf16 %v5075
    %v5140 = vunpack.c.l.bf16 %v5076
    %v5141 = vunpack.c.l.bf16 %v5077
    %v5142 = vunpack.c.l.bf16 %v5078
    %v5143 = vunpack.c.l.bf16 %v5079
    %v5144 = vunpack.c.l.bf16 %v5080
    %v5145 = vunpack.c.l.bf16 %v5081
    %v5146 = vunpack.c.l.bf16 %v5082
    %v5147 = vunpack.c.l.bf16 %v5083
    %v5148 = vunpack.c.l.bf16 %v5084
    %v5149 = vunpack.c.l.bf16 %v5085
    %v5150 = vunpack.c.l.bf16 %v5086
    %v5151 = vunpack.c.l.bf16 %v5087
    %v5152 = vunpack.c.l.bf16 %v5088
    %v5153 = vunpack.c.l.bf16 %v5089
    %v5154 = vunpack.c.l.bf16 %v5090
    %v5155 = vunpack.c.l.bf16 %v5091
    %v5156 = vunpack.c.l.bf16 %v5092
    %v5157 = vunpack.c.l.bf16 %v5093
    %v5158 = vunpack.c.l.bf16 %v5094
    %v5159 = vunpack.c.l.bf16 %v5095
    %v5160 = vunpack.c.l.bf16 %v5096
    %v5161 = vunpack.c.l.bf16 %v5097
    %v5162 = vunpack.c.l.bf16 %v5098
    %v5163 = vunpack.c.l.bf16 %v5099
    %v5164 = vunpack.c.l.bf16 %v5100
    %v5165 = vunpack.c.l.bf16 %v5101
    %v5166 = vunpack.c.l.bf16 %v5102
    %v5167 = vunpack.c.l.bf16 %v5103
    %v5168 = vunpack.c.l.bf16 %v5104
    %v5169 = vunpack.c.l.bf16 %v5105
    %v5170 = vunpack.c.l.bf16 %v5106
    %v5171 = vadd.f32 %v4789, %v5107
    %v5172 = vadd.f32 %v4792, %v5108
    %v5173 = vadd.f32 %v4797, %v5109
    %v5174 = vadd.f32 %v4800, %v5110
    %v5175 = vadd.f32 %v4805, %v5111
    %v5176 = vadd.f32 %v4808, %v5112
    %v5177 = vadd.f32 %v4813, %v5113
    %v5178 = vadd.f32 %v4816, %v5114
    %v5179 = vadd.f32 %v4821, %v5115
    %v5180 = vadd.f32 %v4824, %v5116
    %v5181 = vadd.f32 %v4829, %v5117
    %v5182 = vadd.f32 %v4832, %v5118
    %v5183 = vadd.f32 %v4837, %v5119
    %v5184 = vadd.f32 %v4840, %v5120
    %v5185 = vadd.f32 %v4845, %v5121
    %v5186 = vadd.f32 %v4848, %v5122
    %v5187 = vadd.f32 %v4853, %v5123
    %v5188 = vadd.f32 %v4856, %v5124
    %v5189 = vadd.f32 %v4861, %v5125
    %v5190 = vadd.f32 %v4864, %v5126
    %v5191 = vadd.f32 %v4869, %v5127
    %v5192 = vadd.f32 %v4872, %v5128
    %v5193 = vadd.f32 %v4877, %v5129
    %v5194 = vadd.f32 %v4880, %v5130
    %v5195 = vadd.f32 %v4885, %v5131
    %v5196 = vadd.f32 %v4888, %v5132
    %v5197 = vadd.f32 %v4893, %v5133
    %v5198 = vadd.f32 %v4896, %v5134
    %v5199 = vadd.f32 %v4901, %v5135
    %v5200 = vadd.f32 %v4904, %v5136
    %v5201 = vadd.f32 %v4909, %v5137
    %v5202 = vadd.f32 %v4912, %v5138
    %v5203 = vadd.f32 %v4917, %v5139
    %v5204 = vadd.f32 %v4920, %v5140
    %v5205 = vadd.f32 %v4925, %v5141
    %v5206 = vadd.f32 %v4928, %v5142
    %v5207 = vadd.f32 %v4933, %v5143
    %v5208 = vadd.f32 %v4936, %v5144
    %v5209 = vadd.f32 %v4941, %v5145
    %v5210 = vadd.f32 %v4944, %v5146
    %v5211 = vadd.f32 %v4949, %v5147
    %v5212 = vadd.f32 %v4952, %v5148
    %v5213 = vadd.f32 %v4957, %v5149
    %v5214 = vadd.f32 %v4960, %v5150
    %v5215 = vadd.f32 %v4965, %v5151
    %v5216 = vadd.f32 %v4968, %v5152
    %v5217 = vadd.f32 %v4973, %v5153
    %v5218 = vadd.f32 %v4976, %v5154
    %v5219 = vadd.f32 %v4981, %v5155
    %v5220 = vadd.f32 %v4984, %v5156
    %v5221 = vadd.f32 %v4989, %v5157
    %v5222 = vadd.f32 %v4992, %v5158
    %v5223 = vadd.f32 %v4997, %v5159
    %v5224 = vadd.f32 %v5000, %v5160
    %v5225 = vadd.f32 %v5005, %v5161
    %v5226 = vadd.f32 %v5008, %v5162
    %v5227 = vadd.f32 %v5013, %v5163
    %v5228 = vadd.f32 %v5016, %v5164
    %v5229 = vadd.f32 %v5021, %v5165
    %v5230 = vadd.f32 %v5024, %v5166
    %v5231 = vadd.f32 %v5029, %v5167
    %v5232 = vadd.f32 %v5032, %v5168
    %v5233 = vadd.f32 %v5037, %v5169
    %v5234 = vadd.f32 %v5040, %v5170
    %v5235 = vmax.f32 %v5171, 0.0
    %v5236 = vmax.f32 %v5172, 0.0
    %v5237 = vmax.f32 %v5173, 0.0
    %v5238 = vmax.f32 %v5174, 0.0
    %v5239 = vmax.f32 %v5175, 0.0
    %v5240 = vmax.f32 %v5176, 0.0
    %v5241 = vmax.f32 %v5177, 0.0
    %v5242 = vmax.f32 %v5178, 0.0
    %v5243 = vmax.f32 %v5179, 0.0
    %v5244 = vmax.f32 %v5180, 0.0
    %v5245 = vmax.f32 %v5181, 0.0
    %v5246 = vmax.f32 %v5182, 0.0
    %v5247 = vmax.f32 %v5183, 0.0
    %v5248 = vmax.f32 %v5184, 0.0
    %v5249 = vmax.f32 %v5185, 0.0
    %v5250 = vmax.f32 %v5186, 0.0
    %v5251 = vmax.f32 %v5187, 0.0
    %v5252 = vmax.f32 %v5188, 0.0
    %v5253 = vmax.f32 %v5189, 0.0
    %v5254 = vmax.f32 %v5190, 0.0
    %v5255 = vmax.f32 %v5191, 0.0
    %v5256 = vmax.f32 %v5192, 0.0
    %v5257 = vmax.f32 %v5193, 0.0
    %v5258 = vmax.f32 %v5194, 0.0
    %v5259 = vmax.f32 %v5195, 0.0
    %v5260 = vmax.f32 %v5196, 0.0
    %v5261 = vmax.f32 %v5197, 0.0
    %v5262 = vmax.f32 %v5198, 0.0
    %v5263 = vmax.f32 %v5199, 0.0
    %v5264 = vmax.f32 %v5200, 0.0
    %v5265 = vmax.f32 %v5201, 0.0
    %v5266 = vmax.f32 %v5202, 0.0
    %v5267 = vmax.f32 %v5203, 0.0
    %v5268 = vmax.f32 %v5204, 0.0
    %v5269 = vmax.f32 %v5205, 0.0
    %v5270 = vmax.f32 %v5206, 0.0
    %v5271 = vmax.f32 %v5207, 0.0
    %v5272 = vmax.f32 %v5208, 0.0
    %v5273 = vmax.f32 %v5209, 0.0
    %v5274 = vmax.f32 %v5210, 0.0
    %v5275 = vmax.f32 %v5211, 0.0
    %v5276 = vmax.f32 %v5212, 0.0
    %v5277 = vmax.f32 %v5213, 0.0
    %v5278 = vmax.f32 %v5214, 0.0
    %v5279 = vmax.f32 %v5215, 0.0
    %v5280 = vmax.f32 %v5216, 0.0
    %v5281 = vmax.f32 %v5217, 0.0
    %v5282 = vmax.f32 %v5218, 0.0
    %v5283 = vmax.f32 %v5219, 0.0
    %v5284 = vmax.f32 %v5220, 0.0
    %v5285 = vmax.f32 %v5221, 0.0
    %v5286 = vmax.f32 %v5222, 0.0
    %v5287 = vmax.f32 %v5223, 0.0
    %v5288 = vmax.f32 %v5224, 0.0
    %v5289 = vmax.f32 %v5225, 0.0
    %v5290 = vmax.f32 %v5226, 0.0
    %v5291 = vmax.f32 %v5227, 0.0
    %v5292 = vmax.f32 %v5228, 0.0
    %v5293 = vmax.f32 %v5229, 0.0
    %v5294 = vmax.f32 %v5230, 0.0
    %v5295 = vmax.f32 %v5231, 0.0
    %v5296 = vmax.f32 %v5232, 0.0
    %v5297 = vmax.f32 %v5233, 0.0
    %v5298 = vmax.f32 %v5234, 0.0
    %v5299 = vpack.c.bf16 %v5236, %v5235
    %v5300 = vpack.c.bf16 %v5238, %v5237
    %v5301 = vpack.c.bf16 %v5240, %v5239
    %v5302 = vpack.c.bf16 %v5242, %v5241
    %v5303 = vpack.c.bf16 %v5244, %v5243
    %v5304 = vpack.c.bf16 %v5246, %v5245
    %v5305 = vpack.c.bf16 %v5248, %v5247
    %v5306 = vpack.c.bf16 %v5250, %v5249
    %v5307 = vpack.c.bf16 %v5252, %v5251
    %v5308 = vpack.c.bf16 %v5254, %v5253
    %v5309 = vpack.c.bf16 %v5256, %v5255
    %v5310 = vpack.c.bf16 %v5258, %v5257
    %v5311 = vpack.c.bf16 %v5260, %v5259
    %v5312 = vpack.c.bf16 %v5262, %v5261
    %v5313 = vpack.c.bf16 %v5264, %v5263
    %v5314 = vpack.c.bf16 %v5266, %v5265
    %v5315 = vpack.c.bf16 %v5268, %v5267
    %v5316 = vpack.c.bf16 %v5270, %v5269
    %v5317 = vpack.c.bf16 %v5272, %v5271
    %v5318 = vpack.c.bf16 %v5274, %v5273
    %v5319 = vpack.c.bf16 %v5276, %v5275
    %v5320 = vpack.c.bf16 %v5278, %v5277
    %v5321 = vpack.c.bf16 %v5280, %v5279
    %v5322 = vpack.c.bf16 %v5282, %v5281
    %v5323 = vpack.c.bf16 %v5284, %v5283
    %v5324 = vpack.c.bf16 %v5286, %v5285
    %v5325 = vpack.c.bf16 %v5288, %v5287
    %v5326 = vpack.c.bf16 %v5290, %v5289
    %v5327 = vpack.c.bf16 %v5292, %v5291
    %v5328 = vpack.c.bf16 %v5294, %v5293
    %v5329 = vpack.c.bf16 %v5296, %v5295
    %v5330 = vpack.c.bf16 %v5298, %v5297
    %v5363 = vunpack.c.l.b16 %v5299
    %v5364 = vunpack.c.h.b16 %v5299
    %v5365 = vunpack.c.l.b16 %v5300
    %v5366 = vunpack.c.h.b16 %v5300
    %v5367 = vunpack.c.l.b16 %v5301
    %v5368 = vunpack.c.h.b16 %v5301
    %v5369 = vunpack.c.l.b16 %v5302
    %v5370 = vunpack.c.h.b16 %v5302
    %v5371 = vunpack.c.l.b16 %v5303
    %v5372 = vunpack.c.h.b16 %v5303
    %v5373 = vunpack.c.l.b16 %v5304
    %v5374 = vunpack.c.h.b16 %v5304
    %v5375 = vunpack.c.l.b16 %v5305
    %v5376 = vunpack.c.h.b16 %v5305
    %v5377 = vunpack.c.l.b16 %v5306
    %v5378 = vunpack.c.h.b16 %v5306
    %v5379 = vunpack.c.l.b16 %v5307
    %v5380 = vunpack.c.h.b16 %v5307
    %v5381 = vunpack.c.l.b16 %v5308
    %v5382 = vunpack.c.h.b16 %v5308
    %v5383 = vunpack.c.l.b16 %v5309
    %v5384 = vunpack.c.h.b16 %v5309
    %v5385 = vunpack.c.l.b16 %v5310
    %v5386 = vunpack.c.h.b16 %v5310
    %v5387 = vunpack.c.l.b16 %v5311
    %v5388 = vunpack.c.h.b16 %v5311
    %v5389 = vunpack.c.l.b16 %v5312
    %v5390 = vunpack.c.h.b16 %v5312
    %v5391 = vunpack.c.l.b16 %v5313
    %v5392 = vunpack.c.h.b16 %v5313
    %v5393 = vunpack.c.l.b16 %v5314
    %v5394 = vunpack.c.h.b16 %v5314
    %v5395 = vunpack.c.l.b16 %v5315
    %v5396 = vunpack.c.h.b16 %v5315
    %v5397 = vunpack.c.l.b16 %v5316
    %v5398 = vunpack.c.h.b16 %v5316
    %v5399 = vunpack.c.l.b16 %v5317
    %v5400 = vunpack.c.h.b16 %v5317
    %v5401 = vunpack.c.l.b16 %v5318
    %v5402 = vunpack.c.h.b16 %v5318
    %v5403 = vunpack.c.l.b16 %v5319
    %v5404 = vunpack.c.h.b16 %v5319
    %v5405 = vunpack.c.l.b16 %v5320
    %v5406 = vunpack.c.h.b16 %v5320
    %v5407 = vunpack.c.l.b16 %v5321
    %v5408 = vunpack.c.h.b16 %v5321
    %v5409 = vunpack.c.l.b16 %v5322
    %v5410 = vunpack.c.h.b16 %v5322
    %v5411 = vunpack.c.l.b16 %v5323
    %v5412 = vunpack.c.h.b16 %v5323
    %v5413 = vunpack.c.l.b16 %v5324
    %v5414 = vunpack.c.h.b16 %v5324
    %v5415 = vunpack.c.l.b16 %v5325
    %v5416 = vunpack.c.h.b16 %v5325
    %v5417 = vunpack.c.l.b16 %v5326
    %v5418 = vunpack.c.h.b16 %v5326
    %v5419 = vunpack.c.l.b16 %v5327
    %v5420 = vunpack.c.h.b16 %v5327
    %v5421 = vunpack.c.l.b16 %v5328
    %v5422 = vunpack.c.h.b16 %v5328
    %v5423 = vunpack.c.l.b16 %v5329
    %v5424 = vunpack.c.h.b16 %v5329
    %v5425 = vunpack.c.l.b16 %v5330
    %v5426 = vunpack.c.h.b16 %v5330
    %v5427 = vpack.c.b16 %v5363, %v5363
    %v5428 = vpack.c.b16 %v5364, %v5364
    %v5429 = vpack.c.b16 %v5365, %v5365
    %v5430 = vpack.c.b16 %v5366, %v5366
    %v5431 = vpack.c.b16 %v5367, %v5367
    %v5432 = vpack.c.b16 %v5368, %v5368
    %v5433 = vpack.c.b16 %v5369, %v5369
    %v5434 = vpack.c.b16 %v5370, %v5370
    %v5435 = vpack.c.b16 %v5371, %v5371
    %v5436 = vpack.c.b16 %v5372, %v5372
    %v5437 = vpack.c.b16 %v5373, %v5373
    %v5438 = vpack.c.b16 %v5374, %v5374
    %v5439 = vpack.c.b16 %v5375, %v5375
    %v5440 = vpack.c.b16 %v5376, %v5376
    %v5441 = vpack.c.b16 %v5377, %v5377
    %v5442 = vpack.c.b16 %v5378, %v5378
    %v5443 = vpack.c.b16 %v5379, %v5379
    %v5444 = vpack.c.b16 %v5380, %v5380
    %v5445 = vpack.c.b16 %v5381, %v5381
    %v5446 = vpack.c.b16 %v5382, %v5382
    %v5447 = vpack.c.b16 %v5383, %v5383
    %v5448 = vpack.c.b16 %v5384, %v5384
    %v5449 = vpack.c.b16 %v5385, %v5385
    %v5450 = vpack.c.b16 %v5386, %v5386
    %v5451 = vpack.c.b16 %v5387, %v5387
    %v5452 = vpack.c.b16 %v5388, %v5388
    %v5453 = vpack.c.b16 %v5389, %v5389
    %v5454 = vpack.c.b16 %v5390, %v5390
    %v5455 = vpack.c.b16 %v5391, %v5391
    %v5456 = vpack.c.b16 %v5392, %v5392
    %v5457 = vpack.c.b16 %v5393, %v5393
    %v5458 = vpack.c.b16 %v5394, %v5394
    %v5459 = vpack.c.b16 %v5395, %v5395
    %v5460 = vpack.c.b16 %v5396, %v5396
    %v5461 = vpack.c.b16 %v5397, %v5397
    %v5462 = vpack.c.b16 %v5398, %v5398
    %v5463 = vpack.c.b16 %v5399, %v5399
    %v5464 = vpack.c.b16 %v5400, %v5400
    %v5465 = vpack.c.b16 %v5401, %v5401
    %v5466 = vpack.c.b16 %v5402, %v5402
    %v5467 = vpack.c.b16 %v5403, %v5403
    %v5468 = vpack.c.b16 %v5404, %v5404
    %v5469 = vpack.c.b16 %v5405, %v5405
    %v5470 = vpack.c.b16 %v5406, %v5406
    %v5471 = vpack.c.b16 %v5407, %v5407
    %v5472 = vpack.c.b16 %v5408, %v5408
    %v5473 = vpack.c.b16 %v5409, %v5409
    %v5474 = vpack.c.b16 %v5410, %v5410
    %v5475 = vpack.c.b16 %v5411, %v5411
    %v5476 = vpack.c.b16 %v5412, %v5412
    %v5477 = vpack.c.b16 %v5413, %v5413
    %v5478 = vpack.c.b16 %v5414, %v5414
    %v5479 = vpack.c.b16 %v5415, %v5415
    %v5480 = vpack.c.b16 %v5416, %v5416
    %v5481 = vpack.c.b16 %v5417, %v5417
    %v5482 = vpack.c.b16 %v5418, %v5418
    %v5483 = vpack.c.b16 %v5419, %v5419
    %v5484 = vpack.c.b16 %v5420, %v5420
    %v5485 = vpack.c.b16 %v5421, %v5421
    %v5486 = vpack.c.b16 %v5422, %v5422
    %v5487 = vpack.c.b16 %v5423, %v5423
    %v5488 = vpack.c.b16 %v5424, %v5424
    %v5489 = vpack.c.b16 %v5425, %v5425
    %v5490 = vpack.c.b16 %v5426, %v5426
    %vm5555 = vcmask 125952
    %5556 = vst.msk [vmem:[#allocation7] sm:$0xf] %vm5555, %v5427
    %5557 = vst.msk [vmem:[#allocation7 + $0x4] sm:$0xf] %vm5555, %v5428
    %5558 = vst.msk [vmem:[#allocation7 + $0x8] sm:$0xf] %vm5555, %v5429
    %5559 = vst.msk [vmem:[#allocation7 + $0xc] sm:$0xf] %vm5555, %v5430
    %5560 = vst.msk [vmem:[#allocation7 + $0x10] sm:$0xf] %vm5555, %v5431
    %5561 = vst.msk [vmem:[#allocation7 + $0x14] sm:$0xf] %vm5555, %v5432
    %5562 = vst.msk [vmem:[#allocation7 + $0x18] sm:$0xf] %vm5555, %v5433
    %5563 = vst.msk [vmem:[#allocation7 + $0x1c] sm:$0xf] %vm5555, %v5434
    %5564 = vst.msk [vmem:[#allocation7 + $0x20] sm:$0xf] %vm5555, %v5435
    %5565 = vst.msk [vmem:[#allocation7 + $0x24] sm:$0xf] %vm5555, %v5436
    %5566 = vst.msk [vmem:[#allocation7 + $0x28] sm:$0xf] %vm5555, %v5437
    %5567 = vst.msk [vmem:[#allocation7 + $0x2c] sm:$0xf] %vm5555, %v5438
    %5568 = vst.msk [vmem:[#allocation7 + $0x30] sm:$0xf] %vm5555, %v5439
    %5569 = vst.msk [vmem:[#allocation7 + $0x34] sm:$0xf] %vm5555, %v5440
    %5570 = vst.msk [vmem:[#allocation7 + $0x38] sm:$0xf] %vm5555, %v5441
    %5571 = vst.msk [vmem:[#allocation7 + $0x3c] sm:$0xf] %vm5555, %v5442
    %5572 = vst.msk [vmem:[#allocation7 + $0x40] sm:$0xf] %vm5555, %v5443
    %5573 = vst.msk [vmem:[#allocation7 + $0x44] sm:$0xf] %vm5555, %v5444
    %5574 = vst.msk [vmem:[#allocation7 + $0x48] sm:$0xf] %vm5555, %v5445
    %5575 = vst.msk [vmem:[#allocation7 + $0x4c] sm:$0xf] %vm5555, %v5446
    %5576 = vst.msk [vmem:[#allocation7 + $0x50] sm:$0xf] %vm5555, %v5447
    %5577 = vst.msk [vmem:[#allocation7 + $0x54] sm:$0xf] %vm5555, %v5448
    %5578 = vst.msk [vmem:[#allocation7 + $0x58] sm:$0xf] %vm5555, %v5449
    %5579 = vst.msk [vmem:[#allocation7 + $0x5c] sm:$0xf] %vm5555, %v5450
    %5580 = vst.msk [vmem:[#allocation7 + $0x60] sm:$0xf] %vm5555, %v5451
    %5581 = vst.msk [vmem:[#allocation7 + $0x64] sm:$0xf] %vm5555, %v5452
    %5582 = vst.msk [vmem:[#allocation7 + $0x68] sm:$0xf] %vm5555, %v5453
    %5583 = vst.msk [vmem:[#allocation7 + $0x6c] sm:$0xf] %vm5555, %v5454
    %5584 = vst.msk [vmem:[#allocation7 + $0x70] sm:$0xf] %vm5555, %v5455
    %5585 = vst.msk [vmem:[#allocation7 + $0x74] sm:$0xf] %vm5555, %v5456
    %5586 = vst.msk [vmem:[#allocation7 + $0x78] sm:$0xf] %vm5555, %v5457
    %5587 = vst.msk [vmem:[#allocation7 + $0x7c] sm:$0xf] %vm5555, %v5458
    %5588 = vst.msk [vmem:[#allocation7 + $0x80] sm:$0xf] %vm5555, %v5459
    %5589 = vst.msk [vmem:[#allocation7 + $0x84] sm:$0xf] %vm5555, %v5460
    %5590 = vst.msk [vmem:[#allocation7 + $0x88] sm:$0xf] %vm5555, %v5461
    %5591 = vst.msk [vmem:[#allocation7 + $0x8c] sm:$0xf] %vm5555, %v5462
    %5592 = vst.msk [vmem:[#allocation7 + $0x90] sm:$0xf] %vm5555, %v5463
    %5593 = vst.msk [vmem:[#allocation7 + $0x94] sm:$0xf] %vm5555, %v5464
    %5594 = vst.msk [vmem:[#allocation7 + $0x98] sm:$0xf] %vm5555, %v5465
    %5595 = vst.msk [vmem:[#allocation7 + $0x9c] sm:$0xf] %vm5555, %v5466
    %5596 = vst.msk [vmem:[#allocation7 + $0xa0] sm:$0xf] %vm5555, %v5467
    %5597 = vst.msk [vmem:[#allocation7 + $0xa4] sm:$0xf] %vm5555, %v5468
    %5598 = vst.msk [vmem:[#allocation7 + $0xa8] sm:$0xf] %vm5555, %v5469
    %5599 = vst.msk [vmem:[#allocation7 + $0xac] sm:$0xf] %vm5555, %v5470
    %5600 = vst.msk [vmem:[#allocation7 + $0xb0] sm:$0xf] %vm5555, %v5471
    %5601 = vst.msk [vmem:[#allocation7 + $0xb4] sm:$0xf] %vm5555, %v5472
    %5602 = vst.msk [vmem:[#allocation7 + $0xb8] sm:$0xf] %vm5555, %v5473
    %5603 = vst.msk [vmem:[#allocation7 + $0xbc] sm:$0xf] %vm5555, %v5474
    %5604 = vst.msk [vmem:[#allocation7 + $0xc0] sm:$0xf] %vm5555, %v5475
    %5605 = vst.msk [vmem:[#allocation7 + $0xc4] sm:$0xf] %vm5555, %v5476
    %5606 = vst.msk [vmem:[#allocation7 + $0xc8] sm:$0xf] %vm5555, %v5477
    %5607 = vst.msk [vmem:[#allocation7 + $0xcc] sm:$0xf] %vm5555, %v5478
    %5608 = vst.msk [vmem:[#allocation7 + $0xd0] sm:$0xf] %vm5555, %v5479
    %5609 = vst.msk [vmem:[#allocation7 + $0xd4] sm:$0xf] %vm5555, %v5480
    %5610 = vst.msk [vmem:[#allocation7 + $0xd8] sm:$0xf] %vm5555, %v5481
    %5611 = vst.msk [vmem:[#allocation7 + $0xdc] sm:$0xf] %vm5555, %v5482
    %5612 = vst.msk [vmem:[#allocation7 + $0xe0] sm:$0xf] %vm5555, %v5483
    %5613 = vst.msk [vmem:[#allocation7 + $0xe4] sm:$0xf] %vm5555, %v5484
    %5614 = vst.msk [vmem:[#allocation7 + $0xe8] sm:$0xf] %vm5555, %v5485
    %5615 = vst.msk [vmem:[#allocation7 + $0xec] sm:$0xf] %vm5555, %v5486
    %5616 = vst.msk [vmem:[#allocation7 + $0xf0] sm:$0xf] %vm5555, %v5487
    %5617 = vst.msk [vmem:[#allocation7 + $0xf4] sm:$0xf] %vm5555, %v5488
    %5618 = vst.msk [vmem:[#allocation7 + $0xf8] sm:$0xf] %vm5555, %v5489
    %5619 = vst.msk [vmem:[#allocation7 + $0xfc] sm:$0xf] %vm5555, %v5490
    // Predicated region
    $region34: #{tpu_custom_call.1} parent=1 // pred_check
      _
    $region35: #{tpu_custom_call.1} parent=1 // pred_check_branch
      %5621 = sbr.rel (0) target = $region37
    $region36: #{tpu_custom_call.1} parent=1 // pred_region
      %s5623 = ssub.s32 4096, 4096
      %5624 = vsyncadd [#allocation6], %s5623
      %s5625 = sshll.u32 [#allocation7], 4
      %s5626 = int_to_ptr.vmem [resolvable:$true] %s5625
      %5631 = dma.vmem_to_hbm [thread:$0]  %s5626, 4096, %s7, [#allocation6], 64, 64, 4
    $region37: #{tpu_custom_call.1} parent=1 // pred_fallthru
      _
    // Predicated region
    $region38: #{tpu_custom_call.1} parent=1 // pred_check
      _
    $region39: #{tpu_custom_call.1} parent=1 // pred_check_branch
      %5633 = sbr.rel (0) target = $region41
    $region40: #{tpu_custom_call.1} parent=1 // pred_region
      %5634 = dma.done [#allocation6], 4096
    $region41: #{tpu_custom_call.1} parent=1 // pred_fallthru
      _
    %5635 = vsyncpa [#allocation5], 1
    %5636 = vsyncpa [#allocation6], 1

</llo_original>
